<compile_context>
chip_gen: v7x
topology: tpu7x:2x2x1
jax: 0.10.0
libtpu: 0.0.40
codegen_flags: <defaults>
</compile_context>

<pallas_src>
import math
from functools import partial

import jax
import jax.numpy as jnp
from jax import lax
from jax.experimental import pallas as pl
from jax.experimental.pallas import tpu as pltpu


def _round_up(x, m):
    return ((x + m - 1) // m) * m


# -----------------------------------------------------------------------------
# Pallas kernel: tiled matmul, f32 accumulator, fused bias / GELU epilogue
# -----------------------------------------------------------------------------
def _matmul_kernel(x_ref, w_ref, b_ref, o_ref, acc_ref, *, activation):
    @pl.when(pl.program_id(2) == 0)
    def _():
        acc_ref[...] = jnp.zeros_like(acc_ref)

    acc_ref[...] += jnp.dot(x_ref[...], w_ref[...],
                            preferred_element_type=jnp.float32)

    @pl.when(pl.program_id(2) == pl.num_programs(2) - 1)
    def _():
        out = acc_ref[...] + b_ref[...]
        if activation == "gelu":
            out = 0.5 * out * (1.0 + jnp.tanh(
                0.7978845608028654 * (out + 0.044715 * out * out * out)))
        o_ref[...] = out.astype(o_ref.dtype)


def linear(x, w, b, activation=None, compute_dtype=jnp.bfloat16,
           tm=256, tn=256, tk=512):
    """y = act(x @ w + b).  x: (..., K), w: (K, N) [torch weight transposed], b: (N,).
    Tiled over (M, N, K) with a resident f32 accumulator; operands cast to bf16,
    bias add (+ optional tanh-GELU) fused into the matmul epilogue."""
    *lead, K = x.shape
    N = w.shape[1]
    M = math.prod(lead) if lead else 1
    out_dtype = x.dtype

    x2 = x.reshape(M, K)
    tm = min(tm, _round_up(M, 8))
    tn = min(tn, _round_up(N, 128))
    tk = min(tk, _round_up(K, 128))
    Mp, Np, Kp = _round_up(M, tm), _round_up(N, tn), _round_up(K, tk)

    if (Mp, Kp) != (M, K):
        x2 = jnp.pad(x2, ((0, Mp - M), (0, Kp - K)))
    if (Kp, Np) != (K, N):
        w = jnp.pad(w, ((0, Kp - K), (0, Np - N)))
    if Np != N:
        b = jnp.pad(b, ((0, Np - N),))
    x2 = x2.astype(compute_dtype)
    wp = w.astype(compute_dtype)
    bp = b.reshape(1, Np).astype(jnp.float32)

    out = pl.pallas_call(
        partial(_matmul_kernel, activation=activation),
        out_shape=jax.ShapeDtypeStruct((Mp, Np), out_dtype),
        grid=(Mp // tm, Np // tn, Kp // tk),
        in_specs=[pl.BlockSpec((tm, tk), lambda i, j, k: (i, k)),
                  pl.BlockSpec((tk, tn), lambda i, j, k: (k, j)),
                  pl.BlockSpec((1, tn), lambda i, j, k: (0, j))],
        out_specs=pl.BlockSpec((tm, tn), lambda i, j, k: (i, j)),
        scratch_shapes=[pltpu.VMEM((tm, tn), jnp.float32)],
        compiler_params=pltpu.CompilerParams(
            dimension_semantics=("parallel", "parallel", "arbitrary")),
    )(x2, wp, bp)
    return out[:M, :N].reshape(*lead, N)


# -----------------------------------------------------------------------------
# Pallas kernel: flash attention (online softmax, tiled KV axis)
# -----------------------------------------------------------------------------
def _flash_kernel(q_ref, k_ref, v_ref, bias_ref, o_ref, m_sc, l_sc, acc_sc):
    kv = pl.program_id(3)

    @pl.when(kv == 0)
    def _():
        m_sc[...] = jnp.full_like(m_sc, -jnp.inf)
        l_sc[...] = jnp.zeros_like(l_sc)
        acc_sc[...] = jnp.zeros_like(acc_sc)

    q = q_ref[...]                       # (tq, D) bf16
    k = k_ref[...]                       # (tk, D) bf16
    v = v_ref[...]                       # (tk, D) bf16
    scale = 1.0 / math.sqrt(q.shape[-1])
    s = lax.dot_general(q, k, (((1,), (1,)), ((), ())),
                        preferred_element_type=jnp.float32) * scale
    s = s + bias_ref[...]                # (tq, tk) + (1, tk) additive key mask

    m_prev = m_sc[...]
    m_new = jnp.maximum(m_prev, jnp.max(s, axis=-1, keepdims=True))
    alpha = jnp.exp(m_prev - m_new)
    p = jnp.exp(s - m_new)
    l_sc[...] = alpha * l_sc[...] + jnp.sum(p, axis=-1, keepdims=True)
    acc_sc[...] = alpha * acc_sc[...] + jnp.dot(
        p.astype(v.dtype), v, preferred_element_type=jnp.float32)
    m_sc[...] = m_new

    @pl.when(kv == pl.num_programs(3) - 1)
    def _():
        o_ref[...] = (acc_sc[...] *
                      pl.reciprocal(l_sc[...], approx=True)).astype(o_ref.dtype)


def sdpa(q, k, v, bias, compute_dtype=jnp.bfloat16, tile=128):
    """Masked scaled-dot-product attention.
    q, k, v: (B, H, L, D); bias: (B, 1, L) additive key mask (0 attend, -1e30 masked).
    Returns the head-merged result (B, L, H*D)."""
    B, H, L, D = q.shape
    out_dtype = q.dtype
    t = tile if L >= tile else _round_up(L, 8)
    Lp = _round_up(L, t)
    if Lp != L:
        pad = Lp - L
        q = jnp.pad(q, ((0, 0), (0, 0), (0, pad), (0, 0)))
        k = jnp.pad(k, ((0, 0), (0, 0), (0, pad), (0, 0)))
        v = jnp.pad(v, ((0, 0), (0, 0), (0, pad), (0, 0)))
        bias = jnp.pad(bias, ((0, 0), (0, 0), (0, pad)), constant_values=-1e30)
    qc = q.astype(compute_dtype)
    kc = k.astype(compute_dtype)
    vc = v.astype(compute_dtype)
    bias = bias.astype(jnp.float32)

    nt = Lp // t
    q_spec = pl.BlockSpec((None, None, t, D), lambda b, h, qi, kv: (b, h, qi, 0))
    kv_spec = pl.BlockSpec((None, None, t, D), lambda b, h, qi, kv: (b, h, kv, 0))

    # Lane-dense output: when the head dim is a 128-lane multiple (real Flux:
    # D=128), write each head's tile straight into its column slice of a
    # (B, L, H*D) slab -> unmasked vst + no XLA transpose afterwards.
    lane_dense = (D % 128 == 0)
    if lane_dense:
        out_shape = jax.ShapeDtypeStruct((B, Lp, H * D), out_dtype)
        out_spec = pl.BlockSpec((None, t, D), lambda b, h, qi, kv: (b, qi, h))
    else:
        out_shape = jax.ShapeDtypeStruct((B, H, Lp, D), out_dtype)
        out_spec = pl.BlockSpec((None, None, t, D),
                                lambda b, h, qi, kv: (b, h, qi, 0))

    out = pl.pallas_call(
        _flash_kernel,
        out_shape=out_shape,
        grid=(B, H, nt, nt),
        in_specs=[q_spec, kv_spec, kv_spec,
                  pl.BlockSpec((None, 1, t), lambda b, h, qi, kv: (b, 0, kv))],
        out_specs=out_spec,
        scratch_shapes=[pltpu.VMEM((t, 1), jnp.float32),
                        pltpu.VMEM((t, 1), jnp.float32),
                        pltpu.VMEM((t, D), jnp.float32)],
        compiler_params=pltpu.CompilerParams(
            dimension_semantics=("parallel", "parallel", "parallel", "arbitrary")),
    )(qc, kc, vc, bias)

    if lane_dense:
        return out[:, :L, :]
    out = out[:, :, :L, :]
    return jnp.transpose(out, (0, 2, 1, 3)).reshape(B, L, H * D)


# -----------------------------------------------------------------------------
# Elementwise / embedding glue (plain JAX)
# -----------------------------------------------------------------------------
def silu(x):
    return x * jax.nn.sigmoid(x)


def layer_norm(x, eps=1e-6):
    x32 = x.astype(jnp.float32)
    mu = jnp.mean(x32, axis=-1, keepdims=True)
    var = jnp.mean(jnp.square(x32 - mu), axis=-1, keepdims=True)
    return ((x32 - mu) * lax.rsqrt(var + eps)).astype(x.dtype)


def rms_norm(x, scale, eps=1e-6):
    x32 = x.astype(jnp.float32)
    rrms = lax.rsqrt(jnp.mean(jnp.square(x32), axis=-1, keepdims=True) + eps)
    return (x32 * rrms).astype(x.dtype) * scale


def timestep_embedding(t, dim, max_period=10000, time_factor=1000.0):
    t = time_factor * t
    half = dim // 2
    freqs = jnp.exp(-math.log(max_period) * jnp.arange(half, dtype=jnp.float32) / half)
    args = t[:, None].astype(jnp.float32) * freqs[None]
    return jnp.concatenate([jnp.cos(args), jnp.sin(args)], axis=-1)


def rope(pos, dim, theta):
    scale = jnp.arange(0, dim, 2, dtype=jnp.float32) / dim
    omega = 1.0 / (theta ** scale)
    out = pos[..., None].astype(jnp.float32) * omega          # (B, L, dim//2)
    out = jnp.stack([jnp.cos(out), -jnp.sin(out), jnp.sin(out), jnp.cos(out)], axis=-1)
    return out.reshape(*out.shape[:-1], 2, 2)                 # (B, L, dim//2, 2, 2)


def embed_nd(ids, axes_dim, theta):
    n_axes = ids.shape[-1]
    emb = jnp.concatenate(
        [rope(ids[..., i], axes_dim[i], theta) for i in range(n_axes)], axis=-3)
    return emb[:, None]                                       # (B, 1, L, pe_dim//2, 2, 2)


def apply_rope(xq, xk, freqs_cis):
    # TODO(synk): fuse RoPE (pltpu.roll) and QK RMSNorm into the attention kernel
    # to kill this extra HBM round trip at real Flux sizes.
    B, H, L, D = xq.shape
    xq_ = xq.astype(jnp.float32).reshape(B, H, L, D // 2, 1, 2)
    xk_ = xk.astype(jnp.float32).reshape(B, H, L, D // 2, 1, 2)
    xq_out = freqs_cis[..., 0] * xq_[..., 0] + freqs_cis[..., 1] * xq_[..., 1]
    xk_out = freqs_cis[..., 0] * xk_[..., 0] + freqs_cis[..., 1] * xk_[..., 1]
    return (xq_out.reshape(B, H, L, D).astype(xq.dtype),
            xk_out.reshape(B, H, L, D).astype(xk.dtype))


def attention(q, k, v, pe, bias):
    q, k = apply_rope(q, k, pe)
    return sdpa(q, k, v, bias)            # (B, L, H*D)


def split_qkv(qkv, num_heads):
    B, L, three_h = qkv.shape
    D = three_h // (3 * num_heads)
    qkv = qkv.reshape(B, L, 3, num_heads, D)
    qkv = jnp.transpose(qkv, (2, 0, 3, 1, 4))                 # (3, B, H, L, D)
    return qkv[0], qkv[1], qkv[2]


def mask_to_bias(mask):
    # boolean/0-1 key mask (B, L) -> additive bias (B, 1, L); 1 = attend
    return jnp.where(mask > 0, 0.0, -1e30).astype(jnp.float32)[:, None, :]


# -----------------------------------------------------------------------------
# Parameter init (deterministic, synthetic)
# -----------------------------------------------------------------------------
class KeyGen:
    def __init__(self, key):
        self.key = key

    def __call__(self):
        self.key, sub = jax.random.split(self.key)
        return sub


def init_linear(kg, in_dim, out_dim, bias=True):
    w = jax.random.normal(kg(), (in_dim, out_dim), jnp.float32) * 0.02
    b = (jax.random.normal(kg(), (out_dim,), jnp.float32) * 0.02
         if bias else jnp.zeros((out_dim,), jnp.float32))
    return {"w": w, "b": b}


def init_mlp_embedder(kg, in_dim, hidden):
    return {"in": init_linear(kg, in_dim, hidden), "out": init_linear(kg, hidden, hidden)}


def init_double_block(kg, hidden, num_heads, mlp_ratio, qkv_bias):
    head_dim = hidden // num_heads
    mlp_hidden = int(hidden * mlp_ratio)

    def stream():
        return {
            "mod": init_linear(kg, hidden, 6 * hidden),
            "qkv": init_linear(kg, hidden, 3 * hidden, bias=qkv_bias),
            "q_scale": jnp.ones((head_dim,), jnp.float32),
            "k_scale": jnp.ones((head_dim,), jnp.float32),
            "proj": init_linear(kg, hidden, hidden),
            "mlp0": init_linear(kg, hidden, mlp_hidden),
            "mlp1": init_linear(kg, mlp_hidden, hidden),
        }

    return {"img": stream(), "txt": stream()}


def init_single_block(kg, hidden, num_heads, mlp_ratio):
    head_dim = hidden // num_heads
    mlp_hidden = int(hidden * mlp_ratio)
    return {
        "mod": init_linear(kg, hidden, 3 * hidden),
        "linear1": init_linear(kg, hidden, 3 * hidden + mlp_hidden),
        "linear2": init_linear(kg, hidden + mlp_hidden, hidden),
        "q_scale": jnp.ones((head_dim,), jnp.float32),
        "k_scale": jnp.ones((head_dim,), jnp.float32),
    }


def init_flux(key, cfg):
    kg = KeyGen(key)
    H = cfg["hidden_size"]
    p = {
        "img_in": init_linear(kg, cfg["in_channels"], H),
        "time_in": init_mlp_embedder(kg, 256, H),
        "vector_in": init_mlp_embedder(kg, cfg["vec_in_dim"], H),
        "txt_in": init_linear(kg, cfg["context_in_dim"], H),
        "double_blocks": [
            init_double_block(kg, H, cfg["num_heads"], cfg["mlp_ratio"], cfg["qkv_bias"])
            for _ in range(cfg["depth"])],
        "single_blocks": [
            init_single_block(kg, H, cfg["num_heads"], cfg["mlp_ratio"])
            for _ in range(cfg["depth_single_blocks"])],
        "final_layer": {
            "linear": init_linear(kg, H, 1 * 1 * cfg["out_channels"]),
            "adaLN": init_linear(kg, H, 2 * H),
        },
    }
    if cfg["guidance_embed"]:
        p["guidance_in"] = init_mlp_embedder(kg, 256, H)
    return p


# -----------------------------------------------------------------------------
# Flux forward (composed from Pallas kernels + glue)
# -----------------------------------------------------------------------------
def dense(x, w, b):
    # Tiny (batch-row) matmuls stay in XLA: 2-row M is < 1 sublane of a vreg and
    # per-pallas_call overhead dominates.
    return jnp.dot(x, w) + b


def mlp_embedder(p, x):
    return dense(silu(dense(x, p["in"]["w"], p["in"]["b"])), p["out"]["w"], p["out"]["b"])


def modulation(p, vec, n_chunks):
    out = dense(silu(vec), p["w"], p["b"])[:, None, :]
    return jnp.split(out, n_chunks, axis=-1)


def double_block(p, img, txt, vec, pe, img_mask, txt_mask, num_heads):
    L_txt = txt.shape[1]

    i_sh1, i_sc1, i_g1, i_sh2, i_sc2, i_g2 = modulation(p["img"]["mod"], vec, 6)
    t_sh1, t_sc1, t_g1, t_sh2, t_sc2, t_g2 = modulation(p["txt"]["mod"], vec, 6)

    def prep(sp, x, shift, scale):
        xm = (1.0 + scale) * layer_norm(x) + shift
        q, k, v = split_qkv(linear(xm, sp["qkv"]["w"], sp["qkv"]["b"]), num_heads)
        return rms_norm(q, sp["q_scale"]), rms_norm(k, sp["k_scale"]), v

    img_q, img_k, img_v = prep(p["img"], img, i_sh1, i_sc1)
    txt_q, txt_k, txt_v = prep(p["txt"], txt, t_sh1, t_sc1)

    q = jnp.concatenate([txt_q, img_q], axis=2)
    k = jnp.concatenate([txt_k, img_k], axis=2)
    v = jnp.concatenate([txt_v, img_v], axis=2)

    bias = mask_to_bias(jnp.concatenate([txt_mask, img_mask], axis=1))
    attn = attention(q, k, v, pe, bias)
    txt_attn, img_attn = attn[:, :L_txt], attn[:, L_txt:]

    def post(sp, x, x_attn, g1, sh2, sc2, g2):
        x = x + g1 * linear(x_attn, sp["proj"]["w"], sp["proj"]["b"])
        mlp_in = (1.0 + sc2) * layer_norm(x) + sh2
        h = linear(mlp_in, sp["mlp0"]["w"], sp["mlp0"]["b"], activation="gelu")
        return x + g2 * linear(h, sp["mlp1"]["w"], sp["mlp1"]["b"])

    img = post(p["img"], img, img_attn, i_g1, i_sh2, i_sc2, i_g2)
    txt = post(p["txt"], txt, txt_attn, t_g1, t_sh2, t_sc2, t_g2)
    return img, txt


def single_block(p, x, vec, pe, attn_mask, num_heads):
    B, L, Hs = x.shape
    sh, sc, gate = modulation(p["mod"], vec, 3)
    x_mod = (1.0 + sc) * layer_norm(x) + sh
    # Split linear1 into the QKV part and the MLP part so the tanh-GELU can be
    # fused into the MLP matmul epilogue (identical math to slicing afterwards).
    w1, b1 = p["linear1"]["w"], p["linear1"]["b"]
    qkv = linear(x_mod, w1[:, :3 * Hs], b1[:3 * Hs])
    mlp_act = linear(x_mod, w1[:, 3 * Hs:], b1[3 * Hs:], activation="gelu")
    q, k, v = split_qkv(qkv, num_heads)
    q = rms_norm(q, p["q_scale"])
    k = rms_norm(k, p["k_scale"])
    attn = attention(q, k, v, pe, mask_to_bias(attn_mask))
    out = linear(jnp.concatenate([attn, mlp_act], axis=2),
                 p["linear2"]["w"], p["linear2"]["b"])
    return x + gate * out


def last_layer(p, x, vec):
    mod = dense(silu(vec), p["adaLN"]["w"], p["adaLN"]["b"])
    shift, scale = jnp.split(mod, 2, axis=1)
    x = (1.0 + scale[:, None, :]) * layer_norm(x) + shift[:, None, :]
    return linear(x, p["linear"]["w"], p["linear"]["b"])


def flux_forward(params, cfg, img, img_ids, txt, txt_ids, timesteps, y,
                 txt_mask, img_mask, guidance=None):
    img = linear(img, params["img_in"]["w"], params["img_in"]["b"])
    vec = mlp_embedder(params["time_in"], timestep_embedding(timesteps, 256))
    if cfg["guidance_embed"]:
        vec = vec + mlp_embedder(params["guidance_in"], timestep_embedding(guidance, 256))
    vec = vec + mlp_embedder(params["vector_in"], y)
    txt = linear(txt, params["txt_in"]["w"], params["txt_in"]["b"])

    ids = jnp.concatenate([txt_ids, img_ids], axis=1)
    pe = embed_nd(ids, cfg["axes_dim"], cfg["theta"])

    for blk in params["double_blocks"]:
        img, txt = double_block(blk, img, txt, vec, pe, img_mask, txt_mask,
                                cfg["num_heads"])

    x = jnp.concatenate([txt, img], axis=1)
    attn_mask = jnp.concatenate([txt_mask, img_mask], axis=1)
    for blk in params["single_blocks"]:
        x = single_block(blk, x, vec, pe, attn_mask, cfg["num_heads"])

    img = x[:, txt.shape[1]:, ...]
    return last_layer(params["final_layer"], img, vec)


# -----------------------------------------------------------------------------
if __name__ == "__main__":
    cfg = dict(in_channels=16, out_channels=16, vec_in_dim=32, context_in_dim=32,
               hidden_size=128, mlp_ratio=4.0, num_heads=4, depth=1,
               depth_single_blocks=1, axes_dim=[8, 12, 12], theta=10000,
               qkv_bias=True, guidance_embed=False)
    assert cfg["hidden_size"] % cfg["num_heads"] == 0
    assert sum(cfg["axes_dim"]) == cfg["hidden_size"] // cfg["num_heads"]

    params = init_flux(jax.random.PRNGKey(0), cfg)

    B, L_img, L_txt = 2, 16, 8
    ks = jax.random.split(jax.random.PRNGKey(0), 8)
    img = jax.random.normal(ks[0], (B, L_img, cfg["in_channels"]), jnp.float32)
    txt = jax.random.normal(ks[1], (B, L_txt, cfg["context_in_dim"]), jnp.float32)
    y = jax.random.normal(ks[2], (B, cfg["vec_in_dim"]), jnp.float32)
    timesteps = jax.random.uniform(ks[3], (B,), jnp.float32)

    rows = (jnp.arange(L_img) // 4).astype(jnp.float32)
    cols = (jnp.arange(L_img) % 4).astype(jnp.float32)
    img_ids = jnp.broadcast_to(
        jnp.stack([jnp.zeros((L_img,), jnp.float32), rows, cols], axis=-1),
        (B, L_img, 3))
    txt_ids = jnp.zeros((B, L_txt, 3), jnp.float32)

    # masks: 1 = attend, 0 = masked key position (last txt token masked out)
    txt_mask = jnp.ones((B, L_txt), jnp.float32).at[:, -1].set(0.0)
    img_mask = jnp.ones((B, L_img), jnp.float32)

    fwd = jax.jit(partial(flux_forward, params, cfg))
    out = fwd(img, img_ids, txt, txt_ids, timesteps, y, txt_mask, img_mask)
    out = jax.block_until_ready(out)

    assert out.shape == (B, L_img, cfg["out_channels"]), out.shape
    assert bool(jnp.all(jnp.isfinite(out)))
    print("KERNEL_OK")
</pallas_src>

<mosaic_0001>
module attributes {stable_mosaic.version = 11 : i64} {
  func.func @_matmul_kernel(%arg0: i32, %arg1: i32, %arg2: i32, %arg3: memref<32x128xbf16, #tpu.memory_space<vmem>>, %arg4: memref<128x128xbf16, #tpu.memory_space<vmem>>, %arg5: memref<1x128xf32, #tpu.memory_space<vmem>>, %arg6: memref<32x128xf32, #tpu.memory_space<vmem>>, %arg7: memref<32x128xf32, #tpu.memory_space<vmem>>) attributes {dimension_semantics = [#tpu.dimension_semantics<parallel>, #tpu.dimension_semantics<parallel>, #tpu.dimension_semantics<arbitrary>], iteration_bounds = array<i64: 1, 1, 1>, scalar_prefetch = 0 : i64, scratch_operands = 1 : i64, tpu.core_type = #tpu.core_type<tc>, window_params = [{transform_indices = @transform_0, window_bounds = array<i64: 32, 128>}, {transform_indices = @transform_1, window_bounds = array<i64: 128, 128>}, {transform_indices = @transform_2, window_bounds = array<i64: 1, 128>}, {transform_indices = @transform_3, window_bounds = array<i64: 32, 128>}]} {
    %c0_i32 = arith.constant 0 : i32
    %0 = arith.cmpi eq, %arg2, %c0_i32 : i32
    %1 = arith.extui %0 : i1 to i32
    %c0_i32_0 = arith.constant 0 : i32
    %2 = arith.cmpi ne, %1, %c0_i32_0 : i32
    scf.if %2 {
      %cst_10 = arith.constant 0.000000e+00 : f32
      %12 = vector.broadcast %cst_10 : f32 to vector<32x128xf32>
      %c0_11 = arith.constant 0 : index
      %c0_12 = arith.constant 0 : index
      %13 = vector.load %arg7[%c0_11, %c0_12] : memref<32x128xf32, #tpu.memory_space<vmem>>, vector<32x128xf32>
      tpu.vector_store %arg7[%c0_11, %c0_12], %12 {strides = array<i32>} : memref<32x128xf32, #tpu.memory_space<vmem>>, vector<32x128xf32>,
    } else {
    }
    %c0 = arith.constant 0 : index
    %c0_1 = arith.constant 0 : index
    %3 = vector.load %arg7[%c0, %c0_1] : memref<32x128xf32, #tpu.memory_space<vmem>>, vector<32x128xf32>
    %c0_2 = arith.constant 0 : index
    %c0_3 = arith.constant 0 : index
    %4 = vector.load %arg3[%c0_2, %c0_3] : memref<32x128xbf16, #tpu.memory_space<vmem>>, vector<32x128xbf16>
    %c0_4 = arith.constant 0 : index
    %c0_5 = arith.constant 0 : index
    %5 = vector.load %arg4[%c0_4, %c0_5] : memref<128x128xbf16, #tpu.memory_space<vmem>>, vector<128x128xbf16>
    %cst = arith.constant dense<0.000000e+00> : vector<32x128xf32>
    %6 = tpu.matmul %4, %5, %cst {dimension_numbers = #tpu.dot_dimension_numbers<[1], [0], [0], [1], [0, 0, 1, 1], [], []>} : vector<32x128xbf16>, vector<128x128xbf16>, vector<32x128xf32> -> vector<32x128xf32>
    %7 = arith.addf %3, %6 : vector<32x128xf32>
    %c0_6 = arith.constant 0 : index
    %c0_7 = arith.constant 0 : index
    %8 = vector.load %arg7[%c0_6, %c0_7] : memref<32x128xf32, #tpu.memory_space<vmem>>, vector<32x128xf32>
    tpu.vector_store %arg7[%c0_6, %c0_7], %7 {strides = array<i32>} : memref<32x128xf32, #tpu.memory_space<vmem>>, vector<32x128xf32>,
    %c0_i32_8 = arith.constant 0 : i32
    %9 = arith.cmpi eq, %arg2, %c0_i32_8 : i32
    %10 = arith.extui %9 : i1 to i32
    %c0_i32_9 = arith.constant 0 : i32
    %11 = arith.cmpi ne, %10, %c0_i32_9 : i32
    scf.if %11 {
      %c0_10 = arith.constant 0 : index
      %c0_11 = arith.constant 0 : index
      %12 = vector.load %arg7[%c0_10, %c0_11] : memref<32x128xf32, #tpu.memory_space<vmem>>, vector<32x128xf32>
      %c0_12 = arith.constant 0 : index
      %c0_13 = arith.constant 0 : index
      %13 = vector.load %arg5[%c0_12, %c0_13] : memref<1x128xf32, #tpu.memory_space<vmem>>, vector<1x128xf32>
      %14 = vector.broadcast %13 : vector<1x128xf32> to vector<32x128xf32>
      %15 = arith.addf %12, %14 : vector<32x128xf32>
      %c0_14 = arith.constant 0 : index
      %c0_15 = arith.constant 0 : index
      %16 = vector.load %arg6[%c0_14, %c0_15] : memref<32x128xf32, #tpu.memory_space<vmem>>, vector<32x128xf32>
      tpu.vector_store %arg6[%c0_14, %c0_15], %15 {strides = array<i32>} : memref<32x128xf32, #tpu.memory_space<vmem>>, vector<32x128xf32>,
    } else {
    }
    return
  }
  func.func @transform_0(%arg0: i32, %arg1: i32, %arg2: i32) -> (i32, i32) {
    %c0_i32 = arith.constant 0 : i32
    return %arg0, %arg2 : i32, i32
  }
  func.func @transform_1(%arg0: i32, %arg1: i32, %arg2: i32) -> (i32, i32) {
    %c0_i32 = arith.constant 0 : i32
    return %arg2, %arg1 : i32, i32
  }
  func.func @transform_2(%arg0: i32, %arg1: i32, %arg2: i32) -> (i32, i32) {
    %c0_i32 = arith.constant 0 : i32
    %c0_i32_0 = arith.constant 0 : i32
    return %c0_i32, %arg1 : i32, i32
  }
  func.func @transform_3(%arg0: i32, %arg1: i32, %arg2: i32) -> (i32, i32) {
    %c0_i32 = arith.constant 0 : i32
    return %arg0, %arg1 : i32, i32
  }
}

module attributes {stable_mosaic.version = 11 : i64} {
  func.func @_matmul_kernel(%arg0: i32, %arg1: i32, %arg2: i32, %arg3: memref<32x128xbf16, #tpu.memory_space<vmem>>, %arg4: memref<128x256xbf16, #tpu.memory_space<vmem>>, %arg5: memref<1x256xf32, #tpu.memory_space<vmem>>, %arg6: memref<32x256xf32, #tpu.memory_space<vmem>>, %arg7: memref<32x256xf32, #tpu.memory_space<vmem>>) attributes {dimension_semantics = [#tpu.dimension_semantics<parallel>, #tpu.dimension_semantics<parallel>, #tpu.dimension_semantics<arbitrary>], iteration_bounds = array<i64: 1, 2, 1>, scalar_prefetch = 0 : i64, scratch_operands = 1 : i64, tpu.core_type = #tpu.core_type<tc>, window_params = [{transform_indices = @transform_0, window_bounds = array<i64: 32, 128>}, {transform_indices = @transform_1, window_bounds = array<i64: 128, 256>}, {transform_indices = @transform_2, window_bounds = array<i64: 1, 256>}, {transform_indices = @transform_3, window_bounds = array<i64: 32, 256>}]} {
    %c0_i32 = arith.constant 0 : i32
    %0 = arith.cmpi eq, %arg2, %c0_i32 : i32
    %1 = arith.extui %0 : i1 to i32
    %c0_i32_0 = arith.constant 0 : i32
    %2 = arith.cmpi ne, %1, %c0_i32_0 : i32
    scf.if %2 {
      %cst_10 = arith.constant 0.000000e+00 : f32
      %12 = vector.broadcast %cst_10 : f32 to vector<32x256xf32>
      %c0_11 = arith.constant 0 : index
      %c0_12 = arith.constant 0 : index
      %13 = vector.load %arg7[%c0_11, %c0_12] : memref<32x256xf32, #tpu.memory_space<vmem>>, vector<32x256xf32>
      tpu.vector_store %arg7[%c0_11, %c0_12], %12 {strides = array<i32>} : memref<32x256xf32, #tpu.memory_space<vmem>>, vector<32x256xf32>,
    } else {
    }
    %c0 = arith.constant 0 : index
    %c0_1 = arith.constant 0 : index
    %3 = vector.load %arg7[%c0, %c0_1] : memref<32x256xf32, #tpu.memory_space<vmem>>, vector<32x256xf32>
    %c0_2 = arith.constant 0 : index
    %c0_3 = arith.constant 0 : index
    %4 = vector.load %arg3[%c0_2, %c0_3] : memref<32x128xbf16, #tpu.memory_space<vmem>>, vector<32x128xbf16>
    %c0_4 = arith.constant 0 : index
    %c0_5 = arith.constant 0 : index
    %5 = vector.load %arg4[%c0_4, %c0_5] : memref<128x256xbf16, #tpu.memory_space<vmem>>, vector<128x256xbf16>
    %cst = arith.constant dense<0.000000e+00> : vector<32x256xf32>
    %6 = tpu.matmul %4, %5, %cst {dimension_numbers = #tpu.dot_dimension_numbers<[1], [0], [0], [1], [0, 0, 1, 1], [], []>} : vector<32x128xbf16>, vector<128x256xbf16>, vector<32x256xf32> -> vector<32x256xf32>
    %7 = arith.addf %3, %6 : vector<32x256xf32>
    %c0_6 = arith.constant 0 : index
    %c0_7 = arith.constant 0 : index
    %8 = vector.load %arg7[%c0_6, %c0_7] : memref<32x256xf32, #tpu.memory_space<vmem>>, vector<32x256xf32>
    tpu.vector_store %arg7[%c0_6, %c0_7], %7 {strides = array<i32>} : memref<32x256xf32, #tpu.memory_space<vmem>>, vector<32x256xf32>,
    %c0_i32_8 = arith.constant 0 : i32
    %9 = arith.cmpi eq, %arg2, %c0_i32_8 : i32
    %10 = arith.extui %9 : i1 to i32
    %c0_i32_9 = arith.constant 0 : i32
    %11 = arith.cmpi ne, %10, %c0_i32_9 : i32
    scf.if %11 {
      %c0_10 = arith.constant 0 : index
      %c0_11 = arith.constant 0 : index
      %12 = vector.load %arg7[%c0_10, %c0_11] : memref<32x256xf32, #tpu.memory_space<vmem>>, vector<32x256xf32>
      %c0_12 = arith.constant 0 : index
      %c0_13 = arith.constant 0 : index
      %13 = vector.load %arg5[%c0_12, %c0_13] : memref<1x256xf32, #tpu.memory_space<vmem>>, vector<1x256xf32>
      %14 = vector.broadcast %13 : vector<1x256xf32> to vector<32x256xf32>
      %15 = arith.addf %12, %14 : vector<32x256xf32>
      %c0_14 = arith.constant 0 : index
      %c0_15 = arith.constant 0 : index
      %16 = vector.load %arg6[%c0_14, %c0_15] : memref<32x256xf32, #tpu.memory_space<vmem>>, vector<32x256xf32>
      tpu.vector_store %arg6[%c0_14, %c0_15], %15 {strides = array<i32>} : memref<32x256xf32, #tpu.memory_space<vmem>>, vector<32x256xf32>,
    } else {
    }
    return
  }
  func.func @transform_0(%arg0: i32, %arg1: i32, %arg2: i32) -> (i32, i32) {
    %c0_i32 = arith.constant 0 : i32
    return %arg0, %arg2 : i32, i32
  }
  func.func @transform_1(%arg0: i32, %arg1: i32, %arg2: i32) -> (i32, i32) {
    %c0_i32 = arith.constant 0 : i32
    return %arg2, %arg1 : i32, i32
  }
  func.func @transform_2(%arg0: i32, %arg1: i32, %arg2: i32) -> (i32, i32) {
    %c0_i32 = arith.constant 0 : i32
    %c0_i32_0 = arith.constant 0 : i32
    return %c0_i32, %arg1 : i32, i32
  }
  func.func @transform_3(%arg0: i32, %arg1: i32, %arg2: i32) -> (i32, i32) {
    %c0_i32 = arith.constant 0 : i32
    return %arg0, %arg1 : i32, i32
  }
}

module attributes {stable_mosaic.version = 11 : i64} {
  func.func @_matmul_kernel(%arg0: i32, %arg1: i32, %arg2: i32, %arg3: memref<16x128xbf16, #tpu.memory_space<vmem>>, %arg4: memref<128x128xbf16, #tpu.memory_space<vmem>>, %arg5: memref<1x128xf32, #tpu.memory_space<vmem>>, %arg6: memref<16x128xf32, #tpu.memory_space<vmem>>, %arg7: memref<16x128xf32, #tpu.memory_space<vmem>>) attributes {dimension_semantics = [#tpu.dimension_semantics<parallel>, #tpu.dimension_semantics<parallel>, #tpu.dimension_semantics<arbitrary>], iteration_bounds = array<i64: 1, 1, 1>, scalar_prefetch = 0 : i64, scratch_operands = 1 : i64, tpu.core_type = #tpu.core_type<tc>, window_params = [{transform_indices = @transform_0, window_bounds = array<i64: 16, 128>}, {transform_indices = @transform_1, window_bounds = array<i64: 128, 128>}, {transform_indices = @transform_2, window_bounds = array<i64: 1, 128>}, {transform_indices = @transform_3, window_bounds = array<i64: 16, 128>}]} {
    %c0_i32 = arith.constant 0 : i32
    %0 = arith.cmpi eq, %arg2, %c0_i32 : i32
    %1 = arith.extui %0 : i1 to i32
    %c0_i32_0 = arith.constant 0 : i32
    %2 = arith.cmpi ne, %1, %c0_i32_0 : i32
    scf.if %2 {
      %cst_10 = arith.constant 0.000000e+00 : f32
      %12 = vector.broadcast %cst_10 : f32 to vector<16x128xf32>
      %c0_11 = arith.constant 0 : index
      %c0_12 = arith.constant 0 : index
      %13 = vector.load %arg7[%c0_11, %c0_12] : memref<16x128xf32, #tpu.memory_space<vmem>>, vector<16x128xf32>
      tpu.vector_store %arg7[%c0_11, %c0_12], %12 {strides = array<i32>} : memref<16x128xf32, #tpu.memory_space<vmem>>, vector<16x128xf32>,
    } else {
    }
    %c0 = arith.constant 0 : index
    %c0_1 = arith.constant 0 : index
    %3 = vector.load %arg7[%c0, %c0_1] : memref<16x128xf32, #tpu.memory_space<vmem>>, vector<16x128xf32>
    %c0_2 = arith.constant 0 : index
    %c0_3 = arith.constant 0 : index
    %4 = vector.load %arg3[%c0_2, %c0_3] : memref<16x128xbf16, #tpu.memory_space<vmem>>, vector<16x128xbf16>
    %c0_4 = arith.constant 0 : index
    %c0_5 = arith.constant 0 : index
    %5 = vector.load %arg4[%c0_4, %c0_5] : memref<128x128xbf16, #tpu.memory_space<vmem>>, vector<128x128xbf16>
    %cst = arith.constant dense<0.000000e+00> : vector<16x128xf32>
    %6 = tpu.matmul %4, %5, %cst {dimension_numbers = #tpu.dot_dimension_numbers<[1], [0], [0], [1], [0, 0, 1, 1], [], []>} : vector<16x128xbf16>, vector<128x128xbf16>, vector<16x128xf32> -> vector<16x128xf32>
    %7 = arith.addf %3, %6 : vector<16x128xf32>
    %c0_6 = arith.constant 0 : index
    %c0_7 = arith.constant 0 : index
    %8 = vector.load %arg7[%c0_6, %c0_7] : memref<16x128xf32, #tpu.memory_space<vmem>>, vector<16x128xf32>
    tpu.vector_store %arg7[%c0_6, %c0_7], %7 {strides = array<i32>} : memref<16x128xf32, #tpu.memory_space<vmem>>, vector<16x128xf32>,
    %c0_i32_8 = arith.constant 0 : i32
    %9 = arith.cmpi eq, %arg2, %c0_i32_8 : i32
    %10 = arith.extui %9 : i1 to i32
    %c0_i32_9 = arith.constant 0 : i32
    %11 = arith.cmpi ne, %10, %c0_i32_9 : i32
    scf.if %11 {
      %c0_10 = arith.constant 0 : index
      %c0_11 = arith.constant 0 : index
      %12 = vector.load %arg7[%c0_10, %c0_11] : memref<16x128xf32, #tpu.memory_space<vmem>>, vector<16x128xf32>
      %c0_12 = arith.constant 0 : index
      %c0_13 = arith.constant 0 : index
      %13 = vector.load %arg5[%c0_12, %c0_13] : memref<1x128xf32, #tpu.memory_space<vmem>>, vector<1x128xf32>
      %14 = vector.broadcast %13 : vector<1x128xf32> to vector<16x128xf32>
      %15 = arith.addf %12, %14 : vector<16x128xf32>
      %c0_14 = arith.constant 0 : index
      %c0_15 = arith.constant 0 : index
      %16 = vector.load %arg6[%c0_14, %c0_15] : memref<16x128xf32, #tpu.memory_space<vmem>>, vector<16x128xf32>
      tpu.vector_store %arg6[%c0_14, %c0_15], %15 {strides = array<i32>} : memref<16x128xf32, #tpu.memory_space<vmem>>, vector<16x128xf32>,
    } else {
    }
    return
  }
  func.func @transform_0(%arg0: i32, %arg1: i32, %arg2: i32) -> (i32, i32) {
    %c0_i32 = arith.constant 0 : i32
    return %arg0, %arg2 : i32, i32
  }
  func.func @transform_1(%arg0: i32, %arg1: i32, %arg2: i32) -> (i32, i32) {
    %c0_i32 = arith.constant 0 : i32
    return %arg2, %arg1 : i32, i32
  }
  func.func @transform_2(%arg0: i32, %arg1: i32, %arg2: i32) -> (i32, i32) {
    %c0_i32 = arith.constant 0 : i32
    %c0_i32_0 = arith.constant 0 : i32
    return %c0_i32, %arg1 : i32, i32
  }
  func.func @transform_3(%arg0: i32, %arg1: i32, %arg2: i32) -> (i32, i32) {
    %c0_i32 = arith.constant 0 : i32
    return %arg0, %arg1 : i32, i32
  }
}

module attributes {stable_mosaic.version = 11 : i64} {
  func.func @_matmul_kernel(%arg0: i32, %arg1: i32, %arg2: i32, %arg3: memref<16x128xbf16, #tpu.memory_space<vmem>>, %arg4: memref<128x256xbf16, #tpu.memory_space<vmem>>, %arg5: memref<1x256xf32, #tpu.memory_space<vmem>>, %arg6: memref<16x256xf32, #tpu.memory_space<vmem>>, %arg7: memref<16x256xf32, #tpu.memory_space<vmem>>) attributes {dimension_semantics = [#tpu.dimension_semantics<parallel>, #tpu.dimension_semantics<parallel>, #tpu.dimension_semantics<arbitrary>], iteration_bounds = array<i64: 1, 2, 1>, scalar_prefetch = 0 : i64, scratch_operands = 1 : i64, tpu.core_type = #tpu.core_type<tc>, window_params = [{transform_indices = @transform_0, window_bounds = array<i64: 16, 128>}, {transform_indices = @transform_1, window_bounds = array<i64: 128, 256>}, {transform_indices = @transform_2, window_bounds = array<i64: 1, 256>}, {transform_indices = @transform_3, window_bounds = array<i64: 16, 256>}]} {
    %c0_i32 = arith.constant 0 : i32
    %0 = arith.cmpi eq, %arg2, %c0_i32 : i32
    %1 = arith.extui %0 : i1 to i32
    %c0_i32_0 = arith.constant 0 : i32
    %2 = arith.cmpi ne, %1, %c0_i32_0 : i32
    scf.if %2 {
      %cst_10 = arith.constant 0.000000e+00 : f32
      %12 = vector.broadcast %cst_10 : f32 to vector<16x256xf32>
      %c0_11 = arith.constant 0 : index
      %c0_12 = arith.constant 0 : index
      %13 = vector.load %arg7[%c0_11, %c0_12] : memref<16x256xf32, #tpu.memory_space<vmem>>, vector<16x256xf32>
      tpu.vector_store %arg7[%c0_11, %c0_12], %12 {strides = array<i32>} : memref<16x256xf32, #tpu.memory_space<vmem>>, vector<16x256xf32>,
    } else {
    }
    %c0 = arith.constant 0 : index
    %c0_1 = arith.constant 0 : index
    %3 = vector.load %arg7[%c0, %c0_1] : memref<16x256xf32, #tpu.memory_space<vmem>>, vector<16x256xf32>
    %c0_2 = arith.constant 0 : index
    %c0_3 = arith.constant 0 : index
    %4 = vector.load %arg3[%c0_2, %c0_3] : memref<16x128xbf16, #tpu.memory_space<vmem>>, vector<16x128xbf16>
    %c0_4 = arith.constant 0 : index
    %c0_5 = arith.constant 0 : index
    %5 = vector.load %arg4[%c0_4, %c0_5] : memref<128x256xbf16, #tpu.memory_space<vmem>>, vector<128x256xbf16>
    %cst = arith.constant dense<0.000000e+00> : vector<16x256xf32>
    %6 = tpu.matmul %4, %5, %cst {dimension_numbers = #tpu.dot_dimension_numbers<[1], [0], [0], [1], [0, 0, 1, 1], [], []>} : vector<16x128xbf16>, vector<128x256xbf16>, vector<16x256xf32> -> vector<16x256xf32>
    %7 = arith.addf %3, %6 : vector<16x256xf32>
    %c0_6 = arith.constant 0 : index
    %c0_7 = arith.constant 0 : index
    %8 = vector.load %arg7[%c0_6, %c0_7] : memref<16x256xf32, #tpu.memory_space<vmem>>, vector<16x256xf32>
    tpu.vector_store %arg7[%c0_6, %c0_7], %7 {strides = array<i32>} : memref<16x256xf32, #tpu.memory_space<vmem>>, vector<16x256xf32>,
    %c0_i32_8 = arith.constant 0 : i32
    %9 = arith.cmpi eq, %arg2, %c0_i32_8 : i32
    %10 = arith.extui %9 : i1 to i32
    %c0_i32_9 = arith.constant 0 : i32
    %11 = arith.cmpi ne, %10, %c0_i32_9 : i32
    scf.if %11 {
      %c0_10 = arith.constant 0 : index
      %c0_11 = arith.constant 0 : index
      %12 = vector.load %arg7[%c0_10, %c0_11] : memref<16x256xf32, #tpu.memory_space<vmem>>, vector<16x256xf32>
      %c0_12 = arith.constant 0 : index
      %c0_13 = arith.constant 0 : index
      %13 = vector.load %arg5[%c0_12, %c0_13] : memref<1x256xf32, #tpu.memory_space<vmem>>, vector<1x256xf32>
      %14 = vector.broadcast %13 : vector<1x256xf32> to vector<16x256xf32>
      %15 = arith.addf %12, %14 : vector<16x256xf32>
      %c0_14 = arith.constant 0 : index
      %c0_15 = arith.constant 0 : index
      %16 = vector.load %arg6[%c0_14, %c0_15] : memref<16x256xf32, #tpu.memory_space<vmem>>, vector<16x256xf32>
      tpu.vector_store %arg6[%c0_14, %c0_15], %15 {strides = array<i32>} : memref<16x256xf32, #tpu.memory_space<vmem>>, vector<16x256xf32>,
    } else {
    }
    return
  }
  func.func @transform_0(%arg0: i32, %arg1: i32, %arg2: i32) -> (i32, i32) {
    %c0_i32 = arith.constant 0 : i32
    return %arg0, %arg2 : i32, i32
  }
  func.func @transform_1(%arg0: i32, %arg1: i32, %arg2: i32) -> (i32, i32) {
    %c0_i32 = arith.constant 0 : i32
    return %arg2, %arg1 : i32, i32
  }
  func.func @transform_2(%arg0: i32, %arg1: i32, %arg2: i32) -> (i32, i32) {
    %c0_i32 = arith.constant 0 : i32
    %c0_i32_0 = arith.constant 0 : i32
    return %c0_i32, %arg1 : i32, i32
  }
  func.func @transform_3(%arg0: i32, %arg1: i32, %arg2: i32) -> (i32, i32) {
    %c0_i32 = arith.constant 0 : i32
    return %arg0, %arg1 : i32, i32
  }
}

module attributes {stable_mosaic.version = 11 : i64} {
  func.func @_flash_kernel(%arg0: i32, %arg1: i32, %arg2: i32, %arg3: i32, %arg4: memref<1x1x24x32xbf16, #tpu.memory_space<vmem>>, %arg5: memref<1x1x24x32xbf16, #tpu.memory_space<vmem>>, %arg6: memref<1x1x24x32xbf16, #tpu.memory_space<vmem>>, %arg7: memref<1x1x24xf32, #tpu.memory_space<vmem>>, %arg8: memref<1x1x24x32xf32, #tpu.memory_space<vmem>>, %arg9: memref<24x1xf32, #tpu.memory_space<vmem>>, %arg10: memref<24x1xf32, #tpu.memory_space<vmem>>, %arg11: memref<24x32xf32, #tpu.memory_space<vmem>>) attributes {dimension_semantics = [#tpu.dimension_semantics<parallel>, #tpu.dimension_semantics<parallel>, #tpu.dimension_semantics<parallel>, #tpu.dimension_semantics<arbitrary>], iteration_bounds = array<i64: 2, 4, 1, 1>, scalar_prefetch = 0 : i64, scratch_operands = 3 : i64, tpu.core_type = #tpu.core_type<tc>, window_params = [{transform_indices = @transform_0, window_bounds = array<i64: 1, 1, 24, 32>}, {transform_indices = @transform_1, window_bounds = array<i64: 1, 1, 24, 32>}, {transform_indices = @transform_2, window_bounds = array<i64: 1, 1, 24, 32>}, {transform_indices = @transform_3, window_bounds = array<i64: 1, 1, 24>}, {transform_indices = @transform_4, window_bounds = array<i64: 1, 1, 24, 32>}]} {
    %c0_i32 = arith.constant 0 : i32
    %0 = arith.cmpi eq, %arg3, %c0_i32 : i32
    %1 = arith.extui %0 : i1 to i32
    %c0_i32_0 = arith.constant 0 : i32
    %2 = arith.cmpi ne, %1, %c0_i32_0 : i32
    scf.if %2 {
      %cst_33 = arith.constant 0xFF800000 : f32
      %42 = vector.broadcast %cst_33 : f32 to vector<24x1xf32>
      %c0_34 = arith.constant 0 : index
      %c0_35 = arith.constant 0 : index
      %43 = vector.load %arg9[%c0_34, %c0_35] : memref<24x1xf32, #tpu.memory_space<vmem>>, vector<24x1xf32>
      tpu.vector_store %arg9[%c0_34, %c0_35], %42 {strides = array<i32>} : memref<24x1xf32, #tpu.memory_space<vmem>>, vector<24x1xf32>,
      %cst_36 = arith.constant 0.000000e+00 : f32
      %44 = vector.broadcast %cst_36 : f32 to vector<24x1xf32>
      %c0_37 = arith.constant 0 : index
      %c0_38 = arith.constant 0 : index
      %45 = vector.load %arg10[%c0_37, %c0_38] : memref<24x1xf32, #tpu.memory_space<vmem>>, vector<24x1xf32>
      tpu.vector_store %arg10[%c0_37, %c0_38], %44 {strides = array<i32>} : memref<24x1xf32, #tpu.memory_space<vmem>>, vector<24x1xf32>,
      %cst_39 = arith.constant 0.000000e+00 : f32
      %46 = vector.broadcast %cst_39 : f32 to vector<24x32xf32>
      %c0_40 = arith.constant 0 : index
      %c0_41 = arith.constant 0 : index
      %47 = vector.load %arg11[%c0_40, %c0_41] : memref<24x32xf32, #tpu.memory_space<vmem>>, vector<24x32xf32>
      tpu.vector_store %arg11[%c0_40, %c0_41], %46 {strides = array<i32>} : memref<24x32xf32, #tpu.memory_space<vmem>>, vector<24x32xf32>,
    } else {
    }
    %c0 = arith.constant 0 : index
    %c0_1 = arith.constant 0 : index
    %c0_2 = arith.constant 0 : index
    %c0_3 = arith.constant 0 : index
    %3 = vector.load %arg4[%c0, %c0_1, %c0_2, %c0_3] : memref<1x1x24x32xbf16, #tpu.memory_space<vmem>>, vector<1x1x24x32xbf16>
    %4 = vector.shape_cast %3 : vector<1x1x24x32xbf16> to vector<24x32xbf16>
    %c0_4 = arith.constant 0 : index
    %c0_5 = arith.constant 0 : index
    %c0_6 = arith.constant 0 : index
    %c0_7 = arith.constant 0 : index
    %5 = vector.load %arg5[%c0_4, %c0_5, %c0_6, %c0_7] : memref<1x1x24x32xbf16, #tpu.memory_space<vmem>>, vector<1x1x24x32xbf16>
    %6 = vector.shape_cast %5 : vector<1x1x24x32xbf16> to vector<24x32xbf16>
    %c0_8 = arith.constant 0 : index
    %c0_9 = arith.constant 0 : index
    %c0_10 = arith.constant 0 : index
    %c0_11 = arith.constant 0 : index
    %7 = vector.load %arg6[%c0_8, %c0_9, %c0_10, %c0_11] : memref<1x1x24x32xbf16, #tpu.memory_space<vmem>>, vector<1x1x24x32xbf16>
    %8 = vector.shape_cast %7 : vector<1x1x24x32xbf16> to vector<24x32xbf16>
    %cst = arith.constant dense<0.000000e+00> : vector<24x24xf32>
    %9 = tpu.matmul %4, %6, %cst {dimension_numbers = #tpu.dot_dimension_numbers<[1], [1], [0], [0], [0, 0, 1, 0], [], []>} : vector<24x32xbf16>, vector<24x32xbf16>, vector<24x24xf32> -> vector<24x24xf32>
    %cst_12 = arith.constant 0.176776692 : f32
    %10 = vector.broadcast %cst_12 : f32 to vector<24x24xf32>
    %11 = arith.mulf %9, %10 : vector<24x24xf32>
    %c0_13 = arith.constant 0 : index
    %c0_14 = arith.constant 0 : index
    %c0_15 = arith.constant 0 : index
    %12 = vector.load %arg7[%c0_13, %c0_14, %c0_15] : memref<1x1x24xf32, #tpu.memory_space<vmem>>, vector<1x1x24xf32>
    %13 = vector.shape_cast %12 : vector<1x1x24xf32> to vector<1x24xf32>
    %14 = vector.broadcast %13 : vector<1x24xf32> to vector<24x24xf32>
    %15 = arith.addf %11, %14 : vector<24x24xf32>
    %c0_16 = arith.constant 0 : index
    %c0_17 = arith.constant 0 : index
    %16 = vector.load %arg9[%c0_16, %c0_17] : memref<24x1xf32, #tpu.memory_space<vmem>>, vector<24x1xf32>
    %cst_18 = arith.constant dense<0xFF800000> : vector<24xf32>
    %17 = vector.multi_reduction <maximumf>, %15, %cst_18 [1] : vector<24x24xf32> to vector<24xf32>
    %18 = vector.shape_cast %17 : vector<24xf32> to vector<24x1xf32>
    %19 = arith.maximumf %16, %18 : vector<24x1xf32>
    %20 = arith.subf %16, %19 : vector<24x1xf32>
    %21 = math.exp %20 : vector<24x1xf32>
    %22 = vector.broadcast %19 : vector<24x1xf32> to vector<24x24xf32>
    %23 = arith.subf %15, %22 : vector<24x24xf32>
    %24 = math.exp %23 : vector<24x24xf32>
    %c0_19 = arith.constant 0 : index
    %c0_20 = arith.constant 0 : index
    %25 = vector.load %arg10[%c0_19, %c0_20] : memref<24x1xf32, #tpu.memory_space<vmem>>, vector<24x1xf32>
    %26 = arith.mulf %21, %25 : vector<24x1xf32>
    %cst_21 = arith.constant dense<0.000000e+00> : vector<24xf32>
    %27 = vector.multi_reduction <add>, %24, %cst_21 [1] : vector<24x24xf32> to vector<24xf32>
    %28 = vector.shape_cast %27 : vector<24xf32> to vector<24x1xf32>
    %29 = arith.addf %26, %28 : vector<24x1xf32>
    %c0_22 = arith.constant 0 : index
    %c0_23 = arith.constant 0 : index
    %30 = vector.load %arg10[%c0_22, %c0_23] : memref<24x1xf32, #tpu.memory_space<vmem>>, vector<24x1xf32>
    tpu.vector_store %arg10[%c0_22, %c0_23], %29 {strides = array<i32>} : memref<24x1xf32, #tpu.memory_space<vmem>>, vector<24x1xf32>,
    %c0_24 = arith.constant 0 : index
    %c0_25 = arith.constant 0 : index
    %31 = vector.load %arg11[%c0_24, %c0_25] : memref<24x32xf32, #tpu.memory_space<vmem>>, vector<24x32xf32>
    %32 = vector.broadcast %21 : vector<24x1xf32> to vector<24x32xf32>
    %33 = arith.mulf %32, %31 : vector<24x32xf32>
    %34 = arith.truncf %24 : vector<24x24xf32> to vector<24x24xbf16>
    %cst_26 = arith.constant dense<0.000000e+00> : vector<24x32xf32>
    %35 = tpu.matmul %34, %8, %cst_26 {dimension_numbers = #tpu.dot_dimension_numbers<[1], [0], [0], [1], [0, 0, 1, 1], [], []>} : vector<24x24xbf16>, vector<24x32xbf16>, vector<24x32xf32> -> vector<24x32xf32>
    %36 = arith.addf %33, %35 : vector<24x32xf32>
    %c0_27 = arith.constant 0 : index
    %c0_28 = arith.constant 0 : index
    %37 = vector.load %arg11[%c0_27, %c0_28] : memref<24x32xf32, #tpu.memory_space<vmem>>, vector<24x32xf32>
    tpu.vector_store %arg11[%c0_27, %c0_28], %36 {strides = array<i32>} : memref<24x32xf32, #tpu.memory_space<vmem>>, vector<24x32xf32>,
    %c0_29 = arith.constant 0 : index
    %c0_30 = arith.constant 0 : index
    %38 = vector.load %arg9[%c0_29, %c0_30] : memref<24x1xf32, #tpu.memory_space<vmem>>, vector<24x1xf32>
    tpu.vector_store %arg9[%c0_29, %c0_30], %19 {strides = array<i32>} : memref<24x1xf32, #tpu.memory_space<vmem>>, vector<24x1xf32>,
    %c0_i32_31 = arith.constant 0 : i32
    %39 = arith.cmpi eq, %arg3, %c0_i32_31 : i32
    %40 = arith.extui %39 : i1 to i32
    %c0_i32_32 = arith.constant 0 : i32
    %41 = arith.cmpi ne, %40, %c0_i32_32 : i32
    scf.if %41 {
      %c0_33 = arith.constant 0 : index
      %c0_34 = arith.constant 0 : index
      %42 = vector.load %arg11[%c0_33, %c0_34] : memref<24x32xf32, #tpu.memory_space<vmem>>, vector<24x32xf32>
      %c0_35 = arith.constant 0 : index
      %c0_36 = arith.constant 0 : index
      %43 = vector.load %arg10[%c0_35, %c0_36] : memref<24x1xf32, #tpu.memory_space<vmem>>, vector<24x1xf32>
      %44 = tpu.reciprocal %43 {approx = true} : vector<24x1xf32> -> vector<24x1xf32>
      %45 = vector.broadcast %44 : vector<24x1xf32> to vector<24x32xf32>
      %46 = arith.mulf %42, %45 : vector<24x32xf32>
      %c0_37 = arith.constant 0 : index
      %c0_38 = arith.constant 0 : index
      %c0_39 = arith.constant 0 : index
      %c0_40 = arith.constant 0 : index
      %47 = vector.load %arg8[%c0_37, %c0_38, %c0_39, %c0_40] : memref<1x1x24x32xf32, #tpu.memory_space<vmem>>, vector<1x1x24x32xf32>
      %48 = vector.shape_cast %47 : vector<1x1x24x32xf32> to vector<24x32xf32>
      %49 = vector.shape_cast %46 : vector<24x32xf32> to vector<1x1x24x32xf32>
      tpu.vector_store %arg8[%c0_37, %c0_38, %c0_39, %c0_40], %49 {strides = array<i32>} : memref<1x1x24x32xf32, #tpu.memory_space<vmem>>, vector<1x1x24x32xf32>,
    } else {
    }
    return
  }
  func.func @transform_0(%arg0: i32, %arg1: i32, %arg2: i32, %arg3: i32) -> (i32, i32, i32, i32) {
    %c0_i32 = arith.constant 0 : i32
    %c0_i32_0 = arith.constant 0 : i32
    return %arg0, %arg1, %arg2, %c0_i32 : i32, i32, i32, i32
  }
  func.func @transform_1(%arg0: i32, %arg1: i32, %arg2: i32, %arg3: i32) -> (i32, i32, i32, i32) {
    %c0_i32 = arith.constant 0 : i32
    %c0_i32_0 = arith.constant 0 : i32
    return %arg0, %arg1, %arg3, %c0_i32 : i32, i32, i32, i32
  }
  func.func @transform_2(%arg0: i32, %arg1: i32, %arg2: i32, %arg3: i32) -> (i32, i32, i32, i32) {
    %c0_i32 = arith.constant 0 : i32
    %c0_i32_0 = arith.constant 0 : i32
    return %arg0, %arg1, %arg3, %c0_i32 : i32, i32, i32, i32
  }
  func.func @transform_3(%arg0: i32, %arg1: i32, %arg2: i32, %arg3: i32) -> (i32, i32, i32) {
    %c0_i32 = arith.constant 0 : i32
    %c0_i32_0 = arith.constant 0 : i32
    return %arg0, %c0_i32, %arg3 : i32, i32, i32
  }
  func.func @transform_4(%arg0: i32, %arg1: i32, %arg2: i32, %arg3: i32) -> (i32, i32, i32, i32) {
    %c0_i32 = arith.constant 0 : i32
    %c0_i32_0 = arith.constant 0 : i32
    return %arg0, %arg1, %arg2, %c0_i32 : i32, i32, i32, i32
  }
}

module attributes {stable_mosaic.version = 11 : i64} {
  func.func @_matmul_kernel(%arg0: i32, %arg1: i32, %arg2: i32, %arg3: memref<16x128xbf16, #tpu.memory_space<vmem>>, %arg4: memref<128x256xbf16, #tpu.memory_space<vmem>>, %arg5: memref<1x256xf32, #tpu.memory_space<vmem>>, %arg6: memref<16x256xf32, #tpu.memory_space<vmem>>, %arg7: memref<16x256xf32, #tpu.memory_space<vmem>>) attributes {dimension_semantics = [#tpu.dimension_semantics<parallel>, #tpu.dimension_semantics<parallel>, #tpu.dimension_semantics<arbitrary>], iteration_bounds = array<i64: 1, 2, 1>, scalar_prefetch = 0 : i64, scratch_operands = 1 : i64, tpu.core_type = #tpu.core_type<tc>, window_params = [{transform_indices = @transform_0, window_bounds = array<i64: 16, 128>}, {transform_indices = @transform_1, window_bounds = array<i64: 128, 256>}, {transform_indices = @transform_2, window_bounds = array<i64: 1, 256>}, {transform_indices = @transform_3, window_bounds = array<i64: 16, 256>}]} {
    %c0_i32 = arith.constant 0 : i32
    %0 = arith.cmpi eq, %arg2, %c0_i32 : i32
    %1 = arith.extui %0 : i1 to i32
    %c0_i32_0 = arith.constant 0 : i32
    %2 = arith.cmpi ne, %1, %c0_i32_0 : i32
    scf.if %2 {
      %cst_10 = arith.constant 0.000000e+00 : f32
      %12 = vector.broadcast %cst_10 : f32 to vector<16x256xf32>
      %c0_11 = arith.constant 0 : index
      %c0_12 = arith.constant 0 : index
      %13 = vector.load %arg7[%c0_11, %c0_12] : memref<16x256xf32, #tpu.memory_space<vmem>>, vector<16x256xf32>
      tpu.vector_store %arg7[%c0_11, %c0_12], %12 {strides = array<i32>} : memref<16x256xf32, #tpu.memory_space<vmem>>, vector<16x256xf32>,
    } else {
    }
    %c0 = arith.constant 0 : index
    %c0_1 = arith.constant 0 : index
    %3 = vector.load %arg7[%c0, %c0_1] : memref<16x256xf32, #tpu.memory_space<vmem>>, vector<16x256xf32>
    %c0_2 = arith.constant 0 : index
    %c0_3 = arith.constant 0 : index
    %4 = vector.load %arg3[%c0_2, %c0_3] : memref<16x128xbf16, #tpu.memory_space<vmem>>, vector<16x128xbf16>
    %c0_4 = arith.constant 0 : index
    %c0_5 = arith.constant 0 : index
    %5 = vector.load %arg4[%c0_4, %c0_5] : memref<128x256xbf16, #tpu.memory_space<vmem>>, vector<128x256xbf16>
    %cst = arith.constant dense<0.000000e+00> : vector<16x256xf32>
    %6 = tpu.matmul %4, %5, %cst {dimension_numbers = #tpu.dot_dimension_numbers<[1], [0], [0], [1], [0, 0, 1, 1], [], []>} : vector<16x128xbf16>, vector<128x256xbf16>, vector<16x256xf32> -> vector<16x256xf32>
    %7 = arith.addf %3, %6 : vector<16x256xf32>
    %c0_6 = arith.constant 0 : index
    %c0_7 = arith.constant 0 : index
    %8 = vector.load %arg7[%c0_6, %c0_7] : memref<16x256xf32, #tpu.memory_space<vmem>>, vector<16x256xf32>
    tpu.vector_store %arg7[%c0_6, %c0_7], %7 {strides = array<i32>} : memref<16x256xf32, #tpu.memory_space<vmem>>, vector<16x256xf32>,
    %c0_i32_8 = arith.constant 0 : i32
    %9 = arith.cmpi eq, %arg2, %c0_i32_8 : i32
    %10 = arith.extui %9 : i1 to i32
    %c0_i32_9 = arith.constant 0 : i32
    %11 = arith.cmpi ne, %10, %c0_i32_9 : i32
    scf.if %11 {
      %c0_10 = arith.constant 0 : index
      %c0_11 = arith.constant 0 : index
      %12 = vector.load %arg7[%c0_10, %c0_11] : memref<16x256xf32, #tpu.memory_space<vmem>>, vector<16x256xf32>
      %c0_12 = arith.constant 0 : index
      %c0_13 = arith.constant 0 : index
      %13 = vector.load %arg5[%c0_12, %c0_13] : memref<1x256xf32, #tpu.memory_space<vmem>>, vector<1x256xf32>
      %14 = vector.broadcast %13 : vector<1x256xf32> to vector<16x256xf32>
      %15 = arith.addf %12, %14 : vector<16x256xf32>
      %cst_14 = arith.constant 5.000000e-01 : f32
      %16 = vector.broadcast %cst_14 : f32 to vector<16x256xf32>
      %17 = arith.mulf %16, %15 : vector<16x256xf32>
      %cst_15 = arith.constant 4.471500e-02 : f32
      %18 = vector.broadcast %cst_15 : f32 to vector<16x256xf32>
      %19 = arith.mulf %18, %15 : vector<16x256xf32>
      %20 = arith.mulf %19, %15 : vector<16x256xf32>
      %21 = arith.mulf %20, %15 : vector<16x256xf32>
      %22 = arith.addf %15, %21 : vector<16x256xf32>
      %cst_16 = arith.constant 0.797884583 : f32
      %23 = vector.broadcast %cst_16 : f32 to vector<16x256xf32>
      %24 = arith.mulf %23, %22 : vector<16x256xf32>
      %25 = math.tanh %24 : vector<16x256xf32>
      %cst_17 = arith.constant 1.000000e+00 : f32
      %26 = vector.broadcast %cst_17 : f32 to vector<16x256xf32>
      %27 = arith.addf %26, %25 : vector<16x256xf32>
      %28 = arith.mulf %17, %27 : vector<16x256xf32>
      %c0_18 = arith.constant 0 : index
      %c0_19 = arith.constant 0 : index
      %29 = vector.load %arg6[%c0_18, %c0_19] : memref<16x256xf32, #tpu.memory_space<vmem>>, vector<16x256xf32>
      tpu.vector_store %arg6[%c0_18, %c0_19], %28 {strides = array<i32>} : memref<16x256xf32, #tpu.memory_space<vmem>>, vector<16x256xf32>,
    } else {
    }
    return
  }
  func.func @transform_0(%arg0: i32, %arg1: i32, %arg2: i32) -> (i32, i32) {
    %c0_i32 = arith.constant 0 : i32
    return %arg0, %arg2 : i32, i32
  }
  func.func @transform_1(%arg0: i32, %arg1: i32, %arg2: i32) -> (i32, i32) {
    %c0_i32 = arith.constant 0 : i32
    return %arg2, %arg1 : i32, i32
  }
  func.func @transform_2(%arg0: i32, %arg1: i32, %arg2: i32) -> (i32, i32) {
    %c0_i32 = arith.constant 0 : i32
    %c0_i32_0 = arith.constant 0 : i32
    return %c0_i32, %arg1 : i32, i32
  }
  func.func @transform_3(%arg0: i32, %arg1: i32, %arg2: i32) -> (i32, i32) {
    %c0_i32 = arith.constant 0 : i32
    return %arg0, %arg1 : i32, i32
  }
}

module attributes {stable_mosaic.version = 11 : i64} {
  func.func @_matmul_kernel(%arg0: i32, %arg1: i32, %arg2: i32, %arg3: memref<16x512xbf16, #tpu.memory_space<vmem>>, %arg4: memref<512x128xbf16, #tpu.memory_space<vmem>>, %arg5: memref<1x128xf32, #tpu.memory_space<vmem>>, %arg6: memref<16x128xf32, #tpu.memory_space<vmem>>, %arg7: memref<16x128xf32, #tpu.memory_space<vmem>>) attributes {dimension_semantics = [#tpu.dimension_semantics<parallel>, #tpu.dimension_semantics<parallel>, #tpu.dimension_semantics<arbitrary>], iteration_bounds = array<i64: 1, 1, 1>, scalar_prefetch = 0 : i64, scratch_operands = 1 : i64, tpu.core_type = #tpu.core_type<tc>, window_params = [{transform_indices = @transform_0, window_bounds = array<i64: 16, 512>}, {transform_indices = @transform_1, window_bounds = array<i64: 512, 128>}, {transform_indices = @transform_2, window_bounds = array<i64: 1, 128>}, {transform_indices = @transform_3, window_bounds = array<i64: 16, 128>}]} {
    %c0_i32 = arith.constant 0 : i32
    %0 = arith.cmpi eq, %arg2, %c0_i32 : i32
    %1 = arith.extui %0 : i1 to i32
    %c0_i32_0 = arith.constant 0 : i32
    %2 = arith.cmpi ne, %1, %c0_i32_0 : i32
    scf.if %2 {
      %cst_10 = arith.constant 0.000000e+00 : f32
      %12 = vector.broadcast %cst_10 : f32 to vector<16x128xf32>
      %c0_11 = arith.constant 0 : index
      %c0_12 = arith.constant 0 : index
      %13 = vector.load %arg7[%c0_11, %c0_12] : memref<16x128xf32, #tpu.memory_space<vmem>>, vector<16x128xf32>
      tpu.vector_store %arg7[%c0_11, %c0_12], %12 {strides = array<i32>} : memref<16x128xf32, #tpu.memory_space<vmem>>, vector<16x128xf32>,
    } else {
    }
    %c0 = arith.constant 0 : index
    %c0_1 = arith.constant 0 : index
    %3 = vector.load %arg7[%c0, %c0_1] : memref<16x128xf32, #tpu.memory_space<vmem>>, vector<16x128xf32>
    %c0_2 = arith.constant 0 : index
    %c0_3 = arith.constant 0 : index
    %4 = vector.load %arg3[%c0_2, %c0_3] : memref<16x512xbf16, #tpu.memory_space<vmem>>, vector<16x512xbf16>
    %c0_4 = arith.constant 0 : index
    %c0_5 = arith.constant 0 : index
    %5 = vector.load %arg4[%c0_4, %c0_5] : memref<512x128xbf16, #tpu.memory_space<vmem>>, vector<512x128xbf16>
    %cst = arith.constant dense<0.000000e+00> : vector<16x128xf32>
    %6 = tpu.matmul %4, %5, %cst {dimension_numbers = #tpu.dot_dimension_numbers<[1], [0], [0], [1], [0, 0, 1, 1], [], []>} : vector<16x512xbf16>, vector<512x128xbf16>, vector<16x128xf32> -> vector<16x128xf32>
    %7 = arith.addf %3, %6 : vector<16x128xf32>
    %c0_6 = arith.constant 0 : index
    %c0_7 = arith.constant 0 : index
    %8 = vector.load %arg7[%c0_6, %c0_7] : memref<16x128xf32, #tpu.memory_space<vmem>>, vector<16x128xf32>
    tpu.vector_store %arg7[%c0_6, %c0_7], %7 {strides = array<i32>} : memref<16x128xf32, #tpu.memory_space<vmem>>, vector<16x128xf32>,
    %c0_i32_8 = arith.constant 0 : i32
    %9 = arith.cmpi eq, %arg2, %c0_i32_8 : i32
    %10 = arith.extui %9 : i1 to i32
    %c0_i32_9 = arith.constant 0 : i32
    %11 = arith.cmpi ne, %10, %c0_i32_9 : i32
    scf.if %11 {
      %c0_10 = arith.constant 0 : index
      %c0_11 = arith.constant 0 : index
      %12 = vector.load %arg7[%c0_10, %c0_11] : memref<16x128xf32, #tpu.memory_space<vmem>>, vector<16x128xf32>
      %c0_12 = arith.constant 0 : index
      %c0_13 = arith.constant 0 : index
      %13 = vector.load %arg5[%c0_12, %c0_13] : memref<1x128xf32, #tpu.memory_space<vmem>>, vector<1x128xf32>
      %14 = vector.broadcast %13 : vector<1x128xf32> to vector<16x128xf32>
      %15 = arith.addf %12, %14 : vector<16x128xf32>
      %c0_14 = arith.constant 0 : index
      %c0_15 = arith.constant 0 : index
      %16 = vector.load %arg6[%c0_14, %c0_15] : memref<16x128xf32, #tpu.memory_space<vmem>>, vector<16x128xf32>
      tpu.vector_store %arg6[%c0_14, %c0_15], %15 {strides = array<i32>} : memref<16x128xf32, #tpu.memory_space<vmem>>, vector<16x128xf32>,
    } else {
    }
    return
  }
  func.func @transform_0(%arg0: i32, %arg1: i32, %arg2: i32) -> (i32, i32) {
    %c0_i32 = arith.constant 0 : i32
    return %arg0, %arg2 : i32, i32
  }
  func.func @transform_1(%arg0: i32, %arg1: i32, %arg2: i32) -> (i32, i32) {
    %c0_i32 = arith.constant 0 : i32
    return %arg2, %arg1 : i32, i32
  }
  func.func @transform_2(%arg0: i32, %arg1: i32, %arg2: i32) -> (i32, i32) {
    %c0_i32 = arith.constant 0 : i32
    %c0_i32_0 = arith.constant 0 : i32
    return %c0_i32, %arg1 : i32, i32
  }
  func.func @transform_3(%arg0: i32, %arg1: i32, %arg2: i32) -> (i32, i32) {
    %c0_i32 = arith.constant 0 : i32
    return %arg0, %arg1 : i32, i32
  }
}

module attributes {stable_mosaic.version = 11 : i64} {
  func.func @_matmul_kernel(%arg0: i32, %arg1: i32, %arg2: i32, %arg3: memref<32x512xbf16, #tpu.memory_space<vmem>>, %arg4: memref<512x128xbf16, #tpu.memory_space<vmem>>, %arg5: memref<1x128xf32, #tpu.memory_space<vmem>>, %arg6: memref<32x128xf32, #tpu.memory_space<vmem>>, %arg7: memref<32x128xf32, #tpu.memory_space<vmem>>) attributes {dimension_semantics = [#tpu.dimension_semantics<parallel>, #tpu.dimension_semantics<parallel>, #tpu.dimension_semantics<arbitrary>], iteration_bounds = array<i64: 1, 1, 1>, scalar_prefetch = 0 : i64, scratch_operands = 1 : i64, tpu.core_type = #tpu.core_type<tc>, window_params = [{transform_indices = @transform_0, window_bounds = array<i64: 32, 512>}, {transform_indices = @transform_1, window_bounds = array<i64: 512, 128>}, {transform_indices = @transform_2, window_bounds = array<i64: 1, 128>}, {transform_indices = @transform_3, window_bounds = array<i64: 32, 128>}]} {
    %c0_i32 = arith.constant 0 : i32
    %0 = arith.cmpi eq, %arg2, %c0_i32 : i32
    %1 = arith.extui %0 : i1 to i32
    %c0_i32_0 = arith.constant 0 : i32
    %2 = arith.cmpi ne, %1, %c0_i32_0 : i32
    scf.if %2 {
      %cst_10 = arith.constant 0.000000e+00 : f32
      %12 = vector.broadcast %cst_10 : f32 to vector<32x128xf32>
      %c0_11 = arith.constant 0 : index
      %c0_12 = arith.constant 0 : index
      %13 = vector.load %arg7[%c0_11, %c0_12] : memref<32x128xf32, #tpu.memory_space<vmem>>, vector<32x128xf32>
      tpu.vector_store %arg7[%c0_11, %c0_12], %12 {strides = array<i32>} : memref<32x128xf32, #tpu.memory_space<vmem>>, vector<32x128xf32>,
    } else {
    }
    %c0 = arith.constant 0 : index
    %c0_1 = arith.constant 0 : index
    %3 = vector.load %arg7[%c0, %c0_1] : memref<32x128xf32, #tpu.memory_space<vmem>>, vector<32x128xf32>
    %c0_2 = arith.constant 0 : index
    %c0_3 = arith.constant 0 : index
    %4 = vector.load %arg3[%c0_2, %c0_3] : memref<32x512xbf16, #tpu.memory_space<vmem>>, vector<32x512xbf16>
    %c0_4 = arith.constant 0 : index
    %c0_5 = arith.constant 0 : index
    %5 = vector.load %arg4[%c0_4, %c0_5] : memref<512x128xbf16, #tpu.memory_space<vmem>>, vector<512x128xbf16>
    %cst = arith.constant dense<0.000000e+00> : vector<32x128xf32>
    %6 = tpu.matmul %4, %5, %cst {dimension_numbers = #tpu.dot_dimension_numbers<[1], [0], [0], [1], [0, 0, 1, 1], [], []>} : vector<32x512xbf16>, vector<512x128xbf16>, vector<32x128xf32> -> vector<32x128xf32>
    %7 = arith.addf %3, %6 : vector<32x128xf32>
    %c0_6 = arith.constant 0 : index
    %c0_7 = arith.constant 0 : index
    %8 = vector.load %arg7[%c0_6, %c0_7] : memref<32x128xf32, #tpu.memory_space<vmem>>, vector<32x128xf32>
    tpu.vector_store %arg7[%c0_6, %c0_7], %7 {strides = array<i32>} : memref<32x128xf32, #tpu.memory_space<vmem>>, vector<32x128xf32>,
    %c0_i32_8 = arith.constant 0 : i32
    %9 = arith.cmpi eq, %arg2, %c0_i32_8 : i32
    %10 = arith.extui %9 : i1 to i32
    %c0_i32_9 = arith.constant 0 : i32
    %11 = arith.cmpi ne, %10, %c0_i32_9 : i32
    scf.if %11 {
      %c0_10 = arith.constant 0 : index
      %c0_11 = arith.constant 0 : index
      %12 = vector.load %arg7[%c0_10, %c0_11] : memref<32x128xf32, #tpu.memory_space<vmem>>, vector<32x128xf32>
      %c0_12 = arith.constant 0 : index
      %c0_13 = arith.constant 0 : index
      %13 = vector.load %arg5[%c0_12, %c0_13] : memref<1x128xf32, #tpu.memory_space<vmem>>, vector<1x128xf32>
      %14 = vector.broadcast %13 : vector<1x128xf32> to vector<32x128xf32>
      %15 = arith.addf %12, %14 : vector<32x128xf32>
      %c0_14 = arith.constant 0 : index
      %c0_15 = arith.constant 0 : index
      %16 = vector.load %arg6[%c0_14, %c0_15] : memref<32x128xf32, #tpu.memory_space<vmem>>, vector<32x128xf32>
      tpu.vector_store %arg6[%c0_14, %c0_15], %15 {strides = array<i32>} : memref<32x128xf32, #tpu.memory_space<vmem>>, vector<32x128xf32>,
    } else {
    }
    return
  }
  func.func @transform_0(%arg0: i32, %arg1: i32, %arg2: i32) -> (i32, i32) {
    %c0_i32 = arith.constant 0 : i32
    return %arg0, %arg2 : i32, i32
  }
  func.func @transform_1(%arg0: i32, %arg1: i32, %arg2: i32) -> (i32, i32) {
    %c0_i32 = arith.constant 0 : i32
    return %arg2, %arg1 : i32, i32
  }
  func.func @transform_2(%arg0: i32, %arg1: i32, %arg2: i32) -> (i32, i32) {
    %c0_i32 = arith.constant 0 : i32
    %c0_i32_0 = arith.constant 0 : i32
    return %c0_i32, %arg1 : i32, i32
  }
  func.func @transform_3(%arg0: i32, %arg1: i32, %arg2: i32) -> (i32, i32) {
    %c0_i32 = arith.constant 0 : i32
    return %arg0, %arg1 : i32, i32
  }
}

module attributes {stable_mosaic.version = 11 : i64} {
  func.func @_matmul_kernel(%arg0: i32, %arg1: i32, %arg2: i32, %arg3: memref<32x128xbf16, #tpu.memory_space<vmem>>, %arg4: memref<128x256xbf16, #tpu.memory_space<vmem>>, %arg5: memref<1x256xf32, #tpu.memory_space<vmem>>, %arg6: memref<32x256xf32, #tpu.memory_space<vmem>>, %arg7: memref<32x256xf32, #tpu.memory_space<vmem>>) attributes {dimension_semantics = [#tpu.dimension_semantics<parallel>, #tpu.dimension_semantics<parallel>, #tpu.dimension_semantics<arbitrary>], iteration_bounds = array<i64: 1, 2, 1>, scalar_prefetch = 0 : i64, scratch_operands = 1 : i64, tpu.core_type = #tpu.core_type<tc>, window_params = [{transform_indices = @transform_0, window_bounds = array<i64: 32, 128>}, {transform_indices = @transform_1, window_bounds = array<i64: 128, 256>}, {transform_indices = @transform_2, window_bounds = array<i64: 1, 256>}, {transform_indices = @transform_3, window_bounds = array<i64: 32, 256>}]} {
    %c0_i32 = arith.constant 0 : i32
    %0 = arith.cmpi eq, %arg2, %c0_i32 : i32
    %1 = arith.extui %0 : i1 to i32
    %c0_i32_0 = arith.constant 0 : i32
    %2 = arith.cmpi ne, %1, %c0_i32_0 : i32
    scf.if %2 {
      %cst_10 = arith.constant 0.000000e+00 : f32
      %12 = vector.broadcast %cst_10 : f32 to vector<32x256xf32>
      %c0_11 = arith.constant 0 : index
      %c0_12 = arith.constant 0 : index
      %13 = vector.load %arg7[%c0_11, %c0_12] : memref<32x256xf32, #tpu.memory_space<vmem>>, vector<32x256xf32>
      tpu.vector_store %arg7[%c0_11, %c0_12], %12 {strides = array<i32>} : memref<32x256xf32, #tpu.memory_space<vmem>>, vector<32x256xf32>,
    } else {
    }
    %c0 = arith.constant 0 : index
    %c0_1 = arith.constant 0 : index
    %3 = vector.load %arg7[%c0, %c0_1] : memref<32x256xf32, #tpu.memory_space<vmem>>, vector<32x256xf32>
    %c0_2 = arith.constant 0 : index
    %c0_3 = arith.constant 0 : index
    %4 = vector.load %arg3[%c0_2, %c0_3] : memref<32x128xbf16, #tpu.memory_space<vmem>>, vector<32x128xbf16>
    %c0_4 = arith.constant 0 : index
    %c0_5 = arith.constant 0 : index
    %5 = vector.load %arg4[%c0_4, %c0_5] : memref<128x256xbf16, #tpu.memory_space<vmem>>, vector<128x256xbf16>
    %cst = arith.constant dense<0.000000e+00> : vector<32x256xf32>
    %6 = tpu.matmul %4, %5, %cst {dimension_numbers = #tpu.dot_dimension_numbers<[1], [0], [0], [1], [0, 0, 1, 1], [], []>} : vector<32x128xbf16>, vector<128x256xbf16>, vector<32x256xf32> -> vector<32x256xf32>
    %7 = arith.addf %3, %6 : vector<32x256xf32>
    %c0_6 = arith.constant 0 : index
    %c0_7 = arith.constant 0 : index
    %8 = vector.load %arg7[%c0_6, %c0_7] : memref<32x256xf32, #tpu.memory_space<vmem>>, vector<32x256xf32>
    tpu.vector_store %arg7[%c0_6, %c0_7], %7 {strides = array<i32>} : memref<32x256xf32, #tpu.memory_space<vmem>>, vector<32x256xf32>,
    %c0_i32_8 = arith.constant 0 : i32
    %9 = arith.cmpi eq, %arg2, %c0_i32_8 : i32
    %10 = arith.extui %9 : i1 to i32
    %c0_i32_9 = arith.constant 0 : i32
    %11 = arith.cmpi ne, %10, %c0_i32_9 : i32
    scf.if %11 {
      %c0_10 = arith.constant 0 : index
      %c0_11 = arith.constant 0 : index
      %12 = vector.load %arg7[%c0_10, %c0_11] : memref<32x256xf32, #tpu.memory_space<vmem>>, vector<32x256xf32>
      %c0_12 = arith.constant 0 : index
      %c0_13 = arith.constant 0 : index
      %13 = vector.load %arg5[%c0_12, %c0_13] : memref<1x256xf32, #tpu.memory_space<vmem>>, vector<1x256xf32>
      %14 = vector.broadcast %13 : vector<1x256xf32> to vector<32x256xf32>
      %15 = arith.addf %12, %14 : vector<32x256xf32>
      %cst_14 = arith.constant 5.000000e-01 : f32
      %16 = vector.broadcast %cst_14 : f32 to vector<32x256xf32>
      %17 = arith.mulf %16, %15 : vector<32x256xf32>
      %cst_15 = arith.constant 4.471500e-02 : f32
      %18 = vector.broadcast %cst_15 : f32 to vector<32x256xf32>
      %19 = arith.mulf %18, %15 : vector<32x256xf32>
      %20 = arith.mulf %19, %15 : vector<32x256xf32>
      %21 = arith.mulf %20, %15 : vector<32x256xf32>
      %22 = arith.addf %15, %21 : vector<32x256xf32>
      %cst_16 = arith.constant 0.797884583 : f32
      %23 = vector.broadcast %cst_16 : f32 to vector<32x256xf32>
      %24 = arith.mulf %23, %22 : vector<32x256xf32>
      %25 = math.tanh %24 : vector<32x256xf32>
      %cst_17 = arith.constant 1.000000e+00 : f32
      %26 = vector.broadcast %cst_17 : f32 to vector<32x256xf32>
      %27 = arith.addf %26, %25 : vector<32x256xf32>
      %28 = arith.mulf %17, %27 : vector<32x256xf32>
      %c0_18 = arith.constant 0 : index
      %c0_19 = arith.constant 0 : index
      %29 = vector.load %arg6[%c0_18, %c0_19] : memref<32x256xf32, #tpu.memory_space<vmem>>, vector<32x256xf32>
      tpu.vector_store %arg6[%c0_18, %c0_19], %28 {strides = array<i32>} : memref<32x256xf32, #tpu.memory_space<vmem>>, vector<32x256xf32>,
    } else {
    }
    return
  }
  func.func @transform_0(%arg0: i32, %arg1: i32, %arg2: i32) -> (i32, i32) {
    %c0_i32 = arith.constant 0 : i32
    return %arg0, %arg2 : i32, i32
  }
  func.func @transform_1(%arg0: i32, %arg1: i32, %arg2: i32) -> (i32, i32) {
    %c0_i32 = arith.constant 0 : i32
    return %arg2, %arg1 : i32, i32
  }
  func.func @transform_2(%arg0: i32, %arg1: i32, %arg2: i32) -> (i32, i32) {
    %c0_i32 = arith.constant 0 : i32
    %c0_i32_0 = arith.constant 0 : i32
    return %c0_i32, %arg1 : i32, i32
  }
  func.func @transform_3(%arg0: i32, %arg1: i32, %arg2: i32) -> (i32, i32) {
    %c0_i32 = arith.constant 0 : i32
    return %arg0, %arg1 : i32, i32
  }
}

module attributes {stable_mosaic.version = 11 : i64} {
  func.func @_matmul_kernel(%arg0: i32, %arg1: i32, %arg2: i32, %arg3: memref<48x128xbf16, #tpu.memory_space<vmem>>, %arg4: memref<128x256xbf16, #tpu.memory_space<vmem>>, %arg5: memref<1x256xf32, #tpu.memory_space<vmem>>, %arg6: memref<48x256xf32, #tpu.memory_space<vmem>>, %arg7: memref<48x256xf32, #tpu.memory_space<vmem>>) attributes {dimension_semantics = [#tpu.dimension_semantics<parallel>, #tpu.dimension_semantics<parallel>, #tpu.dimension_semantics<arbitrary>], iteration_bounds = array<i64: 1, 2, 1>, scalar_prefetch = 0 : i64, scratch_operands = 1 : i64, tpu.core_type = #tpu.core_type<tc>, window_params = [{transform_indices = @transform_0, window_bounds = array<i64: 48, 128>}, {transform_indices = @transform_1, window_bounds = array<i64: 128, 256>}, {transform_indices = @transform_2, window_bounds = array<i64: 1, 256>}, {transform_indices = @transform_3, window_bounds = array<i64: 48, 256>}]} {
    %c0_i32 = arith.constant 0 : i32
    %0 = arith.cmpi eq, %arg2, %c0_i32 : i32
    %1 = arith.extui %0 : i1 to i32
    %c0_i32_0 = arith.constant 0 : i32
    %2 = arith.cmpi ne, %1, %c0_i32_0 : i32
    scf.if %2 {
      %cst_10 = arith.constant 0.000000e+00 : f32
      %12 = vector.broadcast %cst_10 : f32 to vector<48x256xf32>
      %c0_11 = arith.constant 0 : index
      %c0_12 = arith.constant 0 : index
      %13 = vector.load %arg7[%c0_11, %c0_12] : memref<48x256xf32, #tpu.memory_space<vmem>>, vector<48x256xf32>
      tpu.vector_store %arg7[%c0_11, %c0_12], %12 {strides = array<i32>} : memref<48x256xf32, #tpu.memory_space<vmem>>, vector<48x256xf32>,
    } else {
    }
    %c0 = arith.constant 0 : index
    %c0_1 = arith.constant 0 : index
    %3 = vector.load %arg7[%c0, %c0_1] : memref<48x256xf32, #tpu.memory_space<vmem>>, vector<48x256xf32>
    %c0_2 = arith.constant 0 : index
    %c0_3 = arith.constant 0 : index
    %4 = vector.load %arg3[%c0_2, %c0_3] : memref<48x128xbf16, #tpu.memory_space<vmem>>, vector<48x128xbf16>
    %c0_4 = arith.constant 0 : index
    %c0_5 = arith.constant 0 : index
    %5 = vector.load %arg4[%c0_4, %c0_5] : memref<128x256xbf16, #tpu.memory_space<vmem>>, vector<128x256xbf16>
    %cst = arith.constant dense<0.000000e+00> : vector<48x256xf32>
    %6 = tpu.matmul %4, %5, %cst {dimension_numbers = #tpu.dot_dimension_numbers<[1], [0], [0], [1], [0, 0, 1, 1], [], []>} : vector<48x128xbf16>, vector<128x256xbf16>, vector<48x256xf32> -> vector<48x256xf32>
    %7 = arith.addf %3, %6 : vector<48x256xf32>
    %c0_6 = arith.constant 0 : index
    %c0_7 = arith.constant 0 : index
    %8 = vector.load %arg7[%c0_6, %c0_7] : memref<48x256xf32, #tpu.memory_space<vmem>>, vector<48x256xf32>
    tpu.vector_store %arg7[%c0_6, %c0_7], %7 {strides = array<i32>} : memref<48x256xf32, #tpu.memory_space<vmem>>, vector<48x256xf32>,
    %c0_i32_8 = arith.constant 0 : i32
    %9 = arith.cmpi eq, %arg2, %c0_i32_8 : i32
    %10 = arith.extui %9 : i1 to i32
    %c0_i32_9 = arith.constant 0 : i32
    %11 = arith.cmpi ne, %10, %c0_i32_9 : i32
    scf.if %11 {
      %c0_10 = arith.constant 0 : index
      %c0_11 = arith.constant 0 : index
      %12 = vector.load %arg7[%c0_10, %c0_11] : memref<48x256xf32, #tpu.memory_space<vmem>>, vector<48x256xf32>
      %c0_12 = arith.constant 0 : index
      %c0_13 = arith.constant 0 : index
      %13 = vector.load %arg5[%c0_12, %c0_13] : memref<1x256xf32, #tpu.memory_space<vmem>>, vector<1x256xf32>
      %14 = vector.broadcast %13 : vector<1x256xf32> to vector<48x256xf32>
      %15 = arith.addf %12, %14 : vector<48x256xf32>
      %c0_14 = arith.constant 0 : index
      %c0_15 = arith.constant 0 : index
      %16 = vector.load %arg6[%c0_14, %c0_15] : memref<48x256xf32, #tpu.memory_space<vmem>>, vector<48x256xf32>
      tpu.vector_store %arg6[%c0_14, %c0_15], %15 {strides = array<i32>} : memref<48x256xf32, #tpu.memory_space<vmem>>, vector<48x256xf32>,
    } else {
    }
    return
  }
  func.func @transform_0(%arg0: i32, %arg1: i32, %arg2: i32) -> (i32, i32) {
    %c0_i32 = arith.constant 0 : i32
    return %arg0, %arg2 : i32, i32
  }
  func.func @transform_1(%arg0: i32, %arg1: i32, %arg2: i32) -> (i32, i32) {
    %c0_i32 = arith.constant 0 : i32
    return %arg2, %arg1 : i32, i32
  }
  func.func @transform_2(%arg0: i32, %arg1: i32, %arg2: i32) -> (i32, i32) {
    %c0_i32 = arith.constant 0 : i32
    %c0_i32_0 = arith.constant 0 : i32
    return %c0_i32, %arg1 : i32, i32
  }
  func.func @transform_3(%arg0: i32, %arg1: i32, %arg2: i32) -> (i32, i32) {
    %c0_i32 = arith.constant 0 : i32
    return %arg0, %arg1 : i32, i32
  }
}

module attributes {stable_mosaic.version = 11 : i64} {
  func.func @_matmul_kernel(%arg0: i32, %arg1: i32, %arg2: i32, %arg3: memref<48x512xbf16, #tpu.memory_space<vmem>>, %arg4: memref<512x128xbf16, #tpu.memory_space<vmem>>, %arg5: memref<1x128xf32, #tpu.memory_space<vmem>>, %arg6: memref<48x128xf32, #tpu.memory_space<vmem>>, %arg7: memref<48x128xf32, #tpu.memory_space<vmem>>) attributes {dimension_semantics = [#tpu.dimension_semantics<parallel>, #tpu.dimension_semantics<parallel>, #tpu.dimension_semantics<arbitrary>], iteration_bounds = array<i64: 1, 1, 2>, scalar_prefetch = 0 : i64, scratch_operands = 1 : i64, tpu.core_type = #tpu.core_type<tc>, window_params = [{transform_indices = @transform_0, window_bounds = array<i64: 48, 512>}, {transform_indices = @transform_1, window_bounds = array<i64: 512, 128>}, {transform_indices = @transform_2, window_bounds = array<i64: 1, 128>}, {transform_indices = @transform_3, window_bounds = array<i64: 48, 128>}]} {
    %c0_i32 = arith.constant 0 : i32
    %0 = arith.cmpi eq, %arg2, %c0_i32 : i32
    %1 = arith.extui %0 : i1 to i32
    %c0_i32_0 = arith.constant 0 : i32
    %2 = arith.cmpi ne, %1, %c0_i32_0 : i32
    scf.if %2 {
      %cst_9 = arith.constant 0.000000e+00 : f32
      %12 = vector.broadcast %cst_9 : f32 to vector<48x128xf32>
      %c0_10 = arith.constant 0 : index
      %c0_11 = arith.constant 0 : index
      %13 = vector.load %arg7[%c0_10, %c0_11] : memref<48x128xf32, #tpu.memory_space<vmem>>, vector<48x128xf32>
      tpu.vector_store %arg7[%c0_10, %c0_11], %12 {strides = array<i32>} : memref<48x128xf32, #tpu.memory_space<vmem>>, vector<48x128xf32>,
    } else {
    }
    %c0 = arith.constant 0 : index
    %c0_1 = arith.constant 0 : index
    %3 = vector.load %arg7[%c0, %c0_1] : memref<48x128xf32, #tpu.memory_space<vmem>>, vector<48x128xf32>
    %c0_2 = arith.constant 0 : index
    %c0_3 = arith.constant 0 : index
    %4 = vector.load %arg3[%c0_2, %c0_3] : memref<48x512xbf16, #tpu.memory_space<vmem>>, vector<48x512xbf16>
    %c0_4 = arith.constant 0 : index
    %c0_5 = arith.constant 0 : index
    %5 = vector.load %arg4[%c0_4, %c0_5] : memref<512x128xbf16, #tpu.memory_space<vmem>>, vector<512x128xbf16>
    %cst = arith.constant dense<0.000000e+00> : vector<48x128xf32>
    %6 = tpu.matmul %4, %5, %cst {dimension_numbers = #tpu.dot_dimension_numbers<[1], [0], [0], [1], [0, 0, 1, 1], [], []>} : vector<48x512xbf16>, vector<512x128xbf16>, vector<48x128xf32> -> vector<48x128xf32>
    %7 = arith.addf %3, %6 : vector<48x128xf32>
    %c0_6 = arith.constant 0 : index
    %c0_7 = arith.constant 0 : index
    %8 = vector.load %arg7[%c0_6, %c0_7] : memref<48x128xf32, #tpu.memory_space<vmem>>, vector<48x128xf32>
    tpu.vector_store %arg7[%c0_6, %c0_7], %7 {strides = array<i32>} : memref<48x128xf32, #tpu.memory_space<vmem>>, vector<48x128xf32>,
    %c1_i32 = arith.constant 1 : i32
    %9 = arith.cmpi eq, %arg2, %c1_i32 : i32
    %10 = arith.extui %9 : i1 to i32
    %c0_i32_8 = arith.constant 0 : i32
    %11 = arith.cmpi ne, %10, %c0_i32_8 : i32
    scf.if %11 {
      %c0_9 = arith.constant 0 : index
      %c0_10 = arith.constant 0 : index
      %12 = vector.load %arg7[%c0_9, %c0_10] : memref<48x128xf32, #tpu.memory_space<vmem>>, vector<48x128xf32>
      %c0_11 = arith.constant 0 : index
      %c0_12 = arith.constant 0 : index
      %13 = vector.load %arg5[%c0_11, %c0_12] : memref<1x128xf32, #tpu.memory_space<vmem>>, vector<1x128xf32>
      %14 = vector.broadcast %13 : vector<1x128xf32> to vector<48x128xf32>
      %15 = arith.addf %12, %14 : vector<48x128xf32>
      %c0_13 = arith.constant 0 : index
      %c0_14 = arith.constant 0 : index
      %16 = vector.load %arg6[%c0_13, %c0_14] : memref<48x128xf32, #tpu.memory_space<vmem>>, vector<48x128xf32>
      tpu.vector_store %arg6[%c0_13, %c0_14], %15 {strides = array<i32>} : memref<48x128xf32, #tpu.memory_space<vmem>>, vector<48x128xf32>,
    } else {
    }
    return
  }
  func.func @transform_0(%arg0: i32, %arg1: i32, %arg2: i32) -> (i32, i32) {
    %c0_i32 = arith.constant 0 : i32
    return %arg0, %arg2 : i32, i32
  }
  func.func @transform_1(%arg0: i32, %arg1: i32, %arg2: i32) -> (i32, i32) {
    %c0_i32 = arith.constant 0 : i32
    return %arg2, %arg1 : i32, i32
  }
  func.func @transform_2(%arg0: i32, %arg1: i32, %arg2: i32) -> (i32, i32) {
    %c0_i32 = arith.constant 0 : i32
    %c0_i32_0 = arith.constant 0 : i32
    return %c0_i32, %arg1 : i32, i32
  }
  func.func @transform_3(%arg0: i32, %arg1: i32, %arg2: i32) -> (i32, i32) {
    %c0_i32 = arith.constant 0 : i32
    return %arg0, %arg1 : i32, i32
  }
}

module attributes {stable_mosaic.version = 11 : i64} {
  func.func @_matmul_kernel(%arg0: i32, %arg1: i32, %arg2: i32, %arg3: memref<48x128xbf16, #tpu.memory_space<vmem>>, %arg4: memref<128x256xbf16, #tpu.memory_space<vmem>>, %arg5: memref<1x256xf32, #tpu.memory_space<vmem>>, %arg6: memref<48x256xf32, #tpu.memory_space<vmem>>, %arg7: memref<48x256xf32, #tpu.memory_space<vmem>>) attributes {dimension_semantics = [#tpu.dimension_semantics<parallel>, #tpu.dimension_semantics<parallel>, #tpu.dimension_semantics<arbitrary>], iteration_bounds = array<i64: 1, 2, 1>, scalar_prefetch = 0 : i64, scratch_operands = 1 : i64, tpu.core_type = #tpu.core_type<tc>, window_params = [{transform_indices = @transform_0, window_bounds = array<i64: 48, 128>}, {transform_indices = @transform_1, window_bounds = array<i64: 128, 256>}, {transform_indices = @transform_2, window_bounds = array<i64: 1, 256>}, {transform_indices = @transform_3, window_bounds = array<i64: 48, 256>}]} {
    %c0_i32 = arith.constant 0 : i32
    %0 = arith.cmpi eq, %arg2, %c0_i32 : i32
    %1 = arith.extui %0 : i1 to i32
    %c0_i32_0 = arith.constant 0 : i32
    %2 = arith.cmpi ne, %1, %c0_i32_0 : i32
    scf.if %2 {
      %cst_10 = arith.constant 0.000000e+00 : f32
      %12 = vector.broadcast %cst_10 : f32 to vector<48x256xf32>
      %c0_11 = arith.constant 0 : index
      %c0_12 = arith.constant 0 : index
      %13 = vector.load %arg7[%c0_11, %c0_12] : memref<48x256xf32, #tpu.memory_space<vmem>>, vector<48x256xf32>
      tpu.vector_store %arg7[%c0_11, %c0_12], %12 {strides = array<i32>} : memref<48x256xf32, #tpu.memory_space<vmem>>, vector<48x256xf32>,
    } else {
    }
    %c0 = arith.constant 0 : index
    %c0_1 = arith.constant 0 : index
    %3 = vector.load %arg7[%c0, %c0_1] : memref<48x256xf32, #tpu.memory_space<vmem>>, vector<48x256xf32>
    %c0_2 = arith.constant 0 : index
    %c0_3 = arith.constant 0 : index
    %4 = vector.load %arg3[%c0_2, %c0_3] : memref<48x128xbf16, #tpu.memory_space<vmem>>, vector<48x128xbf16>
    %c0_4 = arith.constant 0 : index
    %c0_5 = arith.constant 0 : index
    %5 = vector.load %arg4[%c0_4, %c0_5] : memref<128x256xbf16, #tpu.memory_space<vmem>>, vector<128x256xbf16>
    %cst = arith.constant dense<0.000000e+00> : vector<48x256xf32>
    %6 = tpu.matmul %4, %5, %cst {dimension_numbers = #tpu.dot_dimension_numbers<[1], [0], [0], [1], [0, 0, 1, 1], [], []>} : vector<48x128xbf16>, vector<128x256xbf16>, vector<48x256xf32> -> vector<48x256xf32>
    %7 = arith.addf %3, %6 : vector<48x256xf32>
    %c0_6 = arith.constant 0 : index
    %c0_7 = arith.constant 0 : index
    %8 = vector.load %arg7[%c0_6, %c0_7] : memref<48x256xf32, #tpu.memory_space<vmem>>, vector<48x256xf32>
    tpu.vector_store %arg7[%c0_6, %c0_7], %7 {strides = array<i32>} : memref<48x256xf32, #tpu.memory_space<vmem>>, vector<48x256xf32>,
    %c0_i32_8 = arith.constant 0 : i32
    %9 = arith.cmpi eq, %arg2, %c0_i32_8 : i32
    %10 = arith.extui %9 : i1 to i32
    %c0_i32_9 = arith.constant 0 : i32
    %11 = arith.cmpi ne, %10, %c0_i32_9 : i32
    scf.if %11 {
      %c0_10 = arith.constant 0 : index
      %c0_11 = arith.constant 0 : index
      %12 = vector.load %arg7[%c0_10, %c0_11] : memref<48x256xf32, #tpu.memory_space<vmem>>, vector<48x256xf32>
      %c0_12 = arith.constant 0 : index
      %c0_13 = arith.constant 0 : index
      %13 = vector.load %arg5[%c0_12, %c0_13] : memref<1x256xf32, #tpu.memory_space<vmem>>, vector<1x256xf32>
      %14 = vector.broadcast %13 : vector<1x256xf32> to vector<48x256xf32>
      %15 = arith.addf %12, %14 : vector<48x256xf32>
      %cst_14 = arith.constant 5.000000e-01 : f32
      %16 = vector.broadcast %cst_14 : f32 to vector<48x256xf32>
      %17 = arith.mulf %16, %15 : vector<48x256xf32>
      %cst_15 = arith.constant 4.471500e-02 : f32
      %18 = vector.broadcast %cst_15 : f32 to vector<48x256xf32>
      %19 = arith.mulf %18, %15 : vector<48x256xf32>
      %20 = arith.mulf %19, %15 : vector<48x256xf32>
      %21 = arith.mulf %20, %15 : vector<48x256xf32>
      %22 = arith.addf %15, %21 : vector<48x256xf32>
      %cst_16 = arith.constant 0.797884583 : f32
      %23 = vector.broadcast %cst_16 : f32 to vector<48x256xf32>
      %24 = arith.mulf %23, %22 : vector<48x256xf32>
      %25 = math.tanh %24 : vector<48x256xf32>
      %cst_17 = arith.constant 1.000000e+00 : f32
      %26 = vector.broadcast %cst_17 : f32 to vector<48x256xf32>
      %27 = arith.addf %26, %25 : vector<48x256xf32>
      %28 = arith.mulf %17, %27 : vector<48x256xf32>
      %c0_18 = arith.constant 0 : index
      %c0_19 = arith.constant 0 : index
      %29 = vector.load %arg6[%c0_18, %c0_19] : memref<48x256xf32, #tpu.memory_space<vmem>>, vector<48x256xf32>
      tpu.vector_store %arg6[%c0_18, %c0_19], %28 {strides = array<i32>} : memref<48x256xf32, #tpu.memory_space<vmem>>, vector<48x256xf32>,
    } else {
    }
    return
  }
  func.func @transform_0(%arg0: i32, %arg1: i32, %arg2: i32) -> (i32, i32) {
    %c0_i32 = arith.constant 0 : i32
    return %arg0, %arg2 : i32, i32
  }
  func.func @transform_1(%arg0: i32, %arg1: i32, %arg2: i32) -> (i32, i32) {
    %c0_i32 = arith.constant 0 : i32
    return %arg2, %arg1 : i32, i32
  }
  func.func @transform_2(%arg0: i32, %arg1: i32, %arg2: i32) -> (i32, i32) {
    %c0_i32 = arith.constant 0 : i32
    %c0_i32_0 = arith.constant 0 : i32
    return %c0_i32, %arg1 : i32, i32
  }
  func.func @transform_3(%arg0: i32, %arg1: i32, %arg2: i32) -> (i32, i32) {
    %c0_i32 = arith.constant 0 : i32
    return %arg0, %arg1 : i32, i32
  }
}

module attributes {stable_mosaic.version = 11 : i64} {
  func.func @_matmul_kernel(%arg0: i32, %arg1: i32, %arg2: i32, %arg3: memref<32x128xbf16, #tpu.memory_space<vmem>>, %arg4: memref<128x128xbf16, #tpu.memory_space<vmem>>, %arg5: memref<1x128xf32, #tpu.memory_space<vmem>>, %arg6: memref<32x128xf32, #tpu.memory_space<vmem>>, %arg7: memref<32x128xf32, #tpu.memory_space<vmem>>) attributes {dimension_semantics = [#tpu.dimension_semantics<parallel>, #tpu.dimension_semantics<parallel>, #tpu.dimension_semantics<arbitrary>], iteration_bounds = array<i64: 1, 1, 1>, scalar_prefetch = 0 : i64, scratch_operands = 1 : i64, tpu.core_type = #tpu.core_type<tc>, window_params = [{transform_indices = @transform_0, window_bounds = array<i64: 32, 128>}, {transform_indices = @transform_1, window_bounds = array<i64: 128, 128>}, {transform_indices = @transform_2, window_bounds = array<i64: 1, 128>}, {transform_indices = @transform_3, window_bounds = array<i64: 32, 128>}]} {
    %c0_i32 = arith.constant 0 : i32
    %0 = arith.cmpi eq, %arg2, %c0_i32 : i32
    %1 = arith.extui %0 : i1 to i32
    %c0_i32_0 = arith.constant 0 : i32
    %2 = arith.cmpi ne, %1, %c0_i32_0 : i32
    scf.if %2 {
      %cst_10 = arith.constant 0.000000e+00 : f32
      %12 = vector.broadcast %cst_10 : f32 to vector<32x128xf32>
      %c0_11 = arith.constant 0 : index
      %c0_12 = arith.constant 0 : index
      %13 = vector.load %arg7[%c0_11, %c0_12] : memref<32x128xf32, #tpu.memory_space<vmem>>, vector<32x128xf32>
      tpu.vector_store %arg7[%c0_11, %c0_12], %12 {strides = array<i32>} : memref<32x128xf32, #tpu.memory_space<vmem>>, vector<32x128xf32>,
    } else {
    }
    %c0 = arith.constant 0 : index
    %c0_1 = arith.constant 0 : index
    %3 = vector.load %arg7[%c0, %c0_1] : memref<32x128xf32, #tpu.memory_space<vmem>>, vector<32x128xf32>
    %c0_2 = arith.constant 0 : index
    %c0_3 = arith.constant 0 : index
    %4 = vector.load %arg3[%c0_2, %c0_3] : memref<32x128xbf16, #tpu.memory_space<vmem>>, vector<32x128xbf16>
    %c0_4 = arith.constant 0 : index
    %c0_5 = arith.constant 0 : index
    %5 = vector.load %arg4[%c0_4, %c0_5] : memref<128x128xbf16, #tpu.memory_space<vmem>>, vector<128x128xbf16>
    %cst = arith.constant dense<0.000000e+00> : vector<32x128xf32>
    %6 = tpu.matmul %4, %5, %cst {dimension_numbers = #tpu.dot_dimension_numbers<[1], [0], [0], [1], [0, 0, 1, 1], [], []>} : vector<32x128xbf16>, vector<128x128xbf16>, vector<32x128xf32> -> vector<32x128xf32>
    %7 = arith.addf %3, %6 : vector<32x128xf32>
    %c0_6 = arith.constant 0 : index
    %c0_7 = arith.constant 0 : index
    %8 = vector.load %arg7[%c0_6, %c0_7] : memref<32x128xf32, #tpu.memory_space<vmem>>, vector<32x128xf32>
    tpu.vector_store %arg7[%c0_6, %c0_7], %7 {strides = array<i32>} : memref<32x128xf32, #tpu.memory_space<vmem>>, vector<32x128xf32>,
    %c0_i32_8 = arith.constant 0 : i32
    %9 = arith.cmpi eq, %arg2, %c0_i32_8 : i32
    %10 = arith.extui %9 : i1 to i32
    %c0_i32_9 = arith.constant 0 : i32
    %11 = arith.cmpi ne, %10, %c0_i32_9 : i32
    scf.if %11 {
      %c0_10 = arith.constant 0 : index
      %c0_11 = arith.constant 0 : index
      %12 = vector.load %arg7[%c0_10, %c0_11] : memref<32x128xf32, #tpu.memory_space<vmem>>, vector<32x128xf32>
      %c0_12 = arith.constant 0 : index
      %c0_13 = arith.constant 0 : index
      %13 = vector.load %arg5[%c0_12, %c0_13] : memref<1x128xf32, #tpu.memory_space<vmem>>, vector<1x128xf32>
      %14 = vector.broadcast %13 : vector<1x128xf32> to vector<32x128xf32>
      %15 = arith.addf %12, %14 : vector<32x128xf32>
      %c0_14 = arith.constant 0 : index
      %c0_15 = arith.constant 0 : index
      %16 = vector.load %arg6[%c0_14, %c0_15] : memref<32x128xf32, #tpu.memory_space<vmem>>, vector<32x128xf32>
      tpu.vector_store %arg6[%c0_14, %c0_15], %15 {strides = array<i32>} : memref<32x128xf32, #tpu.memory_space<vmem>>, vector<32x128xf32>,
    } else {
    }
    return
  }
  func.func @transform_0(%arg0: i32, %arg1: i32, %arg2: i32) -> (i32, i32) {
    %c0_i32 = arith.constant 0 : i32
    return %arg0, %arg2 : i32, i32
  }
  func.func @transform_1(%arg0: i32, %arg1: i32, %arg2: i32) -> (i32, i32) {
    %c0_i32 = arith.constant 0 : i32
    return %arg2, %arg1 : i32, i32
  }
  func.func @transform_2(%arg0: i32, %arg1: i32, %arg2: i32) -> (i32, i32) {
    %c0_i32 = arith.constant 0 : i32
    %c0_i32_0 = arith.constant 0 : i32
    return %c0_i32, %arg1 : i32, i32
  }
  func.func @transform_3(%arg0: i32, %arg1: i32, %arg2: i32) -> (i32, i32) {
    %c0_i32 = arith.constant 0 : i32
    return %arg0, %arg1 : i32, i32
  }
}

</mosaic_0001>

<llo_original>
// kernel: flux_forward.16
$region0: #{flux_forward.16}
  #allocation0 [shape = 'u32[]', space=smem, size = 0x4, offset = 0x4, fixed_abs, tag = 'smem constant byte address 0x4 - core index']
  #allocation1 [shape = 'u32[144,128]{1,0:T(1,128)}', space=vmem, size = 0x12000, scoped, tag = 'internal scratch']
  #allocation2 [shape = 'f32[32,128]{1,0:T(8,128)}', space=vmem, size = 0x4000, scoped, tag = 'scratch operand']
  %s0 = inlined_call_operand.vmem [shape: bf16[32,128], index: 0, kind: input, shape index: {}]
  %s1 = inlined_call_operand.vmem [shape: bf16[128,128], index: 1, kind: input, shape index: {}]
  %s2 = inlined_call_operand.vmem [shape: f32[1,128], index: 2, kind: input, shape index: {}]
  %s3 = inlined_call_operand.vmem [shape: f32[32,128], index: 3, kind: output, shape index: {}]
  %s4 = sld [smem:[#allocation0]]
  $region30: #{flux_forward.16} parent=0
    _
  %s6 = ssub.s32 1, %s4
  %s7 = scalar_select 0, %s6, %s4
  // Predicated region
  $region2: #{flux_forward.16} parent=0 // pred_check
    _
  $region3: #{flux_forward.16} parent=0 // pred_check_branch
    %9 = sbr.rel (0) target = $region5
  $region4: #{flux_forward.16} parent=0 // pred_region
    _
  $region5: #{flux_forward.16} parent=0 // pred_fallthru
    _
  // Predicated region
  $region6: #{flux_forward.16} parent=0 // pred_check
    _
  $region7: #{flux_forward.16} parent=0 // pred_check_branch
    %11 = sbr.rel (0) target = $region9
  $region8: #{flux_forward.16} parent=0 // pred_region
    _
  $region9: #{flux_forward.16} parent=0 // pred_fallthru
    _
  // Predicated region
  $region10: #{flux_forward.16} parent=0 // pred_check
    _
  $region11: #{flux_forward.16} parent=0 // pred_check_branch
    %13 = sbr.rel (0) target = $region13
  $region12: #{flux_forward.16} parent=0 // pred_region
    _
  $region13: #{flux_forward.16} parent=0 // pred_fallthru
    _
  %p15 = scmp.eq.s32.totalorder 0, 0
  // Predicated region
  $region14: #{flux_forward.16} parent=0 // pred_check
    %p16 = pneg %p15
  $region15: #{flux_forward.16} parent=0 // pred_check_branch
    %18 = sbr.rel (%p16) target = $region17
  $region16: #{flux_forward.16} parent=0 // pred_region
    %19 = vst [vmem:[#allocation2] sm:$0xff] 0.0
    %20 = vst [vmem:[#allocation2 + $0x8] sm:$0xff] 0.0
    %21 = vst [vmem:[#allocation2 + $0x10] sm:$0xff] 0.0
    %22 = vst [vmem:[#allocation2 + $0x18] sm:$0xff] 0.0
  $region17: #{flux_forward.16} parent=0 // pred_fallthru
    _
  %v23 = vld [vmem:[#allocation2] sm:$0xff]
  %v24 = vld [vmem:[#allocation2 + $0x8] sm:$0xff]
  %v25 = vld [vmem:[#allocation2 + $0x10] sm:$0xff]
  %v26 = vld [vmem:[#allocation2 + $0x18] sm:$0xff]
  %v27 = vld [vmem:[%s0] sm:$0xf]
  %v28 = vld [vmem:[%s0 + $0x4] sm:$0xf]
  %v29 = vld [vmem:[%s0 + $0x8] sm:$0xf]
  %v30 = vld [vmem:[%s0 + $0xc] sm:$0xf]
  %v31 = vld [vmem:[%s1] sm:$0xf]
  %v32 = vld [vmem:[%s1 + $0x4] sm:$0xf]
  %v33 = vld [vmem:[%s1 + $0x8] sm:$0xf]
  %v34 = vld [vmem:[%s1 + $0xc] sm:$0xf]
  %v35 = vld [vmem:[%s1 + $0x10] sm:$0xf]
  %v36 = vld [vmem:[%s1 + $0x14] sm:$0xf]
  %v37 = vld [vmem:[%s1 + $0x18] sm:$0xf]
  %v38 = vld [vmem:[%s1 + $0x1c] sm:$0xf]
  %v39 = vld [vmem:[%s1 + $0x20] sm:$0xf]
  %v40 = vld [vmem:[%s1 + $0x24] sm:$0xf]
  %v41 = vld [vmem:[%s1 + $0x28] sm:$0xf]
  %v42 = vld [vmem:[%s1 + $0x2c] sm:$0xf]
  %v43 = vld [vmem:[%s1 + $0x30] sm:$0xf]
  %v44 = vld [vmem:[%s1 + $0x34] sm:$0xf]
  %v45 = vld [vmem:[%s1 + $0x38] sm:$0xf]
  %v46 = vld [vmem:[%s1 + $0x3c] sm:$0xf]
  %v51 = vunpack.c.l.b16 %v27
  %v52 = vunpack.c.l.b16 %v28
  %v53 = vunpack.c.l.b16 %v29
  %v54 = vunpack.c.l.b16 %v30
  %v55 = vpack.c.b16 %v52, %v51
  %v56 = vpack.c.b16 %v54, %v53
  %v75 = vunpack.c.l.b16 %v31
  %v76 = vunpack.c.l.b16 %v32
  %v77 = vunpack.c.l.b16 %v33
  %v78 = vunpack.c.l.b16 %v34
  %v79 = vunpack.c.l.b16 %v35
  %v80 = vunpack.c.l.b16 %v36
  %v81 = vunpack.c.l.b16 %v37
  %v82 = vunpack.c.l.b16 %v38
  %v83 = vunpack.c.l.b16 %v39
  %v84 = vunpack.c.l.b16 %v40
  %v85 = vunpack.c.l.b16 %v41
  %v86 = vunpack.c.l.b16 %v42
  %v87 = vunpack.c.l.b16 %v43
  %v88 = vunpack.c.l.b16 %v44
  %v89 = vunpack.c.l.b16 %v45
  %v90 = vunpack.c.l.b16 %v46
  %v91 = vpack.c.b16 %v76, %v75
  %v92 = vpack.c.b16 %v78, %v77
  %v93 = vpack.c.b16 %v80, %v79
  %v94 = vpack.c.b16 %v82, %v81
  %v95 = vpack.c.b16 %v84, %v83
  %v96 = vpack.c.b16 %v86, %v85
  %v97 = vpack.c.b16 %v88, %v87
  %v98 = vpack.c.b16 %v90, %v89
  %107 = vmatprep.subr.bf16.mxu0 0
  %108 = vmatpush1.bf16.msra.mxu0 %v91
  %109 = vmatprep.subr.bf16.mxu0 0
  %110 = vmatpush1.bf16.msra.mxu0 %v92
  %111 = vmatprep.subr.bf16.mxu0 0
  %112 = vmatpush1.bf16.msra.mxu0 %v93
  %113 = vmatprep.subr.bf16.mxu0 0
  %114 = vmatpush1.bf16.msra.mxu0 %v94
  %115 = vmatprep.subr.bf16.mxu0 0
  %116 = vmatpush1.bf16.msra.mxu0 %v95
  %117 = vmatprep.subr.bf16.mxu0 0
  %118 = vmatpush1.bf16.msra.mxu0 %v96
  %119 = vmatprep.subr.bf16.mxu0 0
  %120 = vmatpush1.bf16.msra.mxu0 %v97
  %121 = vmatprep.subr.bf16.mxu0 0
  %122 = vmatpush1.bf16.msra.mxu0 %v98
  %123 = vmatprep.subr.bf16.mxu0 0
  %124 = vmatpush1.bf16.msra.mxu0 0
  %125 = vmatprep.subr.bf16.mxu0 0
  %126 = vmatpush1.bf16.msra.mxu0 0
  %127 = vmatprep.subr.bf16.mxu0 0
  %128 = vmatpush1.bf16.msra.mxu0 0
  %129 = vmatprep.subr.bf16.mxu0 0
  %130 = vmatpush1.bf16.msra.mxu0 0
  %131 = vmatprep.subr.bf16.mxu0 0
  %132 = vmatpush1.bf16.msra.mxu0 0
  %133 = vmatprep.subr.bf16.mxu0 0
  %134 = vmatpush1.bf16.msra.mxu0 0
  %135 = vmatprep.subr.bf16.mxu0 0
  %136 = vmatpush1.bf16.msra.mxu0 0
  %137 = vmatprep.subr.bf16.mxu0 0
  %138 = vmatpush1.bf16.msra.mxu0 0
  %139 = vmatprep.mubr.bf16.mxu0 0
  %140 = vmatmul.mubr.bf16.gmra.mrb[0].mxu0 %v55
  %v141 = vpop.f32.mrb[0].mxu0
  %v142 = vadd.f32 0.0, %v141
  %v143 = vpop.f32.mrb[0].mxu0
  %v144 = vpop.f32.mrb[0].mxu0
  %v145 = vadd.f32 0.0, %v144
  %v146 = vpop.f32.mrb[0].mxu0
  %147 = vmatprep.mubr.bf16.mxu0 0
  %148 = vmatmul.mubr.bf16.gmra.mrb[0].mxu0 %v56
  %v149 = vpop.f32.mrb[0].mxu0
  %v150 = vadd.f32 0.0, %v149
  %v151 = vpop.f32.mrb[0].mxu0
  %v152 = vpop.f32.mrb[0].mxu0
  %v153 = vadd.f32 0.0, %v152
  %v154 = vpop.f32.mrb[0].mxu0
  %155 = vdwg.mxu0
  %v156 = vadd.f32 %v23, %v142
  %v157 = vadd.f32 %v24, %v145
  %v158 = vadd.f32 %v25, %v150
  %v159 = vadd.f32 %v26, %v153
  %160 = vst [vmem:[#allocation2] sm:$0xff] %v156
  %161 = vst [vmem:[#allocation2 + $0x8] sm:$0xff] %v157
  %162 = vst [vmem:[#allocation2 + $0x10] sm:$0xff] %v158
  %163 = vst [vmem:[#allocation2 + $0x18] sm:$0xff] %v159
  // Predicated region
  $region18: #{flux_forward.16} parent=0 // pred_check
    %p164 = pneg %p15
  $region19: #{flux_forward.16} parent=0 // pred_check_branch
    %166 = sbr.rel (%p164) target = $region21
  $region20: #{flux_forward.16} parent=0 // pred_region
    %v167 = vld [vmem:[#allocation2] sm:$0xff]
    %v168 = vld [vmem:[#allocation2 + $0x8] sm:$0xff]
    %v169 = vld [vmem:[#allocation2 + $0x10] sm:$0xff]
    %v170 = vld [vmem:[#allocation2 + $0x18] sm:$0xff]
    %v171 = vld [vmem:[%s2] sm:$0x1]
    %v173 = vlaneseq
    %v174 = vshrl.u32 %v173, 7
    %v175 = vsub.s32 0, %v174
    %v176 = vrot.slane %v171, %v175
    %v178 = vadd.f32 %v167, %v176
    %v179 = vadd.f32 %v168, %v176
    %v180 = vadd.f32 %v169, %v176
    %v181 = vadd.f32 %v170, %v176
    %182 = vst [vmem:[%s3] sm:$0xff] %v178
    %183 = vst [vmem:[%s3 + $0x8] sm:$0xff] %v179
    %184 = vst [vmem:[%s3 + $0x10] sm:$0xff] %v180
    %185 = vst [vmem:[%s3 + $0x18] sm:$0xff] %v181
  $region21: #{flux_forward.16} parent=0 // pred_fallthru
    _
  // Predicated region
  $region22: #{flux_forward.16} parent=0 // pred_check
    _
  $region23: #{flux_forward.16} parent=0 // pred_check_branch
    %187 = sbr.rel (0) target = $region25
  $region24: #{flux_forward.16} parent=0 // pred_region
    _
  $region25: #{flux_forward.16} parent=0 // pred_fallthru
    _
  // Predicated region
  $region26: #{flux_forward.16} parent=0 // pred_check
    _
  $region27: #{flux_forward.16} parent=0 // pred_check_branch
    %189 = sbr.rel (0) target = $region29
  $region28: #{flux_forward.16} parent=0 // pred_region
    _
  $region29: #{flux_forward.16} parent=0 // pred_fallthru
    _

// kernel: flux_forward.18
$region0: #{flux_forward.18}
  #allocation0 [shape = 'u32[]', space=smem, size = 0x4, offset = 0x4, fixed_abs, tag = 'smem constant byte address 0x4 - core index']
  #allocation1 [shape = 'u32[144,128]{1,0:T(1,128)}', space=vmem, size = 0x12000, scoped, tag = 'internal scratch']
  #allocation2 [shape = 'f32[32,256]{1,0:T(8,128)}', space=vmem, size = 0x8000, scoped, tag = 'scratch operand']
  %s0 = inlined_call_operand.vmem [shape: bf16[32,128], index: 0, kind: input, shape index: {}]
  %s1 = inlined_call_operand.vmem [shape: bf16[128,512], index: 1, kind: input, shape index: {}]
  %s2 = inlined_call_operand.vmem [shape: f32[1,512], index: 2, kind: input, shape index: {}]
  %s3 = inlined_call_operand.vmem [shape: f32[32,512], index: 3, kind: output, shape index: {}]
  %s4 = sld [smem:[#allocation0]]
  $region110: #{flux_forward.18} parent=0
    _
  %s6 = ssub.s32 1, %s4
  %s7 = scalar_select 0, %s6, %s4
  $region1: #{flux_forward.18} parent=0
    #allocation3 [shape = 'u8[131072]{0}', space=vmem, size = 0x20000, scoped, tag = 'input window, operand 1']
    #allocation4 [shape = 'u8[65536]{0}', space=vmem, size = 0x10000, scoped, tag = 'output window, operand 0']
    loop: start=0, step=1, limit=4
    $region2: #{flux_forward.18} parent=1 // loop_pre_header
      _
    $region3: #{flux_forward.18} parent=1 // loop_header
      %s9 = sphi 0, %s13
      %p10 = scmp.ge.s32.totalorder %s9, 4
      %s16 = sphi 0, %s35
      %s17 = sphi 0, %s31
      %s18 = sphi 0, %s27
      %s19 = sphi 0, %s16
      %s20 = sphi 0, %s17
      %s21 = sphi 0, %s18
      %s22 = sphi 0, %s19
      %s23 = sphi 0, %s20
      %s24 = sphi 0, %s21
      %s40 = sphi 0, %s42
      %s43 = sphi 0, %s40
      %s44 = sphi 0, %s43
      %s60 = sphi 0, %s44
      %s68 = sphi 0, %s70
      %s71 = sphi 0, %s68
      %s72 = sphi 0, %s71
      %s88 = sphi 0, %s72
      %s94 = sphi 0, %s96
      %s97 = sphi 0, %s94
      %s98 = sphi 0, %s97
      %s114 = sphi 0, %s98
      %s122 = sphi 0, %s124
      %s125 = sphi 0, %s122
      %s126 = sphi 0, %s125
      %s142 = sphi 0, %s126
    $region4: #{flux_forward.18} parent=1 // loop_header_branch
      %12 = sbr.rel (%p10) target = $region8
    $region5: #{flux_forward.18} parent=1 // loop_body
      %s14 = ssub.s32 %s9, 1
      %s15 = ssub.s32 %s9, 2
      %s25 = sadd.s32 1, %s18
      %p26 = scmp.ge.s32.totalorder %s25, 1
      %s27 = scalar_select %p26, 0, %s25
      %s28 = sadd.s32 1, %s17
      %s29 = scalar_select %p26, %s28, %s17
      %p30 = scmp.ge.s32.totalorder %s29, 2
      %s31 = scalar_select %p30, 0, %s29
      %s32 = sadd.s32 1, %s16
      %s33 = scalar_select %p30, %s32, %s16
      %p34 = scmp.ge.s32.totalorder %s33, 1
      %s35 = scalar_select %p34, 0, %s33
      %s36 = ssub.s32 %s16, %s35
      %s37 = ssub.s32 %s18, %s27
      %s38 = sor.u32 %s36, %s37
      %p39 = scmp.eq.s32.totalorder %s38, 0
      %s41 = sadd.s32 %s40, 1
      %s42 = scalar_select %p39, %s40, %s41
      %p45 = pneg %p39
      %p46 = scmp.eq.s32.totalorder %s9, 1
      %p47 = por %p45, %p46
      %p48 = scmp.ne.s32.totalorder %s40, %s43
      %p49 = scmp.eq.s32.totalorder %s9, 0
      %p50 = por %p48, %p49
      %p51 = scmp.ne.s32.totalorder %s40, %s43
      %p52 = scmp.eq.s32.totalorder %s14, 1
      %p53 = por %p51, %p52
      %p54 = scmp.ne.s32.totalorder %s43, %s44
      %p55 = scmp.eq.s32.totalorder %s14, 0
      %p56 = por %p54, %p55
      %p57 = scmp.ne.s32.totalorder %s43, %s44
      %p58 = scmp.eq.s32.totalorder %s15, 1
      %p59 = por %p57, %p58
      %p61 = scmp.ne.s32.totalorder %s44, %s60
      %p62 = scmp.eq.s32.totalorder %s15, 0
      %p63 = por %p61, %p62
      %s64 = ssub.s32 %s18, %s27
      %s65 = ssub.s32 %s17, %s31
      %s66 = sor.u32 %s64, %s65
      %p67 = scmp.eq.s32.totalorder %s66, 0
      %s69 = sadd.s32 %s68, 1
      %s70 = scalar_select %p67, %s68, %s69
      %p73 = pneg %p67
      %p74 = scmp.eq.s32.totalorder %s9, 1
      %p75 = por %p73, %p74
      %p76 = scmp.ne.s32.totalorder %s68, %s71
      %p77 = scmp.eq.s32.totalorder %s9, 0
      %p78 = por %p76, %p77
      %p79 = scmp.ne.s32.totalorder %s68, %s71
      %p80 = scmp.eq.s32.totalorder %s14, 1
      %p81 = por %p79, %p80
      %p82 = scmp.ne.s32.totalorder %s71, %s72
      %p83 = scmp.eq.s32.totalorder %s14, 0
      %p84 = por %p82, %p83
      %p85 = scmp.ne.s32.totalorder %s71, %s72
      %p86 = scmp.eq.s32.totalorder %s15, 1
      %p87 = por %p85, %p86
      %p89 = scmp.ne.s32.totalorder %s72, %s88
      %p90 = scmp.eq.s32.totalorder %s15, 0
      %p91 = por %p89, %p90
      %s92 = ssub.s32 %s17, %s31
      %p93 = scmp.eq.s32.totalorder %s92, 0
      %s95 = sadd.s32 %s94, 1
      %s96 = scalar_select %p93, %s94, %s95
      %p99 = pneg %p93
      %p100 = scmp.eq.s32.totalorder %s9, 1
      %p101 = por %p99, %p100
      %p102 = scmp.ne.s32.totalorder %s94, %s97
      %p103 = scmp.eq.s32.totalorder %s9, 0
      %p104 = por %p102, %p103
      %p105 = scmp.ne.s32.totalorder %s94, %s97
      %p106 = scmp.eq.s32.totalorder %s14, 1
      %p107 = por %p105, %p106
      %p108 = scmp.ne.s32.totalorder %s97, %s98
      %p109 = scmp.eq.s32.totalorder %s14, 0
      %p110 = por %p108, %p109
      %p111 = scmp.ne.s32.totalorder %s97, %s98
      %p112 = scmp.eq.s32.totalorder %s15, 1
      %p113 = por %p111, %p112
      %p115 = scmp.ne.s32.totalorder %s98, %s114
      %p116 = scmp.eq.s32.totalorder %s15, 0
      %p117 = por %p115, %p116
      %s118 = ssub.s32 %s16, %s35
      %s119 = ssub.s32 %s17, %s31
      %s120 = sor.u32 %s118, %s119
      %p121 = scmp.eq.s32.totalorder %s120, 0
      %s123 = sadd.s32 %s122, 1
      %s124 = scalar_select %p121, %s122, %s123
      %p127 = pneg %p121
      %p128 = scmp.eq.s32.totalorder %s9, 1
      %p129 = por %p127, %p128
      %p130 = scmp.ne.s32.totalorder %s122, %s125
      %p131 = scmp.eq.s32.totalorder %s9, 0
      %p132 = por %p130, %p131
      %p133 = scmp.ne.s32.totalorder %s122, %s125
      %p134 = scmp.eq.s32.totalorder %s14, 1
      %p135 = por %p133, %p134
      %p136 = scmp.ne.s32.totalorder %s125, %s126
      %p137 = scmp.eq.s32.totalorder %s14, 0
      %p138 = por %p136, %p137
      %p139 = scmp.ne.s32.totalorder %s125, %s126
      %p140 = scmp.eq.s32.totalorder %s15, 1
      %p141 = por %p139, %p140
      %p143 = scmp.ne.s32.totalorder %s126, %s142
      %p144 = scmp.eq.s32.totalorder %s15, 0
      %p145 = por %p143, %p144
      %p146 = scmp.le.s32.totalorder 1, %s9
      %p147 = scmp.lt.s32.totalorder %s9, 3
      %p148 = pnand %p146, %p147
      %p149 = pneg %p148
      // Predicated region
      $region9: #{flux_forward.18} parent=5 // pred_check
        _
      $region10: #{flux_forward.18} parent=5 // pred_check_branch
        %151 = sbr.rel (%p148) target = $region12
      $region11: #{flux_forward.18} parent=5 // pred_region
        %s152 = ssub.s32 %s9, 1
        // Predicated region
        $region13: #{flux_forward.18} parent=11 // pred_check
          %p153 = pneg %p56
        $region14: #{flux_forward.18} parent=11 // pred_check_branch
          %155 = sbr.rel (%p153) target = $region16
        $region15: #{flux_forward.18} parent=11 // pred_region
          %s156 = smul.u32 4, %s19
          %p157 = scmp.lt.s32.totalorder %s156, 3
          %s158 = scalar_select %p157, %s156, 3
          %p159 = scmp.lt.s32.totalorder %s21, 0
          %s160 = scalar_select %p159, %s21, 0
          %s161 = sadd.s32 %s160, %s158
          %s162 = smul.addr %s161, 4
          %s163 = scalar_lea.vmem %s0, %s162
          %s164 = smul.u32 4, %s19
        $region16: #{flux_forward.18} parent=11 // pred_fallthru
          _
      $region12: #{flux_forward.18} parent=5 // pred_fallthru
        _
      %p165 = scmp.lt.s32.totalorder %s9, 2
      // Predicated region
      $region17: #{flux_forward.18} parent=5 // pred_check
        %p166 = pneg %p165
      $region18: #{flux_forward.18} parent=5 // pred_check_branch
        %168 = sbr.rel (%p166) target = $region20
      $region19: #{flux_forward.18} parent=5 // pred_region
        // Predicated region
        $region21: #{flux_forward.18} parent=19 // pred_check
          %p169 = pneg %p78
        $region22: #{flux_forward.18} parent=19 // pred_check_branch
          %171 = sbr.rel (%p169) target = $region24
        $region23: #{flux_forward.18} parent=19 // pred_region
          %s172 = sand.u32 %s68, 1
          %s173 = sand.u32 %s68, 1
          %s174 = smul.addr %s173, 128
          %s175 = scalar_lea.vmem [#allocation3], %s174
          %s176 = smul.u32 16, %s18
          %s177 = smul.u32 2, %s17
          %s178 = smul.addr %s176, 4
          %s179 = sadd.s32 %s177, %s178
          %s180 = smul.addr %s179, 4
          %s181 = scalar_lea.vmem %s1, %s180
          // Predicated region
          $region25: #{flux_forward.18} parent=23 // pred_check
            _
          $region26: #{flux_forward.18} parent=23 // pred_check_branch
            %183 = sbr.rel (0) target = $region28
          $region27: #{flux_forward.18} parent=23 // pred_region
            // Predicated region
            $region29: #{flux_forward.18} parent=27 // pred_check
              _
            $region30: #{flux_forward.18} parent=27 // pred_check_branch
              %185 = sbr.rel (0) target = $region32
            $region31: #{flux_forward.18} parent=27 // pred_region
              // Predicated region
              $region44: #{flux_forward.18} parent=31 // pred_check
                _
              $region45: #{flux_forward.18} parent=31 // pred_check_branch
                %230 = sbr.rel (0) target = $region47
              $region46: #{flux_forward.18} parent=31 // pred_region
                loop: start=0, step=1, limit=1
                $region48: #{flux_forward.18} parent=46 // loop_pre_header
                  _
                $region49: #{flux_forward.18} parent=46 // loop_header
                  %s232 = sphi 0, %s236
                  %p233 = scmp.ge.s32.totalorder %s232, 1
                  %s237 = sphi %s181, %s181
                  %s238 = sphi %s175, %s175
                $region50: #{flux_forward.18} parent=46 // loop_header_branch
                  %235 = sbr.rel (%p233) target = $region54
                $region51: #{flux_forward.18} parent=46 // loop_body
                  %v239 = vld [vmem:[%s237] sm:$0xff]
                  %240 = vst [vmem:[%s238] sm:$0xff] %v239
                  %v241 = vld [vmem:[%s237 + $0x10] sm:$0xff]
                  %242 = vst [vmem:[%s238 + $0x8] sm:$0xff] %v241
                  %v243 = vld [vmem:[%s237 + $0x20] sm:$0xff]
                  %244 = vst [vmem:[%s238 + $0x10] sm:$0xff] %v243
                  %v245 = vld [vmem:[%s237 + $0x30] sm:$0xff]
                  %246 = vst [vmem:[%s238 + $0x18] sm:$0xff] %v245
                  %v247 = vld [vmem:[%s237 + $0x40] sm:$0xff]
                  %248 = vst [vmem:[%s238 + $0x20] sm:$0xff] %v247
                  %v249 = vld [vmem:[%s237 + $0x50] sm:$0xff]
                  %250 = vst [vmem:[%s238 + $0x28] sm:$0xff] %v249
                  %v251 = vld [vmem:[%s237 + $0x60] sm:$0xff]
                  %252 = vst [vmem:[%s238 + $0x30] sm:$0xff] %v251
                  %v253 = vld [vmem:[%s237 + $0x70] sm:$0xff]
                  %254 = vst [vmem:[%s238 + $0x38] sm:$0xff] %v253
                  %v255 = vld [vmem:[%s237 + $0x80] sm:$0xff]
                  %256 = vst [vmem:[%s238 + $0x40] sm:$0xff] %v255
                  %v257 = vld [vmem:[%s237 + $0x90] sm:$0xff]
                  %258 = vst [vmem:[%s238 + $0x48] sm:$0xff] %v257
                  %v259 = vld [vmem:[%s237 + $0xa0] sm:$0xff]
                  %260 = vst [vmem:[%s238 + $0x50] sm:$0xff] %v259
                  %v261 = vld [vmem:[%s237 + $0xb0] sm:$0xff]
                  %262 = vst [vmem:[%s238 + $0x58] sm:$0xff] %v261
                  %v263 = vld [vmem:[%s237 + $0xc0] sm:$0xff]
                  %264 = vst [vmem:[%s238 + $0x60] sm:$0xff] %v263
                  %v265 = vld [vmem:[%s237 + $0xd0] sm:$0xff]
                  %266 = vst [vmem:[%s238 + $0x68] sm:$0xff] %v265
                  %v267 = vld [vmem:[%s237 + $0xe0] sm:$0xff]
                  %268 = vst [vmem:[%s238 + $0x70] sm:$0xff] %v267
                  %v269 = vld [vmem:[%s237 + $0xf0] sm:$0xff]
                  %270 = vst [vmem:[%s238 + $0x78] sm:$0xff] %v269
                $region52: #{flux_forward.18} parent=46 // loop_footer
                  %s236 = sadd.s32 1, %s232
                $region53: #{flux_forward.18} parent=46 // loop_footer_branch
                  %231 = sbr.rel target = $region49
                $region54: #{flux_forward.18} parent=46 // loop_exit
                  _
              $region47: #{flux_forward.18} parent=31 // pred_fallthru
                _
              // Predicated region
              $region55: #{flux_forward.18} parent=31 // pred_check
                _
              $region56: #{flux_forward.18} parent=31 // pred_check_branch
                %272 = sbr.rel target = $region58
              $region57: #{flux_forward.18} parent=31 // pred_region
                _
              $region58: #{flux_forward.18} parent=31 // pred_fallthru
                _
            $region32: #{flux_forward.18} parent=27 // pred_fallthru
              _
            // Predicated region
            $region33: #{flux_forward.18} parent=27 // pred_check
              _
            $region34: #{flux_forward.18} parent=27 // pred_check_branch
              %187 = sbr.rel target = $region36
            $region35: #{flux_forward.18} parent=27 // pred_region
              loop: start=0, step=1, limit=1
              $region37: #{flux_forward.18} parent=35 // loop_pre_header
                _
              $region38: #{flux_forward.18} parent=35 // loop_header
                %s190 = sphi 0, %s194
                %p191 = scmp.ge.s32.totalorder %s190, 1
                %s195 = sphi %s181, %s181
                %s196 = sphi %s175, %s175
              $region39: #{flux_forward.18} parent=35 // loop_header_branch
                %193 = sbr.rel (%p191) target = $region43
              $region40: #{flux_forward.18} parent=35 // loop_body
                %v197 = vld [vmem:[%s195] sm:$0xff]
                %198 = vst [vmem:[%s196] sm:$0xff] %v197
                %v199 = vld [vmem:[%s195 + $0x10] sm:$0xff]
                %200 = vst [vmem:[%s196 + $0x8] sm:$0xff] %v199
                %v201 = vld [vmem:[%s195 + $0x20] sm:$0xff]
                %202 = vst [vmem:[%s196 + $0x10] sm:$0xff] %v201
                %v203 = vld [vmem:[%s195 + $0x30] sm:$0xff]
                %204 = vst [vmem:[%s196 + $0x18] sm:$0xff] %v203
                %v205 = vld [vmem:[%s195 + $0x40] sm:$0xff]
                %206 = vst [vmem:[%s196 + $0x20] sm:$0xff] %v205
                %v207 = vld [vmem:[%s195 + $0x50] sm:$0xff]
                %208 = vst [vmem:[%s196 + $0x28] sm:$0xff] %v207
                %v209 = vld [vmem:[%s195 + $0x60] sm:$0xff]
                %210 = vst [vmem:[%s196 + $0x30] sm:$0xff] %v209
                %v211 = vld [vmem:[%s195 + $0x70] sm:$0xff]
                %212 = vst [vmem:[%s196 + $0x38] sm:$0xff] %v211
                %v213 = vld [vmem:[%s195 + $0x80] sm:$0xff]
                %214 = vst [vmem:[%s196 + $0x40] sm:$0xff] %v213
                %v215 = vld [vmem:[%s195 + $0x90] sm:$0xff]
                %216 = vst [vmem:[%s196 + $0x48] sm:$0xff] %v215
                %v217 = vld [vmem:[%s195 + $0xa0] sm:$0xff]
                %218 = vst [vmem:[%s196 + $0x50] sm:$0xff] %v217
                %v219 = vld [vmem:[%s195 + $0xb0] sm:$0xff]
                %220 = vst [vmem:[%s196 + $0x58] sm:$0xff] %v219
                %v221 = vld [vmem:[%s195 + $0xc0] sm:$0xff]
                %222 = vst [vmem:[%s196 + $0x60] sm:$0xff] %v221
                %v223 = vld [vmem:[%s195 + $0xd0] sm:$0xff]
                %224 = vst [vmem:[%s196 + $0x68] sm:$0xff] %v223
                %v225 = vld [vmem:[%s195 + $0xe0] sm:$0xff]
                %226 = vst [vmem:[%s196 + $0x70] sm:$0xff] %v225
                %v227 = vld [vmem:[%s195 + $0xf0] sm:$0xff]
                %228 = vst [vmem:[%s196 + $0x78] sm:$0xff] %v227
              $region41: #{flux_forward.18} parent=35 // loop_footer
                %s194 = sadd.s32 1, %s190
              $region42: #{flux_forward.18} parent=35 // loop_footer_branch
                %189 = sbr.rel target = $region38
              $region43: #{flux_forward.18} parent=35 // loop_exit
                _
            $region36: #{flux_forward.18} parent=27 // pred_fallthru
              _
          $region28: #{flux_forward.18} parent=23 // pred_fallthru
            _
          %273 = vnop
        $region24: #{flux_forward.18} parent=19 // pred_fallthru
          _
        // Predicated region
        $region59: #{flux_forward.18} parent=19 // pred_check
          %p274 = pneg %p104
        $region60: #{flux_forward.18} parent=19 // pred_check_branch
          %276 = sbr.rel (%p274) target = $region62
        $region61: #{flux_forward.18} parent=19 // pred_region
          %s277 = smul.u32 2, %s17
          %p278 = scmp.lt.s32.totalorder %s277, 3
          %s279 = scalar_select %p278, %s277, 3
          %s280 = scalar_lea.vmem %s2, %s279
          %s281 = smul.u32 2, %s17
        $region62: #{flux_forward.18} parent=19 // pred_fallthru
          _
      $region20: #{flux_forward.18} parent=5 // pred_fallthru
        _
      %p282 = scmp.le.s32.totalorder 1, %s9
      %p283 = scmp.lt.s32.totalorder %s9, 3
      %p284 = pnand %p282, %p283
      %p285 = pneg %p284
      // Predicated region
      $region63: #{flux_forward.18} parent=5 // pred_check
        _
      $region64: #{flux_forward.18} parent=5 // pred_check_branch
        %287 = sbr.rel (%p284) target = $region66
      $region65: #{flux_forward.18} parent=5 // pred_region
        %s288 = ssub.s32 %s9, 1
        %s289 = sand.u32 %s71, 1
        %s290 = sand.u32 %s71, 1
        %s291 = smul.addr %s290, 128
        %s292 = scalar_lea.vmem [#allocation3], %s291
        // Predicated region
        $region67: #{flux_forward.18} parent=65 // pred_check
          %p293 = pneg %p84
        $region68: #{flux_forward.18} parent=65 // pred_check_branch
          %295 = sbr.rel (%p293) target = $region70
        $region69: #{flux_forward.18} parent=65 // pred_region
          _
        $region70: #{flux_forward.18} parent=65 // pred_fallthru
          _
        %s296 = smul.u32 4, %s19
        %p297 = scmp.lt.s32.totalorder %s296, 3
        %s298 = scalar_select %p297, %s296, 3
        %p299 = scmp.lt.s32.totalorder %s21, 0
        %s300 = scalar_select %p299, %s21, 0
        %s301 = sadd.s32 %s300, %s298
        %s302 = smul.addr %s301, 4
        %s303 = scalar_lea.vmem %s0, %s302
        %p304 = pneg %p56
        %p305 = pneg %p53
        %s306 = sand.u32 %s71, 1
        %s307 = sand.u32 %s71, 1
        %s308 = smul.addr %s307, 128
        %s309 = scalar_lea.vmem [#allocation3], %s308
        %p310 = pneg %p84
        %p311 = pneg %p81
        %s312 = smul.u32 2, %s20
        %p313 = scmp.lt.s32.totalorder %s312, 3
        %s314 = scalar_select %p313, %s312, 3
        %s315 = scalar_lea.vmem %s2, %s314
        %p316 = pneg %p110
        %p317 = pneg %p107
        %p318 = pneg %p138
        %p319 = pneg %p135
        %s320 = sand.u32 %s125, 1
        %s321 = sand.u32 %s125, 1
        %s322 = smul.addr %s321, 64
        %s323 = scalar_lea.vmem [#allocation4], %s322
        %s324 = smul.u32 4, %s19
        %p325 = scmp.lt.s32.totalorder %s324, 3
        %s326 = scalar_select %p325, %s324, 3
        %p327 = scmp.lt.s32.totalorder %s21, 0
        %s328 = scalar_select %p327, %s21, 0
        %s329 = sadd.s32 %s328, %s326
        %s330 = smul.addr %s329, 4
        %s331 = scalar_lea.vmem %s0, %s330
        %s332 = smul.u32 4, %s19
        %s333 = smul.u32 16, %s21
        %s334 = smul.u32 2, %s20
        %s335 = smul.u32 2, %s20
        %p336 = scmp.lt.s32.totalorder %s335, 3
        %s337 = scalar_select %p336, %s335, 3
        %s338 = scalar_lea.vmem %s2, %s337
        %s339 = smul.u32 2, %s20
        %s340 = smul.u32 4, %s19
        %s341 = smul.u32 2, %s20
        %p343 = scmp.eq.s32.totalorder %s21, 0
        // Predicated region
        $region71: #{flux_forward.18} parent=65 // pred_check
          %p344 = pneg %p343
        $region72: #{flux_forward.18} parent=65 // pred_check_branch
          %346 = sbr.rel (%p344) target = $region74
        $region73: #{flux_forward.18} parent=65 // pred_region
          %347 = vst [vmem:[#allocation2] sm:$0xff] 0.0
          %348 = vst [vmem:[#allocation2 + $0x8] sm:$0xff] 0.0
          %349 = vst [vmem:[#allocation2 + $0x10] sm:$0xff] 0.0
          %350 = vst [vmem:[#allocation2 + $0x18] sm:$0xff] 0.0
          %351 = vst [vmem:[#allocation2 + $0x20] sm:$0xff] 0.0
          %352 = vst [vmem:[#allocation2 + $0x28] sm:$0xff] 0.0
          %353 = vst [vmem:[#allocation2 + $0x30] sm:$0xff] 0.0
          %354 = vst [vmem:[#allocation2 + $0x38] sm:$0xff] 0.0
        $region74: #{flux_forward.18} parent=65 // pred_fallthru
          _
        %v355 = vld [vmem:[#allocation2] sm:$0xff]
        %v356 = vld [vmem:[#allocation2 + $0x8] sm:$0xff]
        %v357 = vld [vmem:[#allocation2 + $0x10] sm:$0xff]
        %v358 = vld [vmem:[#allocation2 + $0x18] sm:$0xff]
        %v359 = vld [vmem:[#allocation2 + $0x20] sm:$0xff]
        %v360 = vld [vmem:[#allocation2 + $0x28] sm:$0xff]
        %v361 = vld [vmem:[#allocation2 + $0x30] sm:$0xff]
        %v362 = vld [vmem:[#allocation2 + $0x38] sm:$0xff]
        %v363 = vld [vmem:[%s331] sm:$0xf]
        %v364 = vld [vmem:[%s331 + $0x4] sm:$0xf]
        %v365 = vld [vmem:[%s331 + $0x8] sm:$0xf]
        %v366 = vld [vmem:[%s331 + $0xc] sm:$0xf]
        %v367 = vld [vmem:[%s292] sm:$0xff]
        %v368 = vld [vmem:[%s292 + $0x8] sm:$0xff]
        %v369 = vld [vmem:[%s292 + $0x10] sm:$0xff]
        %v370 = vld [vmem:[%s292 + $0x18] sm:$0xff]
        %v371 = vld [vmem:[%s292 + $0x20] sm:$0xff]
        %v372 = vld [vmem:[%s292 + $0x28] sm:$0xff]
        %v373 = vld [vmem:[%s292 + $0x30] sm:$0xff]
        %v374 = vld [vmem:[%s292 + $0x38] sm:$0xff]
        %v375 = vld [vmem:[%s292 + $0x40] sm:$0xff]
        %v376 = vld [vmem:[%s292 + $0x48] sm:$0xff]
        %v377 = vld [vmem:[%s292 + $0x50] sm:$0xff]
        %v378 = vld [vmem:[%s292 + $0x58] sm:$0xff]
        %v379 = vld [vmem:[%s292 + $0x60] sm:$0xff]
        %v380 = vld [vmem:[%s292 + $0x68] sm:$0xff]
        %v381 = vld [vmem:[%s292 + $0x70] sm:$0xff]
        %v382 = vld [vmem:[%s292 + $0x78] sm:$0xff]
        %v387 = vunpack.c.l.b16 %v363
        %v388 = vunpack.c.l.b16 %v364
        %v389 = vunpack.c.l.b16 %v365
        %v390 = vunpack.c.l.b16 %v366
        %v391 = vpack.c.b16 %v388, %v387
        %v392 = vpack.c.b16 %v390, %v389
        %v411 = vunpack.c.l.b16 %v367
        %v412 = vunpack.c.h.b16 %v367
        %v413 = vunpack.c.l.b16 %v368
        %v414 = vunpack.c.h.b16 %v368
        %v415 = vunpack.c.l.b16 %v369
        %v416 = vunpack.c.h.b16 %v369
        %v417 = vunpack.c.l.b16 %v370
        %v418 = vunpack.c.h.b16 %v370
        %v419 = vunpack.c.l.b16 %v371
        %v420 = vunpack.c.h.b16 %v371
        %v421 = vunpack.c.l.b16 %v372
        %v422 = vunpack.c.h.b16 %v372
        %v423 = vunpack.c.l.b16 %v373
        %v424 = vunpack.c.h.b16 %v373
        %v425 = vunpack.c.l.b16 %v374
        %v426 = vunpack.c.h.b16 %v374
        %v427 = vunpack.c.l.b16 %v375
        %v428 = vunpack.c.h.b16 %v375
        %v429 = vunpack.c.l.b16 %v376
        %v430 = vunpack.c.h.b16 %v376
        %v431 = vunpack.c.l.b16 %v377
        %v432 = vunpack.c.h.b16 %v377
        %v433 = vunpack.c.l.b16 %v378
        %v434 = vunpack.c.h.b16 %v378
        %v435 = vunpack.c.l.b16 %v379
        %v436 = vunpack.c.h.b16 %v379
        %v437 = vunpack.c.l.b16 %v380
        %v438 = vunpack.c.h.b16 %v380
        %v439 = vunpack.c.l.b16 %v381
        %v440 = vunpack.c.h.b16 %v381
        %v441 = vunpack.c.l.b16 %v382
        %v442 = vunpack.c.h.b16 %v382
        %v443 = vpack.c.b16 %v413, %v411
        %v444 = vpack.c.b16 %v414, %v412
        %v445 = vpack.c.b16 %v417, %v415
        %v446 = vpack.c.b16 %v418, %v416
        %v447 = vpack.c.b16 %v421, %v419
        %v448 = vpack.c.b16 %v422, %v420
        %v449 = vpack.c.b16 %v425, %v423
        %v450 = vpack.c.b16 %v426, %v424
        %v451 = vpack.c.b16 %v429, %v427
        %v452 = vpack.c.b16 %v430, %v428
        %v453 = vpack.c.b16 %v433, %v431
        %v454 = vpack.c.b16 %v434, %v432
        %v455 = vpack.c.b16 %v437, %v435
        %v456 = vpack.c.b16 %v438, %v436
        %v457 = vpack.c.b16 %v441, %v439
        %v458 = vpack.c.b16 %v442, %v440
        %475 = vmatprep.subr.bf16.mxu0 %v444
        %476 = vmatpush1.bf16.msra.mxu0 %v443
        %477 = vmatprep.subr.bf16.mxu0 %v446
        %478 = vmatpush1.bf16.msra.mxu0 %v445
        %479 = vmatprep.subr.bf16.mxu0 %v448
        %480 = vmatpush1.bf16.msra.mxu0 %v447
        %481 = vmatprep.subr.bf16.mxu0 %v450
        %482 = vmatpush1.bf16.msra.mxu0 %v449
        %483 = vmatprep.subr.bf16.mxu0 %v452
        %484 = vmatpush1.bf16.msra.mxu0 %v451
        %485 = vmatprep.subr.bf16.mxu0 %v454
        %486 = vmatpush1.bf16.msra.mxu0 %v453
        %487 = vmatprep.subr.bf16.mxu0 %v456
        %488 = vmatpush1.bf16.msra.mxu0 %v455
        %489 = vmatprep.subr.bf16.mxu0 %v458
        %490 = vmatpush1.bf16.msra.mxu0 %v457
        %491 = vmatprep.subr.bf16.mxu0 0
        %492 = vmatpush1.bf16.msra.mxu0 0
        %493 = vmatprep.subr.bf16.mxu0 0
        %494 = vmatpush1.bf16.msra.mxu0 0
        %495 = vmatprep.subr.bf16.mxu0 0
        %496 = vmatpush1.bf16.msra.mxu0 0
        %497 = vmatprep.subr.bf16.mxu0 0
        %498 = vmatpush1.bf16.msra.mxu0 0
        %499 = vmatprep.subr.bf16.mxu0 0
        %500 = vmatpush1.bf16.msra.mxu0 0
        %501 = vmatprep.subr.bf16.mxu0 0
        %502 = vmatpush1.bf16.msra.mxu0 0
        %503 = vmatprep.subr.bf16.mxu0 0
        %504 = vmatpush1.bf16.msra.mxu0 0
        %505 = vmatprep.subr.bf16.mxu0 0
        %506 = vmatpush1.bf16.msra.mxu0 0
        %507 = vmatprep.mubr.bf16.mxu0 0
        %508 = vmatmul.mubr.bf16.gmra.mrb[0].mxu0 %v391
        %v509 = vpop.f32.mrb[0].mxu0
        %v510 = vadd.f32 0.0, %v509
        %v511 = vpop.f32.mrb[0].mxu0
        %v512 = vadd.f32 0.0, %v511
        %v513 = vpop.f32.mrb[0].mxu0
        %v514 = vadd.f32 0.0, %v513
        %v515 = vpop.f32.mrb[0].mxu0
        %v516 = vadd.f32 0.0, %v515
        %517 = vmatprep.mubr.bf16.mxu0 0
        %518 = vmatmul.mubr.bf16.gmra.mrb[0].mxu0 %v392
        %v519 = vpop.f32.mrb[0].mxu0
        %v520 = vadd.f32 0.0, %v519
        %v521 = vpop.f32.mrb[0].mxu0
        %v522 = vadd.f32 0.0, %v521
        %v523 = vpop.f32.mrb[0].mxu0
        %v524 = vadd.f32 0.0, %v523
        %v525 = vpop.f32.mrb[0].mxu0
        %v526 = vadd.f32 0.0, %v525
        %527 = vdwg.mxu0
        %v528 = vadd.f32 %v355, %v510
        %v529 = vadd.f32 %v356, %v512
        %v530 = vadd.f32 %v357, %v514
        %v531 = vadd.f32 %v358, %v516
        %v532 = vadd.f32 %v359, %v520
        %v533 = vadd.f32 %v360, %v522
        %v534 = vadd.f32 %v361, %v524
        %v535 = vadd.f32 %v362, %v526
        %536 = vst [vmem:[#allocation2] sm:$0xff] %v528
        %537 = vst [vmem:[#allocation2 + $0x8] sm:$0xff] %v529
        %538 = vst [vmem:[#allocation2 + $0x10] sm:$0xff] %v530
        %539 = vst [vmem:[#allocation2 + $0x18] sm:$0xff] %v531
        %540 = vst [vmem:[#allocation2 + $0x20] sm:$0xff] %v532
        %541 = vst [vmem:[#allocation2 + $0x28] sm:$0xff] %v533
        %542 = vst [vmem:[#allocation2 + $0x30] sm:$0xff] %v534
        %543 = vst [vmem:[#allocation2 + $0x38] sm:$0xff] %v535
        // Predicated region
        $region75: #{flux_forward.18} parent=65 // pred_check
          %p544 = pneg %p343
        $region76: #{flux_forward.18} parent=65 // pred_check_branch
          %546 = sbr.rel (%p544) target = $region78
        $region77: #{flux_forward.18} parent=65 // pred_region
          %v547 = vld [vmem:[#allocation2] sm:$0xff]
          %v548 = vld [vmem:[#allocation2 + $0x8] sm:$0xff]
          %v549 = vld [vmem:[#allocation2 + $0x10] sm:$0xff]
          %v550 = vld [vmem:[#allocation2 + $0x18] sm:$0xff]
          %v551 = vld [vmem:[#allocation2 + $0x20] sm:$0xff]
          %v552 = vld [vmem:[#allocation2 + $0x28] sm:$0xff]
          %v553 = vld [vmem:[#allocation2 + $0x30] sm:$0xff]
          %v554 = vld [vmem:[#allocation2 + $0x38] sm:$0xff]
          %v555 = vld [vmem:[%s338] sm:$0x3]
          %v557 = vlaneseq
          %v558 = vshrl.u32 %v557, 7
          %v559 = vsub.s32 0, %v558
          %v560 = vrot.slane %v555, %v559
          %v561 = vlaneseq
          %v562 = vshrl.u32 %v561, 7
          %v563 = vsub.s32 1, %v562
          %v564 = vrot.slane %v555, %v563
          %v567 = vadd.f32 %v547, %v560
          %v568 = vadd.f32 %v548, %v564
          %v569 = vadd.f32 %v549, %v560
          %v570 = vadd.f32 %v550, %v564
          %v571 = vadd.f32 %v551, %v560
          %v572 = vadd.f32 %v552, %v564
          %v573 = vadd.f32 %v553, %v560
          %v574 = vadd.f32 %v554, %v564
          %575 = vst [vmem:[%s323] sm:$0xff] %v567
          %576 = vst [vmem:[%s323 + $0x8] sm:$0xff] %v568
          %577 = vst [vmem:[%s323 + $0x10] sm:$0xff] %v569
          %578 = vst [vmem:[%s323 + $0x18] sm:$0xff] %v570
          %579 = vst [vmem:[%s323 + $0x20] sm:$0xff] %v571
          %580 = vst [vmem:[%s323 + $0x28] sm:$0xff] %v572
          %581 = vst [vmem:[%s323 + $0x30] sm:$0xff] %v573
          %582 = vst [vmem:[%s323 + $0x38] sm:$0xff] %v574
        $region78: #{flux_forward.18} parent=65 // pred_fallthru
          _
        %s583 = sand.u32 %s125, 1
        %s584 = sand.u32 %s125, 1
        %s585 = smul.addr %s584, 64
        %s586 = scalar_lea.vmem [#allocation4], %s585
        // Predicated region
        $region79: #{flux_forward.18} parent=65 // pred_check
          %p587 = pneg %p135
        $region80: #{flux_forward.18} parent=65 // pred_check_branch
          %589 = sbr.rel (%p587) target = $region82
        $region81: #{flux_forward.18} parent=65 // pred_region
          %s590 = smul.u32 4, %s19
          %s591 = smul.u32 2, %s20
          %s592 = smul.addr %s590, 4
          %s593 = sadd.s32 %s591, %s592
          %s594 = smul.addr %s593, 8
          %s595 = scalar_lea.vmem %s3, %s594
          // Predicated region
          $region83: #{flux_forward.18} parent=81 // pred_check
            _
          $region84: #{flux_forward.18} parent=81 // pred_check_branch
            %597 = sbr.rel (0) target = $region86
          $region85: #{flux_forward.18} parent=81 // pred_region
            // Predicated region
            $region87: #{flux_forward.18} parent=85 // pred_check
              _
            $region88: #{flux_forward.18} parent=85 // pred_check_branch
              %599 = sbr.rel (0) target = $region90
            $region89: #{flux_forward.18} parent=85 // pred_region
              loop: start=0, step=1, limit=1
              $region91: #{flux_forward.18} parent=89 // loop_pre_header
                _
              $region92: #{flux_forward.18} parent=89 // loop_header
                %s601 = sphi 0, %s605
                %p602 = scmp.ge.s32.totalorder %s601, 1
                %s606 = sphi %s586, %s586
                %s607 = sphi %s595, %s595
              $region93: #{flux_forward.18} parent=89 // loop_header_branch
                %604 = sbr.rel (%p602) target = $region97
              $region94: #{flux_forward.18} parent=89 // loop_body
                %v608 = vld [vmem:[%s606] sm:$0xff]
                %609 = vst [vmem:[%s607] sm:$0xff] %v608
                %v610 = vld [vmem:[%s606 + $0x8] sm:$0xff]
                %611 = vst [vmem:[%s607 + $0x8] sm:$0xff] %v610
                %v612 = vld [vmem:[%s606 + $0x10] sm:$0xff]
                %613 = vst [vmem:[%s607 + $0x20] sm:$0xff] %v612
                %v614 = vld [vmem:[%s606 + $0x18] sm:$0xff]
                %615 = vst [vmem:[%s607 + $0x28] sm:$0xff] %v614
                %v616 = vld [vmem:[%s606 + $0x20] sm:$0xff]
                %617 = vst [vmem:[%s607 + $0x40] sm:$0xff] %v616
                %v618 = vld [vmem:[%s606 + $0x28] sm:$0xff]
                %619 = vst [vmem:[%s607 + $0x48] sm:$0xff] %v618
                %v620 = vld [vmem:[%s606 + $0x30] sm:$0xff]
                %621 = vst [vmem:[%s607 + $0x60] sm:$0xff] %v620
                %v622 = vld [vmem:[%s606 + $0x38] sm:$0xff]
                %623 = vst [vmem:[%s607 + $0x68] sm:$0xff] %v622
              $region95: #{flux_forward.18} parent=89 // loop_footer
                %s605 = sadd.s32 1, %s601
              $region96: #{flux_forward.18} parent=89 // loop_footer_branch
                %600 = sbr.rel target = $region92
              $region97: #{flux_forward.18} parent=89 // loop_exit
                _
            $region90: #{flux_forward.18} parent=85 // pred_fallthru
              _
            // Predicated region
            $region98: #{flux_forward.18} parent=85 // pred_check
              _
            $region99: #{flux_forward.18} parent=85 // pred_check_branch
              %625 = sbr.rel target = $region101
            $region100: #{flux_forward.18} parent=85 // pred_region
              _
            $region101: #{flux_forward.18} parent=85 // pred_fallthru
              _
          $region86: #{flux_forward.18} parent=81 // pred_fallthru
            _
          %626 = vnop
        $region82: #{flux_forward.18} parent=65 // pred_fallthru
          _
      $region66: #{flux_forward.18} parent=5 // pred_fallthru
        _
      %p627 = scmp.le.s32.totalorder 2, %s9
      // Predicated region
      $region102: #{flux_forward.18} parent=5 // pred_check
        %p628 = pneg %p627
      $region103: #{flux_forward.18} parent=5 // pred_check_branch
        %630 = sbr.rel (%p628) target = $region105
      $region104: #{flux_forward.18} parent=5 // pred_region
        %s631 = ssub.s32 %s9, 2
        // Predicated region
        $region106: #{flux_forward.18} parent=104 // pred_check
          %p632 = pneg %p141
        $region107: #{flux_forward.18} parent=104 // pred_check_branch
          %634 = sbr.rel (%p632) target = $region109
        $region108: #{flux_forward.18} parent=104 // pred_region
          %s635 = sand.u32 %s126, 1
          %s636 = sand.u32 %s126, 1
          %s637 = smul.addr %s636, 64
          %s638 = scalar_lea.vmem [#allocation4], %s637
        $region109: #{flux_forward.18} parent=104 // pred_fallthru
          _
      $region105: #{flux_forward.18} parent=5 // pred_fallthru
        _
    $region6: #{flux_forward.18} parent=1 // loop_footer
      %s13 = sadd.s32 1, %s9
    $region7: #{flux_forward.18} parent=1 // loop_footer_branch
      %8 = sbr.rel target = $region3
    $region8: #{flux_forward.18} parent=1 // loop_exit
      _

// kernel: flux_forward.17
$region0: #{flux_forward.17}
  #allocation0 [shape = 'u32[]', space=smem, size = 0x4, offset = 0x4, fixed_abs, tag = 'smem constant byte address 0x4 - core index']
  #allocation1 [shape = 'u32[144,128]{1,0:T(1,128)}', space=vmem, size = 0x12000, scoped, tag = 'internal scratch']
  #allocation2 [shape = 'f32[16,128]{1,0:T(8,128)}', space=vmem, size = 0x2000, scoped, tag = 'scratch operand']
  %s0 = inlined_call_operand.vmem [shape: bf16[16,128], index: 0, kind: input, shape index: {}]
  %s1 = inlined_call_operand.vmem [shape: bf16[128,128], index: 1, kind: input, shape index: {}]
  %s2 = inlined_call_operand.vmem [shape: f32[1,128], index: 2, kind: input, shape index: {}]
  %s3 = inlined_call_operand.vmem [shape: f32[16,128], index: 3, kind: output, shape index: {}]
  %s4 = sld [smem:[#allocation0]]
  $region30: #{flux_forward.17} parent=0
    _
  %s6 = ssub.s32 1, %s4
  %s7 = scalar_select 0, %s6, %s4
  // Predicated region
  $region2: #{flux_forward.17} parent=0 // pred_check
    _
  $region3: #{flux_forward.17} parent=0 // pred_check_branch
    %9 = sbr.rel (0) target = $region5
  $region4: #{flux_forward.17} parent=0 // pred_region
    _
  $region5: #{flux_forward.17} parent=0 // pred_fallthru
    _
  // Predicated region
  $region6: #{flux_forward.17} parent=0 // pred_check
    _
  $region7: #{flux_forward.17} parent=0 // pred_check_branch
    %11 = sbr.rel (0) target = $region9
  $region8: #{flux_forward.17} parent=0 // pred_region
    _
  $region9: #{flux_forward.17} parent=0 // pred_fallthru
    _
  // Predicated region
  $region10: #{flux_forward.17} parent=0 // pred_check
    _
  $region11: #{flux_forward.17} parent=0 // pred_check_branch
    %13 = sbr.rel (0) target = $region13
  $region12: #{flux_forward.17} parent=0 // pred_region
    _
  $region13: #{flux_forward.17} parent=0 // pred_fallthru
    _
  %p15 = scmp.eq.s32.totalorder 0, 0
  // Predicated region
  $region14: #{flux_forward.17} parent=0 // pred_check
    %p16 = pneg %p15
  $region15: #{flux_forward.17} parent=0 // pred_check_branch
    %18 = sbr.rel (%p16) target = $region17
  $region16: #{flux_forward.17} parent=0 // pred_region
    %19 = vst [vmem:[#allocation2] sm:$0xff] 0.0
    %20 = vst [vmem:[#allocation2 + $0x8] sm:$0xff] 0.0
  $region17: #{flux_forward.17} parent=0 // pred_fallthru
    _
  %v21 = vld [vmem:[#allocation2] sm:$0xff]
  %v22 = vld [vmem:[#allocation2 + $0x8] sm:$0xff]
  %v23 = vld [vmem:[%s0] sm:$0xf]
  %v24 = vld [vmem:[%s0 + $0x4] sm:$0xf]
  %v25 = vld [vmem:[%s1] sm:$0xf]
  %v26 = vld [vmem:[%s1 + $0x4] sm:$0xf]
  %v27 = vld [vmem:[%s1 + $0x8] sm:$0xf]
  %v28 = vld [vmem:[%s1 + $0xc] sm:$0xf]
  %v29 = vld [vmem:[%s1 + $0x10] sm:$0xf]
  %v30 = vld [vmem:[%s1 + $0x14] sm:$0xf]
  %v31 = vld [vmem:[%s1 + $0x18] sm:$0xf]
  %v32 = vld [vmem:[%s1 + $0x1c] sm:$0xf]
  %v33 = vld [vmem:[%s1 + $0x20] sm:$0xf]
  %v34 = vld [vmem:[%s1 + $0x24] sm:$0xf]
  %v35 = vld [vmem:[%s1 + $0x28] sm:$0xf]
  %v36 = vld [vmem:[%s1 + $0x2c] sm:$0xf]
  %v37 = vld [vmem:[%s1 + $0x30] sm:$0xf]
  %v38 = vld [vmem:[%s1 + $0x34] sm:$0xf]
  %v39 = vld [vmem:[%s1 + $0x38] sm:$0xf]
  %v40 = vld [vmem:[%s1 + $0x3c] sm:$0xf]
  %v43 = vunpack.c.l.b16 %v23
  %v44 = vunpack.c.l.b16 %v24
  %v45 = vpack.c.b16 %v44, %v43
  %v63 = vunpack.c.l.b16 %v25
  %v64 = vunpack.c.l.b16 %v26
  %v65 = vunpack.c.l.b16 %v27
  %v66 = vunpack.c.l.b16 %v28
  %v67 = vunpack.c.l.b16 %v29
  %v68 = vunpack.c.l.b16 %v30
  %v69 = vunpack.c.l.b16 %v31
  %v70 = vunpack.c.l.b16 %v32
  %v71 = vunpack.c.l.b16 %v33
  %v72 = vunpack.c.l.b16 %v34
  %v73 = vunpack.c.l.b16 %v35
  %v74 = vunpack.c.l.b16 %v36
  %v75 = vunpack.c.l.b16 %v37
  %v76 = vunpack.c.l.b16 %v38
  %v77 = vunpack.c.l.b16 %v39
  %v78 = vunpack.c.l.b16 %v40
  %v79 = vpack.c.b16 %v64, %v63
  %v80 = vpack.c.b16 %v66, %v65
  %v81 = vpack.c.b16 %v68, %v67
  %v82 = vpack.c.b16 %v70, %v69
  %v83 = vpack.c.b16 %v72, %v71
  %v84 = vpack.c.b16 %v74, %v73
  %v85 = vpack.c.b16 %v76, %v75
  %v86 = vpack.c.b16 %v78, %v77
  %95 = vmatprep.subr.bf16.mxu0 0
  %96 = vmatpush1.bf16.msra.mxu0 %v79
  %97 = vmatprep.subr.bf16.mxu0 0
  %98 = vmatpush1.bf16.msra.mxu0 %v80
  %99 = vmatprep.subr.bf16.mxu0 0
  %100 = vmatpush1.bf16.msra.mxu0 %v81
  %101 = vmatprep.subr.bf16.mxu0 0
  %102 = vmatpush1.bf16.msra.mxu0 %v82
  %103 = vmatprep.subr.bf16.mxu0 0
  %104 = vmatpush1.bf16.msra.mxu0 %v83
  %105 = vmatprep.subr.bf16.mxu0 0
  %106 = vmatpush1.bf16.msra.mxu0 %v84
  %107 = vmatprep.subr.bf16.mxu0 0
  %108 = vmatpush1.bf16.msra.mxu0 %v85
  %109 = vmatprep.subr.bf16.mxu0 0
  %110 = vmatpush1.bf16.msra.mxu0 %v86
  %111 = vmatprep.subr.bf16.mxu0 0
  %112 = vmatpush1.bf16.msra.mxu0 0
  %113 = vmatprep.subr.bf16.mxu0 0
  %114 = vmatpush1.bf16.msra.mxu0 0
  %115 = vmatprep.subr.bf16.mxu0 0
  %116 = vmatpush1.bf16.msra.mxu0 0
  %117 = vmatprep.subr.bf16.mxu0 0
  %118 = vmatpush1.bf16.msra.mxu0 0
  %119 = vmatprep.subr.bf16.mxu0 0
  %120 = vmatpush1.bf16.msra.mxu0 0
  %121 = vmatprep.subr.bf16.mxu0 0
  %122 = vmatpush1.bf16.msra.mxu0 0
  %123 = vmatprep.subr.bf16.mxu0 0
  %124 = vmatpush1.bf16.msra.mxu0 0
  %125 = vmatprep.subr.bf16.mxu0 0
  %126 = vmatpush1.bf16.msra.mxu0 0
  %127 = vmatprep.mubr.bf16.mxu0 0
  %128 = vmatmul.mubr.bf16.gmra.mrb[0].mxu0 %v45
  %v129 = vpop.f32.mrb[0].mxu0
  %v130 = vadd.f32 0.0, %v129
  %v131 = vpop.f32.mrb[0].mxu0
  %v132 = vpop.f32.mrb[0].mxu0
  %v133 = vadd.f32 0.0, %v132
  %v134 = vpop.f32.mrb[0].mxu0
  %135 = vdwg.mxu0
  %v136 = vadd.f32 %v21, %v130
  %v137 = vadd.f32 %v22, %v133
  %138 = vst [vmem:[#allocation2] sm:$0xff] %v136
  %139 = vst [vmem:[#allocation2 + $0x8] sm:$0xff] %v137
  // Predicated region
  $region18: #{flux_forward.17} parent=0 // pred_check
    %p140 = pneg %p15
  $region19: #{flux_forward.17} parent=0 // pred_check_branch
    %142 = sbr.rel (%p140) target = $region21
  $region20: #{flux_forward.17} parent=0 // pred_region
    %v143 = vld [vmem:[#allocation2] sm:$0xff]
    %v144 = vld [vmem:[#allocation2 + $0x8] sm:$0xff]
    %v145 = vld [vmem:[%s2] sm:$0x1]
    %v147 = vlaneseq
    %v148 = vshrl.u32 %v147, 7
    %v149 = vsub.s32 0, %v148
    %v150 = vrot.slane %v145, %v149
    %v152 = vadd.f32 %v143, %v150
    %v153 = vadd.f32 %v144, %v150
    %154 = vst [vmem:[%s3] sm:$0xff] %v152
    %155 = vst [vmem:[%s3 + $0x8] sm:$0xff] %v153
  $region21: #{flux_forward.17} parent=0 // pred_fallthru
    _
  // Predicated region
  $region22: #{flux_forward.17} parent=0 // pred_check
    _
  $region23: #{flux_forward.17} parent=0 // pred_check_branch
    %157 = sbr.rel (0) target = $region25
  $region24: #{flux_forward.17} parent=0 // pred_region
    _
  $region25: #{flux_forward.17} parent=0 // pred_fallthru
    _
  // Predicated region
  $region26: #{flux_forward.17} parent=0 // pred_check
    _
  $region27: #{flux_forward.17} parent=0 // pred_check_branch
    %159 = sbr.rel (0) target = $region29
  $region28: #{flux_forward.17} parent=0 // pred_region
    _
  $region29: #{flux_forward.17} parent=0 // pred_fallthru
    _

// kernel: flux_forward.19
$region0: #{flux_forward.19}
  #allocation0 [shape = 'u32[]', space=smem, size = 0x4, offset = 0x4, fixed_abs, tag = 'smem constant byte address 0x4 - core index']
  #allocation1 [shape = 'u32[144,128]{1,0:T(1,128)}', space=vmem, size = 0x12000, scoped, tag = 'internal scratch']
  #allocation2 [shape = 'f32[16,256]{1,0:T(8,128)}', space=vmem, size = 0x4000, scoped, tag = 'scratch operand']
  %s0 = inlined_call_operand.vmem [shape: bf16[16,128], index: 0, kind: input, shape index: {}]
  %s1 = inlined_call_operand.vmem [shape: bf16[128,512], index: 1, kind: input, shape index: {}]
  %s2 = inlined_call_operand.vmem [shape: f32[1,512], index: 2, kind: input, shape index: {}]
  %s3 = inlined_call_operand.vmem [shape: f32[16,512], index: 3, kind: output, shape index: {}]
  %s4 = sld [smem:[#allocation0]]
  $region110: #{flux_forward.19} parent=0
    _
  %s6 = ssub.s32 1, %s4
  %s7 = scalar_select 0, %s6, %s4
  $region1: #{flux_forward.19} parent=0
    #allocation3 [shape = 'u8[131072]{0}', space=vmem, size = 0x20000, scoped, tag = 'input window, operand 1']
    #allocation4 [shape = 'u8[32768]{0}', space=vmem, size = 0x8000, scoped, tag = 'output window, operand 0']
    loop: start=0, step=1, limit=4
    $region2: #{flux_forward.19} parent=1 // loop_pre_header
      _
    $region3: #{flux_forward.19} parent=1 // loop_header
      %s9 = sphi 0, %s13
      %p10 = scmp.ge.s32.totalorder %s9, 4
      %s16 = sphi 0, %s35
      %s17 = sphi 0, %s31
      %s18 = sphi 0, %s27
      %s19 = sphi 0, %s16
      %s20 = sphi 0, %s17
      %s21 = sphi 0, %s18
      %s22 = sphi 0, %s19
      %s23 = sphi 0, %s20
      %s24 = sphi 0, %s21
      %s40 = sphi 0, %s42
      %s43 = sphi 0, %s40
      %s44 = sphi 0, %s43
      %s60 = sphi 0, %s44
      %s68 = sphi 0, %s70
      %s71 = sphi 0, %s68
      %s72 = sphi 0, %s71
      %s88 = sphi 0, %s72
      %s94 = sphi 0, %s96
      %s97 = sphi 0, %s94
      %s98 = sphi 0, %s97
      %s114 = sphi 0, %s98
      %s122 = sphi 0, %s124
      %s125 = sphi 0, %s122
      %s126 = sphi 0, %s125
      %s142 = sphi 0, %s126
    $region4: #{flux_forward.19} parent=1 // loop_header_branch
      %12 = sbr.rel (%p10) target = $region8
    $region5: #{flux_forward.19} parent=1 // loop_body
      %s14 = ssub.s32 %s9, 1
      %s15 = ssub.s32 %s9, 2
      %s25 = sadd.s32 1, %s18
      %p26 = scmp.ge.s32.totalorder %s25, 1
      %s27 = scalar_select %p26, 0, %s25
      %s28 = sadd.s32 1, %s17
      %s29 = scalar_select %p26, %s28, %s17
      %p30 = scmp.ge.s32.totalorder %s29, 2
      %s31 = scalar_select %p30, 0, %s29
      %s32 = sadd.s32 1, %s16
      %s33 = scalar_select %p30, %s32, %s16
      %p34 = scmp.ge.s32.totalorder %s33, 1
      %s35 = scalar_select %p34, 0, %s33
      %s36 = ssub.s32 %s16, %s35
      %s37 = ssub.s32 %s18, %s27
      %s38 = sor.u32 %s36, %s37
      %p39 = scmp.eq.s32.totalorder %s38, 0
      %s41 = sadd.s32 %s40, 1
      %s42 = scalar_select %p39, %s40, %s41
      %p45 = pneg %p39
      %p46 = scmp.eq.s32.totalorder %s9, 1
      %p47 = por %p45, %p46
      %p48 = scmp.ne.s32.totalorder %s40, %s43
      %p49 = scmp.eq.s32.totalorder %s9, 0
      %p50 = por %p48, %p49
      %p51 = scmp.ne.s32.totalorder %s40, %s43
      %p52 = scmp.eq.s32.totalorder %s14, 1
      %p53 = por %p51, %p52
      %p54 = scmp.ne.s32.totalorder %s43, %s44
      %p55 = scmp.eq.s32.totalorder %s14, 0
      %p56 = por %p54, %p55
      %p57 = scmp.ne.s32.totalorder %s43, %s44
      %p58 = scmp.eq.s32.totalorder %s15, 1
      %p59 = por %p57, %p58
      %p61 = scmp.ne.s32.totalorder %s44, %s60
      %p62 = scmp.eq.s32.totalorder %s15, 0
      %p63 = por %p61, %p62
      %s64 = ssub.s32 %s18, %s27
      %s65 = ssub.s32 %s17, %s31
      %s66 = sor.u32 %s64, %s65
      %p67 = scmp.eq.s32.totalorder %s66, 0
      %s69 = sadd.s32 %s68, 1
      %s70 = scalar_select %p67, %s68, %s69
      %p73 = pneg %p67
      %p74 = scmp.eq.s32.totalorder %s9, 1
      %p75 = por %p73, %p74
      %p76 = scmp.ne.s32.totalorder %s68, %s71
      %p77 = scmp.eq.s32.totalorder %s9, 0
      %p78 = por %p76, %p77
      %p79 = scmp.ne.s32.totalorder %s68, %s71
      %p80 = scmp.eq.s32.totalorder %s14, 1
      %p81 = por %p79, %p80
      %p82 = scmp.ne.s32.totalorder %s71, %s72
      %p83 = scmp.eq.s32.totalorder %s14, 0
      %p84 = por %p82, %p83
      %p85 = scmp.ne.s32.totalorder %s71, %s72
      %p86 = scmp.eq.s32.totalorder %s15, 1
      %p87 = por %p85, %p86
      %p89 = scmp.ne.s32.totalorder %s72, %s88
      %p90 = scmp.eq.s32.totalorder %s15, 0
      %p91 = por %p89, %p90
      %s92 = ssub.s32 %s17, %s31
      %p93 = scmp.eq.s32.totalorder %s92, 0
      %s95 = sadd.s32 %s94, 1
      %s96 = scalar_select %p93, %s94, %s95
      %p99 = pneg %p93
      %p100 = scmp.eq.s32.totalorder %s9, 1
      %p101 = por %p99, %p100
      %p102 = scmp.ne.s32.totalorder %s94, %s97
      %p103 = scmp.eq.s32.totalorder %s9, 0
      %p104 = por %p102, %p103
      %p105 = scmp.ne.s32.totalorder %s94, %s97
      %p106 = scmp.eq.s32.totalorder %s14, 1
      %p107 = por %p105, %p106
      %p108 = scmp.ne.s32.totalorder %s97, %s98
      %p109 = scmp.eq.s32.totalorder %s14, 0
      %p110 = por %p108, %p109
      %p111 = scmp.ne.s32.totalorder %s97, %s98
      %p112 = scmp.eq.s32.totalorder %s15, 1
      %p113 = por %p111, %p112
      %p115 = scmp.ne.s32.totalorder %s98, %s114
      %p116 = scmp.eq.s32.totalorder %s15, 0
      %p117 = por %p115, %p116
      %s118 = ssub.s32 %s16, %s35
      %s119 = ssub.s32 %s17, %s31
      %s120 = sor.u32 %s118, %s119
      %p121 = scmp.eq.s32.totalorder %s120, 0
      %s123 = sadd.s32 %s122, 1
      %s124 = scalar_select %p121, %s122, %s123
      %p127 = pneg %p121
      %p128 = scmp.eq.s32.totalorder %s9, 1
      %p129 = por %p127, %p128
      %p130 = scmp.ne.s32.totalorder %s122, %s125
      %p131 = scmp.eq.s32.totalorder %s9, 0
      %p132 = por %p130, %p131
      %p133 = scmp.ne.s32.totalorder %s122, %s125
      %p134 = scmp.eq.s32.totalorder %s14, 1
      %p135 = por %p133, %p134
      %p136 = scmp.ne.s32.totalorder %s125, %s126
      %p137 = scmp.eq.s32.totalorder %s14, 0
      %p138 = por %p136, %p137
      %p139 = scmp.ne.s32.totalorder %s125, %s126
      %p140 = scmp.eq.s32.totalorder %s15, 1
      %p141 = por %p139, %p140
      %p143 = scmp.ne.s32.totalorder %s126, %s142
      %p144 = scmp.eq.s32.totalorder %s15, 0
      %p145 = por %p143, %p144
      %p146 = scmp.le.s32.totalorder 1, %s9
      %p147 = scmp.lt.s32.totalorder %s9, 3
      %p148 = pnand %p146, %p147
      %p149 = pneg %p148
      // Predicated region
      $region9: #{flux_forward.19} parent=5 // pred_check
        _
      $region10: #{flux_forward.19} parent=5 // pred_check_branch
        %151 = sbr.rel (%p148) target = $region12
      $region11: #{flux_forward.19} parent=5 // pred_region
        %s152 = ssub.s32 %s9, 1
        // Predicated region
        $region13: #{flux_forward.19} parent=11 // pred_check
          %p153 = pneg %p56
        $region14: #{flux_forward.19} parent=11 // pred_check_branch
          %155 = sbr.rel (%p153) target = $region16
        $region15: #{flux_forward.19} parent=11 // pred_region
          %s156 = smul.u32 2, %s19
          %p157 = scmp.lt.s32.totalorder %s156, 1
          %s158 = scalar_select %p157, %s156, 1
          %p159 = scmp.lt.s32.totalorder %s21, 0
          %s160 = scalar_select %p159, %s21, 0
          %s161 = sadd.s32 %s160, %s158
          %s162 = smul.addr %s161, 4
          %s163 = scalar_lea.vmem %s0, %s162
          %s164 = smul.u32 2, %s19
        $region16: #{flux_forward.19} parent=11 // pred_fallthru
          _
      $region12: #{flux_forward.19} parent=5 // pred_fallthru
        _
      %p165 = scmp.lt.s32.totalorder %s9, 2
      // Predicated region
      $region17: #{flux_forward.19} parent=5 // pred_check
        %p166 = pneg %p165
      $region18: #{flux_forward.19} parent=5 // pred_check_branch
        %168 = sbr.rel (%p166) target = $region20
      $region19: #{flux_forward.19} parent=5 // pred_region
        // Predicated region
        $region21: #{flux_forward.19} parent=19 // pred_check
          %p169 = pneg %p78
        $region22: #{flux_forward.19} parent=19 // pred_check_branch
          %171 = sbr.rel (%p169) target = $region24
        $region23: #{flux_forward.19} parent=19 // pred_region
          %s172 = sand.u32 %s68, 1
          %s173 = sand.u32 %s68, 1
          %s174 = smul.addr %s173, 128
          %s175 = scalar_lea.vmem [#allocation3], %s174
          %s176 = smul.u32 16, %s18
          %s177 = smul.u32 2, %s17
          %s178 = smul.addr %s176, 4
          %s179 = sadd.s32 %s177, %s178
          %s180 = smul.addr %s179, 4
          %s181 = scalar_lea.vmem %s1, %s180
          // Predicated region
          $region25: #{flux_forward.19} parent=23 // pred_check
            _
          $region26: #{flux_forward.19} parent=23 // pred_check_branch
            %183 = sbr.rel (0) target = $region28
          $region27: #{flux_forward.19} parent=23 // pred_region
            // Predicated region
            $region29: #{flux_forward.19} parent=27 // pred_check
              _
            $region30: #{flux_forward.19} parent=27 // pred_check_branch
              %185 = sbr.rel (0) target = $region32
            $region31: #{flux_forward.19} parent=27 // pred_region
              // Predicated region
              $region44: #{flux_forward.19} parent=31 // pred_check
                _
              $region45: #{flux_forward.19} parent=31 // pred_check_branch
                %230 = sbr.rel (0) target = $region47
              $region46: #{flux_forward.19} parent=31 // pred_region
                loop: start=0, step=1, limit=1
                $region48: #{flux_forward.19} parent=46 // loop_pre_header
                  _
                $region49: #{flux_forward.19} parent=46 // loop_header
                  %s232 = sphi 0, %s236
                  %p233 = scmp.ge.s32.totalorder %s232, 1
                  %s237 = sphi %s181, %s181
                  %s238 = sphi %s175, %s175
                $region50: #{flux_forward.19} parent=46 // loop_header_branch
                  %235 = sbr.rel (%p233) target = $region54
                $region51: #{flux_forward.19} parent=46 // loop_body
                  %v239 = vld [vmem:[%s237] sm:$0xff]
                  %240 = vst [vmem:[%s238] sm:$0xff] %v239
                  %v241 = vld [vmem:[%s237 + $0x10] sm:$0xff]
                  %242 = vst [vmem:[%s238 + $0x8] sm:$0xff] %v241
                  %v243 = vld [vmem:[%s237 + $0x20] sm:$0xff]
                  %244 = vst [vmem:[%s238 + $0x10] sm:$0xff] %v243
                  %v245 = vld [vmem:[%s237 + $0x30] sm:$0xff]
                  %246 = vst [vmem:[%s238 + $0x18] sm:$0xff] %v245
                  %v247 = vld [vmem:[%s237 + $0x40] sm:$0xff]
                  %248 = vst [vmem:[%s238 + $0x20] sm:$0xff] %v247
                  %v249 = vld [vmem:[%s237 + $0x50] sm:$0xff]
                  %250 = vst [vmem:[%s238 + $0x28] sm:$0xff] %v249
                  %v251 = vld [vmem:[%s237 + $0x60] sm:$0xff]
                  %252 = vst [vmem:[%s238 + $0x30] sm:$0xff] %v251
                  %v253 = vld [vmem:[%s237 + $0x70] sm:$0xff]
                  %254 = vst [vmem:[%s238 + $0x38] sm:$0xff] %v253
                  %v255 = vld [vmem:[%s237 + $0x80] sm:$0xff]
                  %256 = vst [vmem:[%s238 + $0x40] sm:$0xff] %v255
                  %v257 = vld [vmem:[%s237 + $0x90] sm:$0xff]
                  %258 = vst [vmem:[%s238 + $0x48] sm:$0xff] %v257
                  %v259 = vld [vmem:[%s237 + $0xa0] sm:$0xff]
                  %260 = vst [vmem:[%s238 + $0x50] sm:$0xff] %v259
                  %v261 = vld [vmem:[%s237 + $0xb0] sm:$0xff]
                  %262 = vst [vmem:[%s238 + $0x58] sm:$0xff] %v261
                  %v263 = vld [vmem:[%s237 + $0xc0] sm:$0xff]
                  %264 = vst [vmem:[%s238 + $0x60] sm:$0xff] %v263
                  %v265 = vld [vmem:[%s237 + $0xd0] sm:$0xff]
                  %266 = vst [vmem:[%s238 + $0x68] sm:$0xff] %v265
                  %v267 = vld [vmem:[%s237 + $0xe0] sm:$0xff]
                  %268 = vst [vmem:[%s238 + $0x70] sm:$0xff] %v267
                  %v269 = vld [vmem:[%s237 + $0xf0] sm:$0xff]
                  %270 = vst [vmem:[%s238 + $0x78] sm:$0xff] %v269
                $region52: #{flux_forward.19} parent=46 // loop_footer
                  %s236 = sadd.s32 1, %s232
                $region53: #{flux_forward.19} parent=46 // loop_footer_branch
                  %231 = sbr.rel target = $region49
                $region54: #{flux_forward.19} parent=46 // loop_exit
                  _
              $region47: #{flux_forward.19} parent=31 // pred_fallthru
                _
              // Predicated region
              $region55: #{flux_forward.19} parent=31 // pred_check
                _
              $region56: #{flux_forward.19} parent=31 // pred_check_branch
                %272 = sbr.rel target = $region58
              $region57: #{flux_forward.19} parent=31 // pred_region
                _
              $region58: #{flux_forward.19} parent=31 // pred_fallthru
                _
            $region32: #{flux_forward.19} parent=27 // pred_fallthru
              _
            // Predicated region
            $region33: #{flux_forward.19} parent=27 // pred_check
              _
            $region34: #{flux_forward.19} parent=27 // pred_check_branch
              %187 = sbr.rel target = $region36
            $region35: #{flux_forward.19} parent=27 // pred_region
              loop: start=0, step=1, limit=1
              $region37: #{flux_forward.19} parent=35 // loop_pre_header
                _
              $region38: #{flux_forward.19} parent=35 // loop_header
                %s190 = sphi 0, %s194
                %p191 = scmp.ge.s32.totalorder %s190, 1
                %s195 = sphi %s181, %s181
                %s196 = sphi %s175, %s175
              $region39: #{flux_forward.19} parent=35 // loop_header_branch
                %193 = sbr.rel (%p191) target = $region43
              $region40: #{flux_forward.19} parent=35 // loop_body
                %v197 = vld [vmem:[%s195] sm:$0xff]
                %198 = vst [vmem:[%s196] sm:$0xff] %v197
                %v199 = vld [vmem:[%s195 + $0x10] sm:$0xff]
                %200 = vst [vmem:[%s196 + $0x8] sm:$0xff] %v199
                %v201 = vld [vmem:[%s195 + $0x20] sm:$0xff]
                %202 = vst [vmem:[%s196 + $0x10] sm:$0xff] %v201
                %v203 = vld [vmem:[%s195 + $0x30] sm:$0xff]
                %204 = vst [vmem:[%s196 + $0x18] sm:$0xff] %v203
                %v205 = vld [vmem:[%s195 + $0x40] sm:$0xff]
                %206 = vst [vmem:[%s196 + $0x20] sm:$0xff] %v205
                %v207 = vld [vmem:[%s195 + $0x50] sm:$0xff]
                %208 = vst [vmem:[%s196 + $0x28] sm:$0xff] %v207
                %v209 = vld [vmem:[%s195 + $0x60] sm:$0xff]
                %210 = vst [vmem:[%s196 + $0x30] sm:$0xff] %v209
                %v211 = vld [vmem:[%s195 + $0x70] sm:$0xff]
                %212 = vst [vmem:[%s196 + $0x38] sm:$0xff] %v211
                %v213 = vld [vmem:[%s195 + $0x80] sm:$0xff]
                %214 = vst [vmem:[%s196 + $0x40] sm:$0xff] %v213
                %v215 = vld [vmem:[%s195 + $0x90] sm:$0xff]
                %216 = vst [vmem:[%s196 + $0x48] sm:$0xff] %v215
                %v217 = vld [vmem:[%s195 + $0xa0] sm:$0xff]
                %218 = vst [vmem:[%s196 + $0x50] sm:$0xff] %v217
                %v219 = vld [vmem:[%s195 + $0xb0] sm:$0xff]
                %220 = vst [vmem:[%s196 + $0x58] sm:$0xff] %v219
                %v221 = vld [vmem:[%s195 + $0xc0] sm:$0xff]
                %222 = vst [vmem:[%s196 + $0x60] sm:$0xff] %v221
                %v223 = vld [vmem:[%s195 + $0xd0] sm:$0xff]
                %224 = vst [vmem:[%s196 + $0x68] sm:$0xff] %v223
                %v225 = vld [vmem:[%s195 + $0xe0] sm:$0xff]
                %226 = vst [vmem:[%s196 + $0x70] sm:$0xff] %v225
                %v227 = vld [vmem:[%s195 + $0xf0] sm:$0xff]
                %228 = vst [vmem:[%s196 + $0x78] sm:$0xff] %v227
              $region41: #{flux_forward.19} parent=35 // loop_footer
                %s194 = sadd.s32 1, %s190
              $region42: #{flux_forward.19} parent=35 // loop_footer_branch
                %189 = sbr.rel target = $region38
              $region43: #{flux_forward.19} parent=35 // loop_exit
                _
            $region36: #{flux_forward.19} parent=27 // pred_fallthru
              _
          $region28: #{flux_forward.19} parent=23 // pred_fallthru
            _
          %273 = vnop
        $region24: #{flux_forward.19} parent=19 // pred_fallthru
          _
        // Predicated region
        $region59: #{flux_forward.19} parent=19 // pred_check
          %p274 = pneg %p104
        $region60: #{flux_forward.19} parent=19 // pred_check_branch
          %276 = sbr.rel (%p274) target = $region62
        $region61: #{flux_forward.19} parent=19 // pred_region
          %s277 = smul.u32 2, %s17
          %p278 = scmp.lt.s32.totalorder %s277, 3
          %s279 = scalar_select %p278, %s277, 3
          %s280 = scalar_lea.vmem %s2, %s279
          %s281 = smul.u32 2, %s17
        $region62: #{flux_forward.19} parent=19 // pred_fallthru
          _
      $region20: #{flux_forward.19} parent=5 // pred_fallthru
        _
      %p282 = scmp.le.s32.totalorder 1, %s9
      %p283 = scmp.lt.s32.totalorder %s9, 3
      %p284 = pnand %p282, %p283
      %p285 = pneg %p284
      // Predicated region
      $region63: #{flux_forward.19} parent=5 // pred_check
        _
      $region64: #{flux_forward.19} parent=5 // pred_check_branch
        %287 = sbr.rel (%p284) target = $region66
      $region65: #{flux_forward.19} parent=5 // pred_region
        %s288 = ssub.s32 %s9, 1
        %s289 = sand.u32 %s71, 1
        %s290 = sand.u32 %s71, 1
        %s291 = smul.addr %s290, 128
        %s292 = scalar_lea.vmem [#allocation3], %s291
        // Predicated region
        $region67: #{flux_forward.19} parent=65 // pred_check
          %p293 = pneg %p84
        $region68: #{flux_forward.19} parent=65 // pred_check_branch
          %295 = sbr.rel (%p293) target = $region70
        $region69: #{flux_forward.19} parent=65 // pred_region
          _
        $region70: #{flux_forward.19} parent=65 // pred_fallthru
          _
        %s296 = smul.u32 2, %s19
        %p297 = scmp.lt.s32.totalorder %s296, 1
        %s298 = scalar_select %p297, %s296, 1
        %p299 = scmp.lt.s32.totalorder %s21, 0
        %s300 = scalar_select %p299, %s21, 0
        %s301 = sadd.s32 %s300, %s298
        %s302 = smul.addr %s301, 4
        %s303 = scalar_lea.vmem %s0, %s302
        %p304 = pneg %p56
        %p305 = pneg %p53
        %s306 = sand.u32 %s71, 1
        %s307 = sand.u32 %s71, 1
        %s308 = smul.addr %s307, 128
        %s309 = scalar_lea.vmem [#allocation3], %s308
        %p310 = pneg %p84
        %p311 = pneg %p81
        %s312 = smul.u32 2, %s20
        %p313 = scmp.lt.s32.totalorder %s312, 3
        %s314 = scalar_select %p313, %s312, 3
        %s315 = scalar_lea.vmem %s2, %s314
        %p316 = pneg %p110
        %p317 = pneg %p107
        %p318 = pneg %p138
        %p319 = pneg %p135
        %s320 = sand.u32 %s125, 1
        %s321 = sand.u32 %s125, 1
        %s322 = smul.addr %s321, 32
        %s323 = scalar_lea.vmem [#allocation4], %s322
        %s324 = smul.u32 2, %s19
        %p325 = scmp.lt.s32.totalorder %s324, 1
        %s326 = scalar_select %p325, %s324, 1
        %p327 = scmp.lt.s32.totalorder %s21, 0
        %s328 = scalar_select %p327, %s21, 0
        %s329 = sadd.s32 %s328, %s326
        %s330 = smul.addr %s329, 4
        %s331 = scalar_lea.vmem %s0, %s330
        %s332 = smul.u32 2, %s19
        %s333 = smul.u32 16, %s21
        %s334 = smul.u32 2, %s20
        %s335 = smul.u32 2, %s20
        %p336 = scmp.lt.s32.totalorder %s335, 3
        %s337 = scalar_select %p336, %s335, 3
        %s338 = scalar_lea.vmem %s2, %s337
        %s339 = smul.u32 2, %s20
        %s340 = smul.u32 2, %s19
        %s341 = smul.u32 2, %s20
        %p343 = scmp.eq.s32.totalorder %s21, 0
        // Predicated region
        $region71: #{flux_forward.19} parent=65 // pred_check
          %p344 = pneg %p343
        $region72: #{flux_forward.19} parent=65 // pred_check_branch
          %346 = sbr.rel (%p344) target = $region74
        $region73: #{flux_forward.19} parent=65 // pred_region
          %347 = vst [vmem:[#allocation2] sm:$0xff] 0.0
          %348 = vst [vmem:[#allocation2 + $0x8] sm:$0xff] 0.0
          %349 = vst [vmem:[#allocation2 + $0x10] sm:$0xff] 0.0
          %350 = vst [vmem:[#allocation2 + $0x18] sm:$0xff] 0.0
        $region74: #{flux_forward.19} parent=65 // pred_fallthru
          _
        %v351 = vld [vmem:[#allocation2] sm:$0xff]
        %v352 = vld [vmem:[#allocation2 + $0x8] sm:$0xff]
        %v353 = vld [vmem:[#allocation2 + $0x10] sm:$0xff]
        %v354 = vld [vmem:[#allocation2 + $0x18] sm:$0xff]
        %v355 = vld [vmem:[%s331] sm:$0xf]
        %v356 = vld [vmem:[%s331 + $0x4] sm:$0xf]
        %v357 = vld [vmem:[%s292] sm:$0xff]
        %v358 = vld [vmem:[%s292 + $0x8] sm:$0xff]
        %v359 = vld [vmem:[%s292 + $0x10] sm:$0xff]
        %v360 = vld [vmem:[%s292 + $0x18] sm:$0xff]
        %v361 = vld [vmem:[%s292 + $0x20] sm:$0xff]
        %v362 = vld [vmem:[%s292 + $0x28] sm:$0xff]
        %v363 = vld [vmem:[%s292 + $0x30] sm:$0xff]
        %v364 = vld [vmem:[%s292 + $0x38] sm:$0xff]
        %v365 = vld [vmem:[%s292 + $0x40] sm:$0xff]
        %v366 = vld [vmem:[%s292 + $0x48] sm:$0xff]
        %v367 = vld [vmem:[%s292 + $0x50] sm:$0xff]
        %v368 = vld [vmem:[%s292 + $0x58] sm:$0xff]
        %v369 = vld [vmem:[%s292 + $0x60] sm:$0xff]
        %v370 = vld [vmem:[%s292 + $0x68] sm:$0xff]
        %v371 = vld [vmem:[%s292 + $0x70] sm:$0xff]
        %v372 = vld [vmem:[%s292 + $0x78] sm:$0xff]
        %v375 = vunpack.c.l.b16 %v355
        %v376 = vunpack.c.l.b16 %v356
        %v377 = vpack.c.b16 %v376, %v375
        %v395 = vunpack.c.l.b16 %v357
        %v396 = vunpack.c.h.b16 %v357
        %v397 = vunpack.c.l.b16 %v358
        %v398 = vunpack.c.h.b16 %v358
        %v399 = vunpack.c.l.b16 %v359
        %v400 = vunpack.c.h.b16 %v359
        %v401 = vunpack.c.l.b16 %v360
        %v402 = vunpack.c.h.b16 %v360
        %v403 = vunpack.c.l.b16 %v361
        %v404 = vunpack.c.h.b16 %v361
        %v405 = vunpack.c.l.b16 %v362
        %v406 = vunpack.c.h.b16 %v362
        %v407 = vunpack.c.l.b16 %v363
        %v408 = vunpack.c.h.b16 %v363
        %v409 = vunpack.c.l.b16 %v364
        %v410 = vunpack.c.h.b16 %v364
        %v411 = vunpack.c.l.b16 %v365
        %v412 = vunpack.c.h.b16 %v365
        %v413 = vunpack.c.l.b16 %v366
        %v414 = vunpack.c.h.b16 %v366
        %v415 = vunpack.c.l.b16 %v367
        %v416 = vunpack.c.h.b16 %v367
        %v417 = vunpack.c.l.b16 %v368
        %v418 = vunpack.c.h.b16 %v368
        %v419 = vunpack.c.l.b16 %v369
        %v420 = vunpack.c.h.b16 %v369
        %v421 = vunpack.c.l.b16 %v370
        %v422 = vunpack.c.h.b16 %v370
        %v423 = vunpack.c.l.b16 %v371
        %v424 = vunpack.c.h.b16 %v371
        %v425 = vunpack.c.l.b16 %v372
        %v426 = vunpack.c.h.b16 %v372
        %v427 = vpack.c.b16 %v397, %v395
        %v428 = vpack.c.b16 %v398, %v396
        %v429 = vpack.c.b16 %v401, %v399
        %v430 = vpack.c.b16 %v402, %v400
        %v431 = vpack.c.b16 %v405, %v403
        %v432 = vpack.c.b16 %v406, %v404
        %v433 = vpack.c.b16 %v409, %v407
        %v434 = vpack.c.b16 %v410, %v408
        %v435 = vpack.c.b16 %v413, %v411
        %v436 = vpack.c.b16 %v414, %v412
        %v437 = vpack.c.b16 %v417, %v415
        %v438 = vpack.c.b16 %v418, %v416
        %v439 = vpack.c.b16 %v421, %v419
        %v440 = vpack.c.b16 %v422, %v420
        %v441 = vpack.c.b16 %v425, %v423
        %v442 = vpack.c.b16 %v426, %v424
        %459 = vmatprep.subr.bf16.mxu0 %v428
        %460 = vmatpush1.bf16.msra.mxu0 %v427
        %461 = vmatprep.subr.bf16.mxu0 %v430
        %462 = vmatpush1.bf16.msra.mxu0 %v429
        %463 = vmatprep.subr.bf16.mxu0 %v432
        %464 = vmatpush1.bf16.msra.mxu0 %v431
        %465 = vmatprep.subr.bf16.mxu0 %v434
        %466 = vmatpush1.bf16.msra.mxu0 %v433
        %467 = vmatprep.subr.bf16.mxu0 %v436
        %468 = vmatpush1.bf16.msra.mxu0 %v435
        %469 = vmatprep.subr.bf16.mxu0 %v438
        %470 = vmatpush1.bf16.msra.mxu0 %v437
        %471 = vmatprep.subr.bf16.mxu0 %v440
        %472 = vmatpush1.bf16.msra.mxu0 %v439
        %473 = vmatprep.subr.bf16.mxu0 %v442
        %474 = vmatpush1.bf16.msra.mxu0 %v441
        %475 = vmatprep.subr.bf16.mxu0 0
        %476 = vmatpush1.bf16.msra.mxu0 0
        %477 = vmatprep.subr.bf16.mxu0 0
        %478 = vmatpush1.bf16.msra.mxu0 0
        %479 = vmatprep.subr.bf16.mxu0 0
        %480 = vmatpush1.bf16.msra.mxu0 0
        %481 = vmatprep.subr.bf16.mxu0 0
        %482 = vmatpush1.bf16.msra.mxu0 0
        %483 = vmatprep.subr.bf16.mxu0 0
        %484 = vmatpush1.bf16.msra.mxu0 0
        %485 = vmatprep.subr.bf16.mxu0 0
        %486 = vmatpush1.bf16.msra.mxu0 0
        %487 = vmatprep.subr.bf16.mxu0 0
        %488 = vmatpush1.bf16.msra.mxu0 0
        %489 = vmatprep.subr.bf16.mxu0 0
        %490 = vmatpush1.bf16.msra.mxu0 0
        %491 = vmatprep.mubr.bf16.mxu0 0
        %492 = vmatmul.mubr.bf16.gmra.mrb[0].mxu0 %v377
        %v493 = vpop.f32.mrb[0].mxu0
        %v494 = vadd.f32 0.0, %v493
        %v495 = vpop.f32.mrb[0].mxu0
        %v496 = vadd.f32 0.0, %v495
        %v497 = vpop.f32.mrb[0].mxu0
        %v498 = vadd.f32 0.0, %v497
        %v499 = vpop.f32.mrb[0].mxu0
        %v500 = vadd.f32 0.0, %v499
        %501 = vdwg.mxu0
        %v502 = vadd.f32 %v351, %v494
        %v503 = vadd.f32 %v352, %v496
        %v504 = vadd.f32 %v353, %v498
        %v505 = vadd.f32 %v354, %v500
        %506 = vst [vmem:[#allocation2] sm:$0xff] %v502
        %507 = vst [vmem:[#allocation2 + $0x8] sm:$0xff] %v503
        %508 = vst [vmem:[#allocation2 + $0x10] sm:$0xff] %v504
        %509 = vst [vmem:[#allocation2 + $0x18] sm:$0xff] %v505
        // Predicated region
        $region75: #{flux_forward.19} parent=65 // pred_check
          %p510 = pneg %p343
        $region76: #{flux_forward.19} parent=65 // pred_check_branch
          %512 = sbr.rel (%p510) target = $region78
        $region77: #{flux_forward.19} parent=65 // pred_region
          %v513 = vld [vmem:[#allocation2] sm:$0xff]
          %v514 = vld [vmem:[#allocation2 + $0x8] sm:$0xff]
          %v515 = vld [vmem:[#allocation2 + $0x10] sm:$0xff]
          %v516 = vld [vmem:[#allocation2 + $0x18] sm:$0xff]
          %v517 = vld [vmem:[%s338] sm:$0x3]
          %v519 = vlaneseq
          %v520 = vshrl.u32 %v519, 7
          %v521 = vsub.s32 0, %v520
          %v522 = vrot.slane %v517, %v521
          %v523 = vlaneseq
          %v524 = vshrl.u32 %v523, 7
          %v525 = vsub.s32 1, %v524
          %v526 = vrot.slane %v517, %v525
          %v529 = vadd.f32 %v513, %v522
          %v530 = vadd.f32 %v514, %v526
          %v531 = vadd.f32 %v515, %v522
          %v532 = vadd.f32 %v516, %v526
          %533 = vst [vmem:[%s323] sm:$0xff] %v529
          %534 = vst [vmem:[%s323 + $0x8] sm:$0xff] %v530
          %535 = vst [vmem:[%s323 + $0x10] sm:$0xff] %v531
          %536 = vst [vmem:[%s323 + $0x18] sm:$0xff] %v532
        $region78: #{flux_forward.19} parent=65 // pred_fallthru
          _
        %s537 = sand.u32 %s125, 1
        %s538 = sand.u32 %s125, 1
        %s539 = smul.addr %s538, 32
        %s540 = scalar_lea.vmem [#allocation4], %s539
        // Predicated region
        $region79: #{flux_forward.19} parent=65 // pred_check
          %p541 = pneg %p135
        $region80: #{flux_forward.19} parent=65 // pred_check_branch
          %543 = sbr.rel (%p541) target = $region82
        $region81: #{flux_forward.19} parent=65 // pred_region
          %s544 = smul.u32 2, %s19
          %s545 = smul.u32 2, %s20
          %s546 = smul.addr %s544, 4
          %s547 = sadd.s32 %s545, %s546
          %s548 = smul.addr %s547, 8
          %s549 = scalar_lea.vmem %s3, %s548
          // Predicated region
          $region83: #{flux_forward.19} parent=81 // pred_check
            _
          $region84: #{flux_forward.19} parent=81 // pred_check_branch
            %551 = sbr.rel (0) target = $region86
          $region85: #{flux_forward.19} parent=81 // pred_region
            // Predicated region
            $region87: #{flux_forward.19} parent=85 // pred_check
              _
            $region88: #{flux_forward.19} parent=85 // pred_check_branch
              %553 = sbr.rel (0) target = $region90
            $region89: #{flux_forward.19} parent=85 // pred_region
              loop: start=0, step=1, limit=1
              $region91: #{flux_forward.19} parent=89 // loop_pre_header
                _
              $region92: #{flux_forward.19} parent=89 // loop_header
                %s555 = sphi 0, %s559
                %p556 = scmp.ge.s32.totalorder %s555, 1
                %s560 = sphi %s540, %s540
                %s561 = sphi %s549, %s549
              $region93: #{flux_forward.19} parent=89 // loop_header_branch
                %558 = sbr.rel (%p556) target = $region97
              $region94: #{flux_forward.19} parent=89 // loop_body
                %v562 = vld [vmem:[%s560] sm:$0xff]
                %563 = vst [vmem:[%s561] sm:$0xff] %v562
                %v564 = vld [vmem:[%s560 + $0x8] sm:$0xff]
                %565 = vst [vmem:[%s561 + $0x8] sm:$0xff] %v564
                %v566 = vld [vmem:[%s560 + $0x10] sm:$0xff]
                %567 = vst [vmem:[%s561 + $0x20] sm:$0xff] %v566
                %v568 = vld [vmem:[%s560 + $0x18] sm:$0xff]
                %569 = vst [vmem:[%s561 + $0x28] sm:$0xff] %v568
              $region95: #{flux_forward.19} parent=89 // loop_footer
                %s559 = sadd.s32 1, %s555
              $region96: #{flux_forward.19} parent=89 // loop_footer_branch
                %554 = sbr.rel target = $region92
              $region97: #{flux_forward.19} parent=89 // loop_exit
                _
            $region90: #{flux_forward.19} parent=85 // pred_fallthru
              _
            // Predicated region
            $region98: #{flux_forward.19} parent=85 // pred_check
              _
            $region99: #{flux_forward.19} parent=85 // pred_check_branch
              %571 = sbr.rel target = $region101
            $region100: #{flux_forward.19} parent=85 // pred_region
              _
            $region101: #{flux_forward.19} parent=85 // pred_fallthru
              _
          $region86: #{flux_forward.19} parent=81 // pred_fallthru
            _
          %572 = vnop
        $region82: #{flux_forward.19} parent=65 // pred_fallthru
          _
      $region66: #{flux_forward.19} parent=5 // pred_fallthru
        _
      %p573 = scmp.le.s32.totalorder 2, %s9
      // Predicated region
      $region102: #{flux_forward.19} parent=5 // pred_check
        %p574 = pneg %p573
      $region103: #{flux_forward.19} parent=5 // pred_check_branch
        %576 = sbr.rel (%p574) target = $region105
      $region104: #{flux_forward.19} parent=5 // pred_region
        %s577 = ssub.s32 %s9, 2
        // Predicated region
        $region106: #{flux_forward.19} parent=104 // pred_check
          %p578 = pneg %p141
        $region107: #{flux_forward.19} parent=104 // pred_check_branch
          %580 = sbr.rel (%p578) target = $region109
        $region108: #{flux_forward.19} parent=104 // pred_region
          %s581 = sand.u32 %s126, 1
          %s582 = sand.u32 %s126, 1
          %s583 = smul.addr %s582, 32
          %s584 = scalar_lea.vmem [#allocation4], %s583
        $region109: #{flux_forward.19} parent=104 // pred_fallthru
          _
      $region105: #{flux_forward.19} parent=5 // pred_fallthru
        _
    $region6: #{flux_forward.19} parent=1 // loop_footer
      %s13 = sadd.s32 1, %s9
    $region7: #{flux_forward.19} parent=1 // loop_footer_branch
      %8 = sbr.rel target = $region3
    $region8: #{flux_forward.19} parent=1 // loop_exit
      _

// kernel: flux_forward.20
$region0: #{flux_forward.20}
  #allocation0 [shape = 'u32[]', space=smem, size = 0x4, offset = 0x4, fixed_abs, tag = 'smem constant byte address 0x4 - core index']
  #allocation1 [shape = 'u32[144,128]{1,0:T(1,128)}', space=vmem, size = 0x12000, scoped, tag = 'internal scratch']
  #allocation2 [shape = 'f32[24,1]{1,0:T(8,128)}', space=vmem, size = 0x3000, scoped, tag = 'scratch operand']
  #allocation3 [shape = 'f32[24,1]{1,0:T(8,128)}', space=vmem, size = 0x3000, scoped, tag = 'scratch operand']
  #allocation4 [shape = 'f32[24,32]{1,0:T(8,128)}', space=vmem, size = 0x3000, scoped, tag = 'scratch operand']
  %s0 = inlined_call_operand.vmem [shape: bf16[2,4,24,32], index: 0, kind: input, shape index: {}]
  %s1 = inlined_call_operand.vmem [shape: bf16[2,4,24,32], index: 1, kind: input, shape index: {}]
  %s2 = inlined_call_operand.vmem [shape: bf16[2,4,24,32], index: 2, kind: input, shape index: {}]
  %s3 = inlined_call_operand.vmem [shape: f32[2,1,24], index: 3, kind: input, shape index: {}]
  %s4 = inlined_call_operand.vmem [shape: f32[2,4,24,32], index: 4, kind: output, shape index: {}]
  %s5 = sld [smem:[#allocation0]]
  $region57: #{flux_forward.20} parent=0
    _
  %s7 = ssub.s32 1, %s5
  %s8 = scalar_select 0, %s7, %s5
  loop: start=0, step=1, limit=10
  $region2: #{flux_forward.20} parent=0 // loop_pre_header
    _
  $region3: #{flux_forward.20} parent=0 // loop_header
    %s10 = sphi 0, %s14
    %p11 = scmp.ge.s32.totalorder %s10, 10
    %s17 = sphi 0, %s43
    %s18 = sphi 0, %s39
    %s19 = sphi 0, %s35
    %s20 = sphi 0, %s31
    %s21 = sphi 0, %s17
    %s22 = sphi 0, %s18
    %s23 = sphi 0, %s19
    %s24 = sphi 0, %s20
    %s25 = sphi 0, %s21
    %s26 = sphi 0, %s22
    %s27 = sphi 0, %s23
    %s28 = sphi 0, %s24
    %s50 = sphi 0, %s52
    %s53 = sphi 0, %s50
    %s54 = sphi 0, %s53
    %s70 = sphi 0, %s54
    %s80 = sphi 0, %s82
    %s83 = sphi 0, %s80
    %s84 = sphi 0, %s83
    %s100 = sphi 0, %s84
    %s110 = sphi 0, %s112
    %s113 = sphi 0, %s110
    %s114 = sphi 0, %s113
    %s130 = sphi 0, %s114
    %s138 = sphi 0, %s140
    %s141 = sphi 0, %s138
    %s142 = sphi 0, %s141
    %s158 = sphi 0, %s142
    %s168 = sphi 0, %s170
    %s171 = sphi 0, %s168
    %s172 = sphi 0, %s171
    %s188 = sphi 0, %s172
  $region4: #{flux_forward.20} parent=0 // loop_header_branch
    %13 = sbr.rel (%p11) target = $region8
  $region5: #{flux_forward.20} parent=0 // loop_body
    %s15 = ssub.s32 %s10, 1
    %s16 = ssub.s32 %s10, 2
    %s29 = sadd.s32 1, %s20
    %p30 = scmp.ge.s32.totalorder %s29, 1
    %s31 = scalar_select %p30, 0, %s29
    %s32 = sadd.s32 1, %s19
    %s33 = scalar_select %p30, %s32, %s19
    %p34 = scmp.ge.s32.totalorder %s33, 1
    %s35 = scalar_select %p34, 0, %s33
    %s36 = sadd.s32 1, %s18
    %s37 = scalar_select %p34, %s36, %s18
    %p38 = scmp.ge.s32.totalorder %s37, 4
    %s39 = scalar_select %p38, 0, %s37
    %s40 = sadd.s32 1, %s17
    %s41 = scalar_select %p38, %s40, %s17
    %p42 = scmp.ge.s32.totalorder %s41, 2
    %s43 = scalar_select %p42, 0, %s41
    %s44 = ssub.s32 %s17, %s43
    %s45 = ssub.s32 %s18, %s39
    %s46 = sor.u32 %s44, %s45
    %s47 = ssub.s32 %s19, %s35
    %s48 = sor.u32 %s46, %s47
    %p49 = scmp.eq.s32.totalorder %s48, 0
    %s51 = sadd.s32 %s50, 1
    %s52 = scalar_select %p49, %s50, %s51
    %p55 = pneg %p49
    %p56 = scmp.eq.s32.totalorder %s10, 7
    %p57 = por %p55, %p56
    %p58 = scmp.ne.s32.totalorder %s50, %s53
    %p59 = scmp.eq.s32.totalorder %s10, 0
    %p60 = por %p58, %p59
    %p61 = scmp.ne.s32.totalorder %s50, %s53
    %p62 = scmp.eq.s32.totalorder %s15, 7
    %p63 = por %p61, %p62
    %p64 = scmp.ne.s32.totalorder %s53, %s54
    %p65 = scmp.eq.s32.totalorder %s15, 0
    %p66 = por %p64, %p65
    %p67 = scmp.ne.s32.totalorder %s53, %s54
    %p68 = scmp.eq.s32.totalorder %s16, 7
    %p69 = por %p67, %p68
    %p71 = scmp.ne.s32.totalorder %s54, %s70
    %p72 = scmp.eq.s32.totalorder %s16, 0
    %p73 = por %p71, %p72
    %s74 = ssub.s32 %s17, %s43
    %s75 = ssub.s32 %s18, %s39
    %s76 = sor.u32 %s74, %s75
    %s77 = ssub.s32 %s20, %s31
    %s78 = sor.u32 %s76, %s77
    %p79 = scmp.eq.s32.totalorder %s78, 0
    %s81 = sadd.s32 %s80, 1
    %s82 = scalar_select %p79, %s80, %s81
    %p85 = pneg %p79
    %p86 = scmp.eq.s32.totalorder %s10, 7
    %p87 = por %p85, %p86
    %p88 = scmp.ne.s32.totalorder %s80, %s83
    %p89 = scmp.eq.s32.totalorder %s10, 0
    %p90 = por %p88, %p89
    %p91 = scmp.ne.s32.totalorder %s80, %s83
    %p92 = scmp.eq.s32.totalorder %s15, 7
    %p93 = por %p91, %p92
    %p94 = scmp.ne.s32.totalorder %s83, %s84
    %p95 = scmp.eq.s32.totalorder %s15, 0
    %p96 = por %p94, %p95
    %p97 = scmp.ne.s32.totalorder %s83, %s84
    %p98 = scmp.eq.s32.totalorder %s16, 7
    %p99 = por %p97, %p98
    %p101 = scmp.ne.s32.totalorder %s84, %s100
    %p102 = scmp.eq.s32.totalorder %s16, 0
    %p103 = por %p101, %p102
    %s104 = ssub.s32 %s17, %s43
    %s105 = ssub.s32 %s18, %s39
    %s106 = sor.u32 %s104, %s105
    %s107 = ssub.s32 %s20, %s31
    %s108 = sor.u32 %s106, %s107
    %p109 = scmp.eq.s32.totalorder %s108, 0
    %s111 = sadd.s32 %s110, 1
    %s112 = scalar_select %p109, %s110, %s111
    %p115 = pneg %p109
    %p116 = scmp.eq.s32.totalorder %s10, 7
    %p117 = por %p115, %p116
    %p118 = scmp.ne.s32.totalorder %s110, %s113
    %p119 = scmp.eq.s32.totalorder %s10, 0
    %p120 = por %p118, %p119
    %p121 = scmp.ne.s32.totalorder %s110, %s113
    %p122 = scmp.eq.s32.totalorder %s15, 7
    %p123 = por %p121, %p122
    %p124 = scmp.ne.s32.totalorder %s113, %s114
    %p125 = scmp.eq.s32.totalorder %s15, 0
    %p126 = por %p124, %p125
    %p127 = scmp.ne.s32.totalorder %s113, %s114
    %p128 = scmp.eq.s32.totalorder %s16, 7
    %p129 = por %p127, %p128
    %p131 = scmp.ne.s32.totalorder %s114, %s130
    %p132 = scmp.eq.s32.totalorder %s16, 0
    %p133 = por %p131, %p132
    %s134 = ssub.s32 %s17, %s43
    %s135 = ssub.s32 %s20, %s31
    %s136 = sor.u32 %s134, %s135
    %p137 = scmp.eq.s32.totalorder %s136, 0
    %s139 = sadd.s32 %s138, 1
    %s140 = scalar_select %p137, %s138, %s139
    %p143 = pneg %p137
    %p144 = scmp.eq.s32.totalorder %s10, 7
    %p145 = por %p143, %p144
    %p146 = scmp.ne.s32.totalorder %s138, %s141
    %p147 = scmp.eq.s32.totalorder %s10, 0
    %p148 = por %p146, %p147
    %p149 = scmp.ne.s32.totalorder %s138, %s141
    %p150 = scmp.eq.s32.totalorder %s15, 7
    %p151 = por %p149, %p150
    %p152 = scmp.ne.s32.totalorder %s141, %s142
    %p153 = scmp.eq.s32.totalorder %s15, 0
    %p154 = por %p152, %p153
    %p155 = scmp.ne.s32.totalorder %s141, %s142
    %p156 = scmp.eq.s32.totalorder %s16, 7
    %p157 = por %p155, %p156
    %p159 = scmp.ne.s32.totalorder %s142, %s158
    %p160 = scmp.eq.s32.totalorder %s16, 0
    %p161 = por %p159, %p160
    %s162 = ssub.s32 %s17, %s43
    %s163 = ssub.s32 %s18, %s39
    %s164 = sor.u32 %s162, %s163
    %s165 = ssub.s32 %s19, %s35
    %s166 = sor.u32 %s164, %s165
    %p167 = scmp.eq.s32.totalorder %s166, 0
    %s169 = sadd.s32 %s168, 1
    %s170 = scalar_select %p167, %s168, %s169
    %p173 = pneg %p167
    %p174 = scmp.eq.s32.totalorder %s10, 7
    %p175 = por %p173, %p174
    %p176 = scmp.ne.s32.totalorder %s168, %s171
    %p177 = scmp.eq.s32.totalorder %s10, 0
    %p178 = por %p176, %p177
    %p179 = scmp.ne.s32.totalorder %s168, %s171
    %p180 = scmp.eq.s32.totalorder %s15, 7
    %p181 = por %p179, %p180
    %p182 = scmp.ne.s32.totalorder %s171, %s172
    %p183 = scmp.eq.s32.totalorder %s15, 0
    %p184 = por %p182, %p183
    %p185 = scmp.ne.s32.totalorder %s171, %s172
    %p186 = scmp.eq.s32.totalorder %s16, 7
    %p187 = por %p185, %p186
    %p189 = scmp.ne.s32.totalorder %s172, %s188
    %p190 = scmp.eq.s32.totalorder %s16, 0
    %p191 = por %p189, %p190
    %p192 = scmp.le.s32.totalorder 1, %s10
    %p193 = scmp.lt.s32.totalorder %s10, 9
    %p194 = pnand %p192, %p193
    %p195 = pneg %p194
    // Predicated region
    $region9: #{flux_forward.20} parent=5 // pred_check
      _
    $region10: #{flux_forward.20} parent=5 // pred_check_branch
      %197 = sbr.rel (%p194) target = $region12
    $region11: #{flux_forward.20} parent=5 // pred_region
      %s198 = ssub.s32 %s10, 1
    $region12: #{flux_forward.20} parent=5 // pred_fallthru
      _
    %p199 = scmp.lt.s32.totalorder %s10, 8
    // Predicated region
    $region13: #{flux_forward.20} parent=5 // pred_check
      %p200 = pneg %p199
    $region14: #{flux_forward.20} parent=5 // pred_check_branch
      %202 = sbr.rel (%p200) target = $region16
    $region15: #{flux_forward.20} parent=5 // pred_region
      // Predicated region
      $region17: #{flux_forward.20} parent=15 // pred_check
        %p203 = pneg %p60
      $region18: #{flux_forward.20} parent=15 // pred_check_branch
        %205 = sbr.rel (%p203) target = $region20
      $region19: #{flux_forward.20} parent=15 // pred_region
        %s206 = smul.u32 3, %s19
        %p207 = scmp.lt.s32.totalorder %s17, 1
        %s208 = scalar_select %p207, %s17, 1
        %p209 = scmp.lt.s32.totalorder %s18, 3
        %s210 = scalar_select %p209, %s18, 3
        %p211 = scmp.lt.s32.totalorder %s206, 2
        %s212 = scalar_select %p211, %s206, 2
        %s213 = smul.addr %s210, 3
        %s214 = sadd.s32 %s212, %s213
        %s215 = smul.addr %s208, 12
        %s216 = sadd.s32 %s214, %s215
        %s217 = smul.addr %s216, 4
        %s218 = scalar_lea.vmem %s0, %s217
        %s219 = smul.u32 3, %s19
      $region20: #{flux_forward.20} parent=15 // pred_fallthru
        _
      // Predicated region
      $region21: #{flux_forward.20} parent=15 // pred_check
        %p220 = pneg %p90
      $region22: #{flux_forward.20} parent=15 // pred_check_branch
        %222 = sbr.rel (%p220) target = $region24
      $region23: #{flux_forward.20} parent=15 // pred_region
        %s223 = smul.u32 3, %s20
        %p224 = scmp.lt.s32.totalorder %s17, 1
        %s225 = scalar_select %p224, %s17, 1
        %p226 = scmp.lt.s32.totalorder %s18, 3
        %s227 = scalar_select %p226, %s18, 3
        %p228 = scmp.lt.s32.totalorder %s223, 2
        %s229 = scalar_select %p228, %s223, 2
        %s230 = smul.addr %s227, 3
        %s231 = sadd.s32 %s229, %s230
        %s232 = smul.addr %s225, 12
        %s233 = sadd.s32 %s231, %s232
        %s234 = smul.addr %s233, 4
        %s235 = scalar_lea.vmem %s1, %s234
        %s236 = smul.u32 3, %s20
      $region24: #{flux_forward.20} parent=15 // pred_fallthru
        _
      // Predicated region
      $region25: #{flux_forward.20} parent=15 // pred_check
        %p237 = pneg %p120
      $region26: #{flux_forward.20} parent=15 // pred_check_branch
        %239 = sbr.rel (%p237) target = $region28
      $region27: #{flux_forward.20} parent=15 // pred_region
        %s240 = smul.u32 3, %s20
        %p241 = scmp.lt.s32.totalorder %s17, 1
        %s242 = scalar_select %p241, %s17, 1
        %p243 = scmp.lt.s32.totalorder %s18, 3
        %s244 = scalar_select %p243, %s18, 3
        %p245 = scmp.lt.s32.totalorder %s240, 2
        %s246 = scalar_select %p245, %s240, 2
        %s247 = smul.addr %s244, 3
        %s248 = sadd.s32 %s246, %s247
        %s249 = smul.addr %s242, 12
        %s250 = sadd.s32 %s248, %s249
        %s251 = smul.addr %s250, 4
        %s252 = scalar_lea.vmem %s2, %s251
        %s253 = smul.u32 3, %s20
      $region28: #{flux_forward.20} parent=15 // pred_fallthru
        _
      // Predicated region
      $region29: #{flux_forward.20} parent=15 // pred_check
        %p254 = pneg %p148
      $region30: #{flux_forward.20} parent=15 // pred_check_branch
        %256 = sbr.rel (%p254) target = $region32
      $region31: #{flux_forward.20} parent=15 // pred_region
        %p257 = scmp.lt.s32.totalorder %s17, 1
        %s258 = scalar_select %p257, %s17, 1
        %p259 = scmp.lt.s32.totalorder %s20, 0
        %s260 = scalar_select %p259, %s20, 0
        %s261 = sadd.s32 %s260, %s258
        %s262 = scalar_lea.vmem %s3, %s261
      $region32: #{flux_forward.20} parent=15 // pred_fallthru
        _
    $region16: #{flux_forward.20} parent=5 // pred_fallthru
      _
    %p263 = scmp.le.s32.totalorder 1, %s10
    %p264 = scmp.lt.s32.totalorder %s10, 9
    %p265 = pnand %p263, %p264
    %p266 = pneg %p265
    // Predicated region
    $region33: #{flux_forward.20} parent=5 // pred_check
      _
    $region34: #{flux_forward.20} parent=5 // pred_check_branch
      %268 = sbr.rel (%p265) target = $region36
    $region35: #{flux_forward.20} parent=5 // pred_region
      %s269 = ssub.s32 %s10, 1
      %s270 = smul.u32 3, %s23
      %p271 = scmp.lt.s32.totalorder %s21, 1
      %s272 = scalar_select %p271, %s21, 1
      %p273 = scmp.lt.s32.totalorder %s22, 3
      %s274 = scalar_select %p273, %s22, 3
      %p275 = scmp.lt.s32.totalorder %s270, 2
      %s276 = scalar_select %p275, %s270, 2
      %s277 = smul.addr %s274, 3
      %s278 = sadd.s32 %s276, %s277
      %s279 = smul.addr %s272, 12
      %s280 = sadd.s32 %s278, %s279
      %s281 = smul.addr %s280, 4
      %s282 = scalar_lea.vmem %s0, %s281
      %p283 = pneg %p66
      %p284 = pneg %p63
      %s285 = smul.u32 3, %s24
      %p286 = scmp.lt.s32.totalorder %s21, 1
      %s287 = scalar_select %p286, %s21, 1
      %p288 = scmp.lt.s32.totalorder %s22, 3
      %s289 = scalar_select %p288, %s22, 3
      %p290 = scmp.lt.s32.totalorder %s285, 2
      %s291 = scalar_select %p290, %s285, 2
      %s292 = smul.addr %s289, 3
      %s293 = sadd.s32 %s291, %s292
      %s294 = smul.addr %s287, 12
      %s295 = sadd.s32 %s293, %s294
      %s296 = smul.addr %s295, 4
      %s297 = scalar_lea.vmem %s1, %s296
      %p298 = pneg %p96
      %p299 = pneg %p93
      %s300 = smul.u32 3, %s24
      %p301 = scmp.lt.s32.totalorder %s21, 1
      %s302 = scalar_select %p301, %s21, 1
      %p303 = scmp.lt.s32.totalorder %s22, 3
      %s304 = scalar_select %p303, %s22, 3
      %p305 = scmp.lt.s32.totalorder %s300, 2
      %s306 = scalar_select %p305, %s300, 2
      %s307 = smul.addr %s304, 3
      %s308 = sadd.s32 %s306, %s307
      %s309 = smul.addr %s302, 12
      %s310 = sadd.s32 %s308, %s309
      %s311 = smul.addr %s310, 4
      %s312 = scalar_lea.vmem %s2, %s311
      %p313 = pneg %p126
      %p314 = pneg %p123
      %p315 = scmp.lt.s32.totalorder %s21, 1
      %s316 = scalar_select %p315, %s21, 1
      %p317 = scmp.lt.s32.totalorder %s24, 0
      %s318 = scalar_select %p317, %s24, 0
      %s319 = sadd.s32 %s318, %s316
      %s320 = scalar_lea.vmem %s3, %s319
      %p321 = pneg %p154
      %p322 = pneg %p151
      %p323 = pneg %p184
      %p324 = pneg %p181
      %s325 = smul.u32 3, %s23
      %p326 = scmp.lt.s32.totalorder %s21, 1
      %s327 = scalar_select %p326, %s21, 1
      %p328 = scmp.lt.s32.totalorder %s22, 3
      %s329 = scalar_select %p328, %s22, 3
      %p330 = scmp.lt.s32.totalorder %s325, 2
      %s331 = scalar_select %p330, %s325, 2
      %s332 = smul.addr %s329, 3
      %s333 = sadd.s32 %s331, %s332
      %s334 = smul.addr %s327, 12
      %s335 = sadd.s32 %s333, %s334
      %s336 = smul.addr %s335, 8
      %s337 = scalar_lea.vmem %s4, %s336
      %s338 = smul.u32 3, %s23
      %p339 = scmp.lt.s32.totalorder %s21, 1
      %s340 = scalar_select %p339, %s21, 1
      %p341 = scmp.lt.s32.totalorder %s22, 3
      %s342 = scalar_select %p341, %s22, 3
      %p343 = scmp.lt.s32.totalorder %s338, 2
      %s344 = scalar_select %p343, %s338, 2
      %s345 = smul.addr %s342, 3
      %s346 = sadd.s32 %s344, %s345
      %s347 = smul.addr %s340, 12
      %s348 = sadd.s32 %s346, %s347
      %s349 = smul.addr %s348, 4
      %s350 = scalar_lea.vmem %s0, %s349
      %s351 = smul.u32 3, %s23
      %s352 = smul.u32 3, %s24
      %p353 = scmp.lt.s32.totalorder %s21, 1
      %s354 = scalar_select %p353, %s21, 1
      %p355 = scmp.lt.s32.totalorder %s22, 3
      %s356 = scalar_select %p355, %s22, 3
      %p357 = scmp.lt.s32.totalorder %s352, 2
      %s358 = scalar_select %p357, %s352, 2
      %s359 = smul.addr %s356, 3
      %s360 = sadd.s32 %s358, %s359
      %s361 = smul.addr %s354, 12
      %s362 = sadd.s32 %s360, %s361
      %s363 = smul.addr %s362, 4
      %s364 = scalar_lea.vmem %s1, %s363
      %s365 = smul.u32 3, %s24
      %s366 = smul.u32 3, %s24
      %p367 = scmp.lt.s32.totalorder %s21, 1
      %s368 = scalar_select %p367, %s21, 1
      %p369 = scmp.lt.s32.totalorder %s22, 3
      %s370 = scalar_select %p369, %s22, 3
      %p371 = scmp.lt.s32.totalorder %s366, 2
      %s372 = scalar_select %p371, %s366, 2
      %s373 = smul.addr %s370, 3
      %s374 = sadd.s32 %s372, %s373
      %s375 = smul.addr %s368, 12
      %s376 = sadd.s32 %s374, %s375
      %s377 = smul.addr %s376, 4
      %s378 = scalar_lea.vmem %s2, %s377
      %s379 = smul.u32 3, %s24
      %p380 = scmp.lt.s32.totalorder %s21, 1
      %s381 = scalar_select %p380, %s21, 1
      %p382 = scmp.lt.s32.totalorder %s24, 0
      %s383 = scalar_select %p382, %s24, 0
      %s384 = sadd.s32 %s383, %s381
      %s385 = scalar_lea.vmem %s3, %s384
      %s386 = smul.u32 3, %s23
      %p387 = scmp.lt.s32.totalorder %s21, 1
      %s388 = scalar_select %p387, %s21, 1
      %p389 = scmp.lt.s32.totalorder %s22, 3
      %s390 = scalar_select %p389, %s22, 3
      %p391 = scmp.lt.s32.totalorder %s386, 2
      %s392 = scalar_select %p391, %s386, 2
      %s393 = smul.addr %s390, 3
      %s394 = sadd.s32 %s392, %s393
      %s395 = smul.addr %s388, 12
      %s396 = sadd.s32 %s394, %s395
      %s397 = smul.addr %s396, 8
      %s398 = scalar_lea.vmem %s4, %s397
      %s399 = smul.u32 3, %s23
      %p401 = scmp.eq.s32.totalorder %s24, 0
      // Predicated region
      $region37: #{flux_forward.20} parent=35 // pred_check
        %p402 = pneg %p401
      $region38: #{flux_forward.20} parent=35 // pred_check_branch
        %404 = sbr.rel (%p402) target = $region40
      $region39: #{flux_forward.20} parent=35 // pred_region
        %vm405 = vcmask 7168
        %406 = vst.msk [vmem:[#allocation2] sm:$0xff] %vm405, -inf
        %407 = vst.msk [vmem:[#allocation2 + $0x8] sm:$0xff] %vm405, -inf
        %408 = vst.msk [vmem:[#allocation2 + $0x10] sm:$0xff] %vm405, -inf
        %409 = vst.msk [vmem:[#allocation3] sm:$0xff] %vm405, 0.0
        %410 = vst.msk [vmem:[#allocation3 + $0x8] sm:$0xff] %vm405, 0.0
        %411 = vst.msk [vmem:[#allocation3 + $0x10] sm:$0xff] %vm405, 0.0
        %vm412 = vcmask 261120
        %413 = vst.msk [vmem:[#allocation4] sm:$0xff] %vm412, 0.0
        %414 = vst.msk [vmem:[#allocation4 + $0x8] sm:$0xff] %vm412, 0.0
        %415 = vst.msk [vmem:[#allocation4 + $0x10] sm:$0xff] %vm412, 0.0
      $region40: #{flux_forward.20} parent=35 // pred_fallthru
        _
      %v416 = vld [vmem:[%s350] sm:$0xf]
      %v417 = vld [vmem:[%s350 + $0x4] sm:$0xf]
      %v418 = vld [vmem:[%s350 + $0x8] sm:$0xf]
      %v419 = vld [vmem:[%s364] sm:$0xf]
      %v420 = vld [vmem:[%s364 + $0x4] sm:$0xf]
      %v421 = vld [vmem:[%s364 + $0x8] sm:$0xf]
      %v422 = vld [vmem:[%s378] sm:$0xf]
      %v423 = vld [vmem:[%s378 + $0x4] sm:$0xf]
      %v424 = vld [vmem:[%s378 + $0x8] sm:$0xf]
      %v428 = vunpack.c.l.b16 %v416
      %v429 = vunpack.c.l.b16 %v417
      %v430 = vunpack.c.l.b16 %v418
      %v431 = vpack.c.b16 %v429, %v428
      %v432 = vpack.c.b16 %v430, %v430
      %v436 = vunpack.c.l.b16 %v419
      %v437 = vunpack.c.l.b16 %v420
      %v438 = vunpack.c.l.b16 %v421
      %v439 = vpack.c.b16 %v437, %v436
      %v440 = vpack.c.b16 %v438, %v438
      %vm441 = vcmask 261120
      %v443 = vsel %vm441, %v431, 0
      %v446 = vsel %vm441, %v432, 0
      %v449 = vsel %vm441, %v439, 0
      %v452 = vsel %vm441, %v440, 0
      %454 = vmatprep.subr.bf16.mxu0 0
      %455 = vmatpush1.bf16.xpose.msra.mxu0 %v449
      %456 = vmatprep.subr.bf16.mxu0 0
      %457 = vmatpush1.bf16.xpose.msra.mxu0 %v452
      %458 = vmatprep.subr.bf16.mxu0 0
      %459 = vmatpush1.bf16.xpose.msra.mxu0 0
      %460 = vmatprep.subr.bf16.mxu0 0
      %461 = vmatpush1.bf16.xpose.msra.mxu0 0
      %462 = vmatprep.subr.bf16.mxu0 0
      %463 = vmatpush1.bf16.xpose.msra.mxu0 0
      %464 = vmatprep.subr.bf16.mxu0 0
      %465 = vmatpush1.bf16.xpose.msra.mxu0 0
      %466 = vmatprep.subr.bf16.mxu0 0
      %467 = vmatpush1.bf16.xpose.msra.mxu0 0
      %468 = vmatprep.subr.bf16.mxu0 0
      %469 = vmatpush1.bf16.xpose.msra.mxu0 0
      %470 = vmatprep.subr.bf16.mxu0 0
      %471 = vmatpush1.bf16.xpose.msra.mxu0 0
      %472 = vmatprep.subr.bf16.mxu0 0
      %473 = vmatpush1.bf16.xpose.msra.mxu0 0
      %474 = vmatprep.subr.bf16.mxu0 0
      %475 = vmatpush1.bf16.xpose.msra.mxu0 0
      %476 = vmatprep.subr.bf16.mxu0 0
      %477 = vmatpush1.bf16.xpose.msra.mxu0 0
      %478 = vmatprep.subr.bf16.mxu0 0
      %479 = vmatpush1.bf16.xpose.msra.mxu0 0
      %480 = vmatprep.subr.bf16.mxu0 0
      %481 = vmatpush1.bf16.xpose.msra.mxu0 0
      %482 = vmatprep.subr.bf16.mxu0 0
      %483 = vmatpush1.bf16.xpose.msra.mxu0 0
      %484 = vmatprep.subr.bf16.mxu0 0
      %485 = vmatpush1.bf16.xpose.msra.mxu0 0
      %486 = vmatprep.mubr.bf16.mxu0 0
      %487 = vmatmul.mubr.bf16.gmra.mrb[0].mxu0 %v443
      %v488 = vpop.f32.mrb[0].mxu0
      %v489 = vadd.f32 0.0, %v488
      %v490 = vpop.f32.mrb[0].mxu0
      %v491 = vpop.f32.mrb[0].mxu0
      %v492 = vadd.f32 0.0, %v491
      %v493 = vpop.f32.mrb[0].mxu0
      %494 = vmatprep.mubr.bf16.mxu0 0
      %495 = vmatmul.mubr.bf16.gmra.mrb[0].mxu0 %v446
      %v496 = vpop.f32.mrb[0].mxu0
      %v497 = vadd.f32 0.0, %v496
      %v498 = vpop.f32.mrb[0].mxu0
      %v499 = vpop.f32.mrb[0].mxu0
      %v500 = vpop.f32.mrb[0].mxu0
      %501 = vdwg.mxu0
      %v502 = vmul.f32 %v489, 0.17677669
      %v503 = vmul.f32 %v492, 0.17677669
      %v504 = vmul.f32 %v497, 0.17677669
      %v505 = vld [vmem:[%s385] sm:$0x1]
      %v507 = vlaneseq
      %v508 = vshrl.u32 %v507, 7
      %v509 = vsub.s32 0, %v508
      %v510 = vrot.slane %v505, %v509
      %v512 = vadd.f32 %v502, %v510
      %v513 = vadd.f32 %v503, %v510
      %v514 = vadd.f32 %v504, %v510
      %v515 = vld [vmem:[#allocation2] sm:$0xff]
      %v516 = vld [vmem:[#allocation2 + $0x8] sm:$0xff]
      %v517 = vld [vmem:[#allocation2 + $0x10] sm:$0xff]
      %vm518 = vcmask 195584
      %v519 = vsel %vm518, %v512, -inf
      %520 = vmax.xlane.f32.xlu0 %v519
      %v521 = vpop.xlane.xlu0 %520
      %v522 = vsel %vm518, %v513, -inf
      %523 = vmax.xlane.f32.xlu0 %v522
      %v524 = vpop.xlane.xlu0 %523
      %v525 = vsel %vm518, %v514, -inf
      %526 = vmax.xlane.f32.xlu0 %v525
      %v527 = vpop.xlane.xlu0 %526
      %v528 = vmax.f32 %v515, %v521
      %v529 = vmax.f32 %v516, %v524
      %v530 = vmax.f32 %v517, %v527
      %v531 = vsub.f32 %v515, %v528
      %v532 = vsub.f32 %v516, %v529
      %v533 = vsub.f32 %v517, %v530
      %v534 = vmul.f32 %v531, 1.442695
      %v535 = vpow.pop %v534
      %v536 = vmul.f32 %v532, 1.442695
      %v537 = vpow.pop %v536
      %v538 = vmul.f32 %v533, 1.442695
      %v539 = vpow.pop %v538
      %541 = vset.pattern.permute.xlu0 0
      %542 = vperm.xlu0 %541, %v528
      %v543 = vpop.permute.xlu0 %542
      %546 = vset.pattern.permute.xlu0 0
      %547 = vperm.xlu0 %546, %v529
      %v548 = vpop.permute.xlu0 %547
      %551 = vset.pattern.permute.xlu0 0
      %552 = vperm.xlu0 %551, %v530
      %v553 = vpop.permute.xlu0 %552
      %v555 = vsub.f32 %v512, %v543
      %v556 = vsub.f32 %v513, %v548
      %v557 = vsub.f32 %v514, %v553
      %v558 = vmul.f32 %v555, 1.442695
      %v559 = vpow.pop %v558
      %v560 = vmul.f32 %v556, 1.442695
      %v561 = vpow.pop %v560
      %v562 = vmul.f32 %v557, 1.442695
      %v563 = vpow.pop %v562
      %v564 = vld [vmem:[#allocation3] sm:$0xff]
      %v565 = vld [vmem:[#allocation3 + $0x8] sm:$0xff]
      %v566 = vld [vmem:[#allocation3 + $0x10] sm:$0xff]
      %v567 = vmul.f32 %v535, %v564
      %v568 = vmul.f32 %v537, %v565
      %v569 = vmul.f32 %v539, %v566
      %v570 = vsel %vm518, %v559, 0.0
      %571 = vadd.xlane.f32.xlu0 %v570
      %v572 = vpop.xlane.xlu0 %571
      %v573 = vsel %vm518, %v561, 0.0
      %574 = vadd.xlane.f32.xlu0 %v573
      %v575 = vpop.xlane.xlu0 %574
      %v576 = vsel %vm518, %v563, 0.0
      %577 = vadd.xlane.f32.xlu0 %v576
      %v578 = vpop.xlane.xlu0 %577
      %v579 = vadd.f32 %v567, %v572
      %v580 = vadd.f32 %v568, %v575
      %v581 = vadd.f32 %v569, %v578
      %vm582 = vcmask 7168
      %583 = vst.msk [vmem:[#allocation3] sm:$0xff] %vm582, %v579
      %584 = vst.msk [vmem:[#allocation3 + $0x8] sm:$0xff] %vm582, %v580
      %585 = vst.msk [vmem:[#allocation3 + $0x10] sm:$0xff] %vm582, %v581
      %v586 = vld [vmem:[#allocation4] sm:$0xff]
      %v587 = vld [vmem:[#allocation4 + $0x8] sm:$0xff]
      %v588 = vld [vmem:[#allocation4 + $0x10] sm:$0xff]
      %590 = vset.pattern.permute.xlu0 0
      %591 = vperm.xlu0 %590, %v535
      %v592 = vpop.permute.xlu0 %591
      %595 = vset.pattern.permute.xlu0 0
      %596 = vperm.xlu0 %595, %v537
      %v597 = vpop.permute.xlu0 %596
      %600 = vset.pattern.permute.xlu0 0
      %601 = vperm.xlu0 %600, %v539
      %v602 = vpop.permute.xlu0 %601
      %v604 = vmul.f32 %v592, %v586
      %v605 = vmul.f32 %v597, %v587
      %v606 = vmul.f32 %v602, %v588
      %v607 = vpack.c.bf16 %v561, %v559
      %v608 = vpack.c.bf16 %v563, %v563
      %v612 = vunpack.c.l.b16 %v422
      %v613 = vunpack.c.l.b16 %v423
      %v614 = vunpack.c.l.b16 %v424
      %v615 = vpack.c.b16 %v613, %v612
      %v616 = vpack.c.b16 %v614, %v614
      %v619 = vsel %vm518, %v607, 0
      %v622 = vsel %vm518, %v608, 0
      %vm624 = vcmask 1043456
      %v626 = vsel %vm624, %v616, 0
      %628 = vmatprep.subr.bf16.mxu0 0
      %629 = vmatpush1.bf16.msra.mxu0 %v615
      %630 = vmatprep.subr.bf16.mxu0 0
      %631 = vmatpush1.bf16.msra.mxu0 %v626
      %632 = vmatprep.subr.bf16.mxu0 0
      %633 = vmatpush1.bf16.msra.mxu0 0
      %634 = vmatprep.subr.bf16.mxu0 0
      %635 = vmatpush1.bf16.msra.mxu0 0
      %636 = vmatprep.subr.bf16.mxu0 0
      %637 = vmatpush1.bf16.msra.mxu0 0
      %638 = vmatprep.subr.bf16.mxu0 0
      %639 = vmatpush1.bf16.msra.mxu0 0
      %640 = vmatprep.subr.bf16.mxu0 0
      %641 = vmatpush1.bf16.msra.mxu0 0
      %642 = vmatprep.subr.bf16.mxu0 0
      %643 = vmatpush1.bf16.msra.mxu0 0
      %644 = vmatprep.subr.bf16.mxu0 0
      %645 = vmatpush1.bf16.msra.mxu0 0
      %646 = vmatprep.subr.bf16.mxu0 0
      %647 = vmatpush1.bf16.msra.mxu0 0
      %648 = vmatprep.subr.bf16.mxu0 0
      %649 = vmatpush1.bf16.msra.mxu0 0
      %650 = vmatprep.subr.bf16.mxu0 0
      %651 = vmatpush1.bf16.msra.mxu0 0
      %652 = vmatprep.subr.bf16.mxu0 0
      %653 = vmatpush1.bf16.msra.mxu0 0
      %654 = vmatprep.subr.bf16.mxu0 0
      %655 = vmatpush1.bf16.msra.mxu0 0
      %656 = vmatprep.subr.bf16.mxu0 0
      %657 = vmatpush1.bf16.msra.mxu0 0
      %658 = vmatprep.subr.bf16.mxu0 0
      %659 = vmatpush1.bf16.msra.mxu0 0
      %660 = vmatprep.mubr.bf16.mxu0 0
      %661 = vmatmul.mubr.bf16.gmra.mrb[0].mxu0 %v619
      %v662 = vpop.f32.mrb[0].mxu0
      %v663 = vadd.f32 0.0, %v662
      %v664 = vpop.f32.mrb[0].mxu0
      %v665 = vpop.f32.mrb[0].mxu0
      %v666 = vadd.f32 0.0, %v665
      %v667 = vpop.f32.mrb[0].mxu0
      %668 = vmatprep.mubr.bf16.mxu0 0
      %669 = vmatmul.mubr.bf16.gmra.mrb[0].mxu0 %v622
      %v670 = vpop.f32.mrb[0].mxu0
      %v671 = vadd.f32 0.0, %v670
      %v672 = vpop.f32.mrb[0].mxu0
      %v673 = vpop.f32.mrb[0].mxu0
      %v674 = vpop.f32.mrb[0].mxu0
      %675 = vdwg.mxu0
      %v676 = vadd.f32 %v604, %v663
      %v677 = vadd.f32 %v605, %v666
      %v678 = vadd.f32 %v606, %v671
      %679 = vst.msk [vmem:[#allocation4] sm:$0xff] %vm441, %v676
      %680 = vst.msk [vmem:[#allocation4 + $0x8] sm:$0xff] %vm441, %v677
      %681 = vst.msk [vmem:[#allocation4 + $0x10] sm:$0xff] %vm441, %v678
      %682 = vst.msk [vmem:[#allocation2] sm:$0xff] %vm582, %v528
      %683 = vst.msk [vmem:[#allocation2 + $0x8] sm:$0xff] %vm582, %v529
      %684 = vst.msk [vmem:[#allocation2 + $0x10] sm:$0xff] %vm582, %v530
      // Predicated region
      $region41: #{flux_forward.20} parent=35 // pred_check
        %p685 = pneg %p401
      $region42: #{flux_forward.20} parent=35 // pred_check_branch
        %687 = sbr.rel (%p685) target = $region44
      $region43: #{flux_forward.20} parent=35 // pred_region
        %v688 = vld [vmem:[#allocation4] sm:$0xff]
        %v689 = vld [vmem:[#allocation4 + $0x8] sm:$0xff]
        %v690 = vld [vmem:[#allocation4 + $0x10] sm:$0xff]
        %v691 = vld [vmem:[#allocation3] sm:$0xff]
        %v692 = vld [vmem:[#allocation3 + $0x8] sm:$0xff]
        %v693 = vld [vmem:[#allocation3 + $0x10] sm:$0xff]
        %v694 = vrcp.pop %v691
        %v695 = vrcp.pop %v692
        %v696 = vrcp.pop %v693
        %698 = vset.pattern.permute.xlu0 0
        %699 = vperm.xlu0 %698, %v694
        %v700 = vpop.permute.xlu0 %699
        %703 = vset.pattern.permute.xlu0 0
        %704 = vperm.xlu0 %703, %v695
        %v705 = vpop.permute.xlu0 %704
        %708 = vset.pattern.permute.xlu0 0
        %709 = vperm.xlu0 %708, %v696
        %v710 = vpop.permute.xlu0 %709
        %v712 = vmul.f32 %v688, %v700
        %v713 = vmul.f32 %v689, %v705
        %v714 = vmul.f32 %v690, %v710
        %715 = vst.msk [vmem:[%s398] sm:$0xff] %vm441, %v712
        %716 = vst.msk [vmem:[%s398 + $0x8] sm:$0xff] %vm441, %v713
        %717 = vst.msk [vmem:[%s398 + $0x10] sm:$0xff] %vm441, %v714
      $region44: #{flux_forward.20} parent=35 // pred_fallthru
        _
      %s718 = smul.u32 3, %s23
      %p719 = scmp.lt.s32.totalorder %s21, 1
      %s720 = scalar_select %p719, %s21, 1
      %p721 = scmp.lt.s32.totalorder %s22, 3
      %s722 = scalar_select %p721, %s22, 3
      %p723 = scmp.lt.s32.totalorder %s718, 2
      %s724 = scalar_select %p723, %s718, 2
      %s725 = smul.addr %s722, 3
      %s726 = sadd.s32 %s724, %s725
      %s727 = smul.addr %s720, 12
      %s728 = sadd.s32 %s726, %s727
      %s729 = smul.addr %s728, 8
      %s730 = scalar_lea.vmem %s4, %s729
      // Predicated region
      $region45: #{flux_forward.20} parent=35 // pred_check
        %p731 = pneg %p181
      $region46: #{flux_forward.20} parent=35 // pred_check_branch
        %733 = sbr.rel (%p731) target = $region48
      $region47: #{flux_forward.20} parent=35 // pred_region
        %s734 = smul.u32 3, %s23
      $region48: #{flux_forward.20} parent=35 // pred_fallthru
        _
    $region36: #{flux_forward.20} parent=5 // pred_fallthru
      _
    %p735 = scmp.le.s32.totalorder 2, %s10
    // Predicated region
    $region49: #{flux_forward.20} parent=5 // pred_check
      %p736 = pneg %p735
    $region50: #{flux_forward.20} parent=5 // pred_check_branch
      %738 = sbr.rel (%p736) target = $region52
    $region51: #{flux_forward.20} parent=5 // pred_region
      %s739 = ssub.s32 %s10, 2
      // Predicated region
      $region53: #{flux_forward.20} parent=51 // pred_check
        %p740 = pneg %p187
      $region54: #{flux_forward.20} parent=51 // pred_check_branch
        %742 = sbr.rel (%p740) target = $region56
      $region55: #{flux_forward.20} parent=51 // pred_region
        %s743 = smul.u32 3, %s27
        %p744 = scmp.lt.s32.totalorder %s25, 1
        %s745 = scalar_select %p744, %s25, 1
        %p746 = scmp.lt.s32.totalorder %s26, 3
        %s747 = scalar_select %p746, %s26, 3
        %p748 = scmp.lt.s32.totalorder %s743, 2
        %s749 = scalar_select %p748, %s743, 2
        %s750 = smul.addr %s747, 3
        %s751 = sadd.s32 %s749, %s750
        %s752 = smul.addr %s745, 12
        %s753 = sadd.s32 %s751, %s752
        %s754 = smul.addr %s753, 8
        %s755 = scalar_lea.vmem %s4, %s754
      $region56: #{flux_forward.20} parent=51 // pred_fallthru
        _
    $region52: #{flux_forward.20} parent=5 // pred_fallthru
      _
  $region6: #{flux_forward.20} parent=0 // loop_footer
    %s14 = sadd.s32 1, %s10
  $region7: #{flux_forward.20} parent=0 // loop_footer_branch
    %9 = sbr.rel target = $region3
  $region8: #{flux_forward.20} parent=0 // loop_exit
    _

// kernel: flux_forward.25
$region0: #{flux_forward.25}
  #allocation0 [shape = 'u32[]', space=smem, size = 0x4, offset = 0x4, fixed_abs, tag = 'smem constant byte address 0x4 - core index']
  #allocation1 [shape = 'u32[144,128]{1,0:T(1,128)}', space=vmem, size = 0x12000, scoped, tag = 'internal scratch']
  #allocation2 [shape = 'f32[16,256]{1,0:T(8,128)}', space=vmem, size = 0x4000, scoped, tag = 'scratch operand']
  %s0 = inlined_call_operand.vmem [shape: bf16[16,128], index: 0, kind: input, shape index: {}]
  %s1 = inlined_call_operand.vmem [shape: bf16[128,512], index: 1, kind: input, shape index: {}]
  %s2 = inlined_call_operand.vmem [shape: f32[1,512], index: 2, kind: input, shape index: {}]
  %s3 = inlined_call_operand.vmem [shape: f32[16,512], index: 3, kind: output, shape index: {}]
  %s4 = sld [smem:[#allocation0]]
  $region110: #{flux_forward.25} parent=0
    _
  %s6 = ssub.s32 1, %s4
  %s7 = scalar_select 0, %s6, %s4
  $region1: #{flux_forward.25} parent=0
    #allocation3 [shape = 'u8[131072]{0}', space=vmem, size = 0x20000, scoped, tag = 'input window, operand 1']
    #allocation4 [shape = 'u8[32768]{0}', space=vmem, size = 0x8000, scoped, tag = 'output window, operand 0']
    loop: start=0, step=1, limit=4
    $region2: #{flux_forward.25} parent=1 // loop_pre_header
      _
    $region3: #{flux_forward.25} parent=1 // loop_header
      %s9 = sphi 0, %s13
      %p10 = scmp.ge.s32.totalorder %s9, 4
      %s16 = sphi 0, %s35
      %s17 = sphi 0, %s31
      %s18 = sphi 0, %s27
      %s19 = sphi 0, %s16
      %s20 = sphi 0, %s17
      %s21 = sphi 0, %s18
      %s22 = sphi 0, %s19
      %s23 = sphi 0, %s20
      %s24 = sphi 0, %s21
      %s40 = sphi 0, %s42
      %s43 = sphi 0, %s40
      %s44 = sphi 0, %s43
      %s60 = sphi 0, %s44
      %s68 = sphi 0, %s70
      %s71 = sphi 0, %s68
      %s72 = sphi 0, %s71
      %s88 = sphi 0, %s72
      %s94 = sphi 0, %s96
      %s97 = sphi 0, %s94
      %s98 = sphi 0, %s97
      %s114 = sphi 0, %s98
      %s122 = sphi 0, %s124
      %s125 = sphi 0, %s122
      %s126 = sphi 0, %s125
      %s142 = sphi 0, %s126
    $region4: #{flux_forward.25} parent=1 // loop_header_branch
      %12 = sbr.rel (%p10) target = $region8
    $region5: #{flux_forward.25} parent=1 // loop_body
      %s14 = ssub.s32 %s9, 1
      %s15 = ssub.s32 %s9, 2
      %s25 = sadd.s32 1, %s18
      %p26 = scmp.ge.s32.totalorder %s25, 1
      %s27 = scalar_select %p26, 0, %s25
      %s28 = sadd.s32 1, %s17
      %s29 = scalar_select %p26, %s28, %s17
      %p30 = scmp.ge.s32.totalorder %s29, 2
      %s31 = scalar_select %p30, 0, %s29
      %s32 = sadd.s32 1, %s16
      %s33 = scalar_select %p30, %s32, %s16
      %p34 = scmp.ge.s32.totalorder %s33, 1
      %s35 = scalar_select %p34, 0, %s33
      %s36 = ssub.s32 %s16, %s35
      %s37 = ssub.s32 %s18, %s27
      %s38 = sor.u32 %s36, %s37
      %p39 = scmp.eq.s32.totalorder %s38, 0
      %s41 = sadd.s32 %s40, 1
      %s42 = scalar_select %p39, %s40, %s41
      %p45 = pneg %p39
      %p46 = scmp.eq.s32.totalorder %s9, 1
      %p47 = por %p45, %p46
      %p48 = scmp.ne.s32.totalorder %s40, %s43
      %p49 = scmp.eq.s32.totalorder %s9, 0
      %p50 = por %p48, %p49
      %p51 = scmp.ne.s32.totalorder %s40, %s43
      %p52 = scmp.eq.s32.totalorder %s14, 1
      %p53 = por %p51, %p52
      %p54 = scmp.ne.s32.totalorder %s43, %s44
      %p55 = scmp.eq.s32.totalorder %s14, 0
      %p56 = por %p54, %p55
      %p57 = scmp.ne.s32.totalorder %s43, %s44
      %p58 = scmp.eq.s32.totalorder %s15, 1
      %p59 = por %p57, %p58
      %p61 = scmp.ne.s32.totalorder %s44, %s60
      %p62 = scmp.eq.s32.totalorder %s15, 0
      %p63 = por %p61, %p62
      %s64 = ssub.s32 %s18, %s27
      %s65 = ssub.s32 %s17, %s31
      %s66 = sor.u32 %s64, %s65
      %p67 = scmp.eq.s32.totalorder %s66, 0
      %s69 = sadd.s32 %s68, 1
      %s70 = scalar_select %p67, %s68, %s69
      %p73 = pneg %p67
      %p74 = scmp.eq.s32.totalorder %s9, 1
      %p75 = por %p73, %p74
      %p76 = scmp.ne.s32.totalorder %s68, %s71
      %p77 = scmp.eq.s32.totalorder %s9, 0
      %p78 = por %p76, %p77
      %p79 = scmp.ne.s32.totalorder %s68, %s71
      %p80 = scmp.eq.s32.totalorder %s14, 1
      %p81 = por %p79, %p80
      %p82 = scmp.ne.s32.totalorder %s71, %s72
      %p83 = scmp.eq.s32.totalorder %s14, 0
      %p84 = por %p82, %p83
      %p85 = scmp.ne.s32.totalorder %s71, %s72
      %p86 = scmp.eq.s32.totalorder %s15, 1
      %p87 = por %p85, %p86
      %p89 = scmp.ne.s32.totalorder %s72, %s88
      %p90 = scmp.eq.s32.totalorder %s15, 0
      %p91 = por %p89, %p90
      %s92 = ssub.s32 %s17, %s31
      %p93 = scmp.eq.s32.totalorder %s92, 0
      %s95 = sadd.s32 %s94, 1
      %s96 = scalar_select %p93, %s94, %s95
      %p99 = pneg %p93
      %p100 = scmp.eq.s32.totalorder %s9, 1
      %p101 = por %p99, %p100
      %p102 = scmp.ne.s32.totalorder %s94, %s97
      %p103 = scmp.eq.s32.totalorder %s9, 0
      %p104 = por %p102, %p103
      %p105 = scmp.ne.s32.totalorder %s94, %s97
      %p106 = scmp.eq.s32.totalorder %s14, 1
      %p107 = por %p105, %p106
      %p108 = scmp.ne.s32.totalorder %s97, %s98
      %p109 = scmp.eq.s32.totalorder %s14, 0
      %p110 = por %p108, %p109
      %p111 = scmp.ne.s32.totalorder %s97, %s98
      %p112 = scmp.eq.s32.totalorder %s15, 1
      %p113 = por %p111, %p112
      %p115 = scmp.ne.s32.totalorder %s98, %s114
      %p116 = scmp.eq.s32.totalorder %s15, 0
      %p117 = por %p115, %p116
      %s118 = ssub.s32 %s16, %s35
      %s119 = ssub.s32 %s17, %s31
      %s120 = sor.u32 %s118, %s119
      %p121 = scmp.eq.s32.totalorder %s120, 0
      %s123 = sadd.s32 %s122, 1
      %s124 = scalar_select %p121, %s122, %s123
      %p127 = pneg %p121
      %p128 = scmp.eq.s32.totalorder %s9, 1
      %p129 = por %p127, %p128
      %p130 = scmp.ne.s32.totalorder %s122, %s125
      %p131 = scmp.eq.s32.totalorder %s9, 0
      %p132 = por %p130, %p131
      %p133 = scmp.ne.s32.totalorder %s122, %s125
      %p134 = scmp.eq.s32.totalorder %s14, 1
      %p135 = por %p133, %p134
      %p136 = scmp.ne.s32.totalorder %s125, %s126
      %p137 = scmp.eq.s32.totalorder %s14, 0
      %p138 = por %p136, %p137
      %p139 = scmp.ne.s32.totalorder %s125, %s126
      %p140 = scmp.eq.s32.totalorder %s15, 1
      %p141 = por %p139, %p140
      %p143 = scmp.ne.s32.totalorder %s126, %s142
      %p144 = scmp.eq.s32.totalorder %s15, 0
      %p145 = por %p143, %p144
      %p146 = scmp.le.s32.totalorder 1, %s9
      %p147 = scmp.lt.s32.totalorder %s9, 3
      %p148 = pnand %p146, %p147
      %p149 = pneg %p148
      // Predicated region
      $region9: #{flux_forward.25} parent=5 // pred_check
        _
      $region10: #{flux_forward.25} parent=5 // pred_check_branch
        %151 = sbr.rel (%p148) target = $region12
      $region11: #{flux_forward.25} parent=5 // pred_region
        %s152 = ssub.s32 %s9, 1
        // Predicated region
        $region13: #{flux_forward.25} parent=11 // pred_check
          %p153 = pneg %p56
        $region14: #{flux_forward.25} parent=11 // pred_check_branch
          %155 = sbr.rel (%p153) target = $region16
        $region15: #{flux_forward.25} parent=11 // pred_region
          %s156 = smul.u32 2, %s19
          %p157 = scmp.lt.s32.totalorder %s156, 1
          %s158 = scalar_select %p157, %s156, 1
          %p159 = scmp.lt.s32.totalorder %s21, 0
          %s160 = scalar_select %p159, %s21, 0
          %s161 = sadd.s32 %s160, %s158
          %s162 = smul.addr %s161, 4
          %s163 = scalar_lea.vmem %s0, %s162
          %s164 = smul.u32 2, %s19
        $region16: #{flux_forward.25} parent=11 // pred_fallthru
          _
      $region12: #{flux_forward.25} parent=5 // pred_fallthru
        _
      %p165 = scmp.lt.s32.totalorder %s9, 2
      // Predicated region
      $region17: #{flux_forward.25} parent=5 // pred_check
        %p166 = pneg %p165
      $region18: #{flux_forward.25} parent=5 // pred_check_branch
        %168 = sbr.rel (%p166) target = $region20
      $region19: #{flux_forward.25} parent=5 // pred_region
        // Predicated region
        $region21: #{flux_forward.25} parent=19 // pred_check
          %p169 = pneg %p78
        $region22: #{flux_forward.25} parent=19 // pred_check_branch
          %171 = sbr.rel (%p169) target = $region24
        $region23: #{flux_forward.25} parent=19 // pred_region
          %s172 = sand.u32 %s68, 1
          %s173 = sand.u32 %s68, 1
          %s174 = smul.addr %s173, 128
          %s175 = scalar_lea.vmem [#allocation3], %s174
          %s176 = smul.u32 16, %s18
          %s177 = smul.u32 2, %s17
          %s178 = smul.addr %s176, 4
          %s179 = sadd.s32 %s177, %s178
          %s180 = smul.addr %s179, 4
          %s181 = scalar_lea.vmem %s1, %s180
          // Predicated region
          $region25: #{flux_forward.25} parent=23 // pred_check
            _
          $region26: #{flux_forward.25} parent=23 // pred_check_branch
            %183 = sbr.rel (0) target = $region28
          $region27: #{flux_forward.25} parent=23 // pred_region
            // Predicated region
            $region29: #{flux_forward.25} parent=27 // pred_check
              _
            $region30: #{flux_forward.25} parent=27 // pred_check_branch
              %185 = sbr.rel (0) target = $region32
            $region31: #{flux_forward.25} parent=27 // pred_region
              // Predicated region
              $region44: #{flux_forward.25} parent=31 // pred_check
                _
              $region45: #{flux_forward.25} parent=31 // pred_check_branch
                %230 = sbr.rel (0) target = $region47
              $region46: #{flux_forward.25} parent=31 // pred_region
                loop: start=0, step=1, limit=1
                $region48: #{flux_forward.25} parent=46 // loop_pre_header
                  _
                $region49: #{flux_forward.25} parent=46 // loop_header
                  %s232 = sphi 0, %s236
                  %p233 = scmp.ge.s32.totalorder %s232, 1
                  %s237 = sphi %s181, %s181
                  %s238 = sphi %s175, %s175
                $region50: #{flux_forward.25} parent=46 // loop_header_branch
                  %235 = sbr.rel (%p233) target = $region54
                $region51: #{flux_forward.25} parent=46 // loop_body
                  %v239 = vld [vmem:[%s237] sm:$0xff]
                  %240 = vst [vmem:[%s238] sm:$0xff] %v239
                  %v241 = vld [vmem:[%s237 + $0x10] sm:$0xff]
                  %242 = vst [vmem:[%s238 + $0x8] sm:$0xff] %v241
                  %v243 = vld [vmem:[%s237 + $0x20] sm:$0xff]
                  %244 = vst [vmem:[%s238 + $0x10] sm:$0xff] %v243
                  %v245 = vld [vmem:[%s237 + $0x30] sm:$0xff]
                  %246 = vst [vmem:[%s238 + $0x18] sm:$0xff] %v245
                  %v247 = vld [vmem:[%s237 + $0x40] sm:$0xff]
                  %248 = vst [vmem:[%s238 + $0x20] sm:$0xff] %v247
                  %v249 = vld [vmem:[%s237 + $0x50] sm:$0xff]
                  %250 = vst [vmem:[%s238 + $0x28] sm:$0xff] %v249
                  %v251 = vld [vmem:[%s237 + $0x60] sm:$0xff]
                  %252 = vst [vmem:[%s238 + $0x30] sm:$0xff] %v251
                  %v253 = vld [vmem:[%s237 + $0x70] sm:$0xff]
                  %254 = vst [vmem:[%s238 + $0x38] sm:$0xff] %v253
                  %v255 = vld [vmem:[%s237 + $0x80] sm:$0xff]
                  %256 = vst [vmem:[%s238 + $0x40] sm:$0xff] %v255
                  %v257 = vld [vmem:[%s237 + $0x90] sm:$0xff]
                  %258 = vst [vmem:[%s238 + $0x48] sm:$0xff] %v257
                  %v259 = vld [vmem:[%s237 + $0xa0] sm:$0xff]
                  %260 = vst [vmem:[%s238 + $0x50] sm:$0xff] %v259
                  %v261 = vld [vmem:[%s237 + $0xb0] sm:$0xff]
                  %262 = vst [vmem:[%s238 + $0x58] sm:$0xff] %v261
                  %v263 = vld [vmem:[%s237 + $0xc0] sm:$0xff]
                  %264 = vst [vmem:[%s238 + $0x60] sm:$0xff] %v263
                  %v265 = vld [vmem:[%s237 + $0xd0] sm:$0xff]
                  %266 = vst [vmem:[%s238 + $0x68] sm:$0xff] %v265
                  %v267 = vld [vmem:[%s237 + $0xe0] sm:$0xff]
                  %268 = vst [vmem:[%s238 + $0x70] sm:$0xff] %v267
                  %v269 = vld [vmem:[%s237 + $0xf0] sm:$0xff]
                  %270 = vst [vmem:[%s238 + $0x78] sm:$0xff] %v269
                $region52: #{flux_forward.25} parent=46 // loop_footer
                  %s236 = sadd.s32 1, %s232
                $region53: #{flux_forward.25} parent=46 // loop_footer_branch
                  %231 = sbr.rel target = $region49
                $region54: #{flux_forward.25} parent=46 // loop_exit
                  _
              $region47: #{flux_forward.25} parent=31 // pred_fallthru
                _
              // Predicated region
              $region55: #{flux_forward.25} parent=31 // pred_check
                _
              $region56: #{flux_forward.25} parent=31 // pred_check_branch
                %272 = sbr.rel target = $region58
              $region57: #{flux_forward.25} parent=31 // pred_region
                _
              $region58: #{flux_forward.25} parent=31 // pred_fallthru
                _
            $region32: #{flux_forward.25} parent=27 // pred_fallthru
              _
            // Predicated region
            $region33: #{flux_forward.25} parent=27 // pred_check
              _
            $region34: #{flux_forward.25} parent=27 // pred_check_branch
              %187 = sbr.rel target = $region36
            $region35: #{flux_forward.25} parent=27 // pred_region
              loop: start=0, step=1, limit=1
              $region37: #{flux_forward.25} parent=35 // loop_pre_header
                _
              $region38: #{flux_forward.25} parent=35 // loop_header
                %s190 = sphi 0, %s194
                %p191 = scmp.ge.s32.totalorder %s190, 1
                %s195 = sphi %s181, %s181
                %s196 = sphi %s175, %s175
              $region39: #{flux_forward.25} parent=35 // loop_header_branch
                %193 = sbr.rel (%p191) target = $region43
              $region40: #{flux_forward.25} parent=35 // loop_body
                %v197 = vld [vmem:[%s195] sm:$0xff]
                %198 = vst [vmem:[%s196] sm:$0xff] %v197
                %v199 = vld [vmem:[%s195 + $0x10] sm:$0xff]
                %200 = vst [vmem:[%s196 + $0x8] sm:$0xff] %v199
                %v201 = vld [vmem:[%s195 + $0x20] sm:$0xff]
                %202 = vst [vmem:[%s196 + $0x10] sm:$0xff] %v201
                %v203 = vld [vmem:[%s195 + $0x30] sm:$0xff]
                %204 = vst [vmem:[%s196 + $0x18] sm:$0xff] %v203
                %v205 = vld [vmem:[%s195 + $0x40] sm:$0xff]
                %206 = vst [vmem:[%s196 + $0x20] sm:$0xff] %v205
                %v207 = vld [vmem:[%s195 + $0x50] sm:$0xff]
                %208 = vst [vmem:[%s196 + $0x28] sm:$0xff] %v207
                %v209 = vld [vmem:[%s195 + $0x60] sm:$0xff]
                %210 = vst [vmem:[%s196 + $0x30] sm:$0xff] %v209
                %v211 = vld [vmem:[%s195 + $0x70] sm:$0xff]
                %212 = vst [vmem:[%s196 + $0x38] sm:$0xff] %v211
                %v213 = vld [vmem:[%s195 + $0x80] sm:$0xff]
                %214 = vst [vmem:[%s196 + $0x40] sm:$0xff] %v213
                %v215 = vld [vmem:[%s195 + $0x90] sm:$0xff]
                %216 = vst [vmem:[%s196 + $0x48] sm:$0xff] %v215
                %v217 = vld [vmem:[%s195 + $0xa0] sm:$0xff]
                %218 = vst [vmem:[%s196 + $0x50] sm:$0xff] %v217
                %v219 = vld [vmem:[%s195 + $0xb0] sm:$0xff]
                %220 = vst [vmem:[%s196 + $0x58] sm:$0xff] %v219
                %v221 = vld [vmem:[%s195 + $0xc0] sm:$0xff]
                %222 = vst [vmem:[%s196 + $0x60] sm:$0xff] %v221
                %v223 = vld [vmem:[%s195 + $0xd0] sm:$0xff]
                %224 = vst [vmem:[%s196 + $0x68] sm:$0xff] %v223
                %v225 = vld [vmem:[%s195 + $0xe0] sm:$0xff]
                %226 = vst [vmem:[%s196 + $0x70] sm:$0xff] %v225
                %v227 = vld [vmem:[%s195 + $0xf0] sm:$0xff]
                %228 = vst [vmem:[%s196 + $0x78] sm:$0xff] %v227
              $region41: #{flux_forward.25} parent=35 // loop_footer
                %s194 = sadd.s32 1, %s190
              $region42: #{flux_forward.25} parent=35 // loop_footer_branch
                %189 = sbr.rel target = $region38
              $region43: #{flux_forward.25} parent=35 // loop_exit
                _
            $region36: #{flux_forward.25} parent=27 // pred_fallthru
              _
          $region28: #{flux_forward.25} parent=23 // pred_fallthru
            _
          %273 = vnop
        $region24: #{flux_forward.25} parent=19 // pred_fallthru
          _
        // Predicated region
        $region59: #{flux_forward.25} parent=19 // pred_check
          %p274 = pneg %p104
        $region60: #{flux_forward.25} parent=19 // pred_check_branch
          %276 = sbr.rel (%p274) target = $region62
        $region61: #{flux_forward.25} parent=19 // pred_region
          %s277 = smul.u32 2, %s17
          %p278 = scmp.lt.s32.totalorder %s277, 3
          %s279 = scalar_select %p278, %s277, 3
          %s280 = scalar_lea.vmem %s2, %s279
          %s281 = smul.u32 2, %s17
        $region62: #{flux_forward.25} parent=19 // pred_fallthru
          _
      $region20: #{flux_forward.25} parent=5 // pred_fallthru
        _
      %p282 = scmp.le.s32.totalorder 1, %s9
      %p283 = scmp.lt.s32.totalorder %s9, 3
      %p284 = pnand %p282, %p283
      %p285 = pneg %p284
      // Predicated region
      $region63: #{flux_forward.25} parent=5 // pred_check
        _
      $region64: #{flux_forward.25} parent=5 // pred_check_branch
        %287 = sbr.rel (%p284) target = $region66
      $region65: #{flux_forward.25} parent=5 // pred_region
        %s288 = ssub.s32 %s9, 1
        %s289 = sand.u32 %s71, 1
        %s290 = sand.u32 %s71, 1
        %s291 = smul.addr %s290, 128
        %s292 = scalar_lea.vmem [#allocation3], %s291
        // Predicated region
        $region67: #{flux_forward.25} parent=65 // pred_check
          %p293 = pneg %p84
        $region68: #{flux_forward.25} parent=65 // pred_check_branch
          %295 = sbr.rel (%p293) target = $region70
        $region69: #{flux_forward.25} parent=65 // pred_region
          _
        $region70: #{flux_forward.25} parent=65 // pred_fallthru
          _
        %s296 = smul.u32 2, %s19
        %p297 = scmp.lt.s32.totalorder %s296, 1
        %s298 = scalar_select %p297, %s296, 1
        %p299 = scmp.lt.s32.totalorder %s21, 0
        %s300 = scalar_select %p299, %s21, 0
        %s301 = sadd.s32 %s300, %s298
        %s302 = smul.addr %s301, 4
        %s303 = scalar_lea.vmem %s0, %s302
        %p304 = pneg %p56
        %p305 = pneg %p53
        %s306 = sand.u32 %s71, 1
        %s307 = sand.u32 %s71, 1
        %s308 = smul.addr %s307, 128
        %s309 = scalar_lea.vmem [#allocation3], %s308
        %p310 = pneg %p84
        %p311 = pneg %p81
        %s312 = smul.u32 2, %s20
        %p313 = scmp.lt.s32.totalorder %s312, 3
        %s314 = scalar_select %p313, %s312, 3
        %s315 = scalar_lea.vmem %s2, %s314
        %p316 = pneg %p110
        %p317 = pneg %p107
        %p318 = pneg %p138
        %p319 = pneg %p135
        %s320 = sand.u32 %s125, 1
        %s321 = sand.u32 %s125, 1
        %s322 = smul.addr %s321, 32
        %s323 = scalar_lea.vmem [#allocation4], %s322
        %s324 = smul.u32 2, %s19
        %p325 = scmp.lt.s32.totalorder %s324, 1
        %s326 = scalar_select %p325, %s324, 1
        %p327 = scmp.lt.s32.totalorder %s21, 0
        %s328 = scalar_select %p327, %s21, 0
        %s329 = sadd.s32 %s328, %s326
        %s330 = smul.addr %s329, 4
        %s331 = scalar_lea.vmem %s0, %s330
        %s332 = smul.u32 2, %s19
        %s333 = smul.u32 16, %s21
        %s334 = smul.u32 2, %s20
        %s335 = smul.u32 2, %s20
        %p336 = scmp.lt.s32.totalorder %s335, 3
        %s337 = scalar_select %p336, %s335, 3
        %s338 = scalar_lea.vmem %s2, %s337
        %s339 = smul.u32 2, %s20
        %s340 = smul.u32 2, %s19
        %s341 = smul.u32 2, %s20
        %p343 = scmp.eq.s32.totalorder %s21, 0
        // Predicated region
        $region71: #{flux_forward.25} parent=65 // pred_check
          %p344 = pneg %p343
        $region72: #{flux_forward.25} parent=65 // pred_check_branch
          %346 = sbr.rel (%p344) target = $region74
        $region73: #{flux_forward.25} parent=65 // pred_region
          %347 = vst [vmem:[#allocation2] sm:$0xff] 0.0
          %348 = vst [vmem:[#allocation2 + $0x8] sm:$0xff] 0.0
          %349 = vst [vmem:[#allocation2 + $0x10] sm:$0xff] 0.0
          %350 = vst [vmem:[#allocation2 + $0x18] sm:$0xff] 0.0
        $region74: #{flux_forward.25} parent=65 // pred_fallthru
          _
        %v351 = vld [vmem:[#allocation2] sm:$0xff]
        %v352 = vld [vmem:[#allocation2 + $0x8] sm:$0xff]
        %v353 = vld [vmem:[#allocation2 + $0x10] sm:$0xff]
        %v354 = vld [vmem:[#allocation2 + $0x18] sm:$0xff]
        %v355 = vld [vmem:[%s331] sm:$0xf]
        %v356 = vld [vmem:[%s331 + $0x4] sm:$0xf]
        %v357 = vld [vmem:[%s292] sm:$0xff]
        %v358 = vld [vmem:[%s292 + $0x8] sm:$0xff]
        %v359 = vld [vmem:[%s292 + $0x10] sm:$0xff]
        %v360 = vld [vmem:[%s292 + $0x18] sm:$0xff]
        %v361 = vld [vmem:[%s292 + $0x20] sm:$0xff]
        %v362 = vld [vmem:[%s292 + $0x28] sm:$0xff]
        %v363 = vld [vmem:[%s292 + $0x30] sm:$0xff]
        %v364 = vld [vmem:[%s292 + $0x38] sm:$0xff]
        %v365 = vld [vmem:[%s292 + $0x40] sm:$0xff]
        %v366 = vld [vmem:[%s292 + $0x48] sm:$0xff]
        %v367 = vld [vmem:[%s292 + $0x50] sm:$0xff]
        %v368 = vld [vmem:[%s292 + $0x58] sm:$0xff]
        %v369 = vld [vmem:[%s292 + $0x60] sm:$0xff]
        %v370 = vld [vmem:[%s292 + $0x68] sm:$0xff]
        %v371 = vld [vmem:[%s292 + $0x70] sm:$0xff]
        %v372 = vld [vmem:[%s292 + $0x78] sm:$0xff]
        %v375 = vunpack.c.l.b16 %v355
        %v376 = vunpack.c.l.b16 %v356
        %v377 = vpack.c.b16 %v376, %v375
        %v395 = vunpack.c.l.b16 %v357
        %v396 = vunpack.c.h.b16 %v357
        %v397 = vunpack.c.l.b16 %v358
        %v398 = vunpack.c.h.b16 %v358
        %v399 = vunpack.c.l.b16 %v359
        %v400 = vunpack.c.h.b16 %v359
        %v401 = vunpack.c.l.b16 %v360
        %v402 = vunpack.c.h.b16 %v360
        %v403 = vunpack.c.l.b16 %v361
        %v404 = vunpack.c.h.b16 %v361
        %v405 = vunpack.c.l.b16 %v362
        %v406 = vunpack.c.h.b16 %v362
        %v407 = vunpack.c.l.b16 %v363
        %v408 = vunpack.c.h.b16 %v363
        %v409 = vunpack.c.l.b16 %v364
        %v410 = vunpack.c.h.b16 %v364
        %v411 = vunpack.c.l.b16 %v365
        %v412 = vunpack.c.h.b16 %v365
        %v413 = vunpack.c.l.b16 %v366
        %v414 = vunpack.c.h.b16 %v366
        %v415 = vunpack.c.l.b16 %v367
        %v416 = vunpack.c.h.b16 %v367
        %v417 = vunpack.c.l.b16 %v368
        %v418 = vunpack.c.h.b16 %v368
        %v419 = vunpack.c.l.b16 %v369
        %v420 = vunpack.c.h.b16 %v369
        %v421 = vunpack.c.l.b16 %v370
        %v422 = vunpack.c.h.b16 %v370
        %v423 = vunpack.c.l.b16 %v371
        %v424 = vunpack.c.h.b16 %v371
        %v425 = vunpack.c.l.b16 %v372
        %v426 = vunpack.c.h.b16 %v372
        %v427 = vpack.c.b16 %v397, %v395
        %v428 = vpack.c.b16 %v398, %v396
        %v429 = vpack.c.b16 %v401, %v399
        %v430 = vpack.c.b16 %v402, %v400
        %v431 = vpack.c.b16 %v405, %v403
        %v432 = vpack.c.b16 %v406, %v404
        %v433 = vpack.c.b16 %v409, %v407
        %v434 = vpack.c.b16 %v410, %v408
        %v435 = vpack.c.b16 %v413, %v411
        %v436 = vpack.c.b16 %v414, %v412
        %v437 = vpack.c.b16 %v417, %v415
        %v438 = vpack.c.b16 %v418, %v416
        %v439 = vpack.c.b16 %v421, %v419
        %v440 = vpack.c.b16 %v422, %v420
        %v441 = vpack.c.b16 %v425, %v423
        %v442 = vpack.c.b16 %v426, %v424
        %459 = vmatprep.subr.bf16.mxu0 %v428
        %460 = vmatpush1.bf16.msra.mxu0 %v427
        %461 = vmatprep.subr.bf16.mxu0 %v430
        %462 = vmatpush1.bf16.msra.mxu0 %v429
        %463 = vmatprep.subr.bf16.mxu0 %v432
        %464 = vmatpush1.bf16.msra.mxu0 %v431
        %465 = vmatprep.subr.bf16.mxu0 %v434
        %466 = vmatpush1.bf16.msra.mxu0 %v433
        %467 = vmatprep.subr.bf16.mxu0 %v436
        %468 = vmatpush1.bf16.msra.mxu0 %v435
        %469 = vmatprep.subr.bf16.mxu0 %v438
        %470 = vmatpush1.bf16.msra.mxu0 %v437
        %471 = vmatprep.subr.bf16.mxu0 %v440
        %472 = vmatpush1.bf16.msra.mxu0 %v439
        %473 = vmatprep.subr.bf16.mxu0 %v442
        %474 = vmatpush1.bf16.msra.mxu0 %v441
        %475 = vmatprep.subr.bf16.mxu0 0
        %476 = vmatpush1.bf16.msra.mxu0 0
        %477 = vmatprep.subr.bf16.mxu0 0
        %478 = vmatpush1.bf16.msra.mxu0 0
        %479 = vmatprep.subr.bf16.mxu0 0
        %480 = vmatpush1.bf16.msra.mxu0 0
        %481 = vmatprep.subr.bf16.mxu0 0
        %482 = vmatpush1.bf16.msra.mxu0 0
        %483 = vmatprep.subr.bf16.mxu0 0
        %484 = vmatpush1.bf16.msra.mxu0 0
        %485 = vmatprep.subr.bf16.mxu0 0
        %486 = vmatpush1.bf16.msra.mxu0 0
        %487 = vmatprep.subr.bf16.mxu0 0
        %488 = vmatpush1.bf16.msra.mxu0 0
        %489 = vmatprep.subr.bf16.mxu0 0
        %490 = vmatpush1.bf16.msra.mxu0 0
        %491 = vmatprep.mubr.bf16.mxu0 0
        %492 = vmatmul.mubr.bf16.gmra.mrb[0].mxu0 %v377
        %v493 = vpop.f32.mrb[0].mxu0
        %v494 = vadd.f32 0.0, %v493
        %v495 = vpop.f32.mrb[0].mxu0
        %v496 = vadd.f32 0.0, %v495
        %v497 = vpop.f32.mrb[0].mxu0
        %v498 = vadd.f32 0.0, %v497
        %v499 = vpop.f32.mrb[0].mxu0
        %v500 = vadd.f32 0.0, %v499
        %501 = vdwg.mxu0
        %v502 = vadd.f32 %v351, %v494
        %v503 = vadd.f32 %v352, %v496
        %v504 = vadd.f32 %v353, %v498
        %v505 = vadd.f32 %v354, %v500
        %506 = vst [vmem:[#allocation2] sm:$0xff] %v502
        %507 = vst [vmem:[#allocation2 + $0x8] sm:$0xff] %v503
        %508 = vst [vmem:[#allocation2 + $0x10] sm:$0xff] %v504
        %509 = vst [vmem:[#allocation2 + $0x18] sm:$0xff] %v505
        // Predicated region
        $region75: #{flux_forward.25} parent=65 // pred_check
          %p510 = pneg %p343
        $region76: #{flux_forward.25} parent=65 // pred_check_branch
          %512 = sbr.rel (%p510) target = $region78
        $region77: #{flux_forward.25} parent=65 // pred_region
          %v513 = vld [vmem:[#allocation2] sm:$0xff]
          %v514 = vld [vmem:[#allocation2 + $0x8] sm:$0xff]
          %v515 = vld [vmem:[#allocation2 + $0x10] sm:$0xff]
          %v516 = vld [vmem:[#allocation2 + $0x18] sm:$0xff]
          %v517 = vld [vmem:[%s338] sm:$0x3]
          %v519 = vlaneseq
          %v520 = vshrl.u32 %v519, 7
          %v521 = vsub.s32 0, %v520
          %v522 = vrot.slane %v517, %v521
          %v523 = vlaneseq
          %v524 = vshrl.u32 %v523, 7
          %v525 = vsub.s32 1, %v524
          %v526 = vrot.slane %v517, %v525
          %v529 = vadd.f32 %v513, %v522
          %v530 = vadd.f32 %v514, %v526
          %v531 = vadd.f32 %v515, %v522
          %v532 = vadd.f32 %v516, %v526
          %v533 = vmul.f32 %v529, 0.5
          %v534 = vmul.f32 %v530, 0.5
          %v535 = vmul.f32 %v531, 0.5
          %v536 = vmul.f32 %v532, 0.5
          %v537 = vmul.f32 %v529, 0.044715
          %v538 = vmul.f32 %v530, 0.044715
          %v539 = vmul.f32 %v531, 0.044715
          %v540 = vmul.f32 %v532, 0.044715
          %v541 = vmul.f32 %v537, %v529
          %v542 = vmul.f32 %v538, %v530
          %v543 = vmul.f32 %v539, %v531
          %v544 = vmul.f32 %v540, %v532
          %v545 = vmul.f32 %v541, %v529
          %v546 = vmul.f32 %v542, %v530
          %v547 = vmul.f32 %v543, %v531
          %v548 = vmul.f32 %v544, %v532
          %v549 = vadd.f32 %v529, %v545
          %v550 = vadd.f32 %v530, %v546
          %v551 = vadd.f32 %v531, %v547
          %v552 = vadd.f32 %v532, %v548
          %v553 = vmul.f32 %v549, 0.7978846
          %v554 = vmul.f32 %v550, 0.7978846
          %v555 = vmul.f32 %v551, 0.7978846
          %v556 = vmul.f32 %v552, 0.7978846
          %v557 = vtanh.pop %v553
          %v558 = vtanh.pop %v554
          %v559 = vtanh.pop %v555
          %v560 = vtanh.pop %v556
          %v561 = vadd.f32 %v557, 1.0
          %v562 = vadd.f32 %v558, 1.0
          %v563 = vadd.f32 %v559, 1.0
          %v564 = vadd.f32 %v560, 1.0
          %v565 = vmul.f32 %v533, %v561
          %v566 = vmul.f32 %v534, %v562
          %v567 = vmul.f32 %v535, %v563
          %v568 = vmul.f32 %v536, %v564
          %569 = vst [vmem:[%s323] sm:$0xff] %v565
          %570 = vst [vmem:[%s323 + $0x8] sm:$0xff] %v566
          %571 = vst [vmem:[%s323 + $0x10] sm:$0xff] %v567
          %572 = vst [vmem:[%s323 + $0x18] sm:$0xff] %v568
        $region78: #{flux_forward.25} parent=65 // pred_fallthru
          _
        %s573 = sand.u32 %s125, 1
        %s574 = sand.u32 %s125, 1
        %s575 = smul.addr %s574, 32
        %s576 = scalar_lea.vmem [#allocation4], %s575
        // Predicated region
        $region79: #{flux_forward.25} parent=65 // pred_check
          %p577 = pneg %p135
        $region80: #{flux_forward.25} parent=65 // pred_check_branch
          %579 = sbr.rel (%p577) target = $region82
        $region81: #{flux_forward.25} parent=65 // pred_region
          %s580 = smul.u32 2, %s19
          %s581 = smul.u32 2, %s20
          %s582 = smul.addr %s580, 4
          %s583 = sadd.s32 %s581, %s582
          %s584 = smul.addr %s583, 8
          %s585 = scalar_lea.vmem %s3, %s584
          // Predicated region
          $region83: #{flux_forward.25} parent=81 // pred_check
            _
          $region84: #{flux_forward.25} parent=81 // pred_check_branch
            %587 = sbr.rel (0) target = $region86
          $region85: #{flux_forward.25} parent=81 // pred_region
            // Predicated region
            $region87: #{flux_forward.25} parent=85 // pred_check
              _
            $region88: #{flux_forward.25} parent=85 // pred_check_branch
              %589 = sbr.rel (0) target = $region90
            $region89: #{flux_forward.25} parent=85 // pred_region
              loop: start=0, step=1, limit=1
              $region91: #{flux_forward.25} parent=89 // loop_pre_header
                _
              $region92: #{flux_forward.25} parent=89 // loop_header
                %s591 = sphi 0, %s595
                %p592 = scmp.ge.s32.totalorder %s591, 1
                %s596 = sphi %s576, %s576
                %s597 = sphi %s585, %s585
              $region93: #{flux_forward.25} parent=89 // loop_header_branch
                %594 = sbr.rel (%p592) target = $region97
              $region94: #{flux_forward.25} parent=89 // loop_body
                %v598 = vld [vmem:[%s596] sm:$0xff]
                %599 = vst [vmem:[%s597] sm:$0xff] %v598
                %v600 = vld [vmem:[%s596 + $0x8] sm:$0xff]
                %601 = vst [vmem:[%s597 + $0x8] sm:$0xff] %v600
                %v602 = vld [vmem:[%s596 + $0x10] sm:$0xff]
                %603 = vst [vmem:[%s597 + $0x20] sm:$0xff] %v602
                %v604 = vld [vmem:[%s596 + $0x18] sm:$0xff]
                %605 = vst [vmem:[%s597 + $0x28] sm:$0xff] %v604
              $region95: #{flux_forward.25} parent=89 // loop_footer
                %s595 = sadd.s32 1, %s591
              $region96: #{flux_forward.25} parent=89 // loop_footer_branch
                %590 = sbr.rel target = $region92
              $region97: #{flux_forward.25} parent=89 // loop_exit
                _
            $region90: #{flux_forward.25} parent=85 // pred_fallthru
              _
            // Predicated region
            $region98: #{flux_forward.25} parent=85 // pred_check
              _
            $region99: #{flux_forward.25} parent=85 // pred_check_branch
              %607 = sbr.rel target = $region101
            $region100: #{flux_forward.25} parent=85 // pred_region
              _
            $region101: #{flux_forward.25} parent=85 // pred_fallthru
              _
          $region86: #{flux_forward.25} parent=81 // pred_fallthru
            _
          %608 = vnop
        $region82: #{flux_forward.25} parent=65 // pred_fallthru
          _
      $region66: #{flux_forward.25} parent=5 // pred_fallthru
        _
      %p609 = scmp.le.s32.totalorder 2, %s9
      // Predicated region
      $region102: #{flux_forward.25} parent=5 // pred_check
        %p610 = pneg %p609
      $region103: #{flux_forward.25} parent=5 // pred_check_branch
        %612 = sbr.rel (%p610) target = $region105
      $region104: #{flux_forward.25} parent=5 // pred_region
        %s613 = ssub.s32 %s9, 2
        // Predicated region
        $region106: #{flux_forward.25} parent=104 // pred_check
          %p614 = pneg %p141
        $region107: #{flux_forward.25} parent=104 // pred_check_branch
          %616 = sbr.rel (%p614) target = $region109
        $region108: #{flux_forward.25} parent=104 // pred_region
          %s617 = sand.u32 %s126, 1
          %s618 = sand.u32 %s126, 1
          %s619 = smul.addr %s618, 32
          %s620 = scalar_lea.vmem [#allocation4], %s619
        $region109: #{flux_forward.25} parent=104 // pred_fallthru
          _
      $region105: #{flux_forward.25} parent=5 // pred_fallthru
        _
    $region6: #{flux_forward.25} parent=1 // loop_footer
      %s13 = sadd.s32 1, %s9
    $region7: #{flux_forward.25} parent=1 // loop_footer_branch
      %8 = sbr.rel target = $region3
    $region8: #{flux_forward.25} parent=1 // loop_exit
      _

// kernel: flux_forward.26
$region0: #{flux_forward.26}
  #allocation0 [shape = 'u32[]', space=smem, size = 0x4, offset = 0x4, fixed_abs, tag = 'smem constant byte address 0x4 - core index']
  #allocation1 [shape = 'u32[144,128]{1,0:T(1,128)}', space=vmem, size = 0x12000, scoped, tag = 'internal scratch']
  #allocation2 [shape = 'f32[16,128]{1,0:T(8,128)}', space=vmem, size = 0x2000, scoped, tag = 'scratch operand']
  %s0 = inlined_call_operand.vmem [shape: bf16[16,512], index: 0, kind: input, shape index: {}]
  %s1 = inlined_call_operand.vmem [shape: bf16[512,128], index: 1, kind: input, shape index: {}]
  %s2 = inlined_call_operand.vmem [shape: f32[1,128], index: 2, kind: input, shape index: {}]
  %s3 = inlined_call_operand.vmem [shape: f32[16,128], index: 3, kind: output, shape index: {}]
  %s4 = sld [smem:[#allocation0]]
  $region30: #{flux_forward.26} parent=0
    _
  %s6 = ssub.s32 1, %s4
  %s7 = scalar_select 0, %s6, %s4
  // Predicated region
  $region2: #{flux_forward.26} parent=0 // pred_check
    _
  $region3: #{flux_forward.26} parent=0 // pred_check_branch
    %9 = sbr.rel (0) target = $region5
  $region4: #{flux_forward.26} parent=0 // pred_region
    _
  $region5: #{flux_forward.26} parent=0 // pred_fallthru
    _
  // Predicated region
  $region6: #{flux_forward.26} parent=0 // pred_check
    _
  $region7: #{flux_forward.26} parent=0 // pred_check_branch
    %11 = sbr.rel (0) target = $region9
  $region8: #{flux_forward.26} parent=0 // pred_region
    _
  $region9: #{flux_forward.26} parent=0 // pred_fallthru
    _
  // Predicated region
  $region10: #{flux_forward.26} parent=0 // pred_check
    _
  $region11: #{flux_forward.26} parent=0 // pred_check_branch
    %13 = sbr.rel (0) target = $region13
  $region12: #{flux_forward.26} parent=0 // pred_region
    _
  $region13: #{flux_forward.26} parent=0 // pred_fallthru
    _
  %p15 = scmp.eq.s32.totalorder 0, 0
  // Predicated region
  $region14: #{flux_forward.26} parent=0 // pred_check
    %p16 = pneg %p15
  $region15: #{flux_forward.26} parent=0 // pred_check_branch
    %18 = sbr.rel (%p16) target = $region17
  $region16: #{flux_forward.26} parent=0 // pred_region
    %19 = vst [vmem:[#allocation2] sm:$0xff] 0.0
    %20 = vst [vmem:[#allocation2 + $0x8] sm:$0xff] 0.0
  $region17: #{flux_forward.26} parent=0 // pred_fallthru
    _
  %v21 = vld [vmem:[#allocation2] sm:$0xff]
  %v22 = vld [vmem:[#allocation2 + $0x8] sm:$0xff]
  %v23 = vld [vmem:[%s0] sm:$0xff]
  %v24 = vld [vmem:[%s0 + $0x8] sm:$0xff]
  %v25 = vld [vmem:[%s0 + $0x10] sm:$0xff]
  %v26 = vld [vmem:[%s0 + $0x18] sm:$0xff]
  %v27 = vld [vmem:[%s1] sm:$0xf]
  %v28 = vld [vmem:[%s1 + $0x4] sm:$0xf]
  %v29 = vld [vmem:[%s1 + $0x8] sm:$0xf]
  %v30 = vld [vmem:[%s1 + $0xc] sm:$0xf]
  %v31 = vld [vmem:[%s1 + $0x10] sm:$0xf]
  %v32 = vld [vmem:[%s1 + $0x14] sm:$0xf]
  %v33 = vld [vmem:[%s1 + $0x18] sm:$0xf]
  %v34 = vld [vmem:[%s1 + $0x1c] sm:$0xf]
  %v35 = vld [vmem:[%s1 + $0x20] sm:$0xf]
  %v36 = vld [vmem:[%s1 + $0x24] sm:$0xf]
  %v37 = vld [vmem:[%s1 + $0x28] sm:$0xf]
  %v38 = vld [vmem:[%s1 + $0x2c] sm:$0xf]
  %v39 = vld [vmem:[%s1 + $0x30] sm:$0xf]
  %v40 = vld [vmem:[%s1 + $0x34] sm:$0xf]
  %v41 = vld [vmem:[%s1 + $0x38] sm:$0xf]
  %v42 = vld [vmem:[%s1 + $0x3c] sm:$0xf]
  %v43 = vld [vmem:[%s1 + $0x40] sm:$0xf]
  %v44 = vld [vmem:[%s1 + $0x44] sm:$0xf]
  %v45 = vld [vmem:[%s1 + $0x48] sm:$0xf]
  %v46 = vld [vmem:[%s1 + $0x4c] sm:$0xf]
  %v47 = vld [vmem:[%s1 + $0x50] sm:$0xf]
  %v48 = vld [vmem:[%s1 + $0x54] sm:$0xf]
  %v49 = vld [vmem:[%s1 + $0x58] sm:$0xf]
  %v50 = vld [vmem:[%s1 + $0x5c] sm:$0xf]
  %v51 = vld [vmem:[%s1 + $0x60] sm:$0xf]
  %v52 = vld [vmem:[%s1 + $0x64] sm:$0xf]
  %v53 = vld [vmem:[%s1 + $0x68] sm:$0xf]
  %v54 = vld [vmem:[%s1 + $0x6c] sm:$0xf]
  %v55 = vld [vmem:[%s1 + $0x70] sm:$0xf]
  %v56 = vld [vmem:[%s1 + $0x74] sm:$0xf]
  %v57 = vld [vmem:[%s1 + $0x78] sm:$0xf]
  %v58 = vld [vmem:[%s1 + $0x7c] sm:$0xf]
  %v59 = vld [vmem:[%s1 + $0x80] sm:$0xf]
  %v60 = vld [vmem:[%s1 + $0x84] sm:$0xf]
  %v61 = vld [vmem:[%s1 + $0x88] sm:$0xf]
  %v62 = vld [vmem:[%s1 + $0x8c] sm:$0xf]
  %v63 = vld [vmem:[%s1 + $0x90] sm:$0xf]
  %v64 = vld [vmem:[%s1 + $0x94] sm:$0xf]
  %v65 = vld [vmem:[%s1 + $0x98] sm:$0xf]
  %v66 = vld [vmem:[%s1 + $0x9c] sm:$0xf]
  %v67 = vld [vmem:[%s1 + $0xa0] sm:$0xf]
  %v68 = vld [vmem:[%s1 + $0xa4] sm:$0xf]
  %v69 = vld [vmem:[%s1 + $0xa8] sm:$0xf]
  %v70 = vld [vmem:[%s1 + $0xac] sm:$0xf]
  %v71 = vld [vmem:[%s1 + $0xb0] sm:$0xf]
  %v72 = vld [vmem:[%s1 + $0xb4] sm:$0xf]
  %v73 = vld [vmem:[%s1 + $0xb8] sm:$0xf]
  %v74 = vld [vmem:[%s1 + $0xbc] sm:$0xf]
  %v75 = vld [vmem:[%s1 + $0xc0] sm:$0xf]
  %v76 = vld [vmem:[%s1 + $0xc4] sm:$0xf]
  %v77 = vld [vmem:[%s1 + $0xc8] sm:$0xf]
  %v78 = vld [vmem:[%s1 + $0xcc] sm:$0xf]
  %v79 = vld [vmem:[%s1 + $0xd0] sm:$0xf]
  %v80 = vld [vmem:[%s1 + $0xd4] sm:$0xf]
  %v81 = vld [vmem:[%s1 + $0xd8] sm:$0xf]
  %v82 = vld [vmem:[%s1 + $0xdc] sm:$0xf]
  %v83 = vld [vmem:[%s1 + $0xe0] sm:$0xf]
  %v84 = vld [vmem:[%s1 + $0xe4] sm:$0xf]
  %v85 = vld [vmem:[%s1 + $0xe8] sm:$0xf]
  %v86 = vld [vmem:[%s1 + $0xec] sm:$0xf]
  %v87 = vld [vmem:[%s1 + $0xf0] sm:$0xf]
  %v88 = vld [vmem:[%s1 + $0xf4] sm:$0xf]
  %v89 = vld [vmem:[%s1 + $0xf8] sm:$0xf]
  %v90 = vld [vmem:[%s1 + $0xfc] sm:$0xf]
  %v95 = vunpack.c.l.b16 %v23
  %v96 = vunpack.c.h.b16 %v23
  %v97 = vunpack.c.l.b16 %v24
  %v98 = vunpack.c.h.b16 %v24
  %v99 = vunpack.c.l.b16 %v25
  %v100 = vunpack.c.h.b16 %v25
  %v101 = vunpack.c.l.b16 %v26
  %v102 = vunpack.c.h.b16 %v26
  %v103 = vpack.c.b16 %v99, %v95
  %v104 = vpack.c.b16 %v100, %v96
  %v105 = vpack.c.b16 %v101, %v97
  %v106 = vpack.c.b16 %v102, %v98
  %v175 = vunpack.c.l.b16 %v27
  %v176 = vunpack.c.l.b16 %v28
  %v177 = vunpack.c.l.b16 %v29
  %v178 = vunpack.c.l.b16 %v30
  %v179 = vunpack.c.l.b16 %v31
  %v180 = vunpack.c.l.b16 %v32
  %v181 = vunpack.c.l.b16 %v33
  %v182 = vunpack.c.l.b16 %v34
  %v183 = vunpack.c.l.b16 %v35
  %v184 = vunpack.c.l.b16 %v36
  %v185 = vunpack.c.l.b16 %v37
  %v186 = vunpack.c.l.b16 %v38
  %v187 = vunpack.c.l.b16 %v39
  %v188 = vunpack.c.l.b16 %v40
  %v189 = vunpack.c.l.b16 %v41
  %v190 = vunpack.c.l.b16 %v42
  %v191 = vunpack.c.l.b16 %v43
  %v192 = vunpack.c.l.b16 %v44
  %v193 = vunpack.c.l.b16 %v45
  %v194 = vunpack.c.l.b16 %v46
  %v195 = vunpack.c.l.b16 %v47
  %v196 = vunpack.c.l.b16 %v48
  %v197 = vunpack.c.l.b16 %v49
  %v198 = vunpack.c.l.b16 %v50
  %v199 = vunpack.c.l.b16 %v51
  %v200 = vunpack.c.l.b16 %v52
  %v201 = vunpack.c.l.b16 %v53
  %v202 = vunpack.c.l.b16 %v54
  %v203 = vunpack.c.l.b16 %v55
  %v204 = vunpack.c.l.b16 %v56
  %v205 = vunpack.c.l.b16 %v57
  %v206 = vunpack.c.l.b16 %v58
  %v207 = vunpack.c.l.b16 %v59
  %v208 = vunpack.c.l.b16 %v60
  %v209 = vunpack.c.l.b16 %v61
  %v210 = vunpack.c.l.b16 %v62
  %v211 = vunpack.c.l.b16 %v63
  %v212 = vunpack.c.l.b16 %v64
  %v213 = vunpack.c.l.b16 %v65
  %v214 = vunpack.c.l.b16 %v66
  %v215 = vunpack.c.l.b16 %v67
  %v216 = vunpack.c.l.b16 %v68
  %v217 = vunpack.c.l.b16 %v69
  %v218 = vunpack.c.l.b16 %v70
  %v219 = vunpack.c.l.b16 %v71
  %v220 = vunpack.c.l.b16 %v72
  %v221 = vunpack.c.l.b16 %v73
  %v222 = vunpack.c.l.b16 %v74
  %v223 = vunpack.c.l.b16 %v75
  %v224 = vunpack.c.l.b16 %v76
  %v225 = vunpack.c.l.b16 %v77
  %v226 = vunpack.c.l.b16 %v78
  %v227 = vunpack.c.l.b16 %v79
  %v228 = vunpack.c.l.b16 %v80
  %v229 = vunpack.c.l.b16 %v81
  %v230 = vunpack.c.l.b16 %v82
  %v231 = vunpack.c.l.b16 %v83
  %v232 = vunpack.c.l.b16 %v84
  %v233 = vunpack.c.l.b16 %v85
  %v234 = vunpack.c.l.b16 %v86
  %v235 = vunpack.c.l.b16 %v87
  %v236 = vunpack.c.l.b16 %v88
  %v237 = vunpack.c.l.b16 %v89
  %v238 = vunpack.c.l.b16 %v90
  %v239 = vpack.c.b16 %v176, %v175
  %v240 = vpack.c.b16 %v178, %v177
  %v241 = vpack.c.b16 %v180, %v179
  %v242 = vpack.c.b16 %v182, %v181
  %v243 = vpack.c.b16 %v184, %v183
  %v244 = vpack.c.b16 %v186, %v185
  %v245 = vpack.c.b16 %v188, %v187
  %v246 = vpack.c.b16 %v190, %v189
  %v247 = vpack.c.b16 %v192, %v191
  %v248 = vpack.c.b16 %v194, %v193
  %v249 = vpack.c.b16 %v196, %v195
  %v250 = vpack.c.b16 %v198, %v197
  %v251 = vpack.c.b16 %v200, %v199
  %v252 = vpack.c.b16 %v202, %v201
  %v253 = vpack.c.b16 %v204, %v203
  %v254 = vpack.c.b16 %v206, %v205
  %v255 = vpack.c.b16 %v208, %v207
  %v256 = vpack.c.b16 %v210, %v209
  %v257 = vpack.c.b16 %v212, %v211
  %v258 = vpack.c.b16 %v214, %v213
  %v259 = vpack.c.b16 %v216, %v215
  %v260 = vpack.c.b16 %v218, %v217
  %v261 = vpack.c.b16 %v220, %v219
  %v262 = vpack.c.b16 %v222, %v221
  %v263 = vpack.c.b16 %v224, %v223
  %v264 = vpack.c.b16 %v226, %v225
  %v265 = vpack.c.b16 %v228, %v227
  %v266 = vpack.c.b16 %v230, %v229
  %v267 = vpack.c.b16 %v232, %v231
  %v268 = vpack.c.b16 %v234, %v233
  %v269 = vpack.c.b16 %v236, %v235
  %v270 = vpack.c.b16 %v238, %v237
  %303 = vmatprep.subr.bf16.mxu0 0
  %304 = vmatpush1.bf16.msra.mxu0 %v239
  %305 = vmatprep.subr.bf16.mxu0 0
  %306 = vmatpush1.bf16.msra.mxu0 %v240
  %307 = vmatprep.subr.bf16.mxu0 0
  %308 = vmatpush1.bf16.msra.mxu0 %v241
  %309 = vmatprep.subr.bf16.mxu0 0
  %310 = vmatpush1.bf16.msra.mxu0 %v242
  %311 = vmatprep.subr.bf16.mxu0 0
  %312 = vmatpush1.bf16.msra.mxu0 %v243
  %313 = vmatprep.subr.bf16.mxu0 0
  %314 = vmatpush1.bf16.msra.mxu0 %v244
  %315 = vmatprep.subr.bf16.mxu0 0
  %316 = vmatpush1.bf16.msra.mxu0 %v245
  %317 = vmatprep.subr.bf16.mxu0 0
  %318 = vmatpush1.bf16.msra.mxu0 %v246
  %319 = vmatprep.subr.bf16.mxu0 0
  %320 = vmatpush1.bf16.msra.mxu0 %v247
  %321 = vmatprep.subr.bf16.mxu0 0
  %322 = vmatpush1.bf16.msra.mxu0 %v248
  %323 = vmatprep.subr.bf16.mxu0 0
  %324 = vmatpush1.bf16.msra.mxu0 %v249
  %325 = vmatprep.subr.bf16.mxu0 0
  %326 = vmatpush1.bf16.msra.mxu0 %v250
  %327 = vmatprep.subr.bf16.mxu0 0
  %328 = vmatpush1.bf16.msra.mxu0 %v251
  %329 = vmatprep.subr.bf16.mxu0 0
  %330 = vmatpush1.bf16.msra.mxu0 %v252
  %331 = vmatprep.subr.bf16.mxu0 0
  %332 = vmatpush1.bf16.msra.mxu0 %v253
  %333 = vmatprep.subr.bf16.mxu0 0
  %334 = vmatpush1.bf16.msra.mxu0 %v254
  %335 = vmatprep.mubr.bf16.mxu0 %v104
  %336 = vmatmul.mubr.bf16.gmra.mrb[0].mxu0 %v103
  %v337 = vpop.f32.mrb[0].mxu0
  %v338 = vadd.f32 0.0, %v337
  %v339 = vpop.f32.mrb[0].mxu0
  %v340 = vpop.f32.mrb[0].mxu0
  %v341 = vadd.f32 0.0, %v340
  %v342 = vpop.f32.mrb[0].mxu0
  %343 = vdwg.mxu0
  %344 = vmatprep.subr.bf16.mxu0 0
  %345 = vmatpush1.bf16.msra.mxu0 %v255
  %346 = vmatprep.subr.bf16.mxu0 0
  %347 = vmatpush1.bf16.msra.mxu0 %v256
  %348 = vmatprep.subr.bf16.mxu0 0
  %349 = vmatpush1.bf16.msra.mxu0 %v257
  %350 = vmatprep.subr.bf16.mxu0 0
  %351 = vmatpush1.bf16.msra.mxu0 %v258
  %352 = vmatprep.subr.bf16.mxu0 0
  %353 = vmatpush1.bf16.msra.mxu0 %v259
  %354 = vmatprep.subr.bf16.mxu0 0
  %355 = vmatpush1.bf16.msra.mxu0 %v260
  %356 = vmatprep.subr.bf16.mxu0 0
  %357 = vmatpush1.bf16.msra.mxu0 %v261
  %358 = vmatprep.subr.bf16.mxu0 0
  %359 = vmatpush1.bf16.msra.mxu0 %v262
  %360 = vmatprep.subr.bf16.mxu0 0
  %361 = vmatpush1.bf16.msra.mxu0 %v263
  %362 = vmatprep.subr.bf16.mxu0 0
  %363 = vmatpush1.bf16.msra.mxu0 %v264
  %364 = vmatprep.subr.bf16.mxu0 0
  %365 = vmatpush1.bf16.msra.mxu0 %v265
  %366 = vmatprep.subr.bf16.mxu0 0
  %367 = vmatpush1.bf16.msra.mxu0 %v266
  %368 = vmatprep.subr.bf16.mxu0 0
  %369 = vmatpush1.bf16.msra.mxu0 %v267
  %370 = vmatprep.subr.bf16.mxu0 0
  %371 = vmatpush1.bf16.msra.mxu0 %v268
  %372 = vmatprep.subr.bf16.mxu0 0
  %373 = vmatpush1.bf16.msra.mxu0 %v269
  %374 = vmatprep.subr.bf16.mxu0 0
  %375 = vmatpush1.bf16.msra.mxu0 %v270
  %376 = vmatprep.mubr.bf16.mxu0 %v106
  %377 = vmatmul.mubr.bf16.gmra.mrb[0].mxu0 %v105
  %v378 = vpop.f32.mrb[0].mxu0
  %v379 = vadd.f32 %v338, %v378
  %v380 = vpop.f32.mrb[0].mxu0
  %v381 = vpop.f32.mrb[0].mxu0
  %v382 = vadd.f32 %v341, %v381
  %v383 = vpop.f32.mrb[0].mxu0
  %384 = vdwg.mxu0
  %v385 = vadd.f32 %v21, %v379
  %v386 = vadd.f32 %v22, %v382
  %387 = vst [vmem:[#allocation2] sm:$0xff] %v385
  %388 = vst [vmem:[#allocation2 + $0x8] sm:$0xff] %v386
  // Predicated region
  $region18: #{flux_forward.26} parent=0 // pred_check
    %p389 = pneg %p15
  $region19: #{flux_forward.26} parent=0 // pred_check_branch
    %391 = sbr.rel (%p389) target = $region21
  $region20: #{flux_forward.26} parent=0 // pred_region
    %v392 = vld [vmem:[#allocation2] sm:$0xff]
    %v393 = vld [vmem:[#allocation2 + $0x8] sm:$0xff]
    %v394 = vld [vmem:[%s2] sm:$0x1]
    %v396 = vlaneseq
    %v397 = vshrl.u32 %v396, 7
    %v398 = vsub.s32 0, %v397
    %v399 = vrot.slane %v394, %v398
    %v401 = vadd.f32 %v392, %v399
    %v402 = vadd.f32 %v393, %v399
    %403 = vst [vmem:[%s3] sm:$0xff] %v401
    %404 = vst [vmem:[%s3 + $0x8] sm:$0xff] %v402
  $region21: #{flux_forward.26} parent=0 // pred_fallthru
    _
  // Predicated region
  $region22: #{flux_forward.26} parent=0 // pred_check
    _
  $region23: #{flux_forward.26} parent=0 // pred_check_branch
    %406 = sbr.rel (0) target = $region25
  $region24: #{flux_forward.26} parent=0 // pred_region
    _
  $region25: #{flux_forward.26} parent=0 // pred_fallthru
    _
  // Predicated region
  $region26: #{flux_forward.26} parent=0 // pred_check
    _
  $region27: #{flux_forward.26} parent=0 // pred_check_branch
    %408 = sbr.rel (0) target = $region29
  $region28: #{flux_forward.26} parent=0 // pred_region
    _
  $region29: #{flux_forward.26} parent=0 // pred_fallthru
    _

// kernel: flux_forward.23
$region0: #{flux_forward.23}
  #allocation0 [shape = 'u32[]', space=smem, size = 0x4, offset = 0x4, fixed_abs, tag = 'smem constant byte address 0x4 - core index']
  #allocation1 [shape = 'u32[144,128]{1,0:T(1,128)}', space=vmem, size = 0x12000, scoped, tag = 'internal scratch']
  #allocation2 [shape = 'f32[32,128]{1,0:T(8,128)}', space=vmem, size = 0x4000, scoped, tag = 'scratch operand']
  %s0 = inlined_call_operand.vmem [shape: bf16[32,512], index: 0, kind: input, shape index: {}]
  %s1 = inlined_call_operand.vmem [shape: bf16[512,128], index: 1, kind: input, shape index: {}]
  %s2 = inlined_call_operand.vmem [shape: f32[1,128], index: 2, kind: input, shape index: {}]
  %s3 = inlined_call_operand.vmem [shape: f32[32,128], index: 3, kind: output, shape index: {}]
  %s4 = sld [smem:[#allocation0]]
  $region30: #{flux_forward.23} parent=0
    _
  %s6 = ssub.s32 1, %s4
  %s7 = scalar_select 0, %s6, %s4
  // Predicated region
  $region2: #{flux_forward.23} parent=0 // pred_check
    _
  $region3: #{flux_forward.23} parent=0 // pred_check_branch
    %9 = sbr.rel (0) target = $region5
  $region4: #{flux_forward.23} parent=0 // pred_region
    _
  $region5: #{flux_forward.23} parent=0 // pred_fallthru
    _
  // Predicated region
  $region6: #{flux_forward.23} parent=0 // pred_check
    _
  $region7: #{flux_forward.23} parent=0 // pred_check_branch
    %11 = sbr.rel (0) target = $region9
  $region8: #{flux_forward.23} parent=0 // pred_region
    _
  $region9: #{flux_forward.23} parent=0 // pred_fallthru
    _
  // Predicated region
  $region10: #{flux_forward.23} parent=0 // pred_check
    _
  $region11: #{flux_forward.23} parent=0 // pred_check_branch
    %13 = sbr.rel (0) target = $region13
  $region12: #{flux_forward.23} parent=0 // pred_region
    _
  $region13: #{flux_forward.23} parent=0 // pred_fallthru
    _
  %p15 = scmp.eq.s32.totalorder 0, 0
  // Predicated region
  $region14: #{flux_forward.23} parent=0 // pred_check
    %p16 = pneg %p15
  $region15: #{flux_forward.23} parent=0 // pred_check_branch
    %18 = sbr.rel (%p16) target = $region17
  $region16: #{flux_forward.23} parent=0 // pred_region
    %19 = vst [vmem:[#allocation2] sm:$0xff] 0.0
    %20 = vst [vmem:[#allocation2 + $0x8] sm:$0xff] 0.0
    %21 = vst [vmem:[#allocation2 + $0x10] sm:$0xff] 0.0
    %22 = vst [vmem:[#allocation2 + $0x18] sm:$0xff] 0.0
  $region17: #{flux_forward.23} parent=0 // pred_fallthru
    _
  %v23 = vld [vmem:[#allocation2] sm:$0xff]
  %v24 = vld [vmem:[#allocation2 + $0x8] sm:$0xff]
  %v25 = vld [vmem:[#allocation2 + $0x10] sm:$0xff]
  %v26 = vld [vmem:[#allocation2 + $0x18] sm:$0xff]
  %v27 = vld [vmem:[%s0] sm:$0xff]
  %v28 = vld [vmem:[%s0 + $0x8] sm:$0xff]
  %v29 = vld [vmem:[%s0 + $0x10] sm:$0xff]
  %v30 = vld [vmem:[%s0 + $0x18] sm:$0xff]
  %v31 = vld [vmem:[%s0 + $0x20] sm:$0xff]
  %v32 = vld [vmem:[%s0 + $0x28] sm:$0xff]
  %v33 = vld [vmem:[%s0 + $0x30] sm:$0xff]
  %v34 = vld [vmem:[%s0 + $0x38] sm:$0xff]
  %v35 = vld [vmem:[%s1] sm:$0xf]
  %v36 = vld [vmem:[%s1 + $0x4] sm:$0xf]
  %v37 = vld [vmem:[%s1 + $0x8] sm:$0xf]
  %v38 = vld [vmem:[%s1 + $0xc] sm:$0xf]
  %v39 = vld [vmem:[%s1 + $0x10] sm:$0xf]
  %v40 = vld [vmem:[%s1 + $0x14] sm:$0xf]
  %v41 = vld [vmem:[%s1 + $0x18] sm:$0xf]
  %v42 = vld [vmem:[%s1 + $0x1c] sm:$0xf]
  %v43 = vld [vmem:[%s1 + $0x20] sm:$0xf]
  %v44 = vld [vmem:[%s1 + $0x24] sm:$0xf]
  %v45 = vld [vmem:[%s1 + $0x28] sm:$0xf]
  %v46 = vld [vmem:[%s1 + $0x2c] sm:$0xf]
  %v47 = vld [vmem:[%s1 + $0x30] sm:$0xf]
  %v48 = vld [vmem:[%s1 + $0x34] sm:$0xf]
  %v49 = vld [vmem:[%s1 + $0x38] sm:$0xf]
  %v50 = vld [vmem:[%s1 + $0x3c] sm:$0xf]
  %v51 = vld [vmem:[%s1 + $0x40] sm:$0xf]
  %v52 = vld [vmem:[%s1 + $0x44] sm:$0xf]
  %v53 = vld [vmem:[%s1 + $0x48] sm:$0xf]
  %v54 = vld [vmem:[%s1 + $0x4c] sm:$0xf]
  %v55 = vld [vmem:[%s1 + $0x50] sm:$0xf]
  %v56 = vld [vmem:[%s1 + $0x54] sm:$0xf]
  %v57 = vld [vmem:[%s1 + $0x58] sm:$0xf]
  %v58 = vld [vmem:[%s1 + $0x5c] sm:$0xf]
  %v59 = vld [vmem:[%s1 + $0x60] sm:$0xf]
  %v60 = vld [vmem:[%s1 + $0x64] sm:$0xf]
  %v61 = vld [vmem:[%s1 + $0x68] sm:$0xf]
  %v62 = vld [vmem:[%s1 + $0x6c] sm:$0xf]
  %v63 = vld [vmem:[%s1 + $0x70] sm:$0xf]
  %v64 = vld [vmem:[%s1 + $0x74] sm:$0xf]
  %v65 = vld [vmem:[%s1 + $0x78] sm:$0xf]
  %v66 = vld [vmem:[%s1 + $0x7c] sm:$0xf]
  %v67 = vld [vmem:[%s1 + $0x80] sm:$0xf]
  %v68 = vld [vmem:[%s1 + $0x84] sm:$0xf]
  %v69 = vld [vmem:[%s1 + $0x88] sm:$0xf]
  %v70 = vld [vmem:[%s1 + $0x8c] sm:$0xf]
  %v71 = vld [vmem:[%s1 + $0x90] sm:$0xf]
  %v72 = vld [vmem:[%s1 + $0x94] sm:$0xf]
  %v73 = vld [vmem:[%s1 + $0x98] sm:$0xf]
  %v74 = vld [vmem:[%s1 + $0x9c] sm:$0xf]
  %v75 = vld [vmem:[%s1 + $0xa0] sm:$0xf]
  %v76 = vld [vmem:[%s1 + $0xa4] sm:$0xf]
  %v77 = vld [vmem:[%s1 + $0xa8] sm:$0xf]
  %v78 = vld [vmem:[%s1 + $0xac] sm:$0xf]
  %v79 = vld [vmem:[%s1 + $0xb0] sm:$0xf]
  %v80 = vld [vmem:[%s1 + $0xb4] sm:$0xf]
  %v81 = vld [vmem:[%s1 + $0xb8] sm:$0xf]
  %v82 = vld [vmem:[%s1 + $0xbc] sm:$0xf]
  %v83 = vld [vmem:[%s1 + $0xc0] sm:$0xf]
  %v84 = vld [vmem:[%s1 + $0xc4] sm:$0xf]
  %v85 = vld [vmem:[%s1 + $0xc8] sm:$0xf]
  %v86 = vld [vmem:[%s1 + $0xcc] sm:$0xf]
  %v87 = vld [vmem:[%s1 + $0xd0] sm:$0xf]
  %v88 = vld [vmem:[%s1 + $0xd4] sm:$0xf]
  %v89 = vld [vmem:[%s1 + $0xd8] sm:$0xf]
  %v90 = vld [vmem:[%s1 + $0xdc] sm:$0xf]
  %v91 = vld [vmem:[%s1 + $0xe0] sm:$0xf]
  %v92 = vld [vmem:[%s1 + $0xe4] sm:$0xf]
  %v93 = vld [vmem:[%s1 + $0xe8] sm:$0xf]
  %v94 = vld [vmem:[%s1 + $0xec] sm:$0xf]
  %v95 = vld [vmem:[%s1 + $0xf0] sm:$0xf]
  %v96 = vld [vmem:[%s1 + $0xf4] sm:$0xf]
  %v97 = vld [vmem:[%s1 + $0xf8] sm:$0xf]
  %v98 = vld [vmem:[%s1 + $0xfc] sm:$0xf]
  %v107 = vunpack.c.l.b16 %v27
  %v108 = vunpack.c.h.b16 %v27
  %v109 = vunpack.c.l.b16 %v28
  %v110 = vunpack.c.h.b16 %v28
  %v111 = vunpack.c.l.b16 %v29
  %v112 = vunpack.c.h.b16 %v29
  %v113 = vunpack.c.l.b16 %v30
  %v114 = vunpack.c.h.b16 %v30
  %v115 = vunpack.c.l.b16 %v31
  %v116 = vunpack.c.h.b16 %v31
  %v117 = vunpack.c.l.b16 %v32
  %v118 = vunpack.c.h.b16 %v32
  %v119 = vunpack.c.l.b16 %v33
  %v120 = vunpack.c.h.b16 %v33
  %v121 = vunpack.c.l.b16 %v34
  %v122 = vunpack.c.h.b16 %v34
  %v123 = vpack.c.b16 %v111, %v107
  %v124 = vpack.c.b16 %v112, %v108
  %v125 = vpack.c.b16 %v113, %v109
  %v126 = vpack.c.b16 %v114, %v110
  %v127 = vpack.c.b16 %v119, %v115
  %v128 = vpack.c.b16 %v120, %v116
  %v129 = vpack.c.b16 %v121, %v117
  %v130 = vpack.c.b16 %v122, %v118
  %v203 = vunpack.c.l.b16 %v35
  %v204 = vunpack.c.l.b16 %v36
  %v205 = vunpack.c.l.b16 %v37
  %v206 = vunpack.c.l.b16 %v38
  %v207 = vunpack.c.l.b16 %v39
  %v208 = vunpack.c.l.b16 %v40
  %v209 = vunpack.c.l.b16 %v41
  %v210 = vunpack.c.l.b16 %v42
  %v211 = vunpack.c.l.b16 %v43
  %v212 = vunpack.c.l.b16 %v44
  %v213 = vunpack.c.l.b16 %v45
  %v214 = vunpack.c.l.b16 %v46
  %v215 = vunpack.c.l.b16 %v47
  %v216 = vunpack.c.l.b16 %v48
  %v217 = vunpack.c.l.b16 %v49
  %v218 = vunpack.c.l.b16 %v50
  %v219 = vunpack.c.l.b16 %v51
  %v220 = vunpack.c.l.b16 %v52
  %v221 = vunpack.c.l.b16 %v53
  %v222 = vunpack.c.l.b16 %v54
  %v223 = vunpack.c.l.b16 %v55
  %v224 = vunpack.c.l.b16 %v56
  %v225 = vunpack.c.l.b16 %v57
  %v226 = vunpack.c.l.b16 %v58
  %v227 = vunpack.c.l.b16 %v59
  %v228 = vunpack.c.l.b16 %v60
  %v229 = vunpack.c.l.b16 %v61
  %v230 = vunpack.c.l.b16 %v62
  %v231 = vunpack.c.l.b16 %v63
  %v232 = vunpack.c.l.b16 %v64
  %v233 = vunpack.c.l.b16 %v65
  %v234 = vunpack.c.l.b16 %v66
  %v235 = vunpack.c.l.b16 %v67
  %v236 = vunpack.c.l.b16 %v68
  %v237 = vunpack.c.l.b16 %v69
  %v238 = vunpack.c.l.b16 %v70
  %v239 = vunpack.c.l.b16 %v71
  %v240 = vunpack.c.l.b16 %v72
  %v241 = vunpack.c.l.b16 %v73
  %v242 = vunpack.c.l.b16 %v74
  %v243 = vunpack.c.l.b16 %v75
  %v244 = vunpack.c.l.b16 %v76
  %v245 = vunpack.c.l.b16 %v77
  %v246 = vunpack.c.l.b16 %v78
  %v247 = vunpack.c.l.b16 %v79
  %v248 = vunpack.c.l.b16 %v80
  %v249 = vunpack.c.l.b16 %v81
  %v250 = vunpack.c.l.b16 %v82
  %v251 = vunpack.c.l.b16 %v83
  %v252 = vunpack.c.l.b16 %v84
  %v253 = vunpack.c.l.b16 %v85
  %v254 = vunpack.c.l.b16 %v86
  %v255 = vunpack.c.l.b16 %v87
  %v256 = vunpack.c.l.b16 %v88
  %v257 = vunpack.c.l.b16 %v89
  %v258 = vunpack.c.l.b16 %v90
  %v259 = vunpack.c.l.b16 %v91
  %v260 = vunpack.c.l.b16 %v92
  %v261 = vunpack.c.l.b16 %v93
  %v262 = vunpack.c.l.b16 %v94
  %v263 = vunpack.c.l.b16 %v95
  %v264 = vunpack.c.l.b16 %v96
  %v265 = vunpack.c.l.b16 %v97
  %v266 = vunpack.c.l.b16 %v98
  %v267 = vpack.c.b16 %v204, %v203
  %v268 = vpack.c.b16 %v206, %v205
  %v269 = vpack.c.b16 %v208, %v207
  %v270 = vpack.c.b16 %v210, %v209
  %v271 = vpack.c.b16 %v212, %v211
  %v272 = vpack.c.b16 %v214, %v213
  %v273 = vpack.c.b16 %v216, %v215
  %v274 = vpack.c.b16 %v218, %v217
  %v275 = vpack.c.b16 %v220, %v219
  %v276 = vpack.c.b16 %v222, %v221
  %v277 = vpack.c.b16 %v224, %v223
  %v278 = vpack.c.b16 %v226, %v225
  %v279 = vpack.c.b16 %v228, %v227
  %v280 = vpack.c.b16 %v230, %v229
  %v281 = vpack.c.b16 %v232, %v231
  %v282 = vpack.c.b16 %v234, %v233
  %v283 = vpack.c.b16 %v236, %v235
  %v284 = vpack.c.b16 %v238, %v237
  %v285 = vpack.c.b16 %v240, %v239
  %v286 = vpack.c.b16 %v242, %v241
  %v287 = vpack.c.b16 %v244, %v243
  %v288 = vpack.c.b16 %v246, %v245
  %v289 = vpack.c.b16 %v248, %v247
  %v290 = vpack.c.b16 %v250, %v249
  %v291 = vpack.c.b16 %v252, %v251
  %v292 = vpack.c.b16 %v254, %v253
  %v293 = vpack.c.b16 %v256, %v255
  %v294 = vpack.c.b16 %v258, %v257
  %v295 = vpack.c.b16 %v260, %v259
  %v296 = vpack.c.b16 %v262, %v261
  %v297 = vpack.c.b16 %v264, %v263
  %v298 = vpack.c.b16 %v266, %v265
  %331 = vmatprep.subr.bf16.mxu0 0
  %332 = vmatpush1.bf16.msra.mxu0 %v267
  %333 = vmatprep.subr.bf16.mxu0 0
  %334 = vmatpush1.bf16.msra.mxu0 %v268
  %335 = vmatprep.subr.bf16.mxu0 0
  %336 = vmatpush1.bf16.msra.mxu0 %v269
  %337 = vmatprep.subr.bf16.mxu0 0
  %338 = vmatpush1.bf16.msra.mxu0 %v270
  %339 = vmatprep.subr.bf16.mxu0 0
  %340 = vmatpush1.bf16.msra.mxu0 %v271
  %341 = vmatprep.subr.bf16.mxu0 0
  %342 = vmatpush1.bf16.msra.mxu0 %v272
  %343 = vmatprep.subr.bf16.mxu0 0
  %344 = vmatpush1.bf16.msra.mxu0 %v273
  %345 = vmatprep.subr.bf16.mxu0 0
  %346 = vmatpush1.bf16.msra.mxu0 %v274
  %347 = vmatprep.subr.bf16.mxu0 0
  %348 = vmatpush1.bf16.msra.mxu0 %v275
  %349 = vmatprep.subr.bf16.mxu0 0
  %350 = vmatpush1.bf16.msra.mxu0 %v276
  %351 = vmatprep.subr.bf16.mxu0 0
  %352 = vmatpush1.bf16.msra.mxu0 %v277
  %353 = vmatprep.subr.bf16.mxu0 0
  %354 = vmatpush1.bf16.msra.mxu0 %v278
  %355 = vmatprep.subr.bf16.mxu0 0
  %356 = vmatpush1.bf16.msra.mxu0 %v279
  %357 = vmatprep.subr.bf16.mxu0 0
  %358 = vmatpush1.bf16.msra.mxu0 %v280
  %359 = vmatprep.subr.bf16.mxu0 0
  %360 = vmatpush1.bf16.msra.mxu0 %v281
  %361 = vmatprep.subr.bf16.mxu0 0
  %362 = vmatpush1.bf16.msra.mxu0 %v282
  %363 = vmatprep.mubr.bf16.mxu0 %v124
  %364 = vmatmul.mubr.bf16.gmra.mrb[0].mxu0 %v123
  %v365 = vpop.f32.mrb[0].mxu0
  %v366 = vadd.f32 0.0, %v365
  %v367 = vpop.f32.mrb[0].mxu0
  %v368 = vpop.f32.mrb[0].mxu0
  %v369 = vadd.f32 0.0, %v368
  %v370 = vpop.f32.mrb[0].mxu0
  %371 = vmatprep.mubr.bf16.mxu0 %v128
  %372 = vmatmul.mubr.bf16.gmra.mrb[0].mxu0 %v127
  %v373 = vpop.f32.mrb[0].mxu0
  %v374 = vadd.f32 0.0, %v373
  %v375 = vpop.f32.mrb[0].mxu0
  %v376 = vpop.f32.mrb[0].mxu0
  %v377 = vadd.f32 0.0, %v376
  %v378 = vpop.f32.mrb[0].mxu0
  %379 = vdwg.mxu0
  %380 = vmatprep.subr.bf16.mxu0 0
  %381 = vmatpush1.bf16.msra.mxu0 %v283
  %382 = vmatprep.subr.bf16.mxu0 0
  %383 = vmatpush1.bf16.msra.mxu0 %v284
  %384 = vmatprep.subr.bf16.mxu0 0
  %385 = vmatpush1.bf16.msra.mxu0 %v285
  %386 = vmatprep.subr.bf16.mxu0 0
  %387 = vmatpush1.bf16.msra.mxu0 %v286
  %388 = vmatprep.subr.bf16.mxu0 0
  %389 = vmatpush1.bf16.msra.mxu0 %v287
  %390 = vmatprep.subr.bf16.mxu0 0
  %391 = vmatpush1.bf16.msra.mxu0 %v288
  %392 = vmatprep.subr.bf16.mxu0 0
  %393 = vmatpush1.bf16.msra.mxu0 %v289
  %394 = vmatprep.subr.bf16.mxu0 0
  %395 = vmatpush1.bf16.msra.mxu0 %v290
  %396 = vmatprep.subr.bf16.mxu0 0
  %397 = vmatpush1.bf16.msra.mxu0 %v291
  %398 = vmatprep.subr.bf16.mxu0 0
  %399 = vmatpush1.bf16.msra.mxu0 %v292
  %400 = vmatprep.subr.bf16.mxu0 0
  %401 = vmatpush1.bf16.msra.mxu0 %v293
  %402 = vmatprep.subr.bf16.mxu0 0
  %403 = vmatpush1.bf16.msra.mxu0 %v294
  %404 = vmatprep.subr.bf16.mxu0 0
  %405 = vmatpush1.bf16.msra.mxu0 %v295
  %406 = vmatprep.subr.bf16.mxu0 0
  %407 = vmatpush1.bf16.msra.mxu0 %v296
  %408 = vmatprep.subr.bf16.mxu0 0
  %409 = vmatpush1.bf16.msra.mxu0 %v297
  %410 = vmatprep.subr.bf16.mxu0 0
  %411 = vmatpush1.bf16.msra.mxu0 %v298
  %412 = vmatprep.mubr.bf16.mxu0 %v126
  %413 = vmatmul.mubr.bf16.gmra.mrb[0].mxu0 %v125
  %v414 = vpop.f32.mrb[0].mxu0
  %v415 = vadd.f32 %v366, %v414
  %v416 = vpop.f32.mrb[0].mxu0
  %v417 = vpop.f32.mrb[0].mxu0
  %v418 = vadd.f32 %v369, %v417
  %v419 = vpop.f32.mrb[0].mxu0
  %420 = vmatprep.mubr.bf16.mxu0 %v130
  %421 = vmatmul.mubr.bf16.gmra.mrb[0].mxu0 %v129
  %v422 = vpop.f32.mrb[0].mxu0
  %v423 = vadd.f32 %v374, %v422
  %v424 = vpop.f32.mrb[0].mxu0
  %v425 = vpop.f32.mrb[0].mxu0
  %v426 = vadd.f32 %v377, %v425
  %v427 = vpop.f32.mrb[0].mxu0
  %428 = vdwg.mxu0
  %v429 = vadd.f32 %v23, %v415
  %v430 = vadd.f32 %v24, %v418
  %v431 = vadd.f32 %v25, %v423
  %v432 = vadd.f32 %v26, %v426
  %433 = vst [vmem:[#allocation2] sm:$0xff] %v429
  %434 = vst [vmem:[#allocation2 + $0x8] sm:$0xff] %v430
  %435 = vst [vmem:[#allocation2 + $0x10] sm:$0xff] %v431
  %436 = vst [vmem:[#allocation2 + $0x18] sm:$0xff] %v432
  // Predicated region
  $region18: #{flux_forward.23} parent=0 // pred_check
    %p437 = pneg %p15
  $region19: #{flux_forward.23} parent=0 // pred_check_branch
    %439 = sbr.rel (%p437) target = $region21
  $region20: #{flux_forward.23} parent=0 // pred_region
    %v440 = vld [vmem:[#allocation2] sm:$0xff]
    %v441 = vld [vmem:[#allocation2 + $0x8] sm:$0xff]
    %v442 = vld [vmem:[#allocation2 + $0x10] sm:$0xff]
    %v443 = vld [vmem:[#allocation2 + $0x18] sm:$0xff]
    %v444 = vld [vmem:[%s2] sm:$0x1]
    %v446 = vlaneseq
    %v447 = vshrl.u32 %v446, 7
    %v448 = vsub.s32 0, %v447
    %v449 = vrot.slane %v444, %v448
    %v451 = vadd.f32 %v440, %v449
    %v452 = vadd.f32 %v441, %v449
    %v453 = vadd.f32 %v442, %v449
    %v454 = vadd.f32 %v443, %v449
    %455 = vst [vmem:[%s3] sm:$0xff] %v451
    %456 = vst [vmem:[%s3 + $0x8] sm:$0xff] %v452
    %457 = vst [vmem:[%s3 + $0x10] sm:$0xff] %v453
    %458 = vst [vmem:[%s3 + $0x18] sm:$0xff] %v454
  $region21: #{flux_forward.23} parent=0 // pred_fallthru
    _
  // Predicated region
  $region22: #{flux_forward.23} parent=0 // pred_check
    _
  $region23: #{flux_forward.23} parent=0 // pred_check_branch
    %460 = sbr.rel (0) target = $region25
  $region24: #{flux_forward.23} parent=0 // pred_region
    _
  $region25: #{flux_forward.23} parent=0 // pred_fallthru
    _
  // Predicated region
  $region26: #{flux_forward.23} parent=0 // pred_check
    _
  $region27: #{flux_forward.23} parent=0 // pred_check_branch
    %462 = sbr.rel (0) target = $region29
  $region28: #{flux_forward.23} parent=0 // pred_region
    _
  $region29: #{flux_forward.23} parent=0 // pred_fallthru
    _

// kernel: flux_forward.22
$region0: #{flux_forward.22}
  #allocation0 [shape = 'u32[]', space=smem, size = 0x4, offset = 0x4, fixed_abs, tag = 'smem constant byte address 0x4 - core index']
  #allocation1 [shape = 'u32[144,128]{1,0:T(1,128)}', space=vmem, size = 0x12000, scoped, tag = 'internal scratch']
  #allocation2 [shape = 'f32[32,256]{1,0:T(8,128)}', space=vmem, size = 0x8000, scoped, tag = 'scratch operand']
  %s0 = inlined_call_operand.vmem [shape: bf16[32,128], index: 0, kind: input, shape index: {}]
  %s1 = inlined_call_operand.vmem [shape: bf16[128,512], index: 1, kind: input, shape index: {}]
  %s2 = inlined_call_operand.vmem [shape: f32[1,512], index: 2, kind: input, shape index: {}]
  %s3 = inlined_call_operand.vmem [shape: f32[32,512], index: 3, kind: output, shape index: {}]
  %s4 = sld [smem:[#allocation0]]
  $region110: #{flux_forward.22} parent=0
    _
  %s6 = ssub.s32 1, %s4
  %s7 = scalar_select 0, %s6, %s4
  $region1: #{flux_forward.22} parent=0
    #allocation3 [shape = 'u8[131072]{0}', space=vmem, size = 0x20000, scoped, tag = 'input window, operand 1']
    #allocation4 [shape = 'u8[65536]{0}', space=vmem, size = 0x10000, scoped, tag = 'output window, operand 0']
    loop: start=0, step=1, limit=4
    $region2: #{flux_forward.22} parent=1 // loop_pre_header
      _
    $region3: #{flux_forward.22} parent=1 // loop_header
      %s9 = sphi 0, %s13
      %p10 = scmp.ge.s32.totalorder %s9, 4
      %s16 = sphi 0, %s35
      %s17 = sphi 0, %s31
      %s18 = sphi 0, %s27
      %s19 = sphi 0, %s16
      %s20 = sphi 0, %s17
      %s21 = sphi 0, %s18
      %s22 = sphi 0, %s19
      %s23 = sphi 0, %s20
      %s24 = sphi 0, %s21
      %s40 = sphi 0, %s42
      %s43 = sphi 0, %s40
      %s44 = sphi 0, %s43
      %s60 = sphi 0, %s44
      %s68 = sphi 0, %s70
      %s71 = sphi 0, %s68
      %s72 = sphi 0, %s71
      %s88 = sphi 0, %s72
      %s94 = sphi 0, %s96
      %s97 = sphi 0, %s94
      %s98 = sphi 0, %s97
      %s114 = sphi 0, %s98
      %s122 = sphi 0, %s124
      %s125 = sphi 0, %s122
      %s126 = sphi 0, %s125
      %s142 = sphi 0, %s126
    $region4: #{flux_forward.22} parent=1 // loop_header_branch
      %12 = sbr.rel (%p10) target = $region8
    $region5: #{flux_forward.22} parent=1 // loop_body
      %s14 = ssub.s32 %s9, 1
      %s15 = ssub.s32 %s9, 2
      %s25 = sadd.s32 1, %s18
      %p26 = scmp.ge.s32.totalorder %s25, 1
      %s27 = scalar_select %p26, 0, %s25
      %s28 = sadd.s32 1, %s17
      %s29 = scalar_select %p26, %s28, %s17
      %p30 = scmp.ge.s32.totalorder %s29, 2
      %s31 = scalar_select %p30, 0, %s29
      %s32 = sadd.s32 1, %s16
      %s33 = scalar_select %p30, %s32, %s16
      %p34 = scmp.ge.s32.totalorder %s33, 1
      %s35 = scalar_select %p34, 0, %s33
      %s36 = ssub.s32 %s16, %s35
      %s37 = ssub.s32 %s18, %s27
      %s38 = sor.u32 %s36, %s37
      %p39 = scmp.eq.s32.totalorder %s38, 0
      %s41 = sadd.s32 %s40, 1
      %s42 = scalar_select %p39, %s40, %s41
      %p45 = pneg %p39
      %p46 = scmp.eq.s32.totalorder %s9, 1
      %p47 = por %p45, %p46
      %p48 = scmp.ne.s32.totalorder %s40, %s43
      %p49 = scmp.eq.s32.totalorder %s9, 0
      %p50 = por %p48, %p49
      %p51 = scmp.ne.s32.totalorder %s40, %s43
      %p52 = scmp.eq.s32.totalorder %s14, 1
      %p53 = por %p51, %p52
      %p54 = scmp.ne.s32.totalorder %s43, %s44
      %p55 = scmp.eq.s32.totalorder %s14, 0
      %p56 = por %p54, %p55
      %p57 = scmp.ne.s32.totalorder %s43, %s44
      %p58 = scmp.eq.s32.totalorder %s15, 1
      %p59 = por %p57, %p58
      %p61 = scmp.ne.s32.totalorder %s44, %s60
      %p62 = scmp.eq.s32.totalorder %s15, 0
      %p63 = por %p61, %p62
      %s64 = ssub.s32 %s18, %s27
      %s65 = ssub.s32 %s17, %s31
      %s66 = sor.u32 %s64, %s65
      %p67 = scmp.eq.s32.totalorder %s66, 0
      %s69 = sadd.s32 %s68, 1
      %s70 = scalar_select %p67, %s68, %s69
      %p73 = pneg %p67
      %p74 = scmp.eq.s32.totalorder %s9, 1
      %p75 = por %p73, %p74
      %p76 = scmp.ne.s32.totalorder %s68, %s71
      %p77 = scmp.eq.s32.totalorder %s9, 0
      %p78 = por %p76, %p77
      %p79 = scmp.ne.s32.totalorder %s68, %s71
      %p80 = scmp.eq.s32.totalorder %s14, 1
      %p81 = por %p79, %p80
      %p82 = scmp.ne.s32.totalorder %s71, %s72
      %p83 = scmp.eq.s32.totalorder %s14, 0
      %p84 = por %p82, %p83
      %p85 = scmp.ne.s32.totalorder %s71, %s72
      %p86 = scmp.eq.s32.totalorder %s15, 1
      %p87 = por %p85, %p86
      %p89 = scmp.ne.s32.totalorder %s72, %s88
      %p90 = scmp.eq.s32.totalorder %s15, 0
      %p91 = por %p89, %p90
      %s92 = ssub.s32 %s17, %s31
      %p93 = scmp.eq.s32.totalorder %s92, 0
      %s95 = sadd.s32 %s94, 1
      %s96 = scalar_select %p93, %s94, %s95
      %p99 = pneg %p93
      %p100 = scmp.eq.s32.totalorder %s9, 1
      %p101 = por %p99, %p100
      %p102 = scmp.ne.s32.totalorder %s94, %s97
      %p103 = scmp.eq.s32.totalorder %s9, 0
      %p104 = por %p102, %p103
      %p105 = scmp.ne.s32.totalorder %s94, %s97
      %p106 = scmp.eq.s32.totalorder %s14, 1
      %p107 = por %p105, %p106
      %p108 = scmp.ne.s32.totalorder %s97, %s98
      %p109 = scmp.eq.s32.totalorder %s14, 0
      %p110 = por %p108, %p109
      %p111 = scmp.ne.s32.totalorder %s97, %s98
      %p112 = scmp.eq.s32.totalorder %s15, 1
      %p113 = por %p111, %p112
      %p115 = scmp.ne.s32.totalorder %s98, %s114
      %p116 = scmp.eq.s32.totalorder %s15, 0
      %p117 = por %p115, %p116
      %s118 = ssub.s32 %s16, %s35
      %s119 = ssub.s32 %s17, %s31
      %s120 = sor.u32 %s118, %s119
      %p121 = scmp.eq.s32.totalorder %s120, 0
      %s123 = sadd.s32 %s122, 1
      %s124 = scalar_select %p121, %s122, %s123
      %p127 = pneg %p121
      %p128 = scmp.eq.s32.totalorder %s9, 1
      %p129 = por %p127, %p128
      %p130 = scmp.ne.s32.totalorder %s122, %s125
      %p131 = scmp.eq.s32.totalorder %s9, 0
      %p132 = por %p130, %p131
      %p133 = scmp.ne.s32.totalorder %s122, %s125
      %p134 = scmp.eq.s32.totalorder %s14, 1
      %p135 = por %p133, %p134
      %p136 = scmp.ne.s32.totalorder %s125, %s126
      %p137 = scmp.eq.s32.totalorder %s14, 0
      %p138 = por %p136, %p137
      %p139 = scmp.ne.s32.totalorder %s125, %s126
      %p140 = scmp.eq.s32.totalorder %s15, 1
      %p141 = por %p139, %p140
      %p143 = scmp.ne.s32.totalorder %s126, %s142
      %p144 = scmp.eq.s32.totalorder %s15, 0
      %p145 = por %p143, %p144
      %p146 = scmp.le.s32.totalorder 1, %s9
      %p147 = scmp.lt.s32.totalorder %s9, 3
      %p148 = pnand %p146, %p147
      %p149 = pneg %p148
      // Predicated region
      $region9: #{flux_forward.22} parent=5 // pred_check
        _
      $region10: #{flux_forward.22} parent=5 // pred_check_branch
        %151 = sbr.rel (%p148) target = $region12
      $region11: #{flux_forward.22} parent=5 // pred_region
        %s152 = ssub.s32 %s9, 1
        // Predicated region
        $region13: #{flux_forward.22} parent=11 // pred_check
          %p153 = pneg %p56
        $region14: #{flux_forward.22} parent=11 // pred_check_branch
          %155 = sbr.rel (%p153) target = $region16
        $region15: #{flux_forward.22} parent=11 // pred_region
          %s156 = smul.u32 4, %s19
          %p157 = scmp.lt.s32.totalorder %s156, 3
          %s158 = scalar_select %p157, %s156, 3
          %p159 = scmp.lt.s32.totalorder %s21, 0
          %s160 = scalar_select %p159, %s21, 0
          %s161 = sadd.s32 %s160, %s158
          %s162 = smul.addr %s161, 4
          %s163 = scalar_lea.vmem %s0, %s162
          %s164 = smul.u32 4, %s19
        $region16: #{flux_forward.22} parent=11 // pred_fallthru
          _
      $region12: #{flux_forward.22} parent=5 // pred_fallthru
        _
      %p165 = scmp.lt.s32.totalorder %s9, 2
      // Predicated region
      $region17: #{flux_forward.22} parent=5 // pred_check
        %p166 = pneg %p165
      $region18: #{flux_forward.22} parent=5 // pred_check_branch
        %168 = sbr.rel (%p166) target = $region20
      $region19: #{flux_forward.22} parent=5 // pred_region
        // Predicated region
        $region21: #{flux_forward.22} parent=19 // pred_check
          %p169 = pneg %p78
        $region22: #{flux_forward.22} parent=19 // pred_check_branch
          %171 = sbr.rel (%p169) target = $region24
        $region23: #{flux_forward.22} parent=19 // pred_region
          %s172 = sand.u32 %s68, 1
          %s173 = sand.u32 %s68, 1
          %s174 = smul.addr %s173, 128
          %s175 = scalar_lea.vmem [#allocation3], %s174
          %s176 = smul.u32 16, %s18
          %s177 = smul.u32 2, %s17
          %s178 = smul.addr %s176, 4
          %s179 = sadd.s32 %s177, %s178
          %s180 = smul.addr %s179, 4
          %s181 = scalar_lea.vmem %s1, %s180
          // Predicated region
          $region25: #{flux_forward.22} parent=23 // pred_check
            _
          $region26: #{flux_forward.22} parent=23 // pred_check_branch
            %183 = sbr.rel (0) target = $region28
          $region27: #{flux_forward.22} parent=23 // pred_region
            // Predicated region
            $region29: #{flux_forward.22} parent=27 // pred_check
              _
            $region30: #{flux_forward.22} parent=27 // pred_check_branch
              %185 = sbr.rel (0) target = $region32
            $region31: #{flux_forward.22} parent=27 // pred_region
              // Predicated region
              $region44: #{flux_forward.22} parent=31 // pred_check
                _
              $region45: #{flux_forward.22} parent=31 // pred_check_branch
                %230 = sbr.rel (0) target = $region47
              $region46: #{flux_forward.22} parent=31 // pred_region
                loop: start=0, step=1, limit=1
                $region48: #{flux_forward.22} parent=46 // loop_pre_header
                  _
                $region49: #{flux_forward.22} parent=46 // loop_header
                  %s232 = sphi 0, %s236
                  %p233 = scmp.ge.s32.totalorder %s232, 1
                  %s237 = sphi %s181, %s181
                  %s238 = sphi %s175, %s175
                $region50: #{flux_forward.22} parent=46 // loop_header_branch
                  %235 = sbr.rel (%p233) target = $region54
                $region51: #{flux_forward.22} parent=46 // loop_body
                  %v239 = vld [vmem:[%s237] sm:$0xff]
                  %240 = vst [vmem:[%s238] sm:$0xff] %v239
                  %v241 = vld [vmem:[%s237 + $0x10] sm:$0xff]
                  %242 = vst [vmem:[%s238 + $0x8] sm:$0xff] %v241
                  %v243 = vld [vmem:[%s237 + $0x20] sm:$0xff]
                  %244 = vst [vmem:[%s238 + $0x10] sm:$0xff] %v243
                  %v245 = vld [vmem:[%s237 + $0x30] sm:$0xff]
                  %246 = vst [vmem:[%s238 + $0x18] sm:$0xff] %v245
                  %v247 = vld [vmem:[%s237 + $0x40] sm:$0xff]
                  %248 = vst [vmem:[%s238 + $0x20] sm:$0xff] %v247
                  %v249 = vld [vmem:[%s237 + $0x50] sm:$0xff]
                  %250 = vst [vmem:[%s238 + $0x28] sm:$0xff] %v249
                  %v251 = vld [vmem:[%s237 + $0x60] sm:$0xff]
                  %252 = vst [vmem:[%s238 + $0x30] sm:$0xff] %v251
                  %v253 = vld [vmem:[%s237 + $0x70] sm:$0xff]
                  %254 = vst [vmem:[%s238 + $0x38] sm:$0xff] %v253
                  %v255 = vld [vmem:[%s237 + $0x80] sm:$0xff]
                  %256 = vst [vmem:[%s238 + $0x40] sm:$0xff] %v255
                  %v257 = vld [vmem:[%s237 + $0x90] sm:$0xff]
                  %258 = vst [vmem:[%s238 + $0x48] sm:$0xff] %v257
                  %v259 = vld [vmem:[%s237 + $0xa0] sm:$0xff]
                  %260 = vst [vmem:[%s238 + $0x50] sm:$0xff] %v259
                  %v261 = vld [vmem:[%s237 + $0xb0] sm:$0xff]
                  %262 = vst [vmem:[%s238 + $0x58] sm:$0xff] %v261
                  %v263 = vld [vmem:[%s237 + $0xc0] sm:$0xff]
                  %264 = vst [vmem:[%s238 + $0x60] sm:$0xff] %v263
                  %v265 = vld [vmem:[%s237 + $0xd0] sm:$0xff]
                  %266 = vst [vmem:[%s238 + $0x68] sm:$0xff] %v265
                  %v267 = vld [vmem:[%s237 + $0xe0] sm:$0xff]
                  %268 = vst [vmem:[%s238 + $0x70] sm:$0xff] %v267
                  %v269 = vld [vmem:[%s237 + $0xf0] sm:$0xff]
                  %270 = vst [vmem:[%s238 + $0x78] sm:$0xff] %v269
                $region52: #{flux_forward.22} parent=46 // loop_footer
                  %s236 = sadd.s32 1, %s232
                $region53: #{flux_forward.22} parent=46 // loop_footer_branch
                  %231 = sbr.rel target = $region49
                $region54: #{flux_forward.22} parent=46 // loop_exit
                  _
              $region47: #{flux_forward.22} parent=31 // pred_fallthru
                _
              // Predicated region
              $region55: #{flux_forward.22} parent=31 // pred_check
                _
              $region56: #{flux_forward.22} parent=31 // pred_check_branch
                %272 = sbr.rel target = $region58
              $region57: #{flux_forward.22} parent=31 // pred_region
                _
              $region58: #{flux_forward.22} parent=31 // pred_fallthru
                _
            $region32: #{flux_forward.22} parent=27 // pred_fallthru
              _
            // Predicated region
            $region33: #{flux_forward.22} parent=27 // pred_check
              _
            $region34: #{flux_forward.22} parent=27 // pred_check_branch
              %187 = sbr.rel target = $region36
            $region35: #{flux_forward.22} parent=27 // pred_region
              loop: start=0, step=1, limit=1
              $region37: #{flux_forward.22} parent=35 // loop_pre_header
                _
              $region38: #{flux_forward.22} parent=35 // loop_header
                %s190 = sphi 0, %s194
                %p191 = scmp.ge.s32.totalorder %s190, 1
                %s195 = sphi %s181, %s181
                %s196 = sphi %s175, %s175
              $region39: #{flux_forward.22} parent=35 // loop_header_branch
                %193 = sbr.rel (%p191) target = $region43
              $region40: #{flux_forward.22} parent=35 // loop_body
                %v197 = vld [vmem:[%s195] sm:$0xff]
                %198 = vst [vmem:[%s196] sm:$0xff] %v197
                %v199 = vld [vmem:[%s195 + $0x10] sm:$0xff]
                %200 = vst [vmem:[%s196 + $0x8] sm:$0xff] %v199
                %v201 = vld [vmem:[%s195 + $0x20] sm:$0xff]
                %202 = vst [vmem:[%s196 + $0x10] sm:$0xff] %v201
                %v203 = vld [vmem:[%s195 + $0x30] sm:$0xff]
                %204 = vst [vmem:[%s196 + $0x18] sm:$0xff] %v203
                %v205 = vld [vmem:[%s195 + $0x40] sm:$0xff]
                %206 = vst [vmem:[%s196 + $0x20] sm:$0xff] %v205
                %v207 = vld [vmem:[%s195 + $0x50] sm:$0xff]
                %208 = vst [vmem:[%s196 + $0x28] sm:$0xff] %v207
                %v209 = vld [vmem:[%s195 + $0x60] sm:$0xff]
                %210 = vst [vmem:[%s196 + $0x30] sm:$0xff] %v209
                %v211 = vld [vmem:[%s195 + $0x70] sm:$0xff]
                %212 = vst [vmem:[%s196 + $0x38] sm:$0xff] %v211
                %v213 = vld [vmem:[%s195 + $0x80] sm:$0xff]
                %214 = vst [vmem:[%s196 + $0x40] sm:$0xff] %v213
                %v215 = vld [vmem:[%s195 + $0x90] sm:$0xff]
                %216 = vst [vmem:[%s196 + $0x48] sm:$0xff] %v215
                %v217 = vld [vmem:[%s195 + $0xa0] sm:$0xff]
                %218 = vst [vmem:[%s196 + $0x50] sm:$0xff] %v217
                %v219 = vld [vmem:[%s195 + $0xb0] sm:$0xff]
                %220 = vst [vmem:[%s196 + $0x58] sm:$0xff] %v219
                %v221 = vld [vmem:[%s195 + $0xc0] sm:$0xff]
                %222 = vst [vmem:[%s196 + $0x60] sm:$0xff] %v221
                %v223 = vld [vmem:[%s195 + $0xd0] sm:$0xff]
                %224 = vst [vmem:[%s196 + $0x68] sm:$0xff] %v223
                %v225 = vld [vmem:[%s195 + $0xe0] sm:$0xff]
                %226 = vst [vmem:[%s196 + $0x70] sm:$0xff] %v225
                %v227 = vld [vmem:[%s195 + $0xf0] sm:$0xff]
                %228 = vst [vmem:[%s196 + $0x78] sm:$0xff] %v227
              $region41: #{flux_forward.22} parent=35 // loop_footer
                %s194 = sadd.s32 1, %s190
              $region42: #{flux_forward.22} parent=35 // loop_footer_branch
                %189 = sbr.rel target = $region38
              $region43: #{flux_forward.22} parent=35 // loop_exit
                _
            $region36: #{flux_forward.22} parent=27 // pred_fallthru
              _
          $region28: #{flux_forward.22} parent=23 // pred_fallthru
            _
          %273 = vnop
        $region24: #{flux_forward.22} parent=19 // pred_fallthru
          _
        // Predicated region
        $region59: #{flux_forward.22} parent=19 // pred_check
          %p274 = pneg %p104
        $region60: #{flux_forward.22} parent=19 // pred_check_branch
          %276 = sbr.rel (%p274) target = $region62
        $region61: #{flux_forward.22} parent=19 // pred_region
          %s277 = smul.u32 2, %s17
          %p278 = scmp.lt.s32.totalorder %s277, 3
          %s279 = scalar_select %p278, %s277, 3
          %s280 = scalar_lea.vmem %s2, %s279
          %s281 = smul.u32 2, %s17
        $region62: #{flux_forward.22} parent=19 // pred_fallthru
          _
      $region20: #{flux_forward.22} parent=5 // pred_fallthru
        _
      %p282 = scmp.le.s32.totalorder 1, %s9
      %p283 = scmp.lt.s32.totalorder %s9, 3
      %p284 = pnand %p282, %p283
      %p285 = pneg %p284
      // Predicated region
      $region63: #{flux_forward.22} parent=5 // pred_check
        _
      $region64: #{flux_forward.22} parent=5 // pred_check_branch
        %287 = sbr.rel (%p284) target = $region66
      $region65: #{flux_forward.22} parent=5 // pred_region
        %s288 = ssub.s32 %s9, 1
        %s289 = sand.u32 %s71, 1
        %s290 = sand.u32 %s71, 1
        %s291 = smul.addr %s290, 128
        %s292 = scalar_lea.vmem [#allocation3], %s291
        // Predicated region
        $region67: #{flux_forward.22} parent=65 // pred_check
          %p293 = pneg %p84
        $region68: #{flux_forward.22} parent=65 // pred_check_branch
          %295 = sbr.rel (%p293) target = $region70
        $region69: #{flux_forward.22} parent=65 // pred_region
          _
        $region70: #{flux_forward.22} parent=65 // pred_fallthru
          _
        %s296 = smul.u32 4, %s19
        %p297 = scmp.lt.s32.totalorder %s296, 3
        %s298 = scalar_select %p297, %s296, 3
        %p299 = scmp.lt.s32.totalorder %s21, 0
        %s300 = scalar_select %p299, %s21, 0
        %s301 = sadd.s32 %s300, %s298
        %s302 = smul.addr %s301, 4
        %s303 = scalar_lea.vmem %s0, %s302
        %p304 = pneg %p56
        %p305 = pneg %p53
        %s306 = sand.u32 %s71, 1
        %s307 = sand.u32 %s71, 1
        %s308 = smul.addr %s307, 128
        %s309 = scalar_lea.vmem [#allocation3], %s308
        %p310 = pneg %p84
        %p311 = pneg %p81
        %s312 = smul.u32 2, %s20
        %p313 = scmp.lt.s32.totalorder %s312, 3
        %s314 = scalar_select %p313, %s312, 3
        %s315 = scalar_lea.vmem %s2, %s314
        %p316 = pneg %p110
        %p317 = pneg %p107
        %p318 = pneg %p138
        %p319 = pneg %p135
        %s320 = sand.u32 %s125, 1
        %s321 = sand.u32 %s125, 1
        %s322 = smul.addr %s321, 64
        %s323 = scalar_lea.vmem [#allocation4], %s322
        %s324 = smul.u32 4, %s19
        %p325 = scmp.lt.s32.totalorder %s324, 3
        %s326 = scalar_select %p325, %s324, 3
        %p327 = scmp.lt.s32.totalorder %s21, 0
        %s328 = scalar_select %p327, %s21, 0
        %s329 = sadd.s32 %s328, %s326
        %s330 = smul.addr %s329, 4
        %s331 = scalar_lea.vmem %s0, %s330
        %s332 = smul.u32 4, %s19
        %s333 = smul.u32 16, %s21
        %s334 = smul.u32 2, %s20
        %s335 = smul.u32 2, %s20
        %p336 = scmp.lt.s32.totalorder %s335, 3
        %s337 = scalar_select %p336, %s335, 3
        %s338 = scalar_lea.vmem %s2, %s337
        %s339 = smul.u32 2, %s20
        %s340 = smul.u32 4, %s19
        %s341 = smul.u32 2, %s20
        %p343 = scmp.eq.s32.totalorder %s21, 0
        // Predicated region
        $region71: #{flux_forward.22} parent=65 // pred_check
          %p344 = pneg %p343
        $region72: #{flux_forward.22} parent=65 // pred_check_branch
          %346 = sbr.rel (%p344) target = $region74
        $region73: #{flux_forward.22} parent=65 // pred_region
          %347 = vst [vmem:[#allocation2] sm:$0xff] 0.0
          %348 = vst [vmem:[#allocation2 + $0x8] sm:$0xff] 0.0
          %349 = vst [vmem:[#allocation2 + $0x10] sm:$0xff] 0.0
          %350 = vst [vmem:[#allocation2 + $0x18] sm:$0xff] 0.0
          %351 = vst [vmem:[#allocation2 + $0x20] sm:$0xff] 0.0
          %352 = vst [vmem:[#allocation2 + $0x28] sm:$0xff] 0.0
          %353 = vst [vmem:[#allocation2 + $0x30] sm:$0xff] 0.0
          %354 = vst [vmem:[#allocation2 + $0x38] sm:$0xff] 0.0
        $region74: #{flux_forward.22} parent=65 // pred_fallthru
          _
        %v355 = vld [vmem:[#allocation2] sm:$0xff]
        %v356 = vld [vmem:[#allocation2 + $0x8] sm:$0xff]
        %v357 = vld [vmem:[#allocation2 + $0x10] sm:$0xff]
        %v358 = vld [vmem:[#allocation2 + $0x18] sm:$0xff]
        %v359 = vld [vmem:[#allocation2 + $0x20] sm:$0xff]
        %v360 = vld [vmem:[#allocation2 + $0x28] sm:$0xff]
        %v361 = vld [vmem:[#allocation2 + $0x30] sm:$0xff]
        %v362 = vld [vmem:[#allocation2 + $0x38] sm:$0xff]
        %v363 = vld [vmem:[%s331] sm:$0xf]
        %v364 = vld [vmem:[%s331 + $0x4] sm:$0xf]
        %v365 = vld [vmem:[%s331 + $0x8] sm:$0xf]
        %v366 = vld [vmem:[%s331 + $0xc] sm:$0xf]
        %v367 = vld [vmem:[%s292] sm:$0xff]
        %v368 = vld [vmem:[%s292 + $0x8] sm:$0xff]
        %v369 = vld [vmem:[%s292 + $0x10] sm:$0xff]
        %v370 = vld [vmem:[%s292 + $0x18] sm:$0xff]
        %v371 = vld [vmem:[%s292 + $0x20] sm:$0xff]
        %v372 = vld [vmem:[%s292 + $0x28] sm:$0xff]
        %v373 = vld [vmem:[%s292 + $0x30] sm:$0xff]
        %v374 = vld [vmem:[%s292 + $0x38] sm:$0xff]
        %v375 = vld [vmem:[%s292 + $0x40] sm:$0xff]
        %v376 = vld [vmem:[%s292 + $0x48] sm:$0xff]
        %v377 = vld [vmem:[%s292 + $0x50] sm:$0xff]
        %v378 = vld [vmem:[%s292 + $0x58] sm:$0xff]
        %v379 = vld [vmem:[%s292 + $0x60] sm:$0xff]
        %v380 = vld [vmem:[%s292 + $0x68] sm:$0xff]
        %v381 = vld [vmem:[%s292 + $0x70] sm:$0xff]
        %v382 = vld [vmem:[%s292 + $0x78] sm:$0xff]
        %v387 = vunpack.c.l.b16 %v363
        %v388 = vunpack.c.l.b16 %v364
        %v389 = vunpack.c.l.b16 %v365
        %v390 = vunpack.c.l.b16 %v366
        %v391 = vpack.c.b16 %v388, %v387
        %v392 = vpack.c.b16 %v390, %v389
        %v411 = vunpack.c.l.b16 %v367
        %v412 = vunpack.c.h.b16 %v367
        %v413 = vunpack.c.l.b16 %v368
        %v414 = vunpack.c.h.b16 %v368
        %v415 = vunpack.c.l.b16 %v369
        %v416 = vunpack.c.h.b16 %v369
        %v417 = vunpack.c.l.b16 %v370
        %v418 = vunpack.c.h.b16 %v370
        %v419 = vunpack.c.l.b16 %v371
        %v420 = vunpack.c.h.b16 %v371
        %v421 = vunpack.c.l.b16 %v372
        %v422 = vunpack.c.h.b16 %v372
        %v423 = vunpack.c.l.b16 %v373
        %v424 = vunpack.c.h.b16 %v373
        %v425 = vunpack.c.l.b16 %v374
        %v426 = vunpack.c.h.b16 %v374
        %v427 = vunpack.c.l.b16 %v375
        %v428 = vunpack.c.h.b16 %v375
        %v429 = vunpack.c.l.b16 %v376
        %v430 = vunpack.c.h.b16 %v376
        %v431 = vunpack.c.l.b16 %v377
        %v432 = vunpack.c.h.b16 %v377
        %v433 = vunpack.c.l.b16 %v378
        %v434 = vunpack.c.h.b16 %v378
        %v435 = vunpack.c.l.b16 %v379
        %v436 = vunpack.c.h.b16 %v379
        %v437 = vunpack.c.l.b16 %v380
        %v438 = vunpack.c.h.b16 %v380
        %v439 = vunpack.c.l.b16 %v381
        %v440 = vunpack.c.h.b16 %v381
        %v441 = vunpack.c.l.b16 %v382
        %v442 = vunpack.c.h.b16 %v382
        %v443 = vpack.c.b16 %v413, %v411
        %v444 = vpack.c.b16 %v414, %v412
        %v445 = vpack.c.b16 %v417, %v415
        %v446 = vpack.c.b16 %v418, %v416
        %v447 = vpack.c.b16 %v421, %v419
        %v448 = vpack.c.b16 %v422, %v420
        %v449 = vpack.c.b16 %v425, %v423
        %v450 = vpack.c.b16 %v426, %v424
        %v451 = vpack.c.b16 %v429, %v427
        %v452 = vpack.c.b16 %v430, %v428
        %v453 = vpack.c.b16 %v433, %v431
        %v454 = vpack.c.b16 %v434, %v432
        %v455 = vpack.c.b16 %v437, %v435
        %v456 = vpack.c.b16 %v438, %v436
        %v457 = vpack.c.b16 %v441, %v439
        %v458 = vpack.c.b16 %v442, %v440
        %475 = vmatprep.subr.bf16.mxu0 %v444
        %476 = vmatpush1.bf16.msra.mxu0 %v443
        %477 = vmatprep.subr.bf16.mxu0 %v446
        %478 = vmatpush1.bf16.msra.mxu0 %v445
        %479 = vmatprep.subr.bf16.mxu0 %v448
        %480 = vmatpush1.bf16.msra.mxu0 %v447
        %481 = vmatprep.subr.bf16.mxu0 %v450
        %482 = vmatpush1.bf16.msra.mxu0 %v449
        %483 = vmatprep.subr.bf16.mxu0 %v452
        %484 = vmatpush1.bf16.msra.mxu0 %v451
        %485 = vmatprep.subr.bf16.mxu0 %v454
        %486 = vmatpush1.bf16.msra.mxu0 %v453
        %487 = vmatprep.subr.bf16.mxu0 %v456
        %488 = vmatpush1.bf16.msra.mxu0 %v455
        %489 = vmatprep.subr.bf16.mxu0 %v458
        %490 = vmatpush1.bf16.msra.mxu0 %v457
        %491 = vmatprep.subr.bf16.mxu0 0
        %492 = vmatpush1.bf16.msra.mxu0 0
        %493 = vmatprep.subr.bf16.mxu0 0
        %494 = vmatpush1.bf16.msra.mxu0 0
        %495 = vmatprep.subr.bf16.mxu0 0
        %496 = vmatpush1.bf16.msra.mxu0 0
        %497 = vmatprep.subr.bf16.mxu0 0
        %498 = vmatpush1.bf16.msra.mxu0 0
        %499 = vmatprep.subr.bf16.mxu0 0
        %500 = vmatpush1.bf16.msra.mxu0 0
        %501 = vmatprep.subr.bf16.mxu0 0
        %502 = vmatpush1.bf16.msra.mxu0 0
        %503 = vmatprep.subr.bf16.mxu0 0
        %504 = vmatpush1.bf16.msra.mxu0 0
        %505 = vmatprep.subr.bf16.mxu0 0
        %506 = vmatpush1.bf16.msra.mxu0 0
        %507 = vmatprep.mubr.bf16.mxu0 0
        %508 = vmatmul.mubr.bf16.gmra.mrb[0].mxu0 %v391
        %v509 = vpop.f32.mrb[0].mxu0
        %v510 = vadd.f32 0.0, %v509
        %v511 = vpop.f32.mrb[0].mxu0
        %v512 = vadd.f32 0.0, %v511
        %v513 = vpop.f32.mrb[0].mxu0
        %v514 = vadd.f32 0.0, %v513
        %v515 = vpop.f32.mrb[0].mxu0
        %v516 = vadd.f32 0.0, %v515
        %517 = vmatprep.mubr.bf16.mxu0 0
        %518 = vmatmul.mubr.bf16.gmra.mrb[0].mxu0 %v392
        %v519 = vpop.f32.mrb[0].mxu0
        %v520 = vadd.f32 0.0, %v519
        %v521 = vpop.f32.mrb[0].mxu0
        %v522 = vadd.f32 0.0, %v521
        %v523 = vpop.f32.mrb[0].mxu0
        %v524 = vadd.f32 0.0, %v523
        %v525 = vpop.f32.mrb[0].mxu0
        %v526 = vadd.f32 0.0, %v525
        %527 = vdwg.mxu0
        %v528 = vadd.f32 %v355, %v510
        %v529 = vadd.f32 %v356, %v512
        %v530 = vadd.f32 %v357, %v514
        %v531 = vadd.f32 %v358, %v516
        %v532 = vadd.f32 %v359, %v520
        %v533 = vadd.f32 %v360, %v522
        %v534 = vadd.f32 %v361, %v524
        %v535 = vadd.f32 %v362, %v526
        %536 = vst [vmem:[#allocation2] sm:$0xff] %v528
        %537 = vst [vmem:[#allocation2 + $0x8] sm:$0xff] %v529
        %538 = vst [vmem:[#allocation2 + $0x10] sm:$0xff] %v530
        %539 = vst [vmem:[#allocation2 + $0x18] sm:$0xff] %v531
        %540 = vst [vmem:[#allocation2 + $0x20] sm:$0xff] %v532
        %541 = vst [vmem:[#allocation2 + $0x28] sm:$0xff] %v533
        %542 = vst [vmem:[#allocation2 + $0x30] sm:$0xff] %v534
        %543 = vst [vmem:[#allocation2 + $0x38] sm:$0xff] %v535
        // Predicated region
        $region75: #{flux_forward.22} parent=65 // pred_check
          %p544 = pneg %p343
        $region76: #{flux_forward.22} parent=65 // pred_check_branch
          %546 = sbr.rel (%p544) target = $region78
        $region77: #{flux_forward.22} parent=65 // pred_region
          %v547 = vld [vmem:[#allocation2] sm:$0xff]
          %v548 = vld [vmem:[#allocation2 + $0x8] sm:$0xff]
          %v549 = vld [vmem:[#allocation2 + $0x10] sm:$0xff]
          %v550 = vld [vmem:[#allocation2 + $0x18] sm:$0xff]
          %v551 = vld [vmem:[#allocation2 + $0x20] sm:$0xff]
          %v552 = vld [vmem:[#allocation2 + $0x28] sm:$0xff]
          %v553 = vld [vmem:[#allocation2 + $0x30] sm:$0xff]
          %v554 = vld [vmem:[#allocation2 + $0x38] sm:$0xff]
          %v555 = vld [vmem:[%s338] sm:$0x3]
          %v557 = vlaneseq
          %v558 = vshrl.u32 %v557, 7
          %v559 = vsub.s32 0, %v558
          %v560 = vrot.slane %v555, %v559
          %v561 = vlaneseq
          %v562 = vshrl.u32 %v561, 7
          %v563 = vsub.s32 1, %v562
          %v564 = vrot.slane %v555, %v563
          %v567 = vadd.f32 %v547, %v560
          %v568 = vadd.f32 %v548, %v564
          %v569 = vadd.f32 %v549, %v560
          %v570 = vadd.f32 %v550, %v564
          %v571 = vadd.f32 %v551, %v560
          %v572 = vadd.f32 %v552, %v564
          %v573 = vadd.f32 %v553, %v560
          %v574 = vadd.f32 %v554, %v564
          %v575 = vmul.f32 %v567, 0.5
          %v576 = vmul.f32 %v568, 0.5
          %v577 = vmul.f32 %v569, 0.5
          %v578 = vmul.f32 %v570, 0.5
          %v579 = vmul.f32 %v571, 0.5
          %v580 = vmul.f32 %v572, 0.5
          %v581 = vmul.f32 %v573, 0.5
          %v582 = vmul.f32 %v574, 0.5
          %v583 = vmul.f32 %v567, 0.044715
          %v584 = vmul.f32 %v568, 0.044715
          %v585 = vmul.f32 %v569, 0.044715
          %v586 = vmul.f32 %v570, 0.044715
          %v587 = vmul.f32 %v571, 0.044715
          %v588 = vmul.f32 %v572, 0.044715
          %v589 = vmul.f32 %v573, 0.044715
          %v590 = vmul.f32 %v574, 0.044715
          %v591 = vmul.f32 %v583, %v567
          %v592 = vmul.f32 %v584, %v568
          %v593 = vmul.f32 %v585, %v569
          %v594 = vmul.f32 %v586, %v570
          %v595 = vmul.f32 %v587, %v571
          %v596 = vmul.f32 %v588, %v572
          %v597 = vmul.f32 %v589, %v573
          %v598 = vmul.f32 %v590, %v574
          %v599 = vmul.f32 %v591, %v567
          %v600 = vmul.f32 %v592, %v568
          %v601 = vmul.f32 %v593, %v569
          %v602 = vmul.f32 %v594, %v570
          %v603 = vmul.f32 %v595, %v571
          %v604 = vmul.f32 %v596, %v572
          %v605 = vmul.f32 %v597, %v573
          %v606 = vmul.f32 %v598, %v574
          %v607 = vadd.f32 %v567, %v599
          %v608 = vadd.f32 %v568, %v600
          %v609 = vadd.f32 %v569, %v601
          %v610 = vadd.f32 %v570, %v602
          %v611 = vadd.f32 %v571, %v603
          %v612 = vadd.f32 %v572, %v604
          %v613 = vadd.f32 %v573, %v605
          %v614 = vadd.f32 %v574, %v606
          %v615 = vmul.f32 %v607, 0.7978846
          %v616 = vmul.f32 %v608, 0.7978846
          %v617 = vmul.f32 %v609, 0.7978846
          %v618 = vmul.f32 %v610, 0.7978846
          %v619 = vmul.f32 %v611, 0.7978846
          %v620 = vmul.f32 %v612, 0.7978846
          %v621 = vmul.f32 %v613, 0.7978846
          %v622 = vmul.f32 %v614, 0.7978846
          %v623 = vtanh.pop %v615
          %v624 = vtanh.pop %v616
          %v625 = vtanh.pop %v617
          %v626 = vtanh.pop %v618
          %v627 = vtanh.pop %v619
          %v628 = vtanh.pop %v620
          %v629 = vtanh.pop %v621
          %v630 = vtanh.pop %v622
          %v631 = vadd.f32 %v623, 1.0
          %v632 = vadd.f32 %v624, 1.0
          %v633 = vadd.f32 %v625, 1.0
          %v634 = vadd.f32 %v626, 1.0
          %v635 = vadd.f32 %v627, 1.0
          %v636 = vadd.f32 %v628, 1.0
          %v637 = vadd.f32 %v629, 1.0
          %v638 = vadd.f32 %v630, 1.0
          %v639 = vmul.f32 %v575, %v631
          %v640 = vmul.f32 %v576, %v632
          %v641 = vmul.f32 %v577, %v633
          %v642 = vmul.f32 %v578, %v634
          %v643 = vmul.f32 %v579, %v635
          %v644 = vmul.f32 %v580, %v636
          %v645 = vmul.f32 %v581, %v637
          %v646 = vmul.f32 %v582, %v638
          %647 = vst [vmem:[%s323] sm:$0xff] %v639
          %648 = vst [vmem:[%s323 + $0x8] sm:$0xff] %v640
          %649 = vst [vmem:[%s323 + $0x10] sm:$0xff] %v641
          %650 = vst [vmem:[%s323 + $0x18] sm:$0xff] %v642
          %651 = vst [vmem:[%s323 + $0x20] sm:$0xff] %v643
          %652 = vst [vmem:[%s323 + $0x28] sm:$0xff] %v644
          %653 = vst [vmem:[%s323 + $0x30] sm:$0xff] %v645
          %654 = vst [vmem:[%s323 + $0x38] sm:$0xff] %v646
        $region78: #{flux_forward.22} parent=65 // pred_fallthru
          _
        %s655 = sand.u32 %s125, 1
        %s656 = sand.u32 %s125, 1
        %s657 = smul.addr %s656, 64
        %s658 = scalar_lea.vmem [#allocation4], %s657
        // Predicated region
        $region79: #{flux_forward.22} parent=65 // pred_check
          %p659 = pneg %p135
        $region80: #{flux_forward.22} parent=65 // pred_check_branch
          %661 = sbr.rel (%p659) target = $region82
        $region81: #{flux_forward.22} parent=65 // pred_region
          %s662 = smul.u32 4, %s19
          %s663 = smul.u32 2, %s20
          %s664 = smul.addr %s662, 4
          %s665 = sadd.s32 %s663, %s664
          %s666 = smul.addr %s665, 8
          %s667 = scalar_lea.vmem %s3, %s666
          // Predicated region
          $region83: #{flux_forward.22} parent=81 // pred_check
            _
          $region84: #{flux_forward.22} parent=81 // pred_check_branch
            %669 = sbr.rel (0) target = $region86
          $region85: #{flux_forward.22} parent=81 // pred_region
            // Predicated region
            $region87: #{flux_forward.22} parent=85 // pred_check
              _
            $region88: #{flux_forward.22} parent=85 // pred_check_branch
              %671 = sbr.rel (0) target = $region90
            $region89: #{flux_forward.22} parent=85 // pred_region
              loop: start=0, step=1, limit=1
              $region91: #{flux_forward.22} parent=89 // loop_pre_header
                _
              $region92: #{flux_forward.22} parent=89 // loop_header
                %s673 = sphi 0, %s677
                %p674 = scmp.ge.s32.totalorder %s673, 1
                %s678 = sphi %s658, %s658
                %s679 = sphi %s667, %s667
              $region93: #{flux_forward.22} parent=89 // loop_header_branch
                %676 = sbr.rel (%p674) target = $region97
              $region94: #{flux_forward.22} parent=89 // loop_body
                %v680 = vld [vmem:[%s678] sm:$0xff]
                %681 = vst [vmem:[%s679] sm:$0xff] %v680
                %v682 = vld [vmem:[%s678 + $0x8] sm:$0xff]
                %683 = vst [vmem:[%s679 + $0x8] sm:$0xff] %v682
                %v684 = vld [vmem:[%s678 + $0x10] sm:$0xff]
                %685 = vst [vmem:[%s679 + $0x20] sm:$0xff] %v684
                %v686 = vld [vmem:[%s678 + $0x18] sm:$0xff]
                %687 = vst [vmem:[%s679 + $0x28] sm:$0xff] %v686
                %v688 = vld [vmem:[%s678 + $0x20] sm:$0xff]
                %689 = vst [vmem:[%s679 + $0x40] sm:$0xff] %v688
                %v690 = vld [vmem:[%s678 + $0x28] sm:$0xff]
                %691 = vst [vmem:[%s679 + $0x48] sm:$0xff] %v690
                %v692 = vld [vmem:[%s678 + $0x30] sm:$0xff]
                %693 = vst [vmem:[%s679 + $0x60] sm:$0xff] %v692
                %v694 = vld [vmem:[%s678 + $0x38] sm:$0xff]
                %695 = vst [vmem:[%s679 + $0x68] sm:$0xff] %v694
              $region95: #{flux_forward.22} parent=89 // loop_footer
                %s677 = sadd.s32 1, %s673
              $region96: #{flux_forward.22} parent=89 // loop_footer_branch
                %672 = sbr.rel target = $region92
              $region97: #{flux_forward.22} parent=89 // loop_exit
                _
            $region90: #{flux_forward.22} parent=85 // pred_fallthru
              _
            // Predicated region
            $region98: #{flux_forward.22} parent=85 // pred_check
              _
            $region99: #{flux_forward.22} parent=85 // pred_check_branch
              %697 = sbr.rel target = $region101
            $region100: #{flux_forward.22} parent=85 // pred_region
              _
            $region101: #{flux_forward.22} parent=85 // pred_fallthru
              _
          $region86: #{flux_forward.22} parent=81 // pred_fallthru
            _
          %698 = vnop
        $region82: #{flux_forward.22} parent=65 // pred_fallthru
          _
      $region66: #{flux_forward.22} parent=5 // pred_fallthru
        _
      %p699 = scmp.le.s32.totalorder 2, %s9
      // Predicated region
      $region102: #{flux_forward.22} parent=5 // pred_check
        %p700 = pneg %p699
      $region103: #{flux_forward.22} parent=5 // pred_check_branch
        %702 = sbr.rel (%p700) target = $region105
      $region104: #{flux_forward.22} parent=5 // pred_region
        %s703 = ssub.s32 %s9, 2
        // Predicated region
        $region106: #{flux_forward.22} parent=104 // pred_check
          %p704 = pneg %p141
        $region107: #{flux_forward.22} parent=104 // pred_check_branch
          %706 = sbr.rel (%p704) target = $region109
        $region108: #{flux_forward.22} parent=104 // pred_region
          %s707 = sand.u32 %s126, 1
          %s708 = sand.u32 %s126, 1
          %s709 = smul.addr %s708, 64
          %s710 = scalar_lea.vmem [#allocation4], %s709
        $region109: #{flux_forward.22} parent=104 // pred_fallthru
          _
      $region105: #{flux_forward.22} parent=5 // pred_fallthru
        _
    $region6: #{flux_forward.22} parent=1 // loop_footer
      %s13 = sadd.s32 1, %s9
    $region7: #{flux_forward.22} parent=1 // loop_footer_branch
      %8 = sbr.rel target = $region3
    $region8: #{flux_forward.22} parent=1 // loop_exit
      _

// kernel: flux_forward.27
$region0: #{flux_forward.27}
  #allocation0 [shape = 'u32[]', space=smem, size = 0x4, offset = 0x4, fixed_abs, tag = 'smem constant byte address 0x4 - core index']
  #allocation1 [shape = 'u32[144,128]{1,0:T(1,128)}', space=vmem, size = 0x12000, scoped, tag = 'internal scratch']
  #allocation2 [shape = 'f32[48,256]{1,0:T(8,128)}', space=vmem, size = 0xc000, scoped, tag = 'scratch operand']
  %s0 = inlined_call_operand.vmem [shape: bf16[48,128], index: 0, kind: input, shape index: {}]
  %s1 = inlined_call_operand.vmem [shape: bf16[128,512], index: 1, kind: input, shape index: {}]
  %s2 = inlined_call_operand.vmem [shape: f32[1,512], index: 2, kind: input, shape index: {}]
  %s3 = inlined_call_operand.vmem [shape: f32[48,512], index: 3, kind: output, shape index: {}]
  %s4 = sld [smem:[#allocation0]]
  $region110: #{flux_forward.27} parent=0
    _
  %s6 = ssub.s32 1, %s4
  %s7 = scalar_select 0, %s6, %s4
  $region1: #{flux_forward.27} parent=0
    #allocation3 [shape = 'u8[131072]{0}', space=vmem, size = 0x20000, scoped, tag = 'input window, operand 1']
    #allocation4 [shape = 'u8[98304]{0}', space=vmem, size = 0x18000, scoped, tag = 'output window, operand 0']
    loop: start=0, step=1, limit=4
    $region2: #{flux_forward.27} parent=1 // loop_pre_header
      _
    $region3: #{flux_forward.27} parent=1 // loop_header
      %s9 = sphi 0, %s13
      %p10 = scmp.ge.s32.totalorder %s9, 4
      %s16 = sphi 0, %s35
      %s17 = sphi 0, %s31
      %s18 = sphi 0, %s27
      %s19 = sphi 0, %s16
      %s20 = sphi 0, %s17
      %s21 = sphi 0, %s18
      %s22 = sphi 0, %s19
      %s23 = sphi 0, %s20
      %s24 = sphi 0, %s21
      %s40 = sphi 0, %s42
      %s43 = sphi 0, %s40
      %s44 = sphi 0, %s43
      %s60 = sphi 0, %s44
      %s68 = sphi 0, %s70
      %s71 = sphi 0, %s68
      %s72 = sphi 0, %s71
      %s88 = sphi 0, %s72
      %s94 = sphi 0, %s96
      %s97 = sphi 0, %s94
      %s98 = sphi 0, %s97
      %s114 = sphi 0, %s98
      %s122 = sphi 0, %s124
      %s125 = sphi 0, %s122
      %s126 = sphi 0, %s125
      %s142 = sphi 0, %s126
    $region4: #{flux_forward.27} parent=1 // loop_header_branch
      %12 = sbr.rel (%p10) target = $region8
    $region5: #{flux_forward.27} parent=1 // loop_body
      %s14 = ssub.s32 %s9, 1
      %s15 = ssub.s32 %s9, 2
      %s25 = sadd.s32 1, %s18
      %p26 = scmp.ge.s32.totalorder %s25, 1
      %s27 = scalar_select %p26, 0, %s25
      %s28 = sadd.s32 1, %s17
      %s29 = scalar_select %p26, %s28, %s17
      %p30 = scmp.ge.s32.totalorder %s29, 2
      %s31 = scalar_select %p30, 0, %s29
      %s32 = sadd.s32 1, %s16
      %s33 = scalar_select %p30, %s32, %s16
      %p34 = scmp.ge.s32.totalorder %s33, 1
      %s35 = scalar_select %p34, 0, %s33
      %s36 = ssub.s32 %s16, %s35
      %s37 = ssub.s32 %s18, %s27
      %s38 = sor.u32 %s36, %s37
      %p39 = scmp.eq.s32.totalorder %s38, 0
      %s41 = sadd.s32 %s40, 1
      %s42 = scalar_select %p39, %s40, %s41
      %p45 = pneg %p39
      %p46 = scmp.eq.s32.totalorder %s9, 1
      %p47 = por %p45, %p46
      %p48 = scmp.ne.s32.totalorder %s40, %s43
      %p49 = scmp.eq.s32.totalorder %s9, 0
      %p50 = por %p48, %p49
      %p51 = scmp.ne.s32.totalorder %s40, %s43
      %p52 = scmp.eq.s32.totalorder %s14, 1
      %p53 = por %p51, %p52
      %p54 = scmp.ne.s32.totalorder %s43, %s44
      %p55 = scmp.eq.s32.totalorder %s14, 0
      %p56 = por %p54, %p55
      %p57 = scmp.ne.s32.totalorder %s43, %s44
      %p58 = scmp.eq.s32.totalorder %s15, 1
      %p59 = por %p57, %p58
      %p61 = scmp.ne.s32.totalorder %s44, %s60
      %p62 = scmp.eq.s32.totalorder %s15, 0
      %p63 = por %p61, %p62
      %s64 = ssub.s32 %s18, %s27
      %s65 = ssub.s32 %s17, %s31
      %s66 = sor.u32 %s64, %s65
      %p67 = scmp.eq.s32.totalorder %s66, 0
      %s69 = sadd.s32 %s68, 1
      %s70 = scalar_select %p67, %s68, %s69
      %p73 = pneg %p67
      %p74 = scmp.eq.s32.totalorder %s9, 1
      %p75 = por %p73, %p74
      %p76 = scmp.ne.s32.totalorder %s68, %s71
      %p77 = scmp.eq.s32.totalorder %s9, 0
      %p78 = por %p76, %p77
      %p79 = scmp.ne.s32.totalorder %s68, %s71
      %p80 = scmp.eq.s32.totalorder %s14, 1
      %p81 = por %p79, %p80
      %p82 = scmp.ne.s32.totalorder %s71, %s72
      %p83 = scmp.eq.s32.totalorder %s14, 0
      %p84 = por %p82, %p83
      %p85 = scmp.ne.s32.totalorder %s71, %s72
      %p86 = scmp.eq.s32.totalorder %s15, 1
      %p87 = por %p85, %p86
      %p89 = scmp.ne.s32.totalorder %s72, %s88
      %p90 = scmp.eq.s32.totalorder %s15, 0
      %p91 = por %p89, %p90
      %s92 = ssub.s32 %s17, %s31
      %p93 = scmp.eq.s32.totalorder %s92, 0
      %s95 = sadd.s32 %s94, 1
      %s96 = scalar_select %p93, %s94, %s95
      %p99 = pneg %p93
      %p100 = scmp.eq.s32.totalorder %s9, 1
      %p101 = por %p99, %p100
      %p102 = scmp.ne.s32.totalorder %s94, %s97
      %p103 = scmp.eq.s32.totalorder %s9, 0
      %p104 = por %p102, %p103
      %p105 = scmp.ne.s32.totalorder %s94, %s97
      %p106 = scmp.eq.s32.totalorder %s14, 1
      %p107 = por %p105, %p106
      %p108 = scmp.ne.s32.totalorder %s97, %s98
      %p109 = scmp.eq.s32.totalorder %s14, 0
      %p110 = por %p108, %p109
      %p111 = scmp.ne.s32.totalorder %s97, %s98
      %p112 = scmp.eq.s32.totalorder %s15, 1
      %p113 = por %p111, %p112
      %p115 = scmp.ne.s32.totalorder %s98, %s114
      %p116 = scmp.eq.s32.totalorder %s15, 0
      %p117 = por %p115, %p116
      %s118 = ssub.s32 %s16, %s35
      %s119 = ssub.s32 %s17, %s31
      %s120 = sor.u32 %s118, %s119
      %p121 = scmp.eq.s32.totalorder %s120, 0
      %s123 = sadd.s32 %s122, 1
      %s124 = scalar_select %p121, %s122, %s123
      %p127 = pneg %p121
      %p128 = scmp.eq.s32.totalorder %s9, 1
      %p129 = por %p127, %p128
      %p130 = scmp.ne.s32.totalorder %s122, %s125
      %p131 = scmp.eq.s32.totalorder %s9, 0
      %p132 = por %p130, %p131
      %p133 = scmp.ne.s32.totalorder %s122, %s125
      %p134 = scmp.eq.s32.totalorder %s14, 1
      %p135 = por %p133, %p134
      %p136 = scmp.ne.s32.totalorder %s125, %s126
      %p137 = scmp.eq.s32.totalorder %s14, 0
      %p138 = por %p136, %p137
      %p139 = scmp.ne.s32.totalorder %s125, %s126
      %p140 = scmp.eq.s32.totalorder %s15, 1
      %p141 = por %p139, %p140
      %p143 = scmp.ne.s32.totalorder %s126, %s142
      %p144 = scmp.eq.s32.totalorder %s15, 0
      %p145 = por %p143, %p144
      %p146 = scmp.le.s32.totalorder 1, %s9
      %p147 = scmp.lt.s32.totalorder %s9, 3
      %p148 = pnand %p146, %p147
      %p149 = pneg %p148
      // Predicated region
      $region9: #{flux_forward.27} parent=5 // pred_check
        _
      $region10: #{flux_forward.27} parent=5 // pred_check_branch
        %151 = sbr.rel (%p148) target = $region12
      $region11: #{flux_forward.27} parent=5 // pred_region
        %s152 = ssub.s32 %s9, 1
        // Predicated region
        $region13: #{flux_forward.27} parent=11 // pred_check
          %p153 = pneg %p56
        $region14: #{flux_forward.27} parent=11 // pred_check_branch
          %155 = sbr.rel (%p153) target = $region16
        $region15: #{flux_forward.27} parent=11 // pred_region
          %s156 = smul.u32 6, %s19
          %p157 = scmp.lt.s32.totalorder %s156, 5
          %s158 = scalar_select %p157, %s156, 5
          %p159 = scmp.lt.s32.totalorder %s21, 0
          %s160 = scalar_select %p159, %s21, 0
          %s161 = sadd.s32 %s160, %s158
          %s162 = smul.addr %s161, 4
          %s163 = scalar_lea.vmem %s0, %s162
          %s164 = smul.u32 6, %s19
        $region16: #{flux_forward.27} parent=11 // pred_fallthru
          _
      $region12: #{flux_forward.27} parent=5 // pred_fallthru
        _
      %p165 = scmp.lt.s32.totalorder %s9, 2
      // Predicated region
      $region17: #{flux_forward.27} parent=5 // pred_check
        %p166 = pneg %p165
      $region18: #{flux_forward.27} parent=5 // pred_check_branch
        %168 = sbr.rel (%p166) target = $region20
      $region19: #{flux_forward.27} parent=5 // pred_region
        // Predicated region
        $region21: #{flux_forward.27} parent=19 // pred_check
          %p169 = pneg %p78
        $region22: #{flux_forward.27} parent=19 // pred_check_branch
          %171 = sbr.rel (%p169) target = $region24
        $region23: #{flux_forward.27} parent=19 // pred_region
          %s172 = sand.u32 %s68, 1
          %s173 = sand.u32 %s68, 1
          %s174 = smul.addr %s173, 128
          %s175 = scalar_lea.vmem [#allocation3], %s174
          %s176 = smul.u32 16, %s18
          %s177 = smul.u32 2, %s17
          %s178 = smul.addr %s176, 4
          %s179 = sadd.s32 %s177, %s178
          %s180 = smul.addr %s179, 4
          %s181 = scalar_lea.vmem %s1, %s180
          // Predicated region
          $region25: #{flux_forward.27} parent=23 // pred_check
            _
          $region26: #{flux_forward.27} parent=23 // pred_check_branch
            %183 = sbr.rel (0) target = $region28
          $region27: #{flux_forward.27} parent=23 // pred_region
            // Predicated region
            $region29: #{flux_forward.27} parent=27 // pred_check
              _
            $region30: #{flux_forward.27} parent=27 // pred_check_branch
              %185 = sbr.rel (0) target = $region32
            $region31: #{flux_forward.27} parent=27 // pred_region
              // Predicated region
              $region44: #{flux_forward.27} parent=31 // pred_check
                _
              $region45: #{flux_forward.27} parent=31 // pred_check_branch
                %230 = sbr.rel (0) target = $region47
              $region46: #{flux_forward.27} parent=31 // pred_region
                loop: start=0, step=1, limit=1
                $region48: #{flux_forward.27} parent=46 // loop_pre_header
                  _
                $region49: #{flux_forward.27} parent=46 // loop_header
                  %s232 = sphi 0, %s236
                  %p233 = scmp.ge.s32.totalorder %s232, 1
                  %s237 = sphi %s181, %s181
                  %s238 = sphi %s175, %s175
                $region50: #{flux_forward.27} parent=46 // loop_header_branch
                  %235 = sbr.rel (%p233) target = $region54
                $region51: #{flux_forward.27} parent=46 // loop_body
                  %v239 = vld [vmem:[%s237] sm:$0xff]
                  %240 = vst [vmem:[%s238] sm:$0xff] %v239
                  %v241 = vld [vmem:[%s237 + $0x10] sm:$0xff]
                  %242 = vst [vmem:[%s238 + $0x8] sm:$0xff] %v241
                  %v243 = vld [vmem:[%s237 + $0x20] sm:$0xff]
                  %244 = vst [vmem:[%s238 + $0x10] sm:$0xff] %v243
                  %v245 = vld [vmem:[%s237 + $0x30] sm:$0xff]
                  %246 = vst [vmem:[%s238 + $0x18] sm:$0xff] %v245
                  %v247 = vld [vmem:[%s237 + $0x40] sm:$0xff]
                  %248 = vst [vmem:[%s238 + $0x20] sm:$0xff] %v247
                  %v249 = vld [vmem:[%s237 + $0x50] sm:$0xff]
                  %250 = vst [vmem:[%s238 + $0x28] sm:$0xff] %v249
                  %v251 = vld [vmem:[%s237 + $0x60] sm:$0xff]
                  %252 = vst [vmem:[%s238 + $0x30] sm:$0xff] %v251
                  %v253 = vld [vmem:[%s237 + $0x70] sm:$0xff]
                  %254 = vst [vmem:[%s238 + $0x38] sm:$0xff] %v253
                  %v255 = vld [vmem:[%s237 + $0x80] sm:$0xff]
                  %256 = vst [vmem:[%s238 + $0x40] sm:$0xff] %v255
                  %v257 = vld [vmem:[%s237 + $0x90] sm:$0xff]
                  %258 = vst [vmem:[%s238 + $0x48] sm:$0xff] %v257
                  %v259 = vld [vmem:[%s237 + $0xa0] sm:$0xff]
                  %260 = vst [vmem:[%s238 + $0x50] sm:$0xff] %v259
                  %v261 = vld [vmem:[%s237 + $0xb0] sm:$0xff]
                  %262 = vst [vmem:[%s238 + $0x58] sm:$0xff] %v261
                  %v263 = vld [vmem:[%s237 + $0xc0] sm:$0xff]
                  %264 = vst [vmem:[%s238 + $0x60] sm:$0xff] %v263
                  %v265 = vld [vmem:[%s237 + $0xd0] sm:$0xff]
                  %266 = vst [vmem:[%s238 + $0x68] sm:$0xff] %v265
                  %v267 = vld [vmem:[%s237 + $0xe0] sm:$0xff]
                  %268 = vst [vmem:[%s238 + $0x70] sm:$0xff] %v267
                  %v269 = vld [vmem:[%s237 + $0xf0] sm:$0xff]
                  %270 = vst [vmem:[%s238 + $0x78] sm:$0xff] %v269
                $region52: #{flux_forward.27} parent=46 // loop_footer
                  %s236 = sadd.s32 1, %s232
                $region53: #{flux_forward.27} parent=46 // loop_footer_branch
                  %231 = sbr.rel target = $region49
                $region54: #{flux_forward.27} parent=46 // loop_exit
                  _
              $region47: #{flux_forward.27} parent=31 // pred_fallthru
                _
              // Predicated region
              $region55: #{flux_forward.27} parent=31 // pred_check
                _
              $region56: #{flux_forward.27} parent=31 // pred_check_branch
                %272 = sbr.rel target = $region58
              $region57: #{flux_forward.27} parent=31 // pred_region
                _
              $region58: #{flux_forward.27} parent=31 // pred_fallthru
                _
            $region32: #{flux_forward.27} parent=27 // pred_fallthru
              _
            // Predicated region
            $region33: #{flux_forward.27} parent=27 // pred_check
              _
            $region34: #{flux_forward.27} parent=27 // pred_check_branch
              %187 = sbr.rel target = $region36
            $region35: #{flux_forward.27} parent=27 // pred_region
              loop: start=0, step=1, limit=1
              $region37: #{flux_forward.27} parent=35 // loop_pre_header
                _
              $region38: #{flux_forward.27} parent=35 // loop_header
                %s190 = sphi 0, %s194
                %p191 = scmp.ge.s32.totalorder %s190, 1
                %s195 = sphi %s181, %s181
                %s196 = sphi %s175, %s175
              $region39: #{flux_forward.27} parent=35 // loop_header_branch
                %193 = sbr.rel (%p191) target = $region43
              $region40: #{flux_forward.27} parent=35 // loop_body
                %v197 = vld [vmem:[%s195] sm:$0xff]
                %198 = vst [vmem:[%s196] sm:$0xff] %v197
                %v199 = vld [vmem:[%s195 + $0x10] sm:$0xff]
                %200 = vst [vmem:[%s196 + $0x8] sm:$0xff] %v199
                %v201 = vld [vmem:[%s195 + $0x20] sm:$0xff]
                %202 = vst [vmem:[%s196 + $0x10] sm:$0xff] %v201
                %v203 = vld [vmem:[%s195 + $0x30] sm:$0xff]
                %204 = vst [vmem:[%s196 + $0x18] sm:$0xff] %v203
                %v205 = vld [vmem:[%s195 + $0x40] sm:$0xff]
                %206 = vst [vmem:[%s196 + $0x20] sm:$0xff] %v205
                %v207 = vld [vmem:[%s195 + $0x50] sm:$0xff]
                %208 = vst [vmem:[%s196 + $0x28] sm:$0xff] %v207
                %v209 = vld [vmem:[%s195 + $0x60] sm:$0xff]
                %210 = vst [vmem:[%s196 + $0x30] sm:$0xff] %v209
                %v211 = vld [vmem:[%s195 + $0x70] sm:$0xff]
                %212 = vst [vmem:[%s196 + $0x38] sm:$0xff] %v211
                %v213 = vld [vmem:[%s195 + $0x80] sm:$0xff]
                %214 = vst [vmem:[%s196 + $0x40] sm:$0xff] %v213
                %v215 = vld [vmem:[%s195 + $0x90] sm:$0xff]
                %216 = vst [vmem:[%s196 + $0x48] sm:$0xff] %v215
                %v217 = vld [vmem:[%s195 + $0xa0] sm:$0xff]
                %218 = vst [vmem:[%s196 + $0x50] sm:$0xff] %v217
                %v219 = vld [vmem:[%s195 + $0xb0] sm:$0xff]
                %220 = vst [vmem:[%s196 + $0x58] sm:$0xff] %v219
                %v221 = vld [vmem:[%s195 + $0xc0] sm:$0xff]
                %222 = vst [vmem:[%s196 + $0x60] sm:$0xff] %v221
                %v223 = vld [vmem:[%s195 + $0xd0] sm:$0xff]
                %224 = vst [vmem:[%s196 + $0x68] sm:$0xff] %v223
                %v225 = vld [vmem:[%s195 + $0xe0] sm:$0xff]
                %226 = vst [vmem:[%s196 + $0x70] sm:$0xff] %v225
                %v227 = vld [vmem:[%s195 + $0xf0] sm:$0xff]
                %228 = vst [vmem:[%s196 + $0x78] sm:$0xff] %v227
              $region41: #{flux_forward.27} parent=35 // loop_footer
                %s194 = sadd.s32 1, %s190
              $region42: #{flux_forward.27} parent=35 // loop_footer_branch
                %189 = sbr.rel target = $region38
              $region43: #{flux_forward.27} parent=35 // loop_exit
                _
            $region36: #{flux_forward.27} parent=27 // pred_fallthru
              _
          $region28: #{flux_forward.27} parent=23 // pred_fallthru
            _
          %273 = vnop
        $region24: #{flux_forward.27} parent=19 // pred_fallthru
          _
        // Predicated region
        $region59: #{flux_forward.27} parent=19 // pred_check
          %p274 = pneg %p104
        $region60: #{flux_forward.27} parent=19 // pred_check_branch
          %276 = sbr.rel (%p274) target = $region62
        $region61: #{flux_forward.27} parent=19 // pred_region
          %s277 = smul.u32 2, %s17
          %p278 = scmp.lt.s32.totalorder %s277, 3
          %s279 = scalar_select %p278, %s277, 3
          %s280 = scalar_lea.vmem %s2, %s279
          %s281 = smul.u32 2, %s17
        $region62: #{flux_forward.27} parent=19 // pred_fallthru
          _
      $region20: #{flux_forward.27} parent=5 // pred_fallthru
        _
      %p282 = scmp.le.s32.totalorder 1, %s9
      %p283 = scmp.lt.s32.totalorder %s9, 3
      %p284 = pnand %p282, %p283
      %p285 = pneg %p284
      // Predicated region
      $region63: #{flux_forward.27} parent=5 // pred_check
        _
      $region64: #{flux_forward.27} parent=5 // pred_check_branch
        %287 = sbr.rel (%p284) target = $region66
      $region65: #{flux_forward.27} parent=5 // pred_region
        %s288 = ssub.s32 %s9, 1
        %s289 = sand.u32 %s71, 1
        %s290 = sand.u32 %s71, 1
        %s291 = smul.addr %s290, 128
        %s292 = scalar_lea.vmem [#allocation3], %s291
        // Predicated region
        $region67: #{flux_forward.27} parent=65 // pred_check
          %p293 = pneg %p84
        $region68: #{flux_forward.27} parent=65 // pred_check_branch
          %295 = sbr.rel (%p293) target = $region70
        $region69: #{flux_forward.27} parent=65 // pred_region
          _
        $region70: #{flux_forward.27} parent=65 // pred_fallthru
          _
        %s296 = smul.u32 6, %s19
        %p297 = scmp.lt.s32.totalorder %s296, 5
        %s298 = scalar_select %p297, %s296, 5
        %p299 = scmp.lt.s32.totalorder %s21, 0
        %s300 = scalar_select %p299, %s21, 0
        %s301 = sadd.s32 %s300, %s298
        %s302 = smul.addr %s301, 4
        %s303 = scalar_lea.vmem %s0, %s302
        %p304 = pneg %p56
        %p305 = pneg %p53
        %s306 = sand.u32 %s71, 1
        %s307 = sand.u32 %s71, 1
        %s308 = smul.addr %s307, 128
        %s309 = scalar_lea.vmem [#allocation3], %s308
        %p310 = pneg %p84
        %p311 = pneg %p81
        %s312 = smul.u32 2, %s20
        %p313 = scmp.lt.s32.totalorder %s312, 3
        %s314 = scalar_select %p313, %s312, 3
        %s315 = scalar_lea.vmem %s2, %s314
        %p316 = pneg %p110
        %p317 = pneg %p107
        %p318 = pneg %p138
        %p319 = pneg %p135
        %s320 = sand.u32 %s125, 1
        %s321 = sand.u32 %s125, 1
        %s322 = smul.addr %s321, 96
        %s323 = scalar_lea.vmem [#allocation4], %s322
        %s324 = smul.u32 6, %s19
        %p325 = scmp.lt.s32.totalorder %s324, 5
        %s326 = scalar_select %p325, %s324, 5
        %p327 = scmp.lt.s32.totalorder %s21, 0
        %s328 = scalar_select %p327, %s21, 0
        %s329 = sadd.s32 %s328, %s326
        %s330 = smul.addr %s329, 4
        %s331 = scalar_lea.vmem %s0, %s330
        %s332 = smul.u32 6, %s19
        %s333 = smul.u32 16, %s21
        %s334 = smul.u32 2, %s20
        %s335 = smul.u32 2, %s20
        %p336 = scmp.lt.s32.totalorder %s335, 3
        %s337 = scalar_select %p336, %s335, 3
        %s338 = scalar_lea.vmem %s2, %s337
        %s339 = smul.u32 2, %s20
        %s340 = smul.u32 6, %s19
        %s341 = smul.u32 2, %s20
        %p343 = scmp.eq.s32.totalorder %s21, 0
        // Predicated region
        $region71: #{flux_forward.27} parent=65 // pred_check
          %p344 = pneg %p343
        $region72: #{flux_forward.27} parent=65 // pred_check_branch
          %346 = sbr.rel (%p344) target = $region74
        $region73: #{flux_forward.27} parent=65 // pred_region
          %347 = vst [vmem:[#allocation2] sm:$0xff] 0.0
          %348 = vst [vmem:[#allocation2 + $0x8] sm:$0xff] 0.0
          %349 = vst [vmem:[#allocation2 + $0x10] sm:$0xff] 0.0
          %350 = vst [vmem:[#allocation2 + $0x18] sm:$0xff] 0.0
          %351 = vst [vmem:[#allocation2 + $0x20] sm:$0xff] 0.0
          %352 = vst [vmem:[#allocation2 + $0x28] sm:$0xff] 0.0
          %353 = vst [vmem:[#allocation2 + $0x30] sm:$0xff] 0.0
          %354 = vst [vmem:[#allocation2 + $0x38] sm:$0xff] 0.0
          %355 = vst [vmem:[#allocation2 + $0x40] sm:$0xff] 0.0
          %356 = vst [vmem:[#allocation2 + $0x48] sm:$0xff] 0.0
          %357 = vst [vmem:[#allocation2 + $0x50] sm:$0xff] 0.0
          %358 = vst [vmem:[#allocation2 + $0x58] sm:$0xff] 0.0
        $region74: #{flux_forward.27} parent=65 // pred_fallthru
          _
        %v359 = vld [vmem:[#allocation2] sm:$0xff]
        %v360 = vld [vmem:[#allocation2 + $0x8] sm:$0xff]
        %v361 = vld [vmem:[#allocation2 + $0x10] sm:$0xff]
        %v362 = vld [vmem:[#allocation2 + $0x18] sm:$0xff]
        %v363 = vld [vmem:[#allocation2 + $0x20] sm:$0xff]
        %v364 = vld [vmem:[#allocation2 + $0x28] sm:$0xff]
        %v365 = vld [vmem:[#allocation2 + $0x30] sm:$0xff]
        %v366 = vld [vmem:[#allocation2 + $0x38] sm:$0xff]
        %v367 = vld [vmem:[#allocation2 + $0x40] sm:$0xff]
        %v368 = vld [vmem:[#allocation2 + $0x48] sm:$0xff]
        %v369 = vld [vmem:[#allocation2 + $0x50] sm:$0xff]
        %v370 = vld [vmem:[#allocation2 + $0x58] sm:$0xff]
        %v371 = vld [vmem:[%s331] sm:$0xf]
        %v372 = vld [vmem:[%s331 + $0x4] sm:$0xf]
        %v373 = vld [vmem:[%s331 + $0x8] sm:$0xf]
        %v374 = vld [vmem:[%s331 + $0xc] sm:$0xf]
        %v375 = vld [vmem:[%s331 + $0x10] sm:$0xf]
        %v376 = vld [vmem:[%s331 + $0x14] sm:$0xf]
        %v377 = vld [vmem:[%s292] sm:$0xff]
        %v378 = vld [vmem:[%s292 + $0x8] sm:$0xff]
        %v379 = vld [vmem:[%s292 + $0x10] sm:$0xff]
        %v380 = vld [vmem:[%s292 + $0x18] sm:$0xff]
        %v381 = vld [vmem:[%s292 + $0x20] sm:$0xff]
        %v382 = vld [vmem:[%s292 + $0x28] sm:$0xff]
        %v383 = vld [vmem:[%s292 + $0x30] sm:$0xff]
        %v384 = vld [vmem:[%s292 + $0x38] sm:$0xff]
        %v385 = vld [vmem:[%s292 + $0x40] sm:$0xff]
        %v386 = vld [vmem:[%s292 + $0x48] sm:$0xff]
        %v387 = vld [vmem:[%s292 + $0x50] sm:$0xff]
        %v388 = vld [vmem:[%s292 + $0x58] sm:$0xff]
        %v389 = vld [vmem:[%s292 + $0x60] sm:$0xff]
        %v390 = vld [vmem:[%s292 + $0x68] sm:$0xff]
        %v391 = vld [vmem:[%s292 + $0x70] sm:$0xff]
        %v392 = vld [vmem:[%s292 + $0x78] sm:$0xff]
        %v399 = vunpack.c.l.b16 %v371
        %v400 = vunpack.c.l.b16 %v372
        %v401 = vunpack.c.l.b16 %v373
        %v402 = vunpack.c.l.b16 %v374
        %v403 = vunpack.c.l.b16 %v375
        %v404 = vunpack.c.l.b16 %v376
        %v405 = vpack.c.b16 %v400, %v399
        %v406 = vpack.c.b16 %v402, %v401
        %v407 = vpack.c.b16 %v404, %v403
        %v427 = vunpack.c.l.b16 %v377
        %v428 = vunpack.c.h.b16 %v377
        %v429 = vunpack.c.l.b16 %v378
        %v430 = vunpack.c.h.b16 %v378
        %v431 = vunpack.c.l.b16 %v379
        %v432 = vunpack.c.h.b16 %v379
        %v433 = vunpack.c.l.b16 %v380
        %v434 = vunpack.c.h.b16 %v380
        %v435 = vunpack.c.l.b16 %v381
        %v436 = vunpack.c.h.b16 %v381
        %v437 = vunpack.c.l.b16 %v382
        %v438 = vunpack.c.h.b16 %v382
        %v439 = vunpack.c.l.b16 %v383
        %v440 = vunpack.c.h.b16 %v383
        %v441 = vunpack.c.l.b16 %v384
        %v442 = vunpack.c.h.b16 %v384
        %v443 = vunpack.c.l.b16 %v385
        %v444 = vunpack.c.h.b16 %v385
        %v445 = vunpack.c.l.b16 %v386
        %v446 = vunpack.c.h.b16 %v386
        %v447 = vunpack.c.l.b16 %v387
        %v448 = vunpack.c.h.b16 %v387
        %v449 = vunpack.c.l.b16 %v388
        %v450 = vunpack.c.h.b16 %v388
        %v451 = vunpack.c.l.b16 %v389
        %v452 = vunpack.c.h.b16 %v389
        %v453 = vunpack.c.l.b16 %v390
        %v454 = vunpack.c.h.b16 %v390
        %v455 = vunpack.c.l.b16 %v391
        %v456 = vunpack.c.h.b16 %v391
        %v457 = vunpack.c.l.b16 %v392
        %v458 = vunpack.c.h.b16 %v392
        %v459 = vpack.c.b16 %v429, %v427
        %v460 = vpack.c.b16 %v430, %v428
        %v461 = vpack.c.b16 %v433, %v431
        %v462 = vpack.c.b16 %v434, %v432
        %v463 = vpack.c.b16 %v437, %v435
        %v464 = vpack.c.b16 %v438, %v436
        %v465 = vpack.c.b16 %v441, %v439
        %v466 = vpack.c.b16 %v442, %v440
        %v467 = vpack.c.b16 %v445, %v443
        %v468 = vpack.c.b16 %v446, %v444
        %v469 = vpack.c.b16 %v449, %v447
        %v470 = vpack.c.b16 %v450, %v448
        %v471 = vpack.c.b16 %v453, %v451
        %v472 = vpack.c.b16 %v454, %v452
        %v473 = vpack.c.b16 %v457, %v455
        %v474 = vpack.c.b16 %v458, %v456
        %491 = vmatprep.subr.bf16.mxu0 %v460
        %492 = vmatpush1.bf16.msra.mxu0 %v459
        %493 = vmatprep.subr.bf16.mxu0 %v462
        %494 = vmatpush1.bf16.msra.mxu0 %v461
        %495 = vmatprep.subr.bf16.mxu0 %v464
        %496 = vmatpush1.bf16.msra.mxu0 %v463
        %497 = vmatprep.subr.bf16.mxu0 %v466
        %498 = vmatpush1.bf16.msra.mxu0 %v465
        %499 = vmatprep.subr.bf16.mxu0 %v468
        %500 = vmatpush1.bf16.msra.mxu0 %v467
        %501 = vmatprep.subr.bf16.mxu0 %v470
        %502 = vmatpush1.bf16.msra.mxu0 %v469
        %503 = vmatprep.subr.bf16.mxu0 %v472
        %504 = vmatpush1.bf16.msra.mxu0 %v471
        %505 = vmatprep.subr.bf16.mxu0 %v474
        %506 = vmatpush1.bf16.msra.mxu0 %v473
        %507 = vmatprep.subr.bf16.mxu0 0
        %508 = vmatpush1.bf16.msra.mxu0 0
        %509 = vmatprep.subr.bf16.mxu0 0
        %510 = vmatpush1.bf16.msra.mxu0 0
        %511 = vmatprep.subr.bf16.mxu0 0
        %512 = vmatpush1.bf16.msra.mxu0 0
        %513 = vmatprep.subr.bf16.mxu0 0
        %514 = vmatpush1.bf16.msra.mxu0 0
        %515 = vmatprep.subr.bf16.mxu0 0
        %516 = vmatpush1.bf16.msra.mxu0 0
        %517 = vmatprep.subr.bf16.mxu0 0
        %518 = vmatpush1.bf16.msra.mxu0 0
        %519 = vmatprep.subr.bf16.mxu0 0
        %520 = vmatpush1.bf16.msra.mxu0 0
        %521 = vmatprep.subr.bf16.mxu0 0
        %522 = vmatpush1.bf16.msra.mxu0 0
        %523 = vmatprep.mubr.bf16.mxu0 0
        %524 = vmatmul.mubr.bf16.gmra.mrb[0].mxu0 %v405
        %v525 = vpop.f32.mrb[0].mxu0
        %v526 = vadd.f32 0.0, %v525
        %v527 = vpop.f32.mrb[0].mxu0
        %v528 = vadd.f32 0.0, %v527
        %v529 = vpop.f32.mrb[0].mxu0
        %v530 = vadd.f32 0.0, %v529
        %v531 = vpop.f32.mrb[0].mxu0
        %v532 = vadd.f32 0.0, %v531
        %533 = vmatprep.mubr.bf16.mxu0 0
        %534 = vmatmul.mubr.bf16.gmra.mrb[0].mxu0 %v406
        %v535 = vpop.f32.mrb[0].mxu0
        %v536 = vadd.f32 0.0, %v535
        %v537 = vpop.f32.mrb[0].mxu0
        %v538 = vadd.f32 0.0, %v537
        %v539 = vpop.f32.mrb[0].mxu0
        %v540 = vadd.f32 0.0, %v539
        %v541 = vpop.f32.mrb[0].mxu0
        %v542 = vadd.f32 0.0, %v541
        %543 = vmatprep.mubr.bf16.mxu0 0
        %544 = vmatmul.mubr.bf16.gmra.mrb[0].mxu0 %v407
        %v545 = vpop.f32.mrb[0].mxu0
        %v546 = vadd.f32 0.0, %v545
        %v547 = vpop.f32.mrb[0].mxu0
        %v548 = vadd.f32 0.0, %v547
        %v549 = vpop.f32.mrb[0].mxu0
        %v550 = vadd.f32 0.0, %v549
        %v551 = vpop.f32.mrb[0].mxu0
        %v552 = vadd.f32 0.0, %v551
        %553 = vdwg.mxu0
        %v554 = vadd.f32 %v359, %v526
        %v555 = vadd.f32 %v360, %v528
        %v556 = vadd.f32 %v361, %v530
        %v557 = vadd.f32 %v362, %v532
        %v558 = vadd.f32 %v363, %v536
        %v559 = vadd.f32 %v364, %v538
        %v560 = vadd.f32 %v365, %v540
        %v561 = vadd.f32 %v366, %v542
        %v562 = vadd.f32 %v367, %v546
        %v563 = vadd.f32 %v368, %v548
        %v564 = vadd.f32 %v369, %v550
        %v565 = vadd.f32 %v370, %v552
        %566 = vst [vmem:[#allocation2] sm:$0xff] %v554
        %567 = vst [vmem:[#allocation2 + $0x8] sm:$0xff] %v555
        %568 = vst [vmem:[#allocation2 + $0x10] sm:$0xff] %v556
        %569 = vst [vmem:[#allocation2 + $0x18] sm:$0xff] %v557
        %570 = vst [vmem:[#allocation2 + $0x20] sm:$0xff] %v558
        %571 = vst [vmem:[#allocation2 + $0x28] sm:$0xff] %v559
        %572 = vst [vmem:[#allocation2 + $0x30] sm:$0xff] %v560
        %573 = vst [vmem:[#allocation2 + $0x38] sm:$0xff] %v561
        %574 = vst [vmem:[#allocation2 + $0x40] sm:$0xff] %v562
        %575 = vst [vmem:[#allocation2 + $0x48] sm:$0xff] %v563
        %576 = vst [vmem:[#allocation2 + $0x50] sm:$0xff] %v564
        %577 = vst [vmem:[#allocation2 + $0x58] sm:$0xff] %v565
        // Predicated region
        $region75: #{flux_forward.27} parent=65 // pred_check
          %p578 = pneg %p343
        $region76: #{flux_forward.27} parent=65 // pred_check_branch
          %580 = sbr.rel (%p578) target = $region78
        $region77: #{flux_forward.27} parent=65 // pred_region
          %v581 = vld [vmem:[#allocation2] sm:$0xff]
          %v582 = vld [vmem:[#allocation2 + $0x8] sm:$0xff]
          %v583 = vld [vmem:[#allocation2 + $0x10] sm:$0xff]
          %v584 = vld [vmem:[#allocation2 + $0x18] sm:$0xff]
          %v585 = vld [vmem:[#allocation2 + $0x20] sm:$0xff]
          %v586 = vld [vmem:[#allocation2 + $0x28] sm:$0xff]
          %v587 = vld [vmem:[#allocation2 + $0x30] sm:$0xff]
          %v588 = vld [vmem:[#allocation2 + $0x38] sm:$0xff]
          %v589 = vld [vmem:[#allocation2 + $0x40] sm:$0xff]
          %v590 = vld [vmem:[#allocation2 + $0x48] sm:$0xff]
          %v591 = vld [vmem:[#allocation2 + $0x50] sm:$0xff]
          %v592 = vld [vmem:[#allocation2 + $0x58] sm:$0xff]
          %v593 = vld [vmem:[%s338] sm:$0x3]
          %v595 = vlaneseq
          %v596 = vshrl.u32 %v595, 7
          %v597 = vsub.s32 0, %v596
          %v598 = vrot.slane %v593, %v597
          %v599 = vlaneseq
          %v600 = vshrl.u32 %v599, 7
          %v601 = vsub.s32 1, %v600
          %v602 = vrot.slane %v593, %v601
          %v605 = vadd.f32 %v581, %v598
          %v606 = vadd.f32 %v582, %v602
          %v607 = vadd.f32 %v583, %v598
          %v608 = vadd.f32 %v584, %v602
          %v609 = vadd.f32 %v585, %v598
          %v610 = vadd.f32 %v586, %v602
          %v611 = vadd.f32 %v587, %v598
          %v612 = vadd.f32 %v588, %v602
          %v613 = vadd.f32 %v589, %v598
          %v614 = vadd.f32 %v590, %v602
          %v615 = vadd.f32 %v591, %v598
          %v616 = vadd.f32 %v592, %v602
          %617 = vst [vmem:[%s323] sm:$0xff] %v605
          %618 = vst [vmem:[%s323 + $0x8] sm:$0xff] %v606
          %619 = vst [vmem:[%s323 + $0x10] sm:$0xff] %v607
          %620 = vst [vmem:[%s323 + $0x18] sm:$0xff] %v608
          %621 = vst [vmem:[%s323 + $0x20] sm:$0xff] %v609
          %622 = vst [vmem:[%s323 + $0x28] sm:$0xff] %v610
          %623 = vst [vmem:[%s323 + $0x30] sm:$0xff] %v611
          %624 = vst [vmem:[%s323 + $0x38] sm:$0xff] %v612
          %625 = vst [vmem:[%s323 + $0x40] sm:$0xff] %v613
          %626 = vst [vmem:[%s323 + $0x48] sm:$0xff] %v614
          %627 = vst [vmem:[%s323 + $0x50] sm:$0xff] %v615
          %628 = vst [vmem:[%s323 + $0x58] sm:$0xff] %v616
        $region78: #{flux_forward.27} parent=65 // pred_fallthru
          _
        %s629 = sand.u32 %s125, 1
        %s630 = sand.u32 %s125, 1
        %s631 = smul.addr %s630, 96
        %s632 = scalar_lea.vmem [#allocation4], %s631
        // Predicated region
        $region79: #{flux_forward.27} parent=65 // pred_check
          %p633 = pneg %p135
        $region80: #{flux_forward.27} parent=65 // pred_check_branch
          %635 = sbr.rel (%p633) target = $region82
        $region81: #{flux_forward.27} parent=65 // pred_region
          %s636 = smul.u32 6, %s19
          %s637 = smul.u32 2, %s20
          %s638 = smul.addr %s636, 4
          %s639 = sadd.s32 %s637, %s638
          %s640 = smul.addr %s639, 8
          %s641 = scalar_lea.vmem %s3, %s640
          // Predicated region
          $region83: #{flux_forward.27} parent=81 // pred_check
            _
          $region84: #{flux_forward.27} parent=81 // pred_check_branch
            %643 = sbr.rel (0) target = $region86
          $region85: #{flux_forward.27} parent=81 // pred_region
            // Predicated region
            $region87: #{flux_forward.27} parent=85 // pred_check
              _
            $region88: #{flux_forward.27} parent=85 // pred_check_branch
              %645 = sbr.rel (0) target = $region90
            $region89: #{flux_forward.27} parent=85 // pred_region
              loop: start=0, step=1, limit=1
              $region91: #{flux_forward.27} parent=89 // loop_pre_header
                _
              $region92: #{flux_forward.27} parent=89 // loop_header
                %s647 = sphi 0, %s651
                %p648 = scmp.ge.s32.totalorder %s647, 1
                %s652 = sphi %s632, %s632
                %s653 = sphi %s641, %s641
              $region93: #{flux_forward.27} parent=89 // loop_header_branch
                %650 = sbr.rel (%p648) target = $region97
              $region94: #{flux_forward.27} parent=89 // loop_body
                %v654 = vld [vmem:[%s652] sm:$0xff]
                %655 = vst [vmem:[%s653] sm:$0xff] %v654
                %v656 = vld [vmem:[%s652 + $0x8] sm:$0xff]
                %657 = vst [vmem:[%s653 + $0x8] sm:$0xff] %v656
                %v658 = vld [vmem:[%s652 + $0x10] sm:$0xff]
                %659 = vst [vmem:[%s653 + $0x20] sm:$0xff] %v658
                %v660 = vld [vmem:[%s652 + $0x18] sm:$0xff]
                %661 = vst [vmem:[%s653 + $0x28] sm:$0xff] %v660
                %v662 = vld [vmem:[%s652 + $0x20] sm:$0xff]
                %663 = vst [vmem:[%s653 + $0x40] sm:$0xff] %v662
                %v664 = vld [vmem:[%s652 + $0x28] sm:$0xff]
                %665 = vst [vmem:[%s653 + $0x48] sm:$0xff] %v664
                %v666 = vld [vmem:[%s652 + $0x30] sm:$0xff]
                %667 = vst [vmem:[%s653 + $0x60] sm:$0xff] %v666
                %v668 = vld [vmem:[%s652 + $0x38] sm:$0xff]
                %669 = vst [vmem:[%s653 + $0x68] sm:$0xff] %v668
                %v670 = vld [vmem:[%s652 + $0x40] sm:$0xff]
                %671 = vst [vmem:[%s653 + $0x80] sm:$0xff] %v670
                %v672 = vld [vmem:[%s652 + $0x48] sm:$0xff]
                %673 = vst [vmem:[%s653 + $0x88] sm:$0xff] %v672
                %v674 = vld [vmem:[%s652 + $0x50] sm:$0xff]
                %675 = vst [vmem:[%s653 + $0xa0] sm:$0xff] %v674
                %v676 = vld [vmem:[%s652 + $0x58] sm:$0xff]
                %677 = vst [vmem:[%s653 + $0xa8] sm:$0xff] %v676
              $region95: #{flux_forward.27} parent=89 // loop_footer
                %s651 = sadd.s32 1, %s647
              $region96: #{flux_forward.27} parent=89 // loop_footer_branch
                %646 = sbr.rel target = $region92
              $region97: #{flux_forward.27} parent=89 // loop_exit
                _
            $region90: #{flux_forward.27} parent=85 // pred_fallthru
              _
            // Predicated region
            $region98: #{flux_forward.27} parent=85 // pred_check
              _
            $region99: #{flux_forward.27} parent=85 // pred_check_branch
              %679 = sbr.rel target = $region101
            $region100: #{flux_forward.27} parent=85 // pred_region
              _
            $region101: #{flux_forward.27} parent=85 // pred_fallthru
              _
          $region86: #{flux_forward.27} parent=81 // pred_fallthru
            _
          %680 = vnop
        $region82: #{flux_forward.27} parent=65 // pred_fallthru
          _
      $region66: #{flux_forward.27} parent=5 // pred_fallthru
        _
      %p681 = scmp.le.s32.totalorder 2, %s9
      // Predicated region
      $region102: #{flux_forward.27} parent=5 // pred_check
        %p682 = pneg %p681
      $region103: #{flux_forward.27} parent=5 // pred_check_branch
        %684 = sbr.rel (%p682) target = $region105
      $region104: #{flux_forward.27} parent=5 // pred_region
        %s685 = ssub.s32 %s9, 2
        // Predicated region
        $region106: #{flux_forward.27} parent=104 // pred_check
          %p686 = pneg %p141
        $region107: #{flux_forward.27} parent=104 // pred_check_branch
          %688 = sbr.rel (%p686) target = $region109
        $region108: #{flux_forward.27} parent=104 // pred_region
          %s689 = sand.u32 %s126, 1
          %s690 = sand.u32 %s126, 1
          %s691 = smul.addr %s690, 96
          %s692 = scalar_lea.vmem [#allocation4], %s691
        $region109: #{flux_forward.27} parent=104 // pred_fallthru
          _
      $region105: #{flux_forward.27} parent=5 // pred_fallthru
        _
    $region6: #{flux_forward.27} parent=1 // loop_footer
      %s13 = sadd.s32 1, %s9
    $region7: #{flux_forward.27} parent=1 // loop_footer_branch
      %8 = sbr.rel target = $region3
    $region8: #{flux_forward.27} parent=1 // loop_exit
      _

// kernel: flux_forward.28
$region0: #{flux_forward.28}
  #allocation0 [shape = 'u32[]', space=smem, size = 0x4, offset = 0x4, fixed_abs, tag = 'smem constant byte address 0x4 - core index']
  #allocation1 [shape = 'u32[144,128]{1,0:T(1,128)}', space=vmem, size = 0x12000, scoped, tag = 'internal scratch']
  #allocation2 [shape = 'f32[48,256]{1,0:T(8,128)}', space=vmem, size = 0xc000, scoped, tag = 'scratch operand']
  %s0 = inlined_call_operand.vmem [shape: bf16[48,128], index: 0, kind: input, shape index: {}]
  %s1 = inlined_call_operand.vmem [shape: bf16[128,512], index: 1, kind: input, shape index: {}]
  %s2 = inlined_call_operand.vmem [shape: f32[1,512], index: 2, kind: input, shape index: {}]
  %s3 = inlined_call_operand.vmem [shape: f32[48,512], index: 3, kind: output, shape index: {}]
  %s4 = sld [smem:[#allocation0]]
  $region110: #{flux_forward.28} parent=0
    _
  %s6 = ssub.s32 1, %s4
  %s7 = scalar_select 0, %s6, %s4
  $region1: #{flux_forward.28} parent=0
    #allocation3 [shape = 'u8[131072]{0}', space=vmem, size = 0x20000, scoped, tag = 'input window, operand 1']
    #allocation4 [shape = 'u8[98304]{0}', space=vmem, size = 0x18000, scoped, tag = 'output window, operand 0']
    loop: start=0, step=1, limit=4
    $region2: #{flux_forward.28} parent=1 // loop_pre_header
      _
    $region3: #{flux_forward.28} parent=1 // loop_header
      %s9 = sphi 0, %s13
      %p10 = scmp.ge.s32.totalorder %s9, 4
      %s16 = sphi 0, %s35
      %s17 = sphi 0, %s31
      %s18 = sphi 0, %s27
      %s19 = sphi 0, %s16
      %s20 = sphi 0, %s17
      %s21 = sphi 0, %s18
      %s22 = sphi 0, %s19
      %s23 = sphi 0, %s20
      %s24 = sphi 0, %s21
      %s40 = sphi 0, %s42
      %s43 = sphi 0, %s40
      %s44 = sphi 0, %s43
      %s60 = sphi 0, %s44
      %s68 = sphi 0, %s70
      %s71 = sphi 0, %s68
      %s72 = sphi 0, %s71
      %s88 = sphi 0, %s72
      %s94 = sphi 0, %s96
      %s97 = sphi 0, %s94
      %s98 = sphi 0, %s97
      %s114 = sphi 0, %s98
      %s122 = sphi 0, %s124
      %s125 = sphi 0, %s122
      %s126 = sphi 0, %s125
      %s142 = sphi 0, %s126
    $region4: #{flux_forward.28} parent=1 // loop_header_branch
      %12 = sbr.rel (%p10) target = $region8
    $region5: #{flux_forward.28} parent=1 // loop_body
      %s14 = ssub.s32 %s9, 1
      %s15 = ssub.s32 %s9, 2
      %s25 = sadd.s32 1, %s18
      %p26 = scmp.ge.s32.totalorder %s25, 1
      %s27 = scalar_select %p26, 0, %s25
      %s28 = sadd.s32 1, %s17
      %s29 = scalar_select %p26, %s28, %s17
      %p30 = scmp.ge.s32.totalorder %s29, 2
      %s31 = scalar_select %p30, 0, %s29
      %s32 = sadd.s32 1, %s16
      %s33 = scalar_select %p30, %s32, %s16
      %p34 = scmp.ge.s32.totalorder %s33, 1
      %s35 = scalar_select %p34, 0, %s33
      %s36 = ssub.s32 %s16, %s35
      %s37 = ssub.s32 %s18, %s27
      %s38 = sor.u32 %s36, %s37
      %p39 = scmp.eq.s32.totalorder %s38, 0
      %s41 = sadd.s32 %s40, 1
      %s42 = scalar_select %p39, %s40, %s41
      %p45 = pneg %p39
      %p46 = scmp.eq.s32.totalorder %s9, 1
      %p47 = por %p45, %p46
      %p48 = scmp.ne.s32.totalorder %s40, %s43
      %p49 = scmp.eq.s32.totalorder %s9, 0
      %p50 = por %p48, %p49
      %p51 = scmp.ne.s32.totalorder %s40, %s43
      %p52 = scmp.eq.s32.totalorder %s14, 1
      %p53 = por %p51, %p52
      %p54 = scmp.ne.s32.totalorder %s43, %s44
      %p55 = scmp.eq.s32.totalorder %s14, 0
      %p56 = por %p54, %p55
      %p57 = scmp.ne.s32.totalorder %s43, %s44
      %p58 = scmp.eq.s32.totalorder %s15, 1
      %p59 = por %p57, %p58
      %p61 = scmp.ne.s32.totalorder %s44, %s60
      %p62 = scmp.eq.s32.totalorder %s15, 0
      %p63 = por %p61, %p62
      %s64 = ssub.s32 %s18, %s27
      %s65 = ssub.s32 %s17, %s31
      %s66 = sor.u32 %s64, %s65
      %p67 = scmp.eq.s32.totalorder %s66, 0
      %s69 = sadd.s32 %s68, 1
      %s70 = scalar_select %p67, %s68, %s69
      %p73 = pneg %p67
      %p74 = scmp.eq.s32.totalorder %s9, 1
      %p75 = por %p73, %p74
      %p76 = scmp.ne.s32.totalorder %s68, %s71
      %p77 = scmp.eq.s32.totalorder %s9, 0
      %p78 = por %p76, %p77
      %p79 = scmp.ne.s32.totalorder %s68, %s71
      %p80 = scmp.eq.s32.totalorder %s14, 1
      %p81 = por %p79, %p80
      %p82 = scmp.ne.s32.totalorder %s71, %s72
      %p83 = scmp.eq.s32.totalorder %s14, 0
      %p84 = por %p82, %p83
      %p85 = scmp.ne.s32.totalorder %s71, %s72
      %p86 = scmp.eq.s32.totalorder %s15, 1
      %p87 = por %p85, %p86
      %p89 = scmp.ne.s32.totalorder %s72, %s88
      %p90 = scmp.eq.s32.totalorder %s15, 0
      %p91 = por %p89, %p90
      %s92 = ssub.s32 %s17, %s31
      %p93 = scmp.eq.s32.totalorder %s92, 0
      %s95 = sadd.s32 %s94, 1
      %s96 = scalar_select %p93, %s94, %s95
      %p99 = pneg %p93
      %p100 = scmp.eq.s32.totalorder %s9, 1
      %p101 = por %p99, %p100
      %p102 = scmp.ne.s32.totalorder %s94, %s97
      %p103 = scmp.eq.s32.totalorder %s9, 0
      %p104 = por %p102, %p103
      %p105 = scmp.ne.s32.totalorder %s94, %s97
      %p106 = scmp.eq.s32.totalorder %s14, 1
      %p107 = por %p105, %p106
      %p108 = scmp.ne.s32.totalorder %s97, %s98
      %p109 = scmp.eq.s32.totalorder %s14, 0
      %p110 = por %p108, %p109
      %p111 = scmp.ne.s32.totalorder %s97, %s98
      %p112 = scmp.eq.s32.totalorder %s15, 1
      %p113 = por %p111, %p112
      %p115 = scmp.ne.s32.totalorder %s98, %s114
      %p116 = scmp.eq.s32.totalorder %s15, 0
      %p117 = por %p115, %p116
      %s118 = ssub.s32 %s16, %s35
      %s119 = ssub.s32 %s17, %s31
      %s120 = sor.u32 %s118, %s119
      %p121 = scmp.eq.s32.totalorder %s120, 0
      %s123 = sadd.s32 %s122, 1
      %s124 = scalar_select %p121, %s122, %s123
      %p127 = pneg %p121
      %p128 = scmp.eq.s32.totalorder %s9, 1
      %p129 = por %p127, %p128
      %p130 = scmp.ne.s32.totalorder %s122, %s125
      %p131 = scmp.eq.s32.totalorder %s9, 0
      %p132 = por %p130, %p131
      %p133 = scmp.ne.s32.totalorder %s122, %s125
      %p134 = scmp.eq.s32.totalorder %s14, 1
      %p135 = por %p133, %p134
      %p136 = scmp.ne.s32.totalorder %s125, %s126
      %p137 = scmp.eq.s32.totalorder %s14, 0
      %p138 = por %p136, %p137
      %p139 = scmp.ne.s32.totalorder %s125, %s126
      %p140 = scmp.eq.s32.totalorder %s15, 1
      %p141 = por %p139, %p140
      %p143 = scmp.ne.s32.totalorder %s126, %s142
      %p144 = scmp.eq.s32.totalorder %s15, 0
      %p145 = por %p143, %p144
      %p146 = scmp.le.s32.totalorder 1, %s9
      %p147 = scmp.lt.s32.totalorder %s9, 3
      %p148 = pnand %p146, %p147
      %p149 = pneg %p148
      // Predicated region
      $region9: #{flux_forward.28} parent=5 // pred_check
        _
      $region10: #{flux_forward.28} parent=5 // pred_check_branch
        %151 = sbr.rel (%p148) target = $region12
      $region11: #{flux_forward.28} parent=5 // pred_region
        %s152 = ssub.s32 %s9, 1
        // Predicated region
        $region13: #{flux_forward.28} parent=11 // pred_check
          %p153 = pneg %p56
        $region14: #{flux_forward.28} parent=11 // pred_check_branch
          %155 = sbr.rel (%p153) target = $region16
        $region15: #{flux_forward.28} parent=11 // pred_region
          %s156 = smul.u32 6, %s19
          %p157 = scmp.lt.s32.totalorder %s156, 5
          %s158 = scalar_select %p157, %s156, 5
          %p159 = scmp.lt.s32.totalorder %s21, 0
          %s160 = scalar_select %p159, %s21, 0
          %s161 = sadd.s32 %s160, %s158
          %s162 = smul.addr %s161, 4
          %s163 = scalar_lea.vmem %s0, %s162
          %s164 = smul.u32 6, %s19
        $region16: #{flux_forward.28} parent=11 // pred_fallthru
          _
      $region12: #{flux_forward.28} parent=5 // pred_fallthru
        _
      %p165 = scmp.lt.s32.totalorder %s9, 2
      // Predicated region
      $region17: #{flux_forward.28} parent=5 // pred_check
        %p166 = pneg %p165
      $region18: #{flux_forward.28} parent=5 // pred_check_branch
        %168 = sbr.rel (%p166) target = $region20
      $region19: #{flux_forward.28} parent=5 // pred_region
        // Predicated region
        $region21: #{flux_forward.28} parent=19 // pred_check
          %p169 = pneg %p78
        $region22: #{flux_forward.28} parent=19 // pred_check_branch
          %171 = sbr.rel (%p169) target = $region24
        $region23: #{flux_forward.28} parent=19 // pred_region
          %s172 = sand.u32 %s68, 1
          %s173 = sand.u32 %s68, 1
          %s174 = smul.addr %s173, 128
          %s175 = scalar_lea.vmem [#allocation3], %s174
          %s176 = smul.u32 16, %s18
          %s177 = smul.u32 2, %s17
          %s178 = smul.addr %s176, 4
          %s179 = sadd.s32 %s177, %s178
          %s180 = smul.addr %s179, 4
          %s181 = scalar_lea.vmem %s1, %s180
          // Predicated region
          $region25: #{flux_forward.28} parent=23 // pred_check
            _
          $region26: #{flux_forward.28} parent=23 // pred_check_branch
            %183 = sbr.rel (0) target = $region28
          $region27: #{flux_forward.28} parent=23 // pred_region
            // Predicated region
            $region29: #{flux_forward.28} parent=27 // pred_check
              _
            $region30: #{flux_forward.28} parent=27 // pred_check_branch
              %185 = sbr.rel (0) target = $region32
            $region31: #{flux_forward.28} parent=27 // pred_region
              // Predicated region
              $region44: #{flux_forward.28} parent=31 // pred_check
                _
              $region45: #{flux_forward.28} parent=31 // pred_check_branch
                %230 = sbr.rel (0) target = $region47
              $region46: #{flux_forward.28} parent=31 // pred_region
                loop: start=0, step=1, limit=1
                $region48: #{flux_forward.28} parent=46 // loop_pre_header
                  _
                $region49: #{flux_forward.28} parent=46 // loop_header
                  %s232 = sphi 0, %s236
                  %p233 = scmp.ge.s32.totalorder %s232, 1
                  %s237 = sphi %s181, %s181
                  %s238 = sphi %s175, %s175
                $region50: #{flux_forward.28} parent=46 // loop_header_branch
                  %235 = sbr.rel (%p233) target = $region54
                $region51: #{flux_forward.28} parent=46 // loop_body
                  %v239 = vld [vmem:[%s237] sm:$0xff]
                  %240 = vst [vmem:[%s238] sm:$0xff] %v239
                  %v241 = vld [vmem:[%s237 + $0x10] sm:$0xff]
                  %242 = vst [vmem:[%s238 + $0x8] sm:$0xff] %v241
                  %v243 = vld [vmem:[%s237 + $0x20] sm:$0xff]
                  %244 = vst [vmem:[%s238 + $0x10] sm:$0xff] %v243
                  %v245 = vld [vmem:[%s237 + $0x30] sm:$0xff]
                  %246 = vst [vmem:[%s238 + $0x18] sm:$0xff] %v245
                  %v247 = vld [vmem:[%s237 + $0x40] sm:$0xff]
                  %248 = vst [vmem:[%s238 + $0x20] sm:$0xff] %v247
                  %v249 = vld [vmem:[%s237 + $0x50] sm:$0xff]
                  %250 = vst [vmem:[%s238 + $0x28] sm:$0xff] %v249
                  %v251 = vld [vmem:[%s237 + $0x60] sm:$0xff]
                  %252 = vst [vmem:[%s238 + $0x30] sm:$0xff] %v251
                  %v253 = vld [vmem:[%s237 + $0x70] sm:$0xff]
                  %254 = vst [vmem:[%s238 + $0x38] sm:$0xff] %v253
                  %v255 = vld [vmem:[%s237 + $0x80] sm:$0xff]
                  %256 = vst [vmem:[%s238 + $0x40] sm:$0xff] %v255
                  %v257 = vld [vmem:[%s237 + $0x90] sm:$0xff]
                  %258 = vst [vmem:[%s238 + $0x48] sm:$0xff] %v257
                  %v259 = vld [vmem:[%s237 + $0xa0] sm:$0xff]
                  %260 = vst [vmem:[%s238 + $0x50] sm:$0xff] %v259
                  %v261 = vld [vmem:[%s237 + $0xb0] sm:$0xff]
                  %262 = vst [vmem:[%s238 + $0x58] sm:$0xff] %v261
                  %v263 = vld [vmem:[%s237 + $0xc0] sm:$0xff]
                  %264 = vst [vmem:[%s238 + $0x60] sm:$0xff] %v263
                  %v265 = vld [vmem:[%s237 + $0xd0] sm:$0xff]
                  %266 = vst [vmem:[%s238 + $0x68] sm:$0xff] %v265
                  %v267 = vld [vmem:[%s237 + $0xe0] sm:$0xff]
                  %268 = vst [vmem:[%s238 + $0x70] sm:$0xff] %v267
                  %v269 = vld [vmem:[%s237 + $0xf0] sm:$0xff]
                  %270 = vst [vmem:[%s238 + $0x78] sm:$0xff] %v269
                $region52: #{flux_forward.28} parent=46 // loop_footer
                  %s236 = sadd.s32 1, %s232
                $region53: #{flux_forward.28} parent=46 // loop_footer_branch
                  %231 = sbr.rel target = $region49
                $region54: #{flux_forward.28} parent=46 // loop_exit
                  _
              $region47: #{flux_forward.28} parent=31 // pred_fallthru
                _
              // Predicated region
              $region55: #{flux_forward.28} parent=31 // pred_check
                _
              $region56: #{flux_forward.28} parent=31 // pred_check_branch
                %272 = sbr.rel target = $region58
              $region57: #{flux_forward.28} parent=31 // pred_region
                _
              $region58: #{flux_forward.28} parent=31 // pred_fallthru
                _
            $region32: #{flux_forward.28} parent=27 // pred_fallthru
              _
            // Predicated region
            $region33: #{flux_forward.28} parent=27 // pred_check
              _
            $region34: #{flux_forward.28} parent=27 // pred_check_branch
              %187 = sbr.rel target = $region36
            $region35: #{flux_forward.28} parent=27 // pred_region
              loop: start=0, step=1, limit=1
              $region37: #{flux_forward.28} parent=35 // loop_pre_header
                _
              $region38: #{flux_forward.28} parent=35 // loop_header
                %s190 = sphi 0, %s194
                %p191 = scmp.ge.s32.totalorder %s190, 1
                %s195 = sphi %s181, %s181
                %s196 = sphi %s175, %s175
              $region39: #{flux_forward.28} parent=35 // loop_header_branch
                %193 = sbr.rel (%p191) target = $region43
              $region40: #{flux_forward.28} parent=35 // loop_body
                %v197 = vld [vmem:[%s195] sm:$0xff]
                %198 = vst [vmem:[%s196] sm:$0xff] %v197
                %v199 = vld [vmem:[%s195 + $0x10] sm:$0xff]
                %200 = vst [vmem:[%s196 + $0x8] sm:$0xff] %v199
                %v201 = vld [vmem:[%s195 + $0x20] sm:$0xff]
                %202 = vst [vmem:[%s196 + $0x10] sm:$0xff] %v201
                %v203 = vld [vmem:[%s195 + $0x30] sm:$0xff]
                %204 = vst [vmem:[%s196 + $0x18] sm:$0xff] %v203
                %v205 = vld [vmem:[%s195 + $0x40] sm:$0xff]
                %206 = vst [vmem:[%s196 + $0x20] sm:$0xff] %v205
                %v207 = vld [vmem:[%s195 + $0x50] sm:$0xff]
                %208 = vst [vmem:[%s196 + $0x28] sm:$0xff] %v207
                %v209 = vld [vmem:[%s195 + $0x60] sm:$0xff]
                %210 = vst [vmem:[%s196 + $0x30] sm:$0xff] %v209
                %v211 = vld [vmem:[%s195 + $0x70] sm:$0xff]
                %212 = vst [vmem:[%s196 + $0x38] sm:$0xff] %v211
                %v213 = vld [vmem:[%s195 + $0x80] sm:$0xff]
                %214 = vst [vmem:[%s196 + $0x40] sm:$0xff] %v213
                %v215 = vld [vmem:[%s195 + $0x90] sm:$0xff]
                %216 = vst [vmem:[%s196 + $0x48] sm:$0xff] %v215
                %v217 = vld [vmem:[%s195 + $0xa0] sm:$0xff]
                %218 = vst [vmem:[%s196 + $0x50] sm:$0xff] %v217
                %v219 = vld [vmem:[%s195 + $0xb0] sm:$0xff]
                %220 = vst [vmem:[%s196 + $0x58] sm:$0xff] %v219
                %v221 = vld [vmem:[%s195 + $0xc0] sm:$0xff]
                %222 = vst [vmem:[%s196 + $0x60] sm:$0xff] %v221
                %v223 = vld [vmem:[%s195 + $0xd0] sm:$0xff]
                %224 = vst [vmem:[%s196 + $0x68] sm:$0xff] %v223
                %v225 = vld [vmem:[%s195 + $0xe0] sm:$0xff]
                %226 = vst [vmem:[%s196 + $0x70] sm:$0xff] %v225
                %v227 = vld [vmem:[%s195 + $0xf0] sm:$0xff]
                %228 = vst [vmem:[%s196 + $0x78] sm:$0xff] %v227
              $region41: #{flux_forward.28} parent=35 // loop_footer
                %s194 = sadd.s32 1, %s190
              $region42: #{flux_forward.28} parent=35 // loop_footer_branch
                %189 = sbr.rel target = $region38
              $region43: #{flux_forward.28} parent=35 // loop_exit
                _
            $region36: #{flux_forward.28} parent=27 // pred_fallthru
              _
          $region28: #{flux_forward.28} parent=23 // pred_fallthru
            _
          %273 = vnop
        $region24: #{flux_forward.28} parent=19 // pred_fallthru
          _
        // Predicated region
        $region59: #{flux_forward.28} parent=19 // pred_check
          %p274 = pneg %p104
        $region60: #{flux_forward.28} parent=19 // pred_check_branch
          %276 = sbr.rel (%p274) target = $region62
        $region61: #{flux_forward.28} parent=19 // pred_region
          %s277 = smul.u32 2, %s17
          %p278 = scmp.lt.s32.totalorder %s277, 3
          %s279 = scalar_select %p278, %s277, 3
          %s280 = scalar_lea.vmem %s2, %s279
          %s281 = smul.u32 2, %s17
        $region62: #{flux_forward.28} parent=19 // pred_fallthru
          _
      $region20: #{flux_forward.28} parent=5 // pred_fallthru
        _
      %p282 = scmp.le.s32.totalorder 1, %s9
      %p283 = scmp.lt.s32.totalorder %s9, 3
      %p284 = pnand %p282, %p283
      %p285 = pneg %p284
      // Predicated region
      $region63: #{flux_forward.28} parent=5 // pred_check
        _
      $region64: #{flux_forward.28} parent=5 // pred_check_branch
        %287 = sbr.rel (%p284) target = $region66
      $region65: #{flux_forward.28} parent=5 // pred_region
        %s288 = ssub.s32 %s9, 1
        %s289 = sand.u32 %s71, 1
        %s290 = sand.u32 %s71, 1
        %s291 = smul.addr %s290, 128
        %s292 = scalar_lea.vmem [#allocation3], %s291
        // Predicated region
        $region67: #{flux_forward.28} parent=65 // pred_check
          %p293 = pneg %p84
        $region68: #{flux_forward.28} parent=65 // pred_check_branch
          %295 = sbr.rel (%p293) target = $region70
        $region69: #{flux_forward.28} parent=65 // pred_region
          _
        $region70: #{flux_forward.28} parent=65 // pred_fallthru
          _
        %s296 = smul.u32 6, %s19
        %p297 = scmp.lt.s32.totalorder %s296, 5
        %s298 = scalar_select %p297, %s296, 5
        %p299 = scmp.lt.s32.totalorder %s21, 0
        %s300 = scalar_select %p299, %s21, 0
        %s301 = sadd.s32 %s300, %s298
        %s302 = smul.addr %s301, 4
        %s303 = scalar_lea.vmem %s0, %s302
        %p304 = pneg %p56
        %p305 = pneg %p53
        %s306 = sand.u32 %s71, 1
        %s307 = sand.u32 %s71, 1
        %s308 = smul.addr %s307, 128
        %s309 = scalar_lea.vmem [#allocation3], %s308
        %p310 = pneg %p84
        %p311 = pneg %p81
        %s312 = smul.u32 2, %s20
        %p313 = scmp.lt.s32.totalorder %s312, 3
        %s314 = scalar_select %p313, %s312, 3
        %s315 = scalar_lea.vmem %s2, %s314
        %p316 = pneg %p110
        %p317 = pneg %p107
        %p318 = pneg %p138
        %p319 = pneg %p135
        %s320 = sand.u32 %s125, 1
        %s321 = sand.u32 %s125, 1
        %s322 = smul.addr %s321, 96
        %s323 = scalar_lea.vmem [#allocation4], %s322
        %s324 = smul.u32 6, %s19
        %p325 = scmp.lt.s32.totalorder %s324, 5
        %s326 = scalar_select %p325, %s324, 5
        %p327 = scmp.lt.s32.totalorder %s21, 0
        %s328 = scalar_select %p327, %s21, 0
        %s329 = sadd.s32 %s328, %s326
        %s330 = smul.addr %s329, 4
        %s331 = scalar_lea.vmem %s0, %s330
        %s332 = smul.u32 6, %s19
        %s333 = smul.u32 16, %s21
        %s334 = smul.u32 2, %s20
        %s335 = smul.u32 2, %s20
        %p336 = scmp.lt.s32.totalorder %s335, 3
        %s337 = scalar_select %p336, %s335, 3
        %s338 = scalar_lea.vmem %s2, %s337
        %s339 = smul.u32 2, %s20
        %s340 = smul.u32 6, %s19
        %s341 = smul.u32 2, %s20
        %p343 = scmp.eq.s32.totalorder %s21, 0
        // Predicated region
        $region71: #{flux_forward.28} parent=65 // pred_check
          %p344 = pneg %p343
        $region72: #{flux_forward.28} parent=65 // pred_check_branch
          %346 = sbr.rel (%p344) target = $region74
        $region73: #{flux_forward.28} parent=65 // pred_region
          %347 = vst [vmem:[#allocation2] sm:$0xff] 0.0
          %348 = vst [vmem:[#allocation2 + $0x8] sm:$0xff] 0.0
          %349 = vst [vmem:[#allocation2 + $0x10] sm:$0xff] 0.0
          %350 = vst [vmem:[#allocation2 + $0x18] sm:$0xff] 0.0
          %351 = vst [vmem:[#allocation2 + $0x20] sm:$0xff] 0.0
          %352 = vst [vmem:[#allocation2 + $0x28] sm:$0xff] 0.0
          %353 = vst [vmem:[#allocation2 + $0x30] sm:$0xff] 0.0
          %354 = vst [vmem:[#allocation2 + $0x38] sm:$0xff] 0.0
          %355 = vst [vmem:[#allocation2 + $0x40] sm:$0xff] 0.0
          %356 = vst [vmem:[#allocation2 + $0x48] sm:$0xff] 0.0
          %357 = vst [vmem:[#allocation2 + $0x50] sm:$0xff] 0.0
          %358 = vst [vmem:[#allocation2 + $0x58] sm:$0xff] 0.0
        $region74: #{flux_forward.28} parent=65 // pred_fallthru
          _
        %v359 = vld [vmem:[#allocation2] sm:$0xff]
        %v360 = vld [vmem:[#allocation2 + $0x8] sm:$0xff]
        %v361 = vld [vmem:[#allocation2 + $0x10] sm:$0xff]
        %v362 = vld [vmem:[#allocation2 + $0x18] sm:$0xff]
        %v363 = vld [vmem:[#allocation2 + $0x20] sm:$0xff]
        %v364 = vld [vmem:[#allocation2 + $0x28] sm:$0xff]
        %v365 = vld [vmem:[#allocation2 + $0x30] sm:$0xff]
        %v366 = vld [vmem:[#allocation2 + $0x38] sm:$0xff]
        %v367 = vld [vmem:[#allocation2 + $0x40] sm:$0xff]
        %v368 = vld [vmem:[#allocation2 + $0x48] sm:$0xff]
        %v369 = vld [vmem:[#allocation2 + $0x50] sm:$0xff]
        %v370 = vld [vmem:[#allocation2 + $0x58] sm:$0xff]
        %v371 = vld [vmem:[%s331] sm:$0xf]
        %v372 = vld [vmem:[%s331 + $0x4] sm:$0xf]
        %v373 = vld [vmem:[%s331 + $0x8] sm:$0xf]
        %v374 = vld [vmem:[%s331 + $0xc] sm:$0xf]
        %v375 = vld [vmem:[%s331 + $0x10] sm:$0xf]
        %v376 = vld [vmem:[%s331 + $0x14] sm:$0xf]
        %v377 = vld [vmem:[%s292] sm:$0xff]
        %v378 = vld [vmem:[%s292 + $0x8] sm:$0xff]
        %v379 = vld [vmem:[%s292 + $0x10] sm:$0xff]
        %v380 = vld [vmem:[%s292 + $0x18] sm:$0xff]
        %v381 = vld [vmem:[%s292 + $0x20] sm:$0xff]
        %v382 = vld [vmem:[%s292 + $0x28] sm:$0xff]
        %v383 = vld [vmem:[%s292 + $0x30] sm:$0xff]
        %v384 = vld [vmem:[%s292 + $0x38] sm:$0xff]
        %v385 = vld [vmem:[%s292 + $0x40] sm:$0xff]
        %v386 = vld [vmem:[%s292 + $0x48] sm:$0xff]
        %v387 = vld [vmem:[%s292 + $0x50] sm:$0xff]
        %v388 = vld [vmem:[%s292 + $0x58] sm:$0xff]
        %v389 = vld [vmem:[%s292 + $0x60] sm:$0xff]
        %v390 = vld [vmem:[%s292 + $0x68] sm:$0xff]
        %v391 = vld [vmem:[%s292 + $0x70] sm:$0xff]
        %v392 = vld [vmem:[%s292 + $0x78] sm:$0xff]
        %v399 = vunpack.c.l.b16 %v371
        %v400 = vunpack.c.l.b16 %v372
        %v401 = vunpack.c.l.b16 %v373
        %v402 = vunpack.c.l.b16 %v374
        %v403 = vunpack.c.l.b16 %v375
        %v404 = vunpack.c.l.b16 %v376
        %v405 = vpack.c.b16 %v400, %v399
        %v406 = vpack.c.b16 %v402, %v401
        %v407 = vpack.c.b16 %v404, %v403
        %v427 = vunpack.c.l.b16 %v377
        %v428 = vunpack.c.h.b16 %v377
        %v429 = vunpack.c.l.b16 %v378
        %v430 = vunpack.c.h.b16 %v378
        %v431 = vunpack.c.l.b16 %v379
        %v432 = vunpack.c.h.b16 %v379
        %v433 = vunpack.c.l.b16 %v380
        %v434 = vunpack.c.h.b16 %v380
        %v435 = vunpack.c.l.b16 %v381
        %v436 = vunpack.c.h.b16 %v381
        %v437 = vunpack.c.l.b16 %v382
        %v438 = vunpack.c.h.b16 %v382
        %v439 = vunpack.c.l.b16 %v383
        %v440 = vunpack.c.h.b16 %v383
        %v441 = vunpack.c.l.b16 %v384
        %v442 = vunpack.c.h.b16 %v384
        %v443 = vunpack.c.l.b16 %v385
        %v444 = vunpack.c.h.b16 %v385
        %v445 = vunpack.c.l.b16 %v386
        %v446 = vunpack.c.h.b16 %v386
        %v447 = vunpack.c.l.b16 %v387
        %v448 = vunpack.c.h.b16 %v387
        %v449 = vunpack.c.l.b16 %v388
        %v450 = vunpack.c.h.b16 %v388
        %v451 = vunpack.c.l.b16 %v389
        %v452 = vunpack.c.h.b16 %v389
        %v453 = vunpack.c.l.b16 %v390
        %v454 = vunpack.c.h.b16 %v390
        %v455 = vunpack.c.l.b16 %v391
        %v456 = vunpack.c.h.b16 %v391
        %v457 = vunpack.c.l.b16 %v392
        %v458 = vunpack.c.h.b16 %v392
        %v459 = vpack.c.b16 %v429, %v427
        %v460 = vpack.c.b16 %v430, %v428
        %v461 = vpack.c.b16 %v433, %v431
        %v462 = vpack.c.b16 %v434, %v432
        %v463 = vpack.c.b16 %v437, %v435
        %v464 = vpack.c.b16 %v438, %v436
        %v465 = vpack.c.b16 %v441, %v439
        %v466 = vpack.c.b16 %v442, %v440
        %v467 = vpack.c.b16 %v445, %v443
        %v468 = vpack.c.b16 %v446, %v444
        %v469 = vpack.c.b16 %v449, %v447
        %v470 = vpack.c.b16 %v450, %v448
        %v471 = vpack.c.b16 %v453, %v451
        %v472 = vpack.c.b16 %v454, %v452
        %v473 = vpack.c.b16 %v457, %v455
        %v474 = vpack.c.b16 %v458, %v456
        %491 = vmatprep.subr.bf16.mxu0 %v460
        %492 = vmatpush1.bf16.msra.mxu0 %v459
        %493 = vmatprep.subr.bf16.mxu0 %v462
        %494 = vmatpush1.bf16.msra.mxu0 %v461
        %495 = vmatprep.subr.bf16.mxu0 %v464
        %496 = vmatpush1.bf16.msra.mxu0 %v463
        %497 = vmatprep.subr.bf16.mxu0 %v466
        %498 = vmatpush1.bf16.msra.mxu0 %v465
        %499 = vmatprep.subr.bf16.mxu0 %v468
        %500 = vmatpush1.bf16.msra.mxu0 %v467
        %501 = vmatprep.subr.bf16.mxu0 %v470
        %502 = vmatpush1.bf16.msra.mxu0 %v469
        %503 = vmatprep.subr.bf16.mxu0 %v472
        %504 = vmatpush1.bf16.msra.mxu0 %v471
        %505 = vmatprep.subr.bf16.mxu0 %v474
        %506 = vmatpush1.bf16.msra.mxu0 %v473
        %507 = vmatprep.subr.bf16.mxu0 0
        %508 = vmatpush1.bf16.msra.mxu0 0
        %509 = vmatprep.subr.bf16.mxu0 0
        %510 = vmatpush1.bf16.msra.mxu0 0
        %511 = vmatprep.subr.bf16.mxu0 0
        %512 = vmatpush1.bf16.msra.mxu0 0
        %513 = vmatprep.subr.bf16.mxu0 0
        %514 = vmatpush1.bf16.msra.mxu0 0
        %515 = vmatprep.subr.bf16.mxu0 0
        %516 = vmatpush1.bf16.msra.mxu0 0
        %517 = vmatprep.subr.bf16.mxu0 0
        %518 = vmatpush1.bf16.msra.mxu0 0
        %519 = vmatprep.subr.bf16.mxu0 0
        %520 = vmatpush1.bf16.msra.mxu0 0
        %521 = vmatprep.subr.bf16.mxu0 0
        %522 = vmatpush1.bf16.msra.mxu0 0
        %523 = vmatprep.mubr.bf16.mxu0 0
        %524 = vmatmul.mubr.bf16.gmra.mrb[0].mxu0 %v405
        %v525 = vpop.f32.mrb[0].mxu0
        %v526 = vadd.f32 0.0, %v525
        %v527 = vpop.f32.mrb[0].mxu0
        %v528 = vadd.f32 0.0, %v527
        %v529 = vpop.f32.mrb[0].mxu0
        %v530 = vadd.f32 0.0, %v529
        %v531 = vpop.f32.mrb[0].mxu0
        %v532 = vadd.f32 0.0, %v531
        %533 = vmatprep.mubr.bf16.mxu0 0
        %534 = vmatmul.mubr.bf16.gmra.mrb[0].mxu0 %v406
        %v535 = vpop.f32.mrb[0].mxu0
        %v536 = vadd.f32 0.0, %v535
        %v537 = vpop.f32.mrb[0].mxu0
        %v538 = vadd.f32 0.0, %v537
        %v539 = vpop.f32.mrb[0].mxu0
        %v540 = vadd.f32 0.0, %v539
        %v541 = vpop.f32.mrb[0].mxu0
        %v542 = vadd.f32 0.0, %v541
        %543 = vmatprep.mubr.bf16.mxu0 0
        %544 = vmatmul.mubr.bf16.gmra.mrb[0].mxu0 %v407
        %v545 = vpop.f32.mrb[0].mxu0
        %v546 = vadd.f32 0.0, %v545
        %v547 = vpop.f32.mrb[0].mxu0
        %v548 = vadd.f32 0.0, %v547
        %v549 = vpop.f32.mrb[0].mxu0
        %v550 = vadd.f32 0.0, %v549
        %v551 = vpop.f32.mrb[0].mxu0
        %v552 = vadd.f32 0.0, %v551
        %553 = vdwg.mxu0
        %v554 = vadd.f32 %v359, %v526
        %v555 = vadd.f32 %v360, %v528
        %v556 = vadd.f32 %v361, %v530
        %v557 = vadd.f32 %v362, %v532
        %v558 = vadd.f32 %v363, %v536
        %v559 = vadd.f32 %v364, %v538
        %v560 = vadd.f32 %v365, %v540
        %v561 = vadd.f32 %v366, %v542
        %v562 = vadd.f32 %v367, %v546
        %v563 = vadd.f32 %v368, %v548
        %v564 = vadd.f32 %v369, %v550
        %v565 = vadd.f32 %v370, %v552
        %566 = vst [vmem:[#allocation2] sm:$0xff] %v554
        %567 = vst [vmem:[#allocation2 + $0x8] sm:$0xff] %v555
        %568 = vst [vmem:[#allocation2 + $0x10] sm:$0xff] %v556
        %569 = vst [vmem:[#allocation2 + $0x18] sm:$0xff] %v557
        %570 = vst [vmem:[#allocation2 + $0x20] sm:$0xff] %v558
        %571 = vst [vmem:[#allocation2 + $0x28] sm:$0xff] %v559
        %572 = vst [vmem:[#allocation2 + $0x30] sm:$0xff] %v560
        %573 = vst [vmem:[#allocation2 + $0x38] sm:$0xff] %v561
        %574 = vst [vmem:[#allocation2 + $0x40] sm:$0xff] %v562
        %575 = vst [vmem:[#allocation2 + $0x48] sm:$0xff] %v563
        %576 = vst [vmem:[#allocation2 + $0x50] sm:$0xff] %v564
        %577 = vst [vmem:[#allocation2 + $0x58] sm:$0xff] %v565
        // Predicated region
        $region75: #{flux_forward.28} parent=65 // pred_check
          %p578 = pneg %p343
        $region76: #{flux_forward.28} parent=65 // pred_check_branch
          %580 = sbr.rel (%p578) target = $region78
        $region77: #{flux_forward.28} parent=65 // pred_region
          %v581 = vld [vmem:[#allocation2] sm:$0xff]
          %v582 = vld [vmem:[#allocation2 + $0x8] sm:$0xff]
          %v583 = vld [vmem:[#allocation2 + $0x10] sm:$0xff]
          %v584 = vld [vmem:[#allocation2 + $0x18] sm:$0xff]
          %v585 = vld [vmem:[#allocation2 + $0x20] sm:$0xff]
          %v586 = vld [vmem:[#allocation2 + $0x28] sm:$0xff]
          %v587 = vld [vmem:[#allocation2 + $0x30] sm:$0xff]
          %v588 = vld [vmem:[#allocation2 + $0x38] sm:$0xff]
          %v589 = vld [vmem:[#allocation2 + $0x40] sm:$0xff]
          %v590 = vld [vmem:[#allocation2 + $0x48] sm:$0xff]
          %v591 = vld [vmem:[#allocation2 + $0x50] sm:$0xff]
          %v592 = vld [vmem:[#allocation2 + $0x58] sm:$0xff]
          %v593 = vld [vmem:[%s338] sm:$0x3]
          %v595 = vlaneseq
          %v596 = vshrl.u32 %v595, 7
          %v597 = vsub.s32 0, %v596
          %v598 = vrot.slane %v593, %v597
          %v599 = vlaneseq
          %v600 = vshrl.u32 %v599, 7
          %v601 = vsub.s32 1, %v600
          %v602 = vrot.slane %v593, %v601
          %v605 = vadd.f32 %v581, %v598
          %v606 = vadd.f32 %v582, %v602
          %v607 = vadd.f32 %v583, %v598
          %v608 = vadd.f32 %v584, %v602
          %v609 = vadd.f32 %v585, %v598
          %v610 = vadd.f32 %v586, %v602
          %v611 = vadd.f32 %v587, %v598
          %v612 = vadd.f32 %v588, %v602
          %v613 = vadd.f32 %v589, %v598
          %v614 = vadd.f32 %v590, %v602
          %v615 = vadd.f32 %v591, %v598
          %v616 = vadd.f32 %v592, %v602
          %v617 = vmul.f32 %v605, 0.5
          %v618 = vmul.f32 %v606, 0.5
          %v619 = vmul.f32 %v607, 0.5
          %v620 = vmul.f32 %v608, 0.5
          %v621 = vmul.f32 %v609, 0.5
          %v622 = vmul.f32 %v610, 0.5
          %v623 = vmul.f32 %v611, 0.5
          %v624 = vmul.f32 %v612, 0.5
          %v625 = vmul.f32 %v613, 0.5
          %v626 = vmul.f32 %v614, 0.5
          %v627 = vmul.f32 %v615, 0.5
          %v628 = vmul.f32 %v616, 0.5
          %v629 = vmul.f32 %v605, 0.044715
          %v630 = vmul.f32 %v606, 0.044715
          %v631 = vmul.f32 %v607, 0.044715
          %v632 = vmul.f32 %v608, 0.044715
          %v633 = vmul.f32 %v609, 0.044715
          %v634 = vmul.f32 %v610, 0.044715
          %v635 = vmul.f32 %v611, 0.044715
          %v636 = vmul.f32 %v612, 0.044715
          %v637 = vmul.f32 %v613, 0.044715
          %v638 = vmul.f32 %v614, 0.044715
          %v639 = vmul.f32 %v615, 0.044715
          %v640 = vmul.f32 %v616, 0.044715
          %v641 = vmul.f32 %v629, %v605
          %v642 = vmul.f32 %v630, %v606
          %v643 = vmul.f32 %v631, %v607
          %v644 = vmul.f32 %v632, %v608
          %v645 = vmul.f32 %v633, %v609
          %v646 = vmul.f32 %v634, %v610
          %v647 = vmul.f32 %v635, %v611
          %v648 = vmul.f32 %v636, %v612
          %v649 = vmul.f32 %v637, %v613
          %v650 = vmul.f32 %v638, %v614
          %v651 = vmul.f32 %v639, %v615
          %v652 = vmul.f32 %v640, %v616
          %v653 = vmul.f32 %v641, %v605
          %v654 = vmul.f32 %v642, %v606
          %v655 = vmul.f32 %v643, %v607
          %v656 = vmul.f32 %v644, %v608
          %v657 = vmul.f32 %v645, %v609
          %v658 = vmul.f32 %v646, %v610
          %v659 = vmul.f32 %v647, %v611
          %v660 = vmul.f32 %v648, %v612
          %v661 = vmul.f32 %v649, %v613
          %v662 = vmul.f32 %v650, %v614
          %v663 = vmul.f32 %v651, %v615
          %v664 = vmul.f32 %v652, %v616
          %v665 = vadd.f32 %v605, %v653
          %v666 = vadd.f32 %v606, %v654
          %v667 = vadd.f32 %v607, %v655
          %v668 = vadd.f32 %v608, %v656
          %v669 = vadd.f32 %v609, %v657
          %v670 = vadd.f32 %v610, %v658
          %v671 = vadd.f32 %v611, %v659
          %v672 = vadd.f32 %v612, %v660
          %v673 = vadd.f32 %v613, %v661
          %v674 = vadd.f32 %v614, %v662
          %v675 = vadd.f32 %v615, %v663
          %v676 = vadd.f32 %v616, %v664
          %v677 = vmul.f32 %v665, 0.7978846
          %v678 = vmul.f32 %v666, 0.7978846
          %v679 = vmul.f32 %v667, 0.7978846
          %v680 = vmul.f32 %v668, 0.7978846
          %v681 = vmul.f32 %v669, 0.7978846
          %v682 = vmul.f32 %v670, 0.7978846
          %v683 = vmul.f32 %v671, 0.7978846
          %v684 = vmul.f32 %v672, 0.7978846
          %v685 = vmul.f32 %v673, 0.7978846
          %v686 = vmul.f32 %v674, 0.7978846
          %v687 = vmul.f32 %v675, 0.7978846
          %v688 = vmul.f32 %v676, 0.7978846
          %v689 = vtanh.pop %v677
          %v690 = vtanh.pop %v678
          %v691 = vtanh.pop %v679
          %v692 = vtanh.pop %v680
          %v693 = vtanh.pop %v681
          %v694 = vtanh.pop %v682
          %v695 = vtanh.pop %v683
          %v696 = vtanh.pop %v684
          %v697 = vtanh.pop %v685
          %v698 = vtanh.pop %v686
          %v699 = vtanh.pop %v687
          %v700 = vtanh.pop %v688
          %v701 = vadd.f32 %v689, 1.0
          %v702 = vadd.f32 %v690, 1.0
          %v703 = vadd.f32 %v691, 1.0
          %v704 = vadd.f32 %v692, 1.0
          %v705 = vadd.f32 %v693, 1.0
          %v706 = vadd.f32 %v694, 1.0
          %v707 = vadd.f32 %v695, 1.0
          %v708 = vadd.f32 %v696, 1.0
          %v709 = vadd.f32 %v697, 1.0
          %v710 = vadd.f32 %v698, 1.0
          %v711 = vadd.f32 %v699, 1.0
          %v712 = vadd.f32 %v700, 1.0
          %v713 = vmul.f32 %v617, %v701
          %v714 = vmul.f32 %v618, %v702
          %v715 = vmul.f32 %v619, %v703
          %v716 = vmul.f32 %v620, %v704
          %v717 = vmul.f32 %v621, %v705
          %v718 = vmul.f32 %v622, %v706
          %v719 = vmul.f32 %v623, %v707
          %v720 = vmul.f32 %v624, %v708
          %v721 = vmul.f32 %v625, %v709
          %v722 = vmul.f32 %v626, %v710
          %v723 = vmul.f32 %v627, %v711
          %v724 = vmul.f32 %v628, %v712
          %725 = vst [vmem:[%s323] sm:$0xff] %v713
          %726 = vst [vmem:[%s323 + $0x8] sm:$0xff] %v714
          %727 = vst [vmem:[%s323 + $0x10] sm:$0xff] %v715
          %728 = vst [vmem:[%s323 + $0x18] sm:$0xff] %v716
          %729 = vst [vmem:[%s323 + $0x20] sm:$0xff] %v717
          %730 = vst [vmem:[%s323 + $0x28] sm:$0xff] %v718
          %731 = vst [vmem:[%s323 + $0x30] sm:$0xff] %v719
          %732 = vst [vmem:[%s323 + $0x38] sm:$0xff] %v720
          %733 = vst [vmem:[%s323 + $0x40] sm:$0xff] %v721
          %734 = vst [vmem:[%s323 + $0x48] sm:$0xff] %v722
          %735 = vst [vmem:[%s323 + $0x50] sm:$0xff] %v723
          %736 = vst [vmem:[%s323 + $0x58] sm:$0xff] %v724
        $region78: #{flux_forward.28} parent=65 // pred_fallthru
          _
        %s737 = sand.u32 %s125, 1
        %s738 = sand.u32 %s125, 1
        %s739 = smul.addr %s738, 96
        %s740 = scalar_lea.vmem [#allocation4], %s739
        // Predicated region
        $region79: #{flux_forward.28} parent=65 // pred_check
          %p741 = pneg %p135
        $region80: #{flux_forward.28} parent=65 // pred_check_branch
          %743 = sbr.rel (%p741) target = $region82
        $region81: #{flux_forward.28} parent=65 // pred_region
          %s744 = smul.u32 6, %s19
          %s745 = smul.u32 2, %s20
          %s746 = smul.addr %s744, 4
          %s747 = sadd.s32 %s745, %s746
          %s748 = smul.addr %s747, 8
          %s749 = scalar_lea.vmem %s3, %s748
          // Predicated region
          $region83: #{flux_forward.28} parent=81 // pred_check
            _
          $region84: #{flux_forward.28} parent=81 // pred_check_branch
            %751 = sbr.rel (0) target = $region86
          $region85: #{flux_forward.28} parent=81 // pred_region
            // Predicated region
            $region87: #{flux_forward.28} parent=85 // pred_check
              _
            $region88: #{flux_forward.28} parent=85 // pred_check_branch
              %753 = sbr.rel (0) target = $region90
            $region89: #{flux_forward.28} parent=85 // pred_region
              loop: start=0, step=1, limit=1
              $region91: #{flux_forward.28} parent=89 // loop_pre_header
                _
              $region92: #{flux_forward.28} parent=89 // loop_header
                %s755 = sphi 0, %s759
                %p756 = scmp.ge.s32.totalorder %s755, 1
                %s760 = sphi %s740, %s740
                %s761 = sphi %s749, %s749
              $region93: #{flux_forward.28} parent=89 // loop_header_branch
                %758 = sbr.rel (%p756) target = $region97
              $region94: #{flux_forward.28} parent=89 // loop_body
                %v762 = vld [vmem:[%s760] sm:$0xff]
                %763 = vst [vmem:[%s761] sm:$0xff] %v762
                %v764 = vld [vmem:[%s760 + $0x8] sm:$0xff]
                %765 = vst [vmem:[%s761 + $0x8] sm:$0xff] %v764
                %v766 = vld [vmem:[%s760 + $0x10] sm:$0xff]
                %767 = vst [vmem:[%s761 + $0x20] sm:$0xff] %v766
                %v768 = vld [vmem:[%s760 + $0x18] sm:$0xff]
                %769 = vst [vmem:[%s761 + $0x28] sm:$0xff] %v768
                %v770 = vld [vmem:[%s760 + $0x20] sm:$0xff]
                %771 = vst [vmem:[%s761 + $0x40] sm:$0xff] %v770
                %v772 = vld [vmem:[%s760 + $0x28] sm:$0xff]
                %773 = vst [vmem:[%s761 + $0x48] sm:$0xff] %v772
                %v774 = vld [vmem:[%s760 + $0x30] sm:$0xff]
                %775 = vst [vmem:[%s761 + $0x60] sm:$0xff] %v774
                %v776 = vld [vmem:[%s760 + $0x38] sm:$0xff]
                %777 = vst [vmem:[%s761 + $0x68] sm:$0xff] %v776
                %v778 = vld [vmem:[%s760 + $0x40] sm:$0xff]
                %779 = vst [vmem:[%s761 + $0x80] sm:$0xff] %v778
                %v780 = vld [vmem:[%s760 + $0x48] sm:$0xff]
                %781 = vst [vmem:[%s761 + $0x88] sm:$0xff] %v780
                %v782 = vld [vmem:[%s760 + $0x50] sm:$0xff]
                %783 = vst [vmem:[%s761 + $0xa0] sm:$0xff] %v782
                %v784 = vld [vmem:[%s760 + $0x58] sm:$0xff]
                %785 = vst [vmem:[%s761 + $0xa8] sm:$0xff] %v784
              $region95: #{flux_forward.28} parent=89 // loop_footer
                %s759 = sadd.s32 1, %s755
              $region96: #{flux_forward.28} parent=89 // loop_footer_branch
                %754 = sbr.rel target = $region92
              $region97: #{flux_forward.28} parent=89 // loop_exit
                _
            $region90: #{flux_forward.28} parent=85 // pred_fallthru
              _
            // Predicated region
            $region98: #{flux_forward.28} parent=85 // pred_check
              _
            $region99: #{flux_forward.28} parent=85 // pred_check_branch
              %787 = sbr.rel target = $region101
            $region100: #{flux_forward.28} parent=85 // pred_region
              _
            $region101: #{flux_forward.28} parent=85 // pred_fallthru
              _
          $region86: #{flux_forward.28} parent=81 // pred_fallthru
            _
          %788 = vnop
        $region82: #{flux_forward.28} parent=65 // pred_fallthru
          _
      $region66: #{flux_forward.28} parent=5 // pred_fallthru
        _
      %p789 = scmp.le.s32.totalorder 2, %s9
      // Predicated region
      $region102: #{flux_forward.28} parent=5 // pred_check
        %p790 = pneg %p789
      $region103: #{flux_forward.28} parent=5 // pred_check_branch
        %792 = sbr.rel (%p790) target = $region105
      $region104: #{flux_forward.28} parent=5 // pred_region
        %s793 = ssub.s32 %s9, 2
        // Predicated region
        $region106: #{flux_forward.28} parent=104 // pred_check
          %p794 = pneg %p141
        $region107: #{flux_forward.28} parent=104 // pred_check_branch
          %796 = sbr.rel (%p794) target = $region109
        $region108: #{flux_forward.28} parent=104 // pred_region
          %s797 = sand.u32 %s126, 1
          %s798 = sand.u32 %s126, 1
          %s799 = smul.addr %s798, 96
          %s800 = scalar_lea.vmem [#allocation4], %s799
        $region109: #{flux_forward.28} parent=104 // pred_fallthru
          _
      $region105: #{flux_forward.28} parent=5 // pred_fallthru
        _
    $region6: #{flux_forward.28} parent=1 // loop_footer
      %s13 = sadd.s32 1, %s9
    $region7: #{flux_forward.28} parent=1 // loop_footer_branch
      %8 = sbr.rel target = $region3
    $region8: #{flux_forward.28} parent=1 // loop_exit
      _

// kernel: flux_forward.30
$region0: #{flux_forward.30}
  #allocation0 [shape = 'u32[]', space=smem, size = 0x4, offset = 0x4, fixed_abs, tag = 'smem constant byte address 0x4 - core index']
  #allocation1 [shape = 'u32[144,128]{1,0:T(1,128)}', space=vmem, size = 0x12000, scoped, tag = 'internal scratch']
  #allocation2 [shape = 'f32[48,128]{1,0:T(8,128)}', space=vmem, size = 0x6000, scoped, tag = 'scratch operand']
  %s0 = inlined_call_operand.vmem [shape: bf16[48,1024], index: 0, kind: input, shape index: {}]
  %s1 = inlined_call_operand.vmem [shape: bf16[1024,128], index: 1, kind: input, shape index: {}]
  %s2 = inlined_call_operand.vmem [shape: f32[1,128], index: 2, kind: input, shape index: {}]
  %s3 = inlined_call_operand.vmem [shape: f32[48,128], index: 3, kind: output, shape index: {}]
  %s4 = sld [smem:[#allocation0]]
  $region76: #{flux_forward.30} parent=0
    _
  %s6 = ssub.s32 1, %s4
  %s7 = scalar_select 0, %s6, %s4
  $region1: #{flux_forward.30} parent=0
    #allocation3 [shape = 'u8[98304]{0}', space=vmem, size = 0x18000, scoped, tag = 'input window, operand 0']
    loop: start=0, step=1, limit=4
    $region2: #{flux_forward.30} parent=1 // loop_pre_header
      _
    $region3: #{flux_forward.30} parent=1 // loop_header
      %s9 = sphi 0, %s13
      %p10 = scmp.ge.s32.totalorder %s9, 4
      %s16 = sphi 0, %s35
      %s17 = sphi 0, %s31
      %s18 = sphi 0, %s27
      %s19 = sphi 0, %s16
      %s20 = sphi 0, %s17
      %s21 = sphi 0, %s18
      %s22 = sphi 0, %s19
      %s23 = sphi 0, %s20
      %s24 = sphi 0, %s21
      %s40 = sphi 0, %s42
      %s43 = sphi 0, %s40
      %s44 = sphi 0, %s43
      %s60 = sphi 0, %s44
      %s68 = sphi 0, %s70
      %s71 = sphi 0, %s68
      %s72 = sphi 0, %s71
      %s88 = sphi 0, %s72
      %s94 = sphi 0, %s96
      %s97 = sphi 0, %s94
      %s98 = sphi 0, %s97
      %s114 = sphi 0, %s98
      %s122 = sphi 0, %s124
      %s125 = sphi 0, %s122
      %s126 = sphi 0, %s125
      %s142 = sphi 0, %s126
    $region4: #{flux_forward.30} parent=1 // loop_header_branch
      %12 = sbr.rel (%p10) target = $region8
    $region5: #{flux_forward.30} parent=1 // loop_body
      %s14 = ssub.s32 %s9, 1
      %s15 = ssub.s32 %s9, 2
      %s25 = sadd.s32 1, %s18
      %p26 = scmp.ge.s32.totalorder %s25, 2
      %s27 = scalar_select %p26, 0, %s25
      %s28 = sadd.s32 1, %s17
      %s29 = scalar_select %p26, %s28, %s17
      %p30 = scmp.ge.s32.totalorder %s29, 1
      %s31 = scalar_select %p30, 0, %s29
      %s32 = sadd.s32 1, %s16
      %s33 = scalar_select %p30, %s32, %s16
      %p34 = scmp.ge.s32.totalorder %s33, 1
      %s35 = scalar_select %p34, 0, %s33
      %s36 = ssub.s32 %s16, %s35
      %s37 = ssub.s32 %s18, %s27
      %s38 = sor.u32 %s36, %s37
      %p39 = scmp.eq.s32.totalorder %s38, 0
      %s41 = sadd.s32 %s40, 1
      %s42 = scalar_select %p39, %s40, %s41
      %p45 = pneg %p39
      %p46 = scmp.eq.s32.totalorder %s9, 1
      %p47 = por %p45, %p46
      %p48 = scmp.ne.s32.totalorder %s40, %s43
      %p49 = scmp.eq.s32.totalorder %s9, 0
      %p50 = por %p48, %p49
      %p51 = scmp.ne.s32.totalorder %s40, %s43
      %p52 = scmp.eq.s32.totalorder %s14, 1
      %p53 = por %p51, %p52
      %p54 = scmp.ne.s32.totalorder %s43, %s44
      %p55 = scmp.eq.s32.totalorder %s14, 0
      %p56 = por %p54, %p55
      %p57 = scmp.ne.s32.totalorder %s43, %s44
      %p58 = scmp.eq.s32.totalorder %s15, 1
      %p59 = por %p57, %p58
      %p61 = scmp.ne.s32.totalorder %s44, %s60
      %p62 = scmp.eq.s32.totalorder %s15, 0
      %p63 = por %p61, %p62
      %s64 = ssub.s32 %s18, %s27
      %s65 = ssub.s32 %s17, %s31
      %s66 = sor.u32 %s64, %s65
      %p67 = scmp.eq.s32.totalorder %s66, 0
      %s69 = sadd.s32 %s68, 1
      %s70 = scalar_select %p67, %s68, %s69
      %p73 = pneg %p67
      %p74 = scmp.eq.s32.totalorder %s9, 1
      %p75 = por %p73, %p74
      %p76 = scmp.ne.s32.totalorder %s68, %s71
      %p77 = scmp.eq.s32.totalorder %s9, 0
      %p78 = por %p76, %p77
      %p79 = scmp.ne.s32.totalorder %s68, %s71
      %p80 = scmp.eq.s32.totalorder %s14, 1
      %p81 = por %p79, %p80
      %p82 = scmp.ne.s32.totalorder %s71, %s72
      %p83 = scmp.eq.s32.totalorder %s14, 0
      %p84 = por %p82, %p83
      %p85 = scmp.ne.s32.totalorder %s71, %s72
      %p86 = scmp.eq.s32.totalorder %s15, 1
      %p87 = por %p85, %p86
      %p89 = scmp.ne.s32.totalorder %s72, %s88
      %p90 = scmp.eq.s32.totalorder %s15, 0
      %p91 = por %p89, %p90
      %s92 = ssub.s32 %s17, %s31
      %p93 = scmp.eq.s32.totalorder %s92, 0
      %s95 = sadd.s32 %s94, 1
      %s96 = scalar_select %p93, %s94, %s95
      %p99 = pneg %p93
      %p100 = scmp.eq.s32.totalorder %s9, 1
      %p101 = por %p99, %p100
      %p102 = scmp.ne.s32.totalorder %s94, %s97
      %p103 = scmp.eq.s32.totalorder %s9, 0
      %p104 = por %p102, %p103
      %p105 = scmp.ne.s32.totalorder %s94, %s97
      %p106 = scmp.eq.s32.totalorder %s14, 1
      %p107 = por %p105, %p106
      %p108 = scmp.ne.s32.totalorder %s97, %s98
      %p109 = scmp.eq.s32.totalorder %s14, 0
      %p110 = por %p108, %p109
      %p111 = scmp.ne.s32.totalorder %s97, %s98
      %p112 = scmp.eq.s32.totalorder %s15, 1
      %p113 = por %p111, %p112
      %p115 = scmp.ne.s32.totalorder %s98, %s114
      %p116 = scmp.eq.s32.totalorder %s15, 0
      %p117 = por %p115, %p116
      %s118 = ssub.s32 %s16, %s35
      %s119 = ssub.s32 %s17, %s31
      %s120 = sor.u32 %s118, %s119
      %p121 = scmp.eq.s32.totalorder %s120, 0
      %s123 = sadd.s32 %s122, 1
      %s124 = scalar_select %p121, %s122, %s123
      %p127 = pneg %p121
      %p128 = scmp.eq.s32.totalorder %s9, 1
      %p129 = por %p127, %p128
      %p130 = scmp.ne.s32.totalorder %s122, %s125
      %p131 = scmp.eq.s32.totalorder %s9, 0
      %p132 = por %p130, %p131
      %p133 = scmp.ne.s32.totalorder %s122, %s125
      %p134 = scmp.eq.s32.totalorder %s14, 1
      %p135 = por %p133, %p134
      %p136 = scmp.ne.s32.totalorder %s125, %s126
      %p137 = scmp.eq.s32.totalorder %s14, 0
      %p138 = por %p136, %p137
      %p139 = scmp.ne.s32.totalorder %s125, %s126
      %p140 = scmp.eq.s32.totalorder %s15, 1
      %p141 = por %p139, %p140
      %p143 = scmp.ne.s32.totalorder %s126, %s142
      %p144 = scmp.eq.s32.totalorder %s15, 0
      %p145 = por %p143, %p144
      %p146 = scmp.le.s32.totalorder 1, %s9
      %p147 = scmp.lt.s32.totalorder %s9, 3
      %p148 = pnand %p146, %p147
      %p149 = pneg %p148
      // Predicated region
      $region9: #{flux_forward.30} parent=5 // pred_check
        _
      $region10: #{flux_forward.30} parent=5 // pred_check_branch
        %151 = sbr.rel (%p148) target = $region12
      $region11: #{flux_forward.30} parent=5 // pred_region
        %s152 = ssub.s32 %s9, 1
        // Predicated region
        $region13: #{flux_forward.30} parent=11 // pred_check
          %p153 = pneg %p110
        $region14: #{flux_forward.30} parent=11 // pred_check_branch
          %155 = sbr.rel (%p153) target = $region16
        $region15: #{flux_forward.30} parent=11 // pred_region
          %p156 = scmp.lt.s32.totalorder %s20, 0
          %s157 = scalar_select %p156, %s20, 0
          %s158 = scalar_lea.vmem %s2, %s157
        $region16: #{flux_forward.30} parent=11 // pred_fallthru
          _
      $region12: #{flux_forward.30} parent=5 // pred_fallthru
        _
      %p159 = scmp.lt.s32.totalorder %s9, 2
      // Predicated region
      $region17: #{flux_forward.30} parent=5 // pred_check
        %p160 = pneg %p159
      $region18: #{flux_forward.30} parent=5 // pred_check_branch
        %162 = sbr.rel (%p160) target = $region20
      $region19: #{flux_forward.30} parent=5 // pred_region
        // Predicated region
        $region21: #{flux_forward.30} parent=19 // pred_check
          %p163 = pneg %p50
        $region22: #{flux_forward.30} parent=19 // pred_check_branch
          %165 = sbr.rel (%p163) target = $region24
        $region23: #{flux_forward.30} parent=19 // pred_region
          %s166 = sand.u32 %s40, 1
          %s167 = sand.u32 %s40, 1
          %s168 = smul.addr %s167, 96
          %s169 = scalar_lea.vmem [#allocation3], %s168
          %s170 = smul.u32 6, %s16
          %s171 = smul.u32 4, %s18
          %s172 = smul.addr %s170, 8
          %s173 = sadd.s32 %s171, %s172
          %s174 = smul.addr %s173, 4
          %s175 = scalar_lea.vmem %s0, %s174
          // Predicated region
          $region25: #{flux_forward.30} parent=23 // pred_check
            _
          $region26: #{flux_forward.30} parent=23 // pred_check_branch
            %177 = sbr.rel (0) target = $region28
          $region27: #{flux_forward.30} parent=23 // pred_region
            // Predicated region
            $region29: #{flux_forward.30} parent=27 // pred_check
              _
            $region30: #{flux_forward.30} parent=27 // pred_check_branch
              %179 = sbr.rel (0) target = $region32
            $region31: #{flux_forward.30} parent=27 // pred_region
              loop: start=0, step=1, limit=1
              $region33: #{flux_forward.30} parent=31 // loop_pre_header
                _
              $region34: #{flux_forward.30} parent=31 // loop_header
                %s181 = sphi 0, %s185
                %p182 = scmp.ge.s32.totalorder %s181, 1
                %s186 = sphi %s175, %s175
                %s187 = sphi %s169, %s169
              $region35: #{flux_forward.30} parent=31 // loop_header_branch
                %184 = sbr.rel (%p182) target = $region39
              $region36: #{flux_forward.30} parent=31 // loop_body
                %v188 = vld [vmem:[%s186] sm:$0xff]
                %189 = vst [vmem:[%s187] sm:$0xff] %v188
                %v190 = vld [vmem:[%s186 + $0x8] sm:$0xff]
                %191 = vst [vmem:[%s187 + $0x8] sm:$0xff] %v190
                %v192 = vld [vmem:[%s186 + $0x20] sm:$0xff]
                %193 = vst [vmem:[%s187 + $0x10] sm:$0xff] %v192
                %v194 = vld [vmem:[%s186 + $0x28] sm:$0xff]
                %195 = vst [vmem:[%s187 + $0x18] sm:$0xff] %v194
                %v196 = vld [vmem:[%s186 + $0x40] sm:$0xff]
                %197 = vst [vmem:[%s187 + $0x20] sm:$0xff] %v196
                %v198 = vld [vmem:[%s186 + $0x48] sm:$0xff]
                %199 = vst [vmem:[%s187 + $0x28] sm:$0xff] %v198
                %v200 = vld [vmem:[%s186 + $0x60] sm:$0xff]
                %201 = vst [vmem:[%s187 + $0x30] sm:$0xff] %v200
                %v202 = vld [vmem:[%s186 + $0x68] sm:$0xff]
                %203 = vst [vmem:[%s187 + $0x38] sm:$0xff] %v202
                %v204 = vld [vmem:[%s186 + $0x80] sm:$0xff]
                %205 = vst [vmem:[%s187 + $0x40] sm:$0xff] %v204
                %v206 = vld [vmem:[%s186 + $0x88] sm:$0xff]
                %207 = vst [vmem:[%s187 + $0x48] sm:$0xff] %v206
                %v208 = vld [vmem:[%s186 + $0xa0] sm:$0xff]
                %209 = vst [vmem:[%s187 + $0x50] sm:$0xff] %v208
                %v210 = vld [vmem:[%s186 + $0xa8] sm:$0xff]
                %211 = vst [vmem:[%s187 + $0x58] sm:$0xff] %v210
              $region37: #{flux_forward.30} parent=31 // loop_footer
                %s185 = sadd.s32 1, %s181
              $region38: #{flux_forward.30} parent=31 // loop_footer_branch
                %180 = sbr.rel target = $region34
              $region39: #{flux_forward.30} parent=31 // loop_exit
                _
            $region32: #{flux_forward.30} parent=27 // pred_fallthru
              _
            // Predicated region
            $region40: #{flux_forward.30} parent=27 // pred_check
              _
            $region41: #{flux_forward.30} parent=27 // pred_check_branch
              %213 = sbr.rel target = $region43
            $region42: #{flux_forward.30} parent=27 // pred_region
              _
            $region43: #{flux_forward.30} parent=27 // pred_fallthru
              _
          $region28: #{flux_forward.30} parent=23 // pred_fallthru
            _
          %214 = vnop
        $region24: #{flux_forward.30} parent=19 // pred_fallthru
          _
        // Predicated region
        $region44: #{flux_forward.30} parent=19 // pred_check
          %p215 = pneg %p78
        $region45: #{flux_forward.30} parent=19 // pred_check_branch
          %217 = sbr.rel (%p215) target = $region47
        $region46: #{flux_forward.30} parent=19 // pred_region
          %s218 = smul.u32 64, %s18
          %p219 = scmp.lt.s32.totalorder %s218, 127
          %s220 = scalar_select %p219, %s218, 127
          %p221 = scmp.lt.s32.totalorder %s17, 0
          %s222 = scalar_select %p221, %s17, 0
          %s223 = sadd.s32 %s222, %s220
          %s224 = smul.addr %s223, 4
          %s225 = scalar_lea.vmem %s1, %s224
          %s226 = smul.u32 64, %s18
        $region47: #{flux_forward.30} parent=19 // pred_fallthru
          _
      $region20: #{flux_forward.30} parent=5 // pred_fallthru
        _
      %p227 = scmp.le.s32.totalorder 1, %s9
      %p228 = scmp.lt.s32.totalorder %s9, 3
      %p229 = pnand %p227, %p228
      %p230 = pneg %p229
      // Predicated region
      $region48: #{flux_forward.30} parent=5 // pred_check
        _
      $region49: #{flux_forward.30} parent=5 // pred_check_branch
        %232 = sbr.rel (%p229) target = $region51
      $region50: #{flux_forward.30} parent=5 // pred_region
        %s233 = ssub.s32 %s9, 1
        %s234 = sand.u32 %s43, 1
        %s235 = sand.u32 %s43, 1
        %s236 = smul.addr %s235, 96
        %s237 = scalar_lea.vmem [#allocation3], %s236
        // Predicated region
        $region52: #{flux_forward.30} parent=50 // pred_check
          %p238 = pneg %p56
        $region53: #{flux_forward.30} parent=50 // pred_check_branch
          %240 = sbr.rel (%p238) target = $region55
        $region54: #{flux_forward.30} parent=50 // pred_region
          _
        $region55: #{flux_forward.30} parent=50 // pred_fallthru
          _
        %s241 = sand.u32 %s43, 1
        %s242 = sand.u32 %s43, 1
        %s243 = smul.addr %s242, 96
        %s244 = scalar_lea.vmem [#allocation3], %s243
        %p245 = pneg %p56
        %p246 = pneg %p53
        %s247 = smul.u32 64, %s21
        %p248 = scmp.lt.s32.totalorder %s247, 127
        %s249 = scalar_select %p248, %s247, 127
        %p250 = scmp.lt.s32.totalorder %s20, 0
        %s251 = scalar_select %p250, %s20, 0
        %s252 = sadd.s32 %s251, %s249
        %s253 = smul.addr %s252, 4
        %s254 = scalar_lea.vmem %s1, %s253
        %p255 = pneg %p84
        %p256 = pneg %p81
        %p257 = scmp.lt.s32.totalorder %s20, 0
        %s258 = scalar_select %p257, %s20, 0
        %s259 = scalar_lea.vmem %s2, %s258
        %p260 = pneg %p110
        %p261 = pneg %p107
        %p262 = pneg %p138
        %p263 = pneg %p135
        %s264 = smul.u32 6, %s19
        %p265 = scmp.lt.s32.totalorder %s264, 5
        %s266 = scalar_select %p265, %s264, 5
        %p267 = scmp.lt.s32.totalorder %s20, 0
        %s268 = scalar_select %p267, %s20, 0
        %s269 = sadd.s32 %s268, %s266
        %s270 = smul.addr %s269, 8
        %s271 = scalar_lea.vmem %s3, %s270
        %s272 = smul.u32 6, %s19
        %s273 = smul.u32 4, %s21
        %s274 = smul.u32 64, %s21
        %p275 = scmp.lt.s32.totalorder %s274, 127
        %s276 = scalar_select %p275, %s274, 127
        %p277 = scmp.lt.s32.totalorder %s20, 0
        %s278 = scalar_select %p277, %s20, 0
        %s279 = sadd.s32 %s278, %s276
        %s280 = smul.addr %s279, 4
        %s281 = scalar_lea.vmem %s1, %s280
        %s282 = smul.u32 64, %s21
        %p283 = scmp.lt.s32.totalorder %s20, 0
        %s284 = scalar_select %p283, %s20, 0
        %s285 = scalar_lea.vmem %s2, %s284
        %s286 = smul.u32 6, %s19
        %p287 = scmp.lt.s32.totalorder %s286, 5
        %s288 = scalar_select %p287, %s286, 5
        %p289 = scmp.lt.s32.totalorder %s20, 0
        %s290 = scalar_select %p289, %s20, 0
        %s291 = sadd.s32 %s290, %s288
        %s292 = smul.addr %s291, 8
        %s293 = scalar_lea.vmem %s3, %s292
        %s294 = smul.u32 6, %s19
        %p296 = scmp.eq.s32.totalorder %s21, 0
        // Predicated region
        $region56: #{flux_forward.30} parent=50 // pred_check
          %p297 = pneg %p296
        $region57: #{flux_forward.30} parent=50 // pred_check_branch
          %299 = sbr.rel (%p297) target = $region59
        $region58: #{flux_forward.30} parent=50 // pred_region
          %300 = vst [vmem:[#allocation2] sm:$0xff] 0.0
          %301 = vst [vmem:[#allocation2 + $0x8] sm:$0xff] 0.0
          %302 = vst [vmem:[#allocation2 + $0x10] sm:$0xff] 0.0
          %303 = vst [vmem:[#allocation2 + $0x18] sm:$0xff] 0.0
          %304 = vst [vmem:[#allocation2 + $0x20] sm:$0xff] 0.0
          %305 = vst [vmem:[#allocation2 + $0x28] sm:$0xff] 0.0
        $region59: #{flux_forward.30} parent=50 // pred_fallthru
          _
        %v306 = vld [vmem:[#allocation2] sm:$0xff]
        %v307 = vld [vmem:[#allocation2 + $0x8] sm:$0xff]
        %v308 = vld [vmem:[#allocation2 + $0x10] sm:$0xff]
        %v309 = vld [vmem:[#allocation2 + $0x18] sm:$0xff]
        %v310 = vld [vmem:[#allocation2 + $0x20] sm:$0xff]
        %v311 = vld [vmem:[#allocation2 + $0x28] sm:$0xff]
        %v312 = vld [vmem:[%s237] sm:$0xff]
        %v313 = vld [vmem:[%s237 + $0x8] sm:$0xff]
        %v314 = vld [vmem:[%s237 + $0x10] sm:$0xff]
        %v315 = vld [vmem:[%s237 + $0x18] sm:$0xff]
        %v316 = vld [vmem:[%s237 + $0x20] sm:$0xff]
        %v317 = vld [vmem:[%s237 + $0x28] sm:$0xff]
        %v318 = vld [vmem:[%s237 + $0x30] sm:$0xff]
        %v319 = vld [vmem:[%s237 + $0x38] sm:$0xff]
        %v320 = vld [vmem:[%s237 + $0x40] sm:$0xff]
        %v321 = vld [vmem:[%s237 + $0x48] sm:$0xff]
        %v322 = vld [vmem:[%s237 + $0x50] sm:$0xff]
        %v323 = vld [vmem:[%s237 + $0x58] sm:$0xff]
        %v324 = vld [vmem:[%s281] sm:$0xf]
        %v325 = vld [vmem:[%s281 + $0x4] sm:$0xf]
        %v326 = vld [vmem:[%s281 + $0x8] sm:$0xf]
        %v327 = vld [vmem:[%s281 + $0xc] sm:$0xf]
        %v328 = vld [vmem:[%s281 + $0x10] sm:$0xf]
        %v329 = vld [vmem:[%s281 + $0x14] sm:$0xf]
        %v330 = vld [vmem:[%s281 + $0x18] sm:$0xf]
        %v331 = vld [vmem:[%s281 + $0x1c] sm:$0xf]
        %v332 = vld [vmem:[%s281 + $0x20] sm:$0xf]
        %v333 = vld [vmem:[%s281 + $0x24] sm:$0xf]
        %v334 = vld [vmem:[%s281 + $0x28] sm:$0xf]
        %v335 = vld [vmem:[%s281 + $0x2c] sm:$0xf]
        %v336 = vld [vmem:[%s281 + $0x30] sm:$0xf]
        %v337 = vld [vmem:[%s281 + $0x34] sm:$0xf]
        %v338 = vld [vmem:[%s281 + $0x38] sm:$0xf]
        %v339 = vld [vmem:[%s281 + $0x3c] sm:$0xf]
        %v340 = vld [vmem:[%s281 + $0x40] sm:$0xf]
        %v341 = vld [vmem:[%s281 + $0x44] sm:$0xf]
        %v342 = vld [vmem:[%s281 + $0x48] sm:$0xf]
        %v343 = vld [vmem:[%s281 + $0x4c] sm:$0xf]
        %v344 = vld [vmem:[%s281 + $0x50] sm:$0xf]
        %v345 = vld [vmem:[%s281 + $0x54] sm:$0xf]
        %v346 = vld [vmem:[%s281 + $0x58] sm:$0xf]
        %v347 = vld [vmem:[%s281 + $0x5c] sm:$0xf]
        %v348 = vld [vmem:[%s281 + $0x60] sm:$0xf]
        %v349 = vld [vmem:[%s281 + $0x64] sm:$0xf]
        %v350 = vld [vmem:[%s281 + $0x68] sm:$0xf]
        %v351 = vld [vmem:[%s281 + $0x6c] sm:$0xf]
        %v352 = vld [vmem:[%s281 + $0x70] sm:$0xf]
        %v353 = vld [vmem:[%s281 + $0x74] sm:$0xf]
        %v354 = vld [vmem:[%s281 + $0x78] sm:$0xf]
        %v355 = vld [vmem:[%s281 + $0x7c] sm:$0xf]
        %v356 = vld [vmem:[%s281 + $0x80] sm:$0xf]
        %v357 = vld [vmem:[%s281 + $0x84] sm:$0xf]
        %v358 = vld [vmem:[%s281 + $0x88] sm:$0xf]
        %v359 = vld [vmem:[%s281 + $0x8c] sm:$0xf]
        %v360 = vld [vmem:[%s281 + $0x90] sm:$0xf]
        %v361 = vld [vmem:[%s281 + $0x94] sm:$0xf]
        %v362 = vld [vmem:[%s281 + $0x98] sm:$0xf]
        %v363 = vld [vmem:[%s281 + $0x9c] sm:$0xf]
        %v364 = vld [vmem:[%s281 + $0xa0] sm:$0xf]
        %v365 = vld [vmem:[%s281 + $0xa4] sm:$0xf]
        %v366 = vld [vmem:[%s281 + $0xa8] sm:$0xf]
        %v367 = vld [vmem:[%s281 + $0xac] sm:$0xf]
        %v368 = vld [vmem:[%s281 + $0xb0] sm:$0xf]
        %v369 = vld [vmem:[%s281 + $0xb4] sm:$0xf]
        %v370 = vld [vmem:[%s281 + $0xb8] sm:$0xf]
        %v371 = vld [vmem:[%s281 + $0xbc] sm:$0xf]
        %v372 = vld [vmem:[%s281 + $0xc0] sm:$0xf]
        %v373 = vld [vmem:[%s281 + $0xc4] sm:$0xf]
        %v374 = vld [vmem:[%s281 + $0xc8] sm:$0xf]
        %v375 = vld [vmem:[%s281 + $0xcc] sm:$0xf]
        %v376 = vld [vmem:[%s281 + $0xd0] sm:$0xf]
        %v377 = vld [vmem:[%s281 + $0xd4] sm:$0xf]
        %v378 = vld [vmem:[%s281 + $0xd8] sm:$0xf]
        %v379 = vld [vmem:[%s281 + $0xdc] sm:$0xf]
        %v380 = vld [vmem:[%s281 + $0xe0] sm:$0xf]
        %v381 = vld [vmem:[%s281 + $0xe4] sm:$0xf]
        %v382 = vld [vmem:[%s281 + $0xe8] sm:$0xf]
        %v383 = vld [vmem:[%s281 + $0xec] sm:$0xf]
        %v384 = vld [vmem:[%s281 + $0xf0] sm:$0xf]
        %v385 = vld [vmem:[%s281 + $0xf4] sm:$0xf]
        %v386 = vld [vmem:[%s281 + $0xf8] sm:$0xf]
        %v387 = vld [vmem:[%s281 + $0xfc] sm:$0xf]
        %v400 = vunpack.c.l.b16 %v312
        %v401 = vunpack.c.h.b16 %v312
        %v402 = vunpack.c.l.b16 %v313
        %v403 = vunpack.c.h.b16 %v313
        %v404 = vunpack.c.l.b16 %v314
        %v405 = vunpack.c.h.b16 %v314
        %v406 = vunpack.c.l.b16 %v315
        %v407 = vunpack.c.h.b16 %v315
        %v408 = vunpack.c.l.b16 %v316
        %v409 = vunpack.c.h.b16 %v316
        %v410 = vunpack.c.l.b16 %v317
        %v411 = vunpack.c.h.b16 %v317
        %v412 = vunpack.c.l.b16 %v318
        %v413 = vunpack.c.h.b16 %v318
        %v414 = vunpack.c.l.b16 %v319
        %v415 = vunpack.c.h.b16 %v319
        %v416 = vunpack.c.l.b16 %v320
        %v417 = vunpack.c.h.b16 %v320
        %v418 = vunpack.c.l.b16 %v321
        %v419 = vunpack.c.h.b16 %v321
        %v420 = vunpack.c.l.b16 %v322
        %v421 = vunpack.c.h.b16 %v322
        %v422 = vunpack.c.l.b16 %v323
        %v423 = vunpack.c.h.b16 %v323
        %v424 = vpack.c.b16 %v404, %v400
        %v425 = vpack.c.b16 %v405, %v401
        %v426 = vpack.c.b16 %v406, %v402
        %v427 = vpack.c.b16 %v407, %v403
        %v428 = vpack.c.b16 %v412, %v408
        %v429 = vpack.c.b16 %v413, %v409
        %v430 = vpack.c.b16 %v414, %v410
        %v431 = vpack.c.b16 %v415, %v411
        %v432 = vpack.c.b16 %v420, %v416
        %v433 = vpack.c.b16 %v421, %v417
        %v434 = vpack.c.b16 %v422, %v418
        %v435 = vpack.c.b16 %v423, %v419
        %v512 = vunpack.c.l.b16 %v324
        %v513 = vunpack.c.l.b16 %v325
        %v514 = vunpack.c.l.b16 %v326
        %v515 = vunpack.c.l.b16 %v327
        %v516 = vunpack.c.l.b16 %v328
        %v517 = vunpack.c.l.b16 %v329
        %v518 = vunpack.c.l.b16 %v330
        %v519 = vunpack.c.l.b16 %v331
        %v520 = vunpack.c.l.b16 %v332
        %v521 = vunpack.c.l.b16 %v333
        %v522 = vunpack.c.l.b16 %v334
        %v523 = vunpack.c.l.b16 %v335
        %v524 = vunpack.c.l.b16 %v336
        %v525 = vunpack.c.l.b16 %v337
        %v526 = vunpack.c.l.b16 %v338
        %v527 = vunpack.c.l.b16 %v339
        %v528 = vunpack.c.l.b16 %v340
        %v529 = vunpack.c.l.b16 %v341
        %v530 = vunpack.c.l.b16 %v342
        %v531 = vunpack.c.l.b16 %v343
        %v532 = vunpack.c.l.b16 %v344
        %v533 = vunpack.c.l.b16 %v345
        %v534 = vunpack.c.l.b16 %v346
        %v535 = vunpack.c.l.b16 %v347
        %v536 = vunpack.c.l.b16 %v348
        %v537 = vunpack.c.l.b16 %v349
        %v538 = vunpack.c.l.b16 %v350
        %v539 = vunpack.c.l.b16 %v351
        %v540 = vunpack.c.l.b16 %v352
        %v541 = vunpack.c.l.b16 %v353
        %v542 = vunpack.c.l.b16 %v354
        %v543 = vunpack.c.l.b16 %v355
        %v544 = vunpack.c.l.b16 %v356
        %v545 = vunpack.c.l.b16 %v357
        %v546 = vunpack.c.l.b16 %v358
        %v547 = vunpack.c.l.b16 %v359
        %v548 = vunpack.c.l.b16 %v360
        %v549 = vunpack.c.l.b16 %v361
        %v550 = vunpack.c.l.b16 %v362
        %v551 = vunpack.c.l.b16 %v363
        %v552 = vunpack.c.l.b16 %v364
        %v553 = vunpack.c.l.b16 %v365
        %v554 = vunpack.c.l.b16 %v366
        %v555 = vunpack.c.l.b16 %v367
        %v556 = vunpack.c.l.b16 %v368
        %v557 = vunpack.c.l.b16 %v369
        %v558 = vunpack.c.l.b16 %v370
        %v559 = vunpack.c.l.b16 %v371
        %v560 = vunpack.c.l.b16 %v372
        %v561 = vunpack.c.l.b16 %v373
        %v562 = vunpack.c.l.b16 %v374
        %v563 = vunpack.c.l.b16 %v375
        %v564 = vunpack.c.l.b16 %v376
        %v565 = vunpack.c.l.b16 %v377
        %v566 = vunpack.c.l.b16 %v378
        %v567 = vunpack.c.l.b16 %v379
        %v568 = vunpack.c.l.b16 %v380
        %v569 = vunpack.c.l.b16 %v381
        %v570 = vunpack.c.l.b16 %v382
        %v571 = vunpack.c.l.b16 %v383
        %v572 = vunpack.c.l.b16 %v384
        %v573 = vunpack.c.l.b16 %v385
        %v574 = vunpack.c.l.b16 %v386
        %v575 = vunpack.c.l.b16 %v387
        %v576 = vpack.c.b16 %v513, %v512
        %v577 = vpack.c.b16 %v515, %v514
        %v578 = vpack.c.b16 %v517, %v516
        %v579 = vpack.c.b16 %v519, %v518
        %v580 = vpack.c.b16 %v521, %v520
        %v581 = vpack.c.b16 %v523, %v522
        %v582 = vpack.c.b16 %v525, %v524
        %v583 = vpack.c.b16 %v527, %v526
        %v584 = vpack.c.b16 %v529, %v528
        %v585 = vpack.c.b16 %v531, %v530
        %v586 = vpack.c.b16 %v533, %v532
        %v587 = vpack.c.b16 %v535, %v534
        %v588 = vpack.c.b16 %v537, %v536
        %v589 = vpack.c.b16 %v539, %v538
        %v590 = vpack.c.b16 %v541, %v540
        %v591 = vpack.c.b16 %v543, %v542
        %v592 = vpack.c.b16 %v545, %v544
        %v593 = vpack.c.b16 %v547, %v546
        %v594 = vpack.c.b16 %v549, %v548
        %v595 = vpack.c.b16 %v551, %v550
        %v596 = vpack.c.b16 %v553, %v552
        %v597 = vpack.c.b16 %v555, %v554
        %v598 = vpack.c.b16 %v557, %v556
        %v599 = vpack.c.b16 %v559, %v558
        %v600 = vpack.c.b16 %v561, %v560
        %v601 = vpack.c.b16 %v563, %v562
        %v602 = vpack.c.b16 %v565, %v564
        %v603 = vpack.c.b16 %v567, %v566
        %v604 = vpack.c.b16 %v569, %v568
        %v605 = vpack.c.b16 %v571, %v570
        %v606 = vpack.c.b16 %v573, %v572
        %v607 = vpack.c.b16 %v575, %v574
        %640 = vmatprep.subr.bf16.mxu0 0
        %641 = vmatpush1.bf16.msra.mxu0 %v576
        %642 = vmatprep.subr.bf16.mxu0 0
        %643 = vmatpush1.bf16.msra.mxu0 %v577
        %644 = vmatprep.subr.bf16.mxu0 0
        %645 = vmatpush1.bf16.msra.mxu0 %v578
        %646 = vmatprep.subr.bf16.mxu0 0
        %647 = vmatpush1.bf16.msra.mxu0 %v579
        %648 = vmatprep.subr.bf16.mxu0 0
        %649 = vmatpush1.bf16.msra.mxu0 %v580
        %650 = vmatprep.subr.bf16.mxu0 0
        %651 = vmatpush1.bf16.msra.mxu0 %v581
        %652 = vmatprep.subr.bf16.mxu0 0
        %653 = vmatpush1.bf16.msra.mxu0 %v582
        %654 = vmatprep.subr.bf16.mxu0 0
        %655 = vmatpush1.bf16.msra.mxu0 %v583
        %656 = vmatprep.subr.bf16.mxu0 0
        %657 = vmatpush1.bf16.msra.mxu0 %v584
        %658 = vmatprep.subr.bf16.mxu0 0
        %659 = vmatpush1.bf16.msra.mxu0 %v585
        %660 = vmatprep.subr.bf16.mxu0 0
        %661 = vmatpush1.bf16.msra.mxu0 %v586
        %662 = vmatprep.subr.bf16.mxu0 0
        %663 = vmatpush1.bf16.msra.mxu0 %v587
        %664 = vmatprep.subr.bf16.mxu0 0
        %665 = vmatpush1.bf16.msra.mxu0 %v588
        %666 = vmatprep.subr.bf16.mxu0 0
        %667 = vmatpush1.bf16.msra.mxu0 %v589
        %668 = vmatprep.subr.bf16.mxu0 0
        %669 = vmatpush1.bf16.msra.mxu0 %v590
        %670 = vmatprep.subr.bf16.mxu0 0
        %671 = vmatpush1.bf16.msra.mxu0 %v591
        %672 = vmatprep.mubr.bf16.mxu0 %v425
        %673 = vmatmul.mubr.bf16.gmra.mrb[0].mxu0 %v424
        %v674 = vpop.f32.mrb[0].mxu0
        %v675 = vadd.f32 0.0, %v674
        %v676 = vpop.f32.mrb[0].mxu0
        %v677 = vpop.f32.mrb[0].mxu0
        %v678 = vadd.f32 0.0, %v677
        %v679 = vpop.f32.mrb[0].mxu0
        %680 = vmatprep.mubr.bf16.mxu0 %v429
        %681 = vmatmul.mubr.bf16.gmra.mrb[0].mxu0 %v428
        %v682 = vpop.f32.mrb[0].mxu0
        %v683 = vadd.f32 0.0, %v682
        %v684 = vpop.f32.mrb[0].mxu0
        %v685 = vpop.f32.mrb[0].mxu0
        %v686 = vadd.f32 0.0, %v685
        %v687 = vpop.f32.mrb[0].mxu0
        %688 = vmatprep.mubr.bf16.mxu0 %v433
        %689 = vmatmul.mubr.bf16.gmra.mrb[0].mxu0 %v432
        %v690 = vpop.f32.mrb[0].mxu0
        %v691 = vadd.f32 0.0, %v690
        %v692 = vpop.f32.mrb[0].mxu0
        %v693 = vpop.f32.mrb[0].mxu0
        %v694 = vadd.f32 0.0, %v693
        %v695 = vpop.f32.mrb[0].mxu0
        %696 = vdwg.mxu0
        %697 = vmatprep.subr.bf16.mxu0 0
        %698 = vmatpush1.bf16.msra.mxu0 %v592
        %699 = vmatprep.subr.bf16.mxu0 0
        %700 = vmatpush1.bf16.msra.mxu0 %v593
        %701 = vmatprep.subr.bf16.mxu0 0
        %702 = vmatpush1.bf16.msra.mxu0 %v594
        %703 = vmatprep.subr.bf16.mxu0 0
        %704 = vmatpush1.bf16.msra.mxu0 %v595
        %705 = vmatprep.subr.bf16.mxu0 0
        %706 = vmatpush1.bf16.msra.mxu0 %v596
        %707 = vmatprep.subr.bf16.mxu0 0
        %708 = vmatpush1.bf16.msra.mxu0 %v597
        %709 = vmatprep.subr.bf16.mxu0 0
        %710 = vmatpush1.bf16.msra.mxu0 %v598
        %711 = vmatprep.subr.bf16.mxu0 0
        %712 = vmatpush1.bf16.msra.mxu0 %v599
        %713 = vmatprep.subr.bf16.mxu0 0
        %714 = vmatpush1.bf16.msra.mxu0 %v600
        %715 = vmatprep.subr.bf16.mxu0 0
        %716 = vmatpush1.bf16.msra.mxu0 %v601
        %717 = vmatprep.subr.bf16.mxu0 0
        %718 = vmatpush1.bf16.msra.mxu0 %v602
        %719 = vmatprep.subr.bf16.mxu0 0
        %720 = vmatpush1.bf16.msra.mxu0 %v603
        %721 = vmatprep.subr.bf16.mxu0 0
        %722 = vmatpush1.bf16.msra.mxu0 %v604
        %723 = vmatprep.subr.bf16.mxu0 0
        %724 = vmatpush1.bf16.msra.mxu0 %v605
        %725 = vmatprep.subr.bf16.mxu0 0
        %726 = vmatpush1.bf16.msra.mxu0 %v606
        %727 = vmatprep.subr.bf16.mxu0 0
        %728 = vmatpush1.bf16.msra.mxu0 %v607
        %729 = vmatprep.mubr.bf16.mxu0 %v427
        %730 = vmatmul.mubr.bf16.gmra.mrb[0].mxu0 %v426
        %v731 = vpop.f32.mrb[0].mxu0
        %v732 = vadd.f32 %v675, %v731
        %v733 = vpop.f32.mrb[0].mxu0
        %v734 = vpop.f32.mrb[0].mxu0
        %v735 = vadd.f32 %v678, %v734
        %v736 = vpop.f32.mrb[0].mxu0
        %737 = vmatprep.mubr.bf16.mxu0 %v431
        %738 = vmatmul.mubr.bf16.gmra.mrb[0].mxu0 %v430
        %v739 = vpop.f32.mrb[0].mxu0
        %v740 = vadd.f32 %v683, %v739
        %v741 = vpop.f32.mrb[0].mxu0
        %v742 = vpop.f32.mrb[0].mxu0
        %v743 = vadd.f32 %v686, %v742
        %v744 = vpop.f32.mrb[0].mxu0
        %745 = vmatprep.mubr.bf16.mxu0 %v435
        %746 = vmatmul.mubr.bf16.gmra.mrb[0].mxu0 %v434
        %v747 = vpop.f32.mrb[0].mxu0
        %v748 = vadd.f32 %v691, %v747
        %v749 = vpop.f32.mrb[0].mxu0
        %v750 = vpop.f32.mrb[0].mxu0
        %v751 = vadd.f32 %v694, %v750
        %v752 = vpop.f32.mrb[0].mxu0
        %753 = vdwg.mxu0
        %v754 = vadd.f32 %v306, %v732
        %v755 = vadd.f32 %v307, %v735
        %v756 = vadd.f32 %v308, %v740
        %v757 = vadd.f32 %v309, %v743
        %v758 = vadd.f32 %v310, %v748
        %v759 = vadd.f32 %v311, %v751
        %760 = vst [vmem:[#allocation2] sm:$0xff] %v754
        %761 = vst [vmem:[#allocation2 + $0x8] sm:$0xff] %v755
        %762 = vst [vmem:[#allocation2 + $0x10] sm:$0xff] %v756
        %763 = vst [vmem:[#allocation2 + $0x18] sm:$0xff] %v757
        %764 = vst [vmem:[#allocation2 + $0x20] sm:$0xff] %v758
        %765 = vst [vmem:[#allocation2 + $0x28] sm:$0xff] %v759
        %p766 = scmp.eq.s32.totalorder %s21, 1
        // Predicated region
        $region60: #{flux_forward.30} parent=50 // pred_check
          %p767 = pneg %p766
        $region61: #{flux_forward.30} parent=50 // pred_check_branch
          %769 = sbr.rel (%p767) target = $region63
        $region62: #{flux_forward.30} parent=50 // pred_region
          %v770 = vld [vmem:[#allocation2] sm:$0xff]
          %v771 = vld [vmem:[#allocation2 + $0x8] sm:$0xff]
          %v772 = vld [vmem:[#allocation2 + $0x10] sm:$0xff]
          %v773 = vld [vmem:[#allocation2 + $0x18] sm:$0xff]
          %v774 = vld [vmem:[#allocation2 + $0x20] sm:$0xff]
          %v775 = vld [vmem:[#allocation2 + $0x28] sm:$0xff]
          %v776 = vld [vmem:[%s285] sm:$0x1]
          %v778 = vlaneseq
          %v779 = vshrl.u32 %v778, 7
          %v780 = vsub.s32 0, %v779
          %v781 = vrot.slane %v776, %v780
          %v783 = vadd.f32 %v770, %v781
          %v784 = vadd.f32 %v771, %v781
          %v785 = vadd.f32 %v772, %v781
          %v786 = vadd.f32 %v773, %v781
          %v787 = vadd.f32 %v774, %v781
          %v788 = vadd.f32 %v775, %v781
          %789 = vst [vmem:[%s293] sm:$0xff] %v783
          %790 = vst [vmem:[%s293 + $0x8] sm:$0xff] %v784
          %791 = vst [vmem:[%s293 + $0x10] sm:$0xff] %v785
          %792 = vst [vmem:[%s293 + $0x18] sm:$0xff] %v786
          %793 = vst [vmem:[%s293 + $0x20] sm:$0xff] %v787
          %794 = vst [vmem:[%s293 + $0x28] sm:$0xff] %v788
        $region63: #{flux_forward.30} parent=50 // pred_fallthru
          _
        %s795 = smul.u32 6, %s19
        %p796 = scmp.lt.s32.totalorder %s795, 5
        %s797 = scalar_select %p796, %s795, 5
        %p798 = scmp.lt.s32.totalorder %s20, 0
        %s799 = scalar_select %p798, %s20, 0
        %s800 = sadd.s32 %s799, %s797
        %s801 = smul.addr %s800, 8
        %s802 = scalar_lea.vmem %s3, %s801
        // Predicated region
        $region64: #{flux_forward.30} parent=50 // pred_check
          %p803 = pneg %p135
        $region65: #{flux_forward.30} parent=50 // pred_check_branch
          %805 = sbr.rel (%p803) target = $region67
        $region66: #{flux_forward.30} parent=50 // pred_region
          %s806 = smul.u32 6, %s19
        $region67: #{flux_forward.30} parent=50 // pred_fallthru
          _
        // Predicated region
        $region68: #{flux_forward.30} parent=50 // pred_check
          %p807 = pneg %p135
        $region69: #{flux_forward.30} parent=50 // pred_check_branch
          %809 = sbr.rel (%p807) target = $region71
        $region70: #{flux_forward.30} parent=50 // pred_region
          %s810 = smul.u32 6, %s19
          %p811 = scmp.lt.s32.totalorder %s810, 5
          %s812 = scalar_select %p811, %s810, 5
          %p813 = scmp.lt.s32.totalorder %s20, 0
          %s814 = scalar_select %p813, %s20, 0
          %s815 = sadd.s32 %s814, %s812
          %s816 = smul.addr %s815, 8
          %s817 = scalar_lea.vmem %s3, %s816
        $region71: #{flux_forward.30} parent=50 // pred_fallthru
          _
      $region51: #{flux_forward.30} parent=5 // pred_fallthru
        _
      %p818 = scmp.le.s32.totalorder 2, %s9
      // Predicated region
      $region72: #{flux_forward.30} parent=5 // pred_check
        %p819 = pneg %p818
      $region73: #{flux_forward.30} parent=5 // pred_check_branch
        %821 = sbr.rel (%p819) target = $region75
      $region74: #{flux_forward.30} parent=5 // pred_region
        %s822 = ssub.s32 %s9, 2
      $region75: #{flux_forward.30} parent=5 // pred_fallthru
        _
    $region6: #{flux_forward.30} parent=1 // loop_footer
      %s13 = sadd.s32 1, %s9
    $region7: #{flux_forward.30} parent=1 // loop_footer_branch
      %8 = sbr.rel target = $region3
    $region8: #{flux_forward.30} parent=1 // loop_exit
      _

// kernel: flux_forward.31
$region0: #{flux_forward.31}
  #allocation0 [shape = 'u32[]', space=smem, size = 0x4, offset = 0x4, fixed_abs, tag = 'smem constant byte address 0x4 - core index']
  #allocation1 [shape = 'u32[144,128]{1,0:T(1,128)}', space=vmem, size = 0x12000, scoped, tag = 'internal scratch']
  #allocation2 [shape = 'f32[32,128]{1,0:T(8,128)}', space=vmem, size = 0x4000, scoped, tag = 'scratch operand']
  %s0 = inlined_call_operand.vmem [shape: bf16[32,128], index: 0, kind: input, shape index: {}]
  %s1 = inlined_call_operand.vmem [shape: bf16[128,128], index: 1, kind: input, shape index: {}]
  %s2 = inlined_call_operand.vmem [shape: f32[1,128], index: 2, kind: input, shape index: {}]
  %s3 = inlined_call_operand.hbm [shape: f32[32,128], index: 3, kind: output, shape index: {}]
  %s4 = sld [smem:[#allocation0]]
  $region30: #{flux_forward.31} parent=0
    _
  %s6 = ssub.s32 1, %s4
  %s7 = scalar_select 0, %s6, %s4
  $region1: #{flux_forward.31} parent=0
    #allocation3 [shape = 'u8[16384]{0}', space=vmem, size = 0x4000, scoped, tag = 'output window, operand 0, single buffered']
    #allocation4 [shape = 's32[1]{0}', space=sflag, size = 0x4, scoped, tag = 'scoped memory for flux_forward.31']
    %8 = vsyncpa [#allocation4], 0
    // Predicated region
    $region2: #{flux_forward.31} parent=1 // pred_check
      _
    $region3: #{flux_forward.31} parent=1 // pred_check_branch
      %10 = sbr.rel (0) target = $region5
    $region4: #{flux_forward.31} parent=1 // pred_region
      _
    $region5: #{flux_forward.31} parent=1 // pred_fallthru
      _
    // Predicated region
    $region6: #{flux_forward.31} parent=1 // pred_check
      _
    $region7: #{flux_forward.31} parent=1 // pred_check_branch
      %12 = sbr.rel (0) target = $region9
    $region8: #{flux_forward.31} parent=1 // pred_region
      _
    $region9: #{flux_forward.31} parent=1 // pred_fallthru
      _
    // Predicated region
    $region10: #{flux_forward.31} parent=1 // pred_check
      _
    $region11: #{flux_forward.31} parent=1 // pred_check_branch
      %14 = sbr.rel (0) target = $region13
    $region12: #{flux_forward.31} parent=1 // pred_region
      _
    $region13: #{flux_forward.31} parent=1 // pred_fallthru
      _
    %p16 = scmp.eq.s32.totalorder 0, 0
    // Predicated region
    $region14: #{flux_forward.31} parent=1 // pred_check
      %p17 = pneg %p16
    $region15: #{flux_forward.31} parent=1 // pred_check_branch
      %19 = sbr.rel (%p17) target = $region17
    $region16: #{flux_forward.31} parent=1 // pred_region
      %20 = vst [vmem:[#allocation2] sm:$0xff] 0.0
      %21 = vst [vmem:[#allocation2 + $0x8] sm:$0xff] 0.0
      %22 = vst [vmem:[#allocation2 + $0x10] sm:$0xff] 0.0
      %23 = vst [vmem:[#allocation2 + $0x18] sm:$0xff] 0.0
    $region17: #{flux_forward.31} parent=1 // pred_fallthru
      _
    %v24 = vld [vmem:[#allocation2] sm:$0xff]
    %v25 = vld [vmem:[#allocation2 + $0x8] sm:$0xff]
    %v26 = vld [vmem:[#allocation2 + $0x10] sm:$0xff]
    %v27 = vld [vmem:[#allocation2 + $0x18] sm:$0xff]
    %v28 = vld [vmem:[%s0] sm:$0xf]
    %v29 = vld [vmem:[%s0 + $0x4] sm:$0xf]
    %v30 = vld [vmem:[%s0 + $0x8] sm:$0xf]
    %v31 = vld [vmem:[%s0 + $0xc] sm:$0xf]
    %v32 = vld [vmem:[%s1] sm:$0xf]
    %v33 = vld [vmem:[%s1 + $0x4] sm:$0xf]
    %v34 = vld [vmem:[%s1 + $0x8] sm:$0xf]
    %v35 = vld [vmem:[%s1 + $0xc] sm:$0xf]
    %v36 = vld [vmem:[%s1 + $0x10] sm:$0xf]
    %v37 = vld [vmem:[%s1 + $0x14] sm:$0xf]
    %v38 = vld [vmem:[%s1 + $0x18] sm:$0xf]
    %v39 = vld [vmem:[%s1 + $0x1c] sm:$0xf]
    %v40 = vld [vmem:[%s1 + $0x20] sm:$0xf]
    %v41 = vld [vmem:[%s1 + $0x24] sm:$0xf]
    %v42 = vld [vmem:[%s1 + $0x28] sm:$0xf]
    %v43 = vld [vmem:[%s1 + $0x2c] sm:$0xf]
    %v44 = vld [vmem:[%s1 + $0x30] sm:$0xf]
    %v45 = vld [vmem:[%s1 + $0x34] sm:$0xf]
    %v46 = vld [vmem:[%s1 + $0x38] sm:$0xf]
    %v47 = vld [vmem:[%s1 + $0x3c] sm:$0xf]
    %v52 = vunpack.c.l.b16 %v28
    %v53 = vunpack.c.l.b16 %v29
    %v54 = vunpack.c.l.b16 %v30
    %v55 = vunpack.c.l.b16 %v31
    %v56 = vpack.c.b16 %v53, %v52
    %v57 = vpack.c.b16 %v55, %v54
    %v76 = vunpack.c.l.b16 %v32
    %v77 = vunpack.c.l.b16 %v33
    %v78 = vunpack.c.l.b16 %v34
    %v79 = vunpack.c.l.b16 %v35
    %v80 = vunpack.c.l.b16 %v36
    %v81 = vunpack.c.l.b16 %v37
    %v82 = vunpack.c.l.b16 %v38
    %v83 = vunpack.c.l.b16 %v39
    %v84 = vunpack.c.l.b16 %v40
    %v85 = vunpack.c.l.b16 %v41
    %v86 = vunpack.c.l.b16 %v42
    %v87 = vunpack.c.l.b16 %v43
    %v88 = vunpack.c.l.b16 %v44
    %v89 = vunpack.c.l.b16 %v45
    %v90 = vunpack.c.l.b16 %v46
    %v91 = vunpack.c.l.b16 %v47
    %v92 = vpack.c.b16 %v77, %v76
    %v93 = vpack.c.b16 %v79, %v78
    %v94 = vpack.c.b16 %v81, %v80
    %v95 = vpack.c.b16 %v83, %v82
    %v96 = vpack.c.b16 %v85, %v84
    %v97 = vpack.c.b16 %v87, %v86
    %v98 = vpack.c.b16 %v89, %v88
    %v99 = vpack.c.b16 %v91, %v90
    %108 = vmatprep.subr.bf16.mxu0 0
    %109 = vmatpush1.bf16.msra.mxu0 %v92
    %110 = vmatprep.subr.bf16.mxu0 0
    %111 = vmatpush1.bf16.msra.mxu0 %v93
    %112 = vmatprep.subr.bf16.mxu0 0
    %113 = vmatpush1.bf16.msra.mxu0 %v94
    %114 = vmatprep.subr.bf16.mxu0 0
    %115 = vmatpush1.bf16.msra.mxu0 %v95
    %116 = vmatprep.subr.bf16.mxu0 0
    %117 = vmatpush1.bf16.msra.mxu0 %v96
    %118 = vmatprep.subr.bf16.mxu0 0
    %119 = vmatpush1.bf16.msra.mxu0 %v97
    %120 = vmatprep.subr.bf16.mxu0 0
    %121 = vmatpush1.bf16.msra.mxu0 %v98
    %122 = vmatprep.subr.bf16.mxu0 0
    %123 = vmatpush1.bf16.msra.mxu0 %v99
    %124 = vmatprep.subr.bf16.mxu0 0
    %125 = vmatpush1.bf16.msra.mxu0 0
    %126 = vmatprep.subr.bf16.mxu0 0
    %127 = vmatpush1.bf16.msra.mxu0 0
    %128 = vmatprep.subr.bf16.mxu0 0
    %129 = vmatpush1.bf16.msra.mxu0 0
    %130 = vmatprep.subr.bf16.mxu0 0
    %131 = vmatpush1.bf16.msra.mxu0 0
    %132 = vmatprep.subr.bf16.mxu0 0
    %133 = vmatpush1.bf16.msra.mxu0 0
    %134 = vmatprep.subr.bf16.mxu0 0
    %135 = vmatpush1.bf16.msra.mxu0 0
    %136 = vmatprep.subr.bf16.mxu0 0
    %137 = vmatpush1.bf16.msra.mxu0 0
    %138 = vmatprep.subr.bf16.mxu0 0
    %139 = vmatpush1.bf16.msra.mxu0 0
    %140 = vmatprep.mubr.bf16.mxu0 0
    %141 = vmatmul.mubr.bf16.gmra.mrb[0].mxu0 %v56
    %v142 = vpop.f32.mrb[0].mxu0
    %v143 = vadd.f32 0.0, %v142
    %v144 = vpop.f32.mrb[0].mxu0
    %v145 = vpop.f32.mrb[0].mxu0
    %v146 = vadd.f32 0.0, %v145
    %v147 = vpop.f32.mrb[0].mxu0
    %148 = vmatprep.mubr.bf16.mxu0 0
    %149 = vmatmul.mubr.bf16.gmra.mrb[0].mxu0 %v57
    %v150 = vpop.f32.mrb[0].mxu0
    %v151 = vadd.f32 0.0, %v150
    %v152 = vpop.f32.mrb[0].mxu0
    %v153 = vpop.f32.mrb[0].mxu0
    %v154 = vadd.f32 0.0, %v153
    %v155 = vpop.f32.mrb[0].mxu0
    %156 = vdwg.mxu0
    %v157 = vadd.f32 %v24, %v143
    %v158 = vadd.f32 %v25, %v146
    %v159 = vadd.f32 %v26, %v151
    %v160 = vadd.f32 %v27, %v154
    %161 = vst [vmem:[#allocation2] sm:$0xff] %v157
    %162 = vst [vmem:[#allocation2 + $0x8] sm:$0xff] %v158
    %163 = vst [vmem:[#allocation2 + $0x10] sm:$0xff] %v159
    %164 = vst [vmem:[#allocation2 + $0x18] sm:$0xff] %v160
    // Predicated region
    $region18: #{flux_forward.31} parent=1 // pred_check
      %p165 = pneg %p16
    $region19: #{flux_forward.31} parent=1 // pred_check_branch
      %167 = sbr.rel (%p165) target = $region21
    $region20: #{flux_forward.31} parent=1 // pred_region
      %v168 = vld [vmem:[#allocation2] sm:$0xff]
      %v169 = vld [vmem:[#allocation2 + $0x8] sm:$0xff]
      %v170 = vld [vmem:[#allocation2 + $0x10] sm:$0xff]
      %v171 = vld [vmem:[#allocation2 + $0x18] sm:$0xff]
      %v172 = vld [vmem:[%s2] sm:$0x1]
      %v174 = vlaneseq
      %v175 = vshrl.u32 %v174, 7
      %v176 = vsub.s32 0, %v175
      %v177 = vrot.slane %v172, %v176
      %v179 = vadd.f32 %v168, %v177
      %v180 = vadd.f32 %v169, %v177
      %v181 = vadd.f32 %v170, %v177
      %v182 = vadd.f32 %v171, %v177
      %183 = vst [vmem:[#allocation3] sm:$0xff] %v179
      %184 = vst [vmem:[#allocation3 + $0x8] sm:$0xff] %v180
      %185 = vst [vmem:[#allocation3 + $0x10] sm:$0xff] %v181
      %186 = vst [vmem:[#allocation3 + $0x18] sm:$0xff] %v182
    $region21: #{flux_forward.31} parent=1 // pred_fallthru
      _
    // Predicated region
    $region22: #{flux_forward.31} parent=1 // pred_check
      _
    $region23: #{flux_forward.31} parent=1 // pred_check_branch
      %188 = sbr.rel (0) target = $region25
    $region24: #{flux_forward.31} parent=1 // pred_region
      %s190 = ssub.s32 512, 512
      %191 = vsyncadd [#allocation4], %s190
      %s192 = sshll.u32 [#allocation3], 4
      %s193 = int_to_ptr.vmem [resolvable:$true] %s192
      %198 = dma.vmem_to_hbm [thread:$0]  %s193, 512, %s3, [#allocation4], 128, 128, 8
    $region25: #{flux_forward.31} parent=1 // pred_fallthru
      _
    // Predicated region
    $region26: #{flux_forward.31} parent=1 // pred_check
      _
    $region27: #{flux_forward.31} parent=1 // pred_check_branch
      %200 = sbr.rel (0) target = $region29
    $region28: #{flux_forward.31} parent=1 // pred_region
      %201 = dma.done [#allocation4], 512
    $region29: #{flux_forward.31} parent=1 // pred_fallthru
      _
    %202 = vsyncpa [#allocation4], 1

</llo_original>
